<compile_context>
chip_gen: v5e
topology: v5e:2x2
jax: 0.10.0
libtpu: 0.0.40
codegen_flags: <defaults>
</compile_context>

<pallas_src>
import functools

import numpy as np
import jax
import jax.numpy as jnp
from jax.experimental import pallas as pl
from jax.experimental.pallas import tpu as pltpu


LANE = 128
LEAKY_SLOPE = 0.1  # matches nn.LeakyReLU(0.1) in the reference builder
BN_EPS = 1e-5


def _pad_to_lane(c):
    return ((c + LANE - 1) // LANE) * LANE


# ----------------------------------------------------------------------------
# Pallas kernels
# ----------------------------------------------------------------------------

def _conv_bn_act_kernel(*refs, leaky, has_res):
    """Fused conv-as-GEMM + training-mode BatchNorm + LeakyReLU (+ residual).

    Single full-extent block (grid=1): BN statistics need every row, and at
    these sizes fixed per-call / per-grid-step overhead dominates anyway.
    """
    if has_res:
        a_ref, w_ref, g_ref, b_ref, r_ref, o_ref = refs
    else:
        a_ref, w_ref, g_ref, b_ref, o_ref = refs
    # bf16 operands, f32 accumulation on the MXU.
    y = jnp.dot(a_ref[...], w_ref[...], preferred_element_type=jnp.float32)
    # PyTorch-default training-mode BatchNorm: batch statistics, biased var.
    mean = jnp.mean(y, axis=0, keepdims=True)
    var = jnp.mean(jnp.square(y - mean), axis=0, keepdims=True)
    scale = g_ref[...] * jax.lax.rsqrt(var + BN_EPS)
    out = (y - mean) * scale + b_ref[...]
    if leaky:
        out = jnp.where(out > 0, out, LEAKY_SLOPE * out)
    if has_res:
        out = out + r_ref[...]
    o_ref[...] = out


def _conv_bias_act_kernel(a_ref, w_ref, b_ref, o_ref, *, leaky):
    y = jnp.dot(a_ref[...], w_ref[...], preferred_element_type=jnp.float32)
    y = y + b_ref[...]
    if leaky:
        y = jnp.where(y > 0, y, LEAKY_SLOPE * y)
    o_ref[...] = y


def _add_kernel(a_ref, b_ref, o_ref):
    o_ref[...] = a_ref[...] + b_ref[...]


def conv_bn_act(a, w, gamma, beta, residual, leaky):
    """a: [M, K] bf16, w: [K, Np] bf16, gamma/beta: [1, Np] f32,
    residual: [M, Np] f32 or None."""
    m, k = a.shape
    n = w.shape[1]
    has_res = residual is not None
    in_specs = [
        pl.BlockSpec((m, k), lambda i: (0, 0)),
        pl.BlockSpec((k, n), lambda i: (0, 0)),
        pl.BlockSpec((1, n), lambda i: (0, 0)),
        pl.BlockSpec((1, n), lambda i: (0, 0)),
    ]
    args = [a, w, gamma, beta]
    if has_res:
        in_specs.append(pl.BlockSpec((m, n), lambda i: (0, 0)))
        args.append(residual)
    return pl.pallas_call(
        functools.partial(_conv_bn_act_kernel, leaky=leaky, has_res=has_res),
        out_shape=jax.ShapeDtypeStruct((m, n), jnp.float32),
        grid=(1,),
        in_specs=in_specs,
        out_specs=pl.BlockSpec((m, n), lambda i: (0, 0)),
    )(*args)


def conv_bias_act(a, w, bias, leaky):
    """a: [M, K] bf16, w: [K, Np] bf16, bias: [1, Np] f32."""
    m, k = a.shape
    n = w.shape[1]
    # 2-way row split (when legal) so v7x's two TensorCores both get work;
    # otherwise a single full block — launch overhead dominates at these sizes.
    tm = m // 2 if (m % 16 == 0 and m >= 16) else m
    return pl.pallas_call(
        functools.partial(_conv_bias_act_kernel, leaky=leaky),
        out_shape=jax.ShapeDtypeStruct((m, n), jnp.float32),
        grid=(m // tm,),
        in_specs=[
            pl.BlockSpec((tm, k), lambda i: (i, 0)),
            pl.BlockSpec((k, n), lambda i: (0, 0)),
            pl.BlockSpec((1, n), lambda i: (0, 0)),
        ],
        out_specs=pl.BlockSpec((tm, n), lambda i: (i, 0)),
        compiler_params=pltpu.CompilerParams(dimension_semantics=("parallel",)),
    )(a, w, bias)


def shortcut_add(a, b):
    """Fallback elementwise residual add (used only when the shortcut cannot be
    fused into the preceding conv's epilogue)."""
    n, h, w, c = a.shape
    m = n * h * w
    tm = m // 2 if (m % 16 == 0 and m >= 16) else m
    out = pl.pallas_call(
        _add_kernel,
        out_shape=jax.ShapeDtypeStruct((m, c), jnp.float32),
        grid=(m // tm,),
        in_specs=[
            pl.BlockSpec((tm, c), lambda i: (i, 0)),
            pl.BlockSpec((tm, c), lambda i: (i, 0)),
        ],
        out_specs=pl.BlockSpec((tm, c), lambda i: (i, 0)),
        compiler_params=pltpu.CompilerParams(dimension_semantics=("parallel",)),
    )(a.reshape(m, c), b.reshape(m, c))
    return out.reshape(n, h, w, c)


# ----------------------------------------------------------------------------
# Conv layer = im2col (glue) + fused Pallas GEMM/BN/bias/act(/residual)
# ----------------------------------------------------------------------------

def conv_layer(x, p, residual=None):
    """x: NHWC float32 with p['cin_stored'] channels (lane-padded upstream).
    residual: [M, cout_pad] f32 or None."""
    n, h, w, cs = x.shape
    k, s, pad = p['k'], p['stride'], p['pad']
    assert cs == p['cin_stored'], (cs, p['cin_stored'])

    xp = jnp.pad(x, ((0, 0), (pad, pad), (pad, pad), (0, 0))) if pad else x
    hp, wp = h + 2 * pad, w + 2 * pad
    ho = (hp - k) // s + 1
    wo = (wp - k) // s + 1

    if k == 1 and s == 1:
        a = xp
    else:
        # im2col patches; channel order (kh, kw, cin) matches wmat layout.
        # TODO(synk): at production resolutions loop kh,kw inside the kernel
        # instead of materializing the k*k-expanded tensor in HBM.
        patches = [xp[:, kh:kh + s * (ho - 1) + 1:s,
                      kw:kw + s * (wo - 1) + 1:s, :]
                   for kh in range(k) for kw in range(k)]
        a = patches[0] if len(patches) == 1 else jnp.concatenate(patches, axis=-1)

    m = n * ho * wo
    a = a.reshape(m, k * k * cs).astype(jnp.bfloat16)   # bf16 MXU operand

    if p['bn']:
        y = conv_bn_act(a, p['wmat'], p['gamma'], p['beta'], residual,
                        leaky=(p['activation'] == 'leaky'))
    else:
        assert residual is None
        y = conv_bias_act(a, p['wmat'], p['bias'],
                          leaky=(p['activation'] == 'leaky'))
    return y.reshape(n, ho, wo, p['cout_pad'])


# ----------------------------------------------------------------------------
# YOLO head decode (plain JAX glue)
# ----------------------------------------------------------------------------

def yolo_decode(x_nhwc, p, img_dim):
    # TODO(synk): YOLOLayer source was not provided; this is the standard
    # YOLOv3 inference decode (sigmoid xy/conf/cls, exp wh * anchors).
    n, h, w, c = x_nhwc.shape
    anchors = jnp.asarray(p['anchors'], jnp.float32)
    na = anchors.shape[0]
    nc = p['num_classes']
    attrs = 5 + nc
    stride = float(img_dim) / float(h)

    x = jnp.transpose(x_nhwc, (0, 3, 1, 2))                        # mimic torch.view on NCHW
    pred = x.reshape(n, na, attrs, h, w).transpose(0, 1, 3, 4, 2)  # [N,A,H,W,attrs]

    gx = jnp.arange(w, dtype=jnp.float32).reshape(1, 1, 1, w)
    gy = jnp.arange(h, dtype=jnp.float32).reshape(1, 1, h, 1)
    scaled = anchors / stride
    aw = scaled[:, 0].reshape(1, na, 1, 1)
    ah = scaled[:, 1].reshape(1, na, 1, 1)

    bx = jax.nn.sigmoid(pred[..., 0]) + gx
    by = jax.nn.sigmoid(pred[..., 1]) + gy
    bw = jnp.exp(pred[..., 2]) * aw
    bh = jnp.exp(pred[..., 3]) * ah
    conf = jax.nn.sigmoid(pred[..., 4])
    cls = jax.nn.sigmoid(pred[..., 5:])

    boxes = jnp.stack([bx, by, bw, bh], axis=-1) * stride
    out = jnp.concatenate([boxes, conf[..., None], cls], axis=-1)
    return out.reshape(n, na * h * w, attrs)


# ----------------------------------------------------------------------------
# Model definition (mini YOLOv3-style cfg) and parameter construction
# ----------------------------------------------------------------------------

ANCHORS_STR = '10,13, 16,30, 33,23, 30,61, 62,45, 59,119'

MODULE_DEFS = [
    {'type': 'net', 'channels': '3', 'height': '16', 'width': '16'},
    {'type': 'convolutional', 'batch_normalize': '1', 'filters': '16', 'size': '3', 'stride': '1', 'pad': '1', 'activation': 'leaky'},
    {'type': 'convolutional', 'batch_normalize': '1', 'filters': '32', 'size': '3', 'stride': '2', 'pad': '1', 'activation': 'leaky'},
    {'type': 'convolutional', 'batch_normalize': '1', 'filters': '16', 'size': '1', 'stride': '1', 'pad': '1', 'activation': 'leaky'},
    {'type': 'convolutional', 'batch_normalize': '1', 'filters': '32', 'size': '3', 'stride': '1', 'pad': '1', 'activation': 'leaky'},
    {'type': 'shortcut', 'from': '-3', 'activation': 'linear'},
    {'type': 'convolutional', 'batch_normalize': '1', 'filters': '64', 'size': '3', 'stride': '2', 'pad': '1', 'activation': 'leaky'},
    {'type': 'convolutional', 'batch_normalize': '1', 'filters': '32', 'size': '1', 'stride': '1', 'pad': '1', 'activation': 'leaky'},
    {'type': 'convolutional', 'batch_normalize': '0', 'filters': '30', 'size': '1', 'stride': '1', 'pad': '1', 'activation': 'linear'},
    {'type': 'yolo', 'mask': '3,4,5', 'anchors': ANCHORS_STR, 'classes': '5', 'num': '6'},
    {'type': 'route', 'layers': '-3'},
    {'type': 'convolutional', 'batch_normalize': '1', 'filters': '16', 'size': '1', 'stride': '1', 'pad': '1', 'activation': 'leaky'},
    {'type': 'upsample', 'stride': '2'},
    {'type': 'route', 'layers': '-1,4'},
    {'type': 'convolutional', 'batch_normalize': '1', 'filters': '32', 'size': '3', 'stride': '1', 'pad': '1', 'activation': 'leaky'},
    {'type': 'convolutional', 'batch_normalize': '0', 'filters': '30', 'size': '1', 'stride': '1', 'pad': '1', 'activation': 'linear'},
    {'type': 'yolo', 'mask': '0,1,2', 'anchors': ANCHORS_STR, 'classes': '5', 'num': '6'},
]


def _pack_weight(w, cin_stored, cout_pad):
    """PyTorch [Cout, Cin, KH, KW] -> bf16 [KH*KW*Cin_stored, Cout_pad],
    zero-padded on both channel axes, pre-laid-out for the MXU GEMM."""
    cout, cin, kh, kw = w.shape
    wp = jnp.zeros((cout_pad, cin_stored, kh, kw), jnp.float32)
    wp = wp.at[:cout, :cin].set(w)
    wmat = jnp.transpose(wp, (2, 3, 1, 0)).reshape(kh * kw * cin_stored, cout_pad)
    return wmat.astype(jnp.bfloat16)


def _pad_vec(v, n_pad):
    out = jnp.zeros((1, n_pad), jnp.float32)
    return out.at[0, :v.shape[0]].set(v)


def build_params(module_defs, cls_num, key):
    """Mirrors create_model(): same bookkeeping, including replacement of the
    conv preceding each 'yolo' layer by a plain bias conv with padding=0.
    Weights are pre-packed (lane-padded, transposed, bf16) here so the forward
    path never re-lays-out constants."""
    defs = [dict(d) for d in module_defs]
    hyper = defs.pop(0)
    in_ch = int(hyper['channels'])

    params = []
    true_ch = []     # true channel count of each layer's output
    stored_ch = []   # stored (lane-padded) channel count of each layer's output

    def prev_true():
        return true_ch[-1] if true_ch else in_ch

    def prev_stored():
        return stored_ch[-1] if stored_ch else in_ch

    for idx, d in enumerate(defs):
        t = d['type']
        if 'convolutional' in t:
            bn = int(d.get('batch_normalize', 0))
            filters = int(d['filters'])
            k = int(d['size'])
            pad = (k - 1) // 2 if int(d['pad']) else 0
            stride = int(d['stride'])
            cin_true = prev_true()
            cin_stored = prev_stored()
            cout_pad = _pad_to_lane(filters)
            key, wk, k1, k2 = jax.random.split(key, 4)
            w = jax.random.normal(wk, (filters, cin_true, k, k), jnp.float32) / np.sqrt(cin_true * k * k)
            p = dict(type='convolutional', wmat=_pack_weight(w, cin_stored, cout_pad),
                     k=k, stride=stride, pad=pad,
                     cin_true=cin_true, cin_stored=cin_stored,
                     cout_true=filters, cout_pad=cout_pad,
                     bn=bn, activation=d['activation'], residual_from=None)
            if bn:
                g = 1.0 + 0.1 * jax.random.normal(k1, (filters,), jnp.float32)
                b = 0.1 * jax.random.normal(k2, (filters,), jnp.float32)
                p['gamma'] = _pad_vec(g, cout_pad)
                p['beta'] = _pad_vec(b, cout_pad)
            else:
                b = 0.1 * jax.random.normal(k1, (filters,), jnp.float32)
                p['bias'] = _pad_vec(b, cout_pad)
            true_ch.append(filters)
            stored_ch.append(cout_pad)
        elif t == 'upsample':
            p = dict(type='upsample', stride=int(d['stride']))
            true_ch.append(prev_true())
            stored_ch.append(prev_stored())
        elif 'route' in t:
            layers = [int(l) for l in d['layers'].split(',')]
            abs_layers = [l if l >= 0 else idx + l for l in layers]
            t_sum = sum(true_ch[a] for a in abs_layers)
            p = dict(type='route', layers=abs_layers)
            true_ch.append(t_sum)
            stored_ch.append(t_sum)   # route concatenates true-width slices
        elif 'shortcut' in t:
            frm = int(d['from'])
            abs_frm = idx + frm if frm < 0 else frm
            p = dict(type='shortcut', frm=abs_frm, fused=False)
            true_ch.append(true_ch[abs_frm])
            stored_ch.append(stored_ch[-1])
        elif t == 'yolo':
            anchor_index = [int(l) for l in d['mask'].split(',')]
            anchors = [float(a) for a in d['anchors'].split(',')]
            anchors = [(anchors[j], anchors[j + 1]) for j in range(0, len(anchors), 2)]
            anchors = [anchors[j] for j in anchor_index]
            num_classes = cls_num if cls_num is not None else int(d['classes'])
            attr_num = 4 + 1 + num_classes
            new_cout = attr_num * len(anchors)
            prev = params[-1]
            kp, sp = prev['k'], prev['stride']
            cin_true, cin_stored = prev['cin_true'], prev['cin_stored']
            cout_pad = _pad_to_lane(new_cout)
            key, wk, bk = jax.random.split(key, 3)
            w = jax.random.normal(wk, (new_cout, cin_true, kp, kp), jnp.float32) / np.sqrt(cin_true * kp * kp)
            b = 0.1 * jax.random.normal(bk, (new_cout,), jnp.float32)
            # replace the preceding conv: bias=True, padding defaults to 0
            params[-1] = dict(type='convolutional', wmat=_pack_weight(w, cin_stored, cout_pad),
                              bias=_pad_vec(b, cout_pad), k=kp, stride=sp, pad=0,
                              cin_true=cin_true, cin_stored=cin_stored,
                              cout_true=new_cout, cout_pad=cout_pad,
                              bn=0, activation='linear', residual_from=None)
            true_ch[-1] = new_cout
            stored_ch[-1] = cout_pad
            params[-1]['true_out'] = new_cout
            params[-1]['stored_out'] = cout_pad
            p = dict(type='yolo', anchors=anchors, num_classes=num_classes, in_true=new_cout)
            true_ch.append(new_cout)
            stored_ch.append(cout_pad)
        else:
            raise ValueError(t)
        p['true_out'] = true_ch[-1]
        p['stored_out'] = stored_ch[-1]
        params.append(p)

    # Fuse each shortcut into the preceding conv's epilogue when the pre-add
    # conv output is not referenced by any other route/shortcut.
    referenced = set()
    for p in params:
        if p['type'] == 'route':
            referenced.update(p['layers'])
        elif p['type'] == 'shortcut':
            referenced.add(p['frm'])
    for i, p in enumerate(params):
        if p['type'] == 'shortcut':
            j = i - 1
            if (j >= 0 and params[j]['type'] == 'convolutional'
                    and params[j]['bn']
                    and j not in referenced
                    and true_ch[j] == true_ch[p['frm']]
                    and stored_ch[j] == stored_ch[p['frm']]):
                params[j]['residual_from'] = p['frm']
                p['fused'] = True
    return params


# ----------------------------------------------------------------------------
# DarkNet forward (inference, target=None)
# ----------------------------------------------------------------------------

def darknet_forward(x_nchw, params, img_dim):
    x = jnp.transpose(x_nchw.astype(jnp.float32), (0, 2, 3, 1))   # NCHW -> NHWC
    layer_outputs = []
    outputs = []
    for i, p in enumerate(params):
        t = p['type']
        if t == 'convolutional':
            res = None
            if p.get('residual_from') is not None:
                src = layer_outputs[p['residual_from']]
                nb, hb, wb, cb = src.shape
                res = src.reshape(nb * hb * wb, cb)
            x = conv_layer(x, p, res)
        elif t == 'route':
            x = jnp.concatenate(
                [layer_outputs[l][..., :params[l]['true_out']] for l in p['layers']],
                axis=-1)
        elif t == 'shortcut':
            if p['fused']:
                x = layer_outputs[-1]   # residual already added in conv epilogue
            else:
                x = shortcut_add(layer_outputs[-1], layer_outputs[p['frm']])
        elif t == 'upsample':
            s = p['stride']
            x = jnp.repeat(jnp.repeat(layer_outputs[-1], s, axis=1), s, axis=2)
        elif t == 'yolo':
            x = yolo_decode(x[..., :p['in_true']], p, img_dim)
            if i != 82:   # kept verbatim from the reference forward
                outputs.append(x)
        layer_outputs.append(x)
    return jnp.concatenate(outputs, axis=1)


# ----------------------------------------------------------------------------
# Main
# ----------------------------------------------------------------------------

if __name__ == "__main__":
    key = jax.random.PRNGKey(0)
    key, pkey, xkey = jax.random.split(key, 3)

    params = build_params(MODULE_DEFS, cls_num=5, key=pkey)

    N, C, H, W = 2, 3, 16, 16
    x = jax.random.normal(xkey, (N, C, H, W), jnp.float32)   # PyTorch-style NCHW input

    fwd = jax.jit(lambda inp: darknet_forward(inp, params, img_dim=H))
    out = fwd(x)
    out = jax.block_until_ready(out)

    # expected: [N, 3*4*4 + 3*8*8, 5 + num_classes] = [2, 240, 10]
    assert out.shape == (2, 240, 10), out.shape
    assert bool(jnp.all(jnp.isfinite(out)))
    print("KERNEL_OK")
</pallas_src>

<mosaic_0001>
module attributes {stable_mosaic.version = 11 : i64} {
  func.func @_conv_bn_act_kernel(%arg0: i32, %arg1: memref<512x27xbf16, #tpu.memory_space<vmem>>, %arg2: memref<27x128xbf16, #tpu.memory_space<vmem>>, %arg3: memref<1x128xf32, #tpu.memory_space<vmem>>, %arg4: memref<1x128xf32, #tpu.memory_space<vmem>>, %arg5: memref<512x128xf32, #tpu.memory_space<vmem>>) attributes {dimension_semantics = [#tpu.dimension_semantics<arbitrary>], iteration_bounds = array<i64: 1>, scalar_prefetch = 0 : i64, scratch_operands = 0 : i64, tpu.core_type = #tpu.core_type<tc>, window_params = [{pipeline_mode = #tpu.pipeline_mode<synchronous>, transform_indices = @transform_0, window_bounds = array<i64: 512, 27>}, {pipeline_mode = #tpu.pipeline_mode<synchronous>, transform_indices = @transform_1, window_bounds = array<i64: 27, 128>}, {pipeline_mode = #tpu.pipeline_mode<synchronous>, transform_indices = @transform_2, window_bounds = array<i64: 1, 128>}, {pipeline_mode = #tpu.pipeline_mode<synchronous>, transform_indices = @transform_3, window_bounds = array<i64: 1, 128>}, {pipeline_mode = #tpu.pipeline_mode<synchronous>, transform_indices = @transform_4, window_bounds = array<i64: 512, 128>}]} {
    %c0 = arith.constant 0 : index
    %c0_0 = arith.constant 0 : index
    %0 = vector.load %arg1[%c0, %c0_0] : memref<512x27xbf16, #tpu.memory_space<vmem>>, vector<512x27xbf16>
    %c0_1 = arith.constant 0 : index
    %c0_2 = arith.constant 0 : index
    %1 = vector.load %arg2[%c0_1, %c0_2] : memref<27x128xbf16, #tpu.memory_space<vmem>>, vector<27x128xbf16>
    %cst = arith.constant dense<0.000000e+00> : vector<512x128xf32>
    %2 = tpu.matmul %0, %1, %cst {dimension_numbers = #tpu.dot_dimension_numbers<[1], [0], [0], [1], [0, 0, 1, 1], [], []>} : vector<512x27xbf16>, vector<27x128xbf16>, vector<512x128xf32> -> vector<512x128xf32>
    %cst_3 = arith.constant dense<0.000000e+00> : vector<128xf32>
    %3 = vector.multi_reduction <add>, %2, %cst_3 [0] : vector<512x128xf32> to vector<128xf32>
    %4 = vector.shape_cast %3 : vector<128xf32> to vector<1x128xf32>
    %cst_4 = arith.constant 5.120000e+02 : f32
    %5 = vector.broadcast %cst_4 : f32 to vector<1x128xf32>
    %6 = arith.divf %4, %5 : vector<1x128xf32>
    %7 = vector.broadcast %6 : vector<1x128xf32> to vector<512x128xf32>
    %8 = arith.subf %2, %7 : vector<512x128xf32>
    %9 = arith.mulf %8, %8 : vector<512x128xf32>
    %cst_5 = arith.constant dense<0.000000e+00> : vector<128xf32>
    %10 = vector.multi_reduction <add>, %9, %cst_5 [0] : vector<512x128xf32> to vector<128xf32>
    %11 = vector.shape_cast %10 : vector<128xf32> to vector<1x128xf32>
    %cst_6 = arith.constant 5.120000e+02 : f32
    %12 = vector.broadcast %cst_6 : f32 to vector<1x128xf32>
    %13 = arith.divf %11, %12 : vector<1x128xf32>
    %c0_7 = arith.constant 0 : index
    %c0_8 = arith.constant 0 : index
    %14 = vector.load %arg3[%c0_7, %c0_8] : memref<1x128xf32, #tpu.memory_space<vmem>>, vector<1x128xf32>
    %cst_9 = arith.constant 9.99999974E-6 : f32
    %15 = vector.broadcast %cst_9 : f32 to vector<1x128xf32>
    %16 = arith.addf %13, %15 : vector<1x128xf32>
    %17 = math.rsqrt %16 : vector<1x128xf32>
    %18 = arith.mulf %14, %17 : vector<1x128xf32>
    %19 = vector.broadcast %6 : vector<1x128xf32> to vector<512x128xf32>
    %20 = arith.subf %2, %19 : vector<512x128xf32>
    %21 = vector.broadcast %18 : vector<1x128xf32> to vector<512x128xf32>
    %22 = arith.mulf %20, %21 : vector<512x128xf32>
    %c0_10 = arith.constant 0 : index
    %c0_11 = arith.constant 0 : index
    %23 = vector.load %arg4[%c0_10, %c0_11] : memref<1x128xf32, #tpu.memory_space<vmem>>, vector<1x128xf32>
    %24 = vector.broadcast %23 : vector<1x128xf32> to vector<512x128xf32>
    %25 = arith.addf %22, %24 : vector<512x128xf32>
    %cst_12 = arith.constant 0.000000e+00 : f32
    %26 = vector.broadcast %cst_12 : f32 to vector<512x128xf32>
    %27 = arith.cmpf ogt, %25, %26 : vector<512x128xf32>
    %cst_13 = arith.constant 1.000000e-01 : f32
    %28 = vector.broadcast %cst_13 : f32 to vector<512x128xf32>
    %29 = arith.mulf %28, %25 : vector<512x128xf32>
    %30 = arith.select %27, %25, %29 : vector<512x128xi1>, vector<512x128xf32>
    %c0_14 = arith.constant 0 : index
    %c0_15 = arith.constant 0 : index
    %31 = vector.load %arg5[%c0_14, %c0_15] : memref<512x128xf32, #tpu.memory_space<vmem>>, vector<512x128xf32>
    tpu.vector_store %arg5[%c0_14, %c0_15], %30 {strides = array<i32>} : memref<512x128xf32, #tpu.memory_space<vmem>>, vector<512x128xf32>,
    return
  }
  func.func @transform_0(%arg0: i32) -> (i32, i32) {
    %c0_i32 = arith.constant 0 : i32
    %c0_i32_0 = arith.constant 0 : i32
    %c0_i32_1 = arith.constant 0 : i32
    return %c0_i32, %c0_i32_0 : i32, i32
  }
  func.func @transform_1(%arg0: i32) -> (i32, i32) {
    %c0_i32 = arith.constant 0 : i32
    %c0_i32_0 = arith.constant 0 : i32
    %c0_i32_1 = arith.constant 0 : i32
    return %c0_i32, %c0_i32_0 : i32, i32
  }
  func.func @transform_2(%arg0: i32) -> (i32, i32) {
    %c0_i32 = arith.constant 0 : i32
    %c0_i32_0 = arith.constant 0 : i32
    %c0_i32_1 = arith.constant 0 : i32
    return %c0_i32, %c0_i32_0 : i32, i32
  }
  func.func @transform_3(%arg0: i32) -> (i32, i32) {
    %c0_i32 = arith.constant 0 : i32
    %c0_i32_0 = arith.constant 0 : i32
    %c0_i32_1 = arith.constant 0 : i32
    return %c0_i32, %c0_i32_0 : i32, i32
  }
  func.func @transform_4(%arg0: i32) -> (i32, i32) {
    %c0_i32 = arith.constant 0 : i32
    %c0_i32_0 = arith.constant 0 : i32
    %c0_i32_1 = arith.constant 0 : i32
    return %c0_i32, %c0_i32_0 : i32, i32
  }
}

module attributes {stable_mosaic.version = 11 : i64} {
  func.func @_conv_bn_act_kernel(%arg0: i32, %arg1: memref<128x1152xbf16, #tpu.memory_space<vmem>>, %arg2: memref<1152x128xbf16, #tpu.memory_space<vmem>>, %arg3: memref<1x128xf32, #tpu.memory_space<vmem>>, %arg4: memref<1x128xf32, #tpu.memory_space<vmem>>, %arg5: memref<128x128xf32, #tpu.memory_space<vmem>>) attributes {dimension_semantics = [#tpu.dimension_semantics<arbitrary>], iteration_bounds = array<i64: 1>, scalar_prefetch = 0 : i64, scratch_operands = 0 : i64, tpu.core_type = #tpu.core_type<tc>, window_params = [{pipeline_mode = #tpu.pipeline_mode<synchronous>, transform_indices = @transform_0, window_bounds = array<i64: 128, 1152>}, {pipeline_mode = #tpu.pipeline_mode<synchronous>, transform_indices = @transform_1, window_bounds = array<i64: 1152, 128>}, {pipeline_mode = #tpu.pipeline_mode<synchronous>, transform_indices = @transform_2, window_bounds = array<i64: 1, 128>}, {pipeline_mode = #tpu.pipeline_mode<synchronous>, transform_indices = @transform_3, window_bounds = array<i64: 1, 128>}, {pipeline_mode = #tpu.pipeline_mode<synchronous>, transform_indices = @transform_4, window_bounds = array<i64: 128, 128>}]} {
    %c0 = arith.constant 0 : index
    %c0_0 = arith.constant 0 : index
    %0 = vector.load %arg1[%c0, %c0_0] : memref<128x1152xbf16, #tpu.memory_space<vmem>>, vector<128x1152xbf16>
    %c0_1 = arith.constant 0 : index
    %c0_2 = arith.constant 0 : index
    %1 = vector.load %arg2[%c0_1, %c0_2] : memref<1152x128xbf16, #tpu.memory_space<vmem>>, vector<1152x128xbf16>
    %cst = arith.constant dense<0.000000e+00> : vector<128x128xf32>
    %2 = tpu.matmul %0, %1, %cst {dimension_numbers = #tpu.dot_dimension_numbers<[1], [0], [0], [1], [0, 0, 1, 1], [], []>} : vector<128x1152xbf16>, vector<1152x128xbf16>, vector<128x128xf32> -> vector<128x128xf32>
    %cst_3 = arith.constant dense<0.000000e+00> : vector<128xf32>
    %3 = vector.multi_reduction <add>, %2, %cst_3 [0] : vector<128x128xf32> to vector<128xf32>
    %4 = vector.shape_cast %3 : vector<128xf32> to vector<1x128xf32>
    %cst_4 = arith.constant 1.280000e+02 : f32
    %5 = vector.broadcast %cst_4 : f32 to vector<1x128xf32>
    %6 = arith.divf %4, %5 : vector<1x128xf32>
    %7 = vector.broadcast %6 : vector<1x128xf32> to vector<128x128xf32>
    %8 = arith.subf %2, %7 : vector<128x128xf32>
    %9 = arith.mulf %8, %8 : vector<128x128xf32>
    %cst_5 = arith.constant dense<0.000000e+00> : vector<128xf32>
    %10 = vector.multi_reduction <add>, %9, %cst_5 [0] : vector<128x128xf32> to vector<128xf32>
    %11 = vector.shape_cast %10 : vector<128xf32> to vector<1x128xf32>
    %cst_6 = arith.constant 1.280000e+02 : f32
    %12 = vector.broadcast %cst_6 : f32 to vector<1x128xf32>
    %13 = arith.divf %11, %12 : vector<1x128xf32>
    %c0_7 = arith.constant 0 : index
    %c0_8 = arith.constant 0 : index
    %14 = vector.load %arg3[%c0_7, %c0_8] : memref<1x128xf32, #tpu.memory_space<vmem>>, vector<1x128xf32>
    %cst_9 = arith.constant 9.99999974E-6 : f32
    %15 = vector.broadcast %cst_9 : f32 to vector<1x128xf32>
    %16 = arith.addf %13, %15 : vector<1x128xf32>
    %17 = math.rsqrt %16 : vector<1x128xf32>
    %18 = arith.mulf %14, %17 : vector<1x128xf32>
    %19 = vector.broadcast %6 : vector<1x128xf32> to vector<128x128xf32>
    %20 = arith.subf %2, %19 : vector<128x128xf32>
    %21 = vector.broadcast %18 : vector<1x128xf32> to vector<128x128xf32>
    %22 = arith.mulf %20, %21 : vector<128x128xf32>
    %c0_10 = arith.constant 0 : index
    %c0_11 = arith.constant 0 : index
    %23 = vector.load %arg4[%c0_10, %c0_11] : memref<1x128xf32, #tpu.memory_space<vmem>>, vector<1x128xf32>
    %24 = vector.broadcast %23 : vector<1x128xf32> to vector<128x128xf32>
    %25 = arith.addf %22, %24 : vector<128x128xf32>
    %cst_12 = arith.constant 0.000000e+00 : f32
    %26 = vector.broadcast %cst_12 : f32 to vector<128x128xf32>
    %27 = arith.cmpf ogt, %25, %26 : vector<128x128xf32>
    %cst_13 = arith.constant 1.000000e-01 : f32
    %28 = vector.broadcast %cst_13 : f32 to vector<128x128xf32>
    %29 = arith.mulf %28, %25 : vector<128x128xf32>
    %30 = arith.select %27, %25, %29 : vector<128x128xi1>, vector<128x128xf32>
    %c0_14 = arith.constant 0 : index
    %c0_15 = arith.constant 0 : index
    %31 = vector.load %arg5[%c0_14, %c0_15] : memref<128x128xf32, #tpu.memory_space<vmem>>, vector<128x128xf32>
    tpu.vector_store %arg5[%c0_14, %c0_15], %30 {strides = array<i32>} : memref<128x128xf32, #tpu.memory_space<vmem>>, vector<128x128xf32>,
    return
  }
  func.func @transform_0(%arg0: i32) -> (i32, i32) {
    %c0_i32 = arith.constant 0 : i32
    %c0_i32_0 = arith.constant 0 : i32
    %c0_i32_1 = arith.constant 0 : i32
    return %c0_i32, %c0_i32_0 : i32, i32
  }
  func.func @transform_1(%arg0: i32) -> (i32, i32) {
    %c0_i32 = arith.constant 0 : i32
    %c0_i32_0 = arith.constant 0 : i32
    %c0_i32_1 = arith.constant 0 : i32
    return %c0_i32, %c0_i32_0 : i32, i32
  }
  func.func @transform_2(%arg0: i32) -> (i32, i32) {
    %c0_i32 = arith.constant 0 : i32
    %c0_i32_0 = arith.constant 0 : i32
    %c0_i32_1 = arith.constant 0 : i32
    return %c0_i32, %c0_i32_0 : i32, i32
  }
  func.func @transform_3(%arg0: i32) -> (i32, i32) {
    %c0_i32 = arith.constant 0 : i32
    %c0_i32_0 = arith.constant 0 : i32
    %c0_i32_1 = arith.constant 0 : i32
    return %c0_i32, %c0_i32_0 : i32, i32
  }
  func.func @transform_4(%arg0: i32) -> (i32, i32) {
    %c0_i32 = arith.constant 0 : i32
    %c0_i32_0 = arith.constant 0 : i32
    %c0_i32_1 = arith.constant 0 : i32
    return %c0_i32, %c0_i32_0 : i32, i32
  }
}

module attributes {stable_mosaic.version = 11 : i64} {
  func.func @_conv_bn_act_kernel(%arg0: i32, %arg1: memref<128x128xbf16, #tpu.memory_space<vmem>>, %arg2: memref<128x128xbf16, #tpu.memory_space<vmem>>, %arg3: memref<1x128xf32, #tpu.memory_space<vmem>>, %arg4: memref<1x128xf32, #tpu.memory_space<vmem>>, %arg5: memref<128x128xf32, #tpu.memory_space<vmem>>) attributes {dimension_semantics = [#tpu.dimension_semantics<arbitrary>], iteration_bounds = array<i64: 1>, scalar_prefetch = 0 : i64, scratch_operands = 0 : i64, tpu.core_type = #tpu.core_type<tc>, window_params = [{pipeline_mode = #tpu.pipeline_mode<synchronous>, transform_indices = @transform_0, window_bounds = array<i64: 128, 128>}, {pipeline_mode = #tpu.pipeline_mode<synchronous>, transform_indices = @transform_1, window_bounds = array<i64: 128, 128>}, {pipeline_mode = #tpu.pipeline_mode<synchronous>, transform_indices = @transform_2, window_bounds = array<i64: 1, 128>}, {pipeline_mode = #tpu.pipeline_mode<synchronous>, transform_indices = @transform_3, window_bounds = array<i64: 1, 128>}, {pipeline_mode = #tpu.pipeline_mode<synchronous>, transform_indices = @transform_4, window_bounds = array<i64: 128, 128>}]} {
    %c0 = arith.constant 0 : index
    %c0_0 = arith.constant 0 : index
    %0 = vector.load %arg1[%c0, %c0_0] : memref<128x128xbf16, #tpu.memory_space<vmem>>, vector<128x128xbf16>
    %c0_1 = arith.constant 0 : index
    %c0_2 = arith.constant 0 : index
    %1 = vector.load %arg2[%c0_1, %c0_2] : memref<128x128xbf16, #tpu.memory_space<vmem>>, vector<128x128xbf16>
    %cst = arith.constant dense<0.000000e+00> : vector<128x128xf32>
    %2 = tpu.matmul %0, %1, %cst {dimension_numbers = #tpu.dot_dimension_numbers<[1], [0], [0], [1], [0, 0, 1, 1], [], []>} : vector<128x128xbf16>, vector<128x128xbf16>, vector<128x128xf32> -> vector<128x128xf32>
    %cst_3 = arith.constant dense<0.000000e+00> : vector<128xf32>
    %3 = vector.multi_reduction <add>, %2, %cst_3 [0] : vector<128x128xf32> to vector<128xf32>
    %4 = vector.shape_cast %3 : vector<128xf32> to vector<1x128xf32>
    %cst_4 = arith.constant 1.280000e+02 : f32
    %5 = vector.broadcast %cst_4 : f32 to vector<1x128xf32>
    %6 = arith.divf %4, %5 : vector<1x128xf32>
    %7 = vector.broadcast %6 : vector<1x128xf32> to vector<128x128xf32>
    %8 = arith.subf %2, %7 : vector<128x128xf32>
    %9 = arith.mulf %8, %8 : vector<128x128xf32>
    %cst_5 = arith.constant dense<0.000000e+00> : vector<128xf32>
    %10 = vector.multi_reduction <add>, %9, %cst_5 [0] : vector<128x128xf32> to vector<128xf32>
    %11 = vector.shape_cast %10 : vector<128xf32> to vector<1x128xf32>
    %cst_6 = arith.constant 1.280000e+02 : f32
    %12 = vector.broadcast %cst_6 : f32 to vector<1x128xf32>
    %13 = arith.divf %11, %12 : vector<1x128xf32>
    %c0_7 = arith.constant 0 : index
    %c0_8 = arith.constant 0 : index
    %14 = vector.load %arg3[%c0_7, %c0_8] : memref<1x128xf32, #tpu.memory_space<vmem>>, vector<1x128xf32>
    %cst_9 = arith.constant 9.99999974E-6 : f32
    %15 = vector.broadcast %cst_9 : f32 to vector<1x128xf32>
    %16 = arith.addf %13, %15 : vector<1x128xf32>
    %17 = math.rsqrt %16 : vector<1x128xf32>
    %18 = arith.mulf %14, %17 : vector<1x128xf32>
    %19 = vector.broadcast %6 : vector<1x128xf32> to vector<128x128xf32>
    %20 = arith.subf %2, %19 : vector<128x128xf32>
    %21 = vector.broadcast %18 : vector<1x128xf32> to vector<128x128xf32>
    %22 = arith.mulf %20, %21 : vector<128x128xf32>
    %c0_10 = arith.constant 0 : index
    %c0_11 = arith.constant 0 : index
    %23 = vector.load %arg4[%c0_10, %c0_11] : memref<1x128xf32, #tpu.memory_space<vmem>>, vector<1x128xf32>
    %24 = vector.broadcast %23 : vector<1x128xf32> to vector<128x128xf32>
    %25 = arith.addf %22, %24 : vector<128x128xf32>
    %cst_12 = arith.constant 0.000000e+00 : f32
    %26 = vector.broadcast %cst_12 : f32 to vector<128x128xf32>
    %27 = arith.cmpf ogt, %25, %26 : vector<128x128xf32>
    %cst_13 = arith.constant 1.000000e-01 : f32
    %28 = vector.broadcast %cst_13 : f32 to vector<128x128xf32>
    %29 = arith.mulf %28, %25 : vector<128x128xf32>
    %30 = arith.select %27, %25, %29 : vector<128x128xi1>, vector<128x128xf32>
    %c0_14 = arith.constant 0 : index
    %c0_15 = arith.constant 0 : index
    %31 = vector.load %arg5[%c0_14, %c0_15] : memref<128x128xf32, #tpu.memory_space<vmem>>, vector<128x128xf32>
    tpu.vector_store %arg5[%c0_14, %c0_15], %30 {strides = array<i32>} : memref<128x128xf32, #tpu.memory_space<vmem>>, vector<128x128xf32>,
    return
  }
  func.func @transform_0(%arg0: i32) -> (i32, i32) {
    %c0_i32 = arith.constant 0 : i32
    %c0_i32_0 = arith.constant 0 : i32
    %c0_i32_1 = arith.constant 0 : i32
    return %c0_i32, %c0_i32_0 : i32, i32
  }
  func.func @transform_1(%arg0: i32) -> (i32, i32) {
    %c0_i32 = arith.constant 0 : i32
    %c0_i32_0 = arith.constant 0 : i32
    %c0_i32_1 = arith.constant 0 : i32
    return %c0_i32, %c0_i32_0 : i32, i32
  }
  func.func @transform_2(%arg0: i32) -> (i32, i32) {
    %c0_i32 = arith.constant 0 : i32
    %c0_i32_0 = arith.constant 0 : i32
    %c0_i32_1 = arith.constant 0 : i32
    return %c0_i32, %c0_i32_0 : i32, i32
  }
  func.func @transform_3(%arg0: i32) -> (i32, i32) {
    %c0_i32 = arith.constant 0 : i32
    %c0_i32_0 = arith.constant 0 : i32
    %c0_i32_1 = arith.constant 0 : i32
    return %c0_i32, %c0_i32_0 : i32, i32
  }
  func.func @transform_4(%arg0: i32) -> (i32, i32) {
    %c0_i32 = arith.constant 0 : i32
    %c0_i32_0 = arith.constant 0 : i32
    %c0_i32_1 = arith.constant 0 : i32
    return %c0_i32, %c0_i32_0 : i32, i32
  }
}

module attributes {stable_mosaic.version = 11 : i64} {
  func.func @_conv_bn_act_kernel(%arg0: i32, %arg1: memref<128x1152xbf16, #tpu.memory_space<vmem>>, %arg2: memref<1152x128xbf16, #tpu.memory_space<vmem>>, %arg3: memref<1x128xf32, #tpu.memory_space<vmem>>, %arg4: memref<1x128xf32, #tpu.memory_space<vmem>>, %arg5: memref<128x128xf32, #tpu.memory_space<vmem>>, %arg6: memref<128x128xf32, #tpu.memory_space<vmem>>) attributes {dimension_semantics = [#tpu.dimension_semantics<arbitrary>], iteration_bounds = array<i64: 1>, scalar_prefetch = 0 : i64, scratch_operands = 0 : i64, tpu.core_type = #tpu.core_type<tc>, window_params = [{pipeline_mode = #tpu.pipeline_mode<synchronous>, transform_indices = @transform_0, window_bounds = array<i64: 128, 1152>}, {pipeline_mode = #tpu.pipeline_mode<synchronous>, transform_indices = @transform_1, window_bounds = array<i64: 1152, 128>}, {pipeline_mode = #tpu.pipeline_mode<synchronous>, transform_indices = @transform_2, window_bounds = array<i64: 1, 128>}, {pipeline_mode = #tpu.pipeline_mode<synchronous>, transform_indices = @transform_3, window_bounds = array<i64: 1, 128>}, {pipeline_mode = #tpu.pipeline_mode<synchronous>, transform_indices = @transform_4, window_bounds = array<i64: 128, 128>}, {pipeline_mode = #tpu.pipeline_mode<synchronous>, transform_indices = @transform_5, window_bounds = array<i64: 128, 128>}]} {
    %c0 = arith.constant 0 : index
    %c0_0 = arith.constant 0 : index
    %0 = vector.load %arg1[%c0, %c0_0] : memref<128x1152xbf16, #tpu.memory_space<vmem>>, vector<128x1152xbf16>
    %c0_1 = arith.constant 0 : index
    %c0_2 = arith.constant 0 : index
    %1 = vector.load %arg2[%c0_1, %c0_2] : memref<1152x128xbf16, #tpu.memory_space<vmem>>, vector<1152x128xbf16>
    %cst = arith.constant dense<0.000000e+00> : vector<128x128xf32>
    %2 = tpu.matmul %0, %1, %cst {dimension_numbers = #tpu.dot_dimension_numbers<[1], [0], [0], [1], [0, 0, 1, 1], [], []>} : vector<128x1152xbf16>, vector<1152x128xbf16>, vector<128x128xf32> -> vector<128x128xf32>
    %cst_3 = arith.constant dense<0.000000e+00> : vector<128xf32>
    %3 = vector.multi_reduction <add>, %2, %cst_3 [0] : vector<128x128xf32> to vector<128xf32>
    %4 = vector.shape_cast %3 : vector<128xf32> to vector<1x128xf32>
    %cst_4 = arith.constant 1.280000e+02 : f32
    %5 = vector.broadcast %cst_4 : f32 to vector<1x128xf32>
    %6 = arith.divf %4, %5 : vector<1x128xf32>
    %7 = vector.broadcast %6 : vector<1x128xf32> to vector<128x128xf32>
    %8 = arith.subf %2, %7 : vector<128x128xf32>
    %9 = arith.mulf %8, %8 : vector<128x128xf32>
    %cst_5 = arith.constant dense<0.000000e+00> : vector<128xf32>
    %10 = vector.multi_reduction <add>, %9, %cst_5 [0] : vector<128x128xf32> to vector<128xf32>
    %11 = vector.shape_cast %10 : vector<128xf32> to vector<1x128xf32>
    %cst_6 = arith.constant 1.280000e+02 : f32
    %12 = vector.broadcast %cst_6 : f32 to vector<1x128xf32>
    %13 = arith.divf %11, %12 : vector<1x128xf32>
    %c0_7 = arith.constant 0 : index
    %c0_8 = arith.constant 0 : index
    %14 = vector.load %arg3[%c0_7, %c0_8] : memref<1x128xf32, #tpu.memory_space<vmem>>, vector<1x128xf32>
    %cst_9 = arith.constant 9.99999974E-6 : f32
    %15 = vector.broadcast %cst_9 : f32 to vector<1x128xf32>
    %16 = arith.addf %13, %15 : vector<1x128xf32>
    %17 = math.rsqrt %16 : vector<1x128xf32>
    %18 = arith.mulf %14, %17 : vector<1x128xf32>
    %19 = vector.broadcast %6 : vector<1x128xf32> to vector<128x128xf32>
    %20 = arith.subf %2, %19 : vector<128x128xf32>
    %21 = vector.broadcast %18 : vector<1x128xf32> to vector<128x128xf32>
    %22 = arith.mulf %20, %21 : vector<128x128xf32>
    %c0_10 = arith.constant 0 : index
    %c0_11 = arith.constant 0 : index
    %23 = vector.load %arg4[%c0_10, %c0_11] : memref<1x128xf32, #tpu.memory_space<vmem>>, vector<1x128xf32>
    %24 = vector.broadcast %23 : vector<1x128xf32> to vector<128x128xf32>
    %25 = arith.addf %22, %24 : vector<128x128xf32>
    %cst_12 = arith.constant 0.000000e+00 : f32
    %26 = vector.broadcast %cst_12 : f32 to vector<128x128xf32>
    %27 = arith.cmpf ogt, %25, %26 : vector<128x128xf32>
    %cst_13 = arith.constant 1.000000e-01 : f32
    %28 = vector.broadcast %cst_13 : f32 to vector<128x128xf32>
    %29 = arith.mulf %28, %25 : vector<128x128xf32>
    %30 = arith.select %27, %25, %29 : vector<128x128xi1>, vector<128x128xf32>
    %c0_14 = arith.constant 0 : index
    %c0_15 = arith.constant 0 : index
    %31 = vector.load %arg5[%c0_14, %c0_15] : memref<128x128xf32, #tpu.memory_space<vmem>>, vector<128x128xf32>
    %32 = arith.addf %30, %31 : vector<128x128xf32>
    %c0_16 = arith.constant 0 : index
    %c0_17 = arith.constant 0 : index
    %33 = vector.load %arg6[%c0_16, %c0_17] : memref<128x128xf32, #tpu.memory_space<vmem>>, vector<128x128xf32>
    tpu.vector_store %arg6[%c0_16, %c0_17], %32 {strides = array<i32>} : memref<128x128xf32, #tpu.memory_space<vmem>>, vector<128x128xf32>,
    return
  }
  func.func @transform_0(%arg0: i32) -> (i32, i32) {
    %c0_i32 = arith.constant 0 : i32
    %c0_i32_0 = arith.constant 0 : i32
    %c0_i32_1 = arith.constant 0 : i32
    return %c0_i32, %c0_i32_0 : i32, i32
  }
  func.func @transform_1(%arg0: i32) -> (i32, i32) {
    %c0_i32 = arith.constant 0 : i32
    %c0_i32_0 = arith.constant 0 : i32
    %c0_i32_1 = arith.constant 0 : i32
    return %c0_i32, %c0_i32_0 : i32, i32
  }
  func.func @transform_2(%arg0: i32) -> (i32, i32) {
    %c0_i32 = arith.constant 0 : i32
    %c0_i32_0 = arith.constant 0 : i32
    %c0_i32_1 = arith.constant 0 : i32
    return %c0_i32, %c0_i32_0 : i32, i32
  }
  func.func @transform_3(%arg0: i32) -> (i32, i32) {
    %c0_i32 = arith.constant 0 : i32
    %c0_i32_0 = arith.constant 0 : i32
    %c0_i32_1 = arith.constant 0 : i32
    return %c0_i32, %c0_i32_0 : i32, i32
  }
  func.func @transform_4(%arg0: i32) -> (i32, i32) {
    %c0_i32 = arith.constant 0 : i32
    %c0_i32_0 = arith.constant 0 : i32
    %c0_i32_1 = arith.constant 0 : i32
    return %c0_i32, %c0_i32_0 : i32, i32
  }
  func.func @transform_5(%arg0: i32) -> (i32, i32) {
    %c0_i32 = arith.constant 0 : i32
    %c0_i32_0 = arith.constant 0 : i32
    %c0_i32_1 = arith.constant 0 : i32
    return %c0_i32, %c0_i32_0 : i32, i32
  }
}

module attributes {stable_mosaic.version = 11 : i64} {
  func.func @_conv_bn_act_kernel(%arg0: i32, %arg1: memref<32x32xbf16, #tpu.memory_space<vmem>>, %arg2: memref<32x128xbf16, #tpu.memory_space<vmem>>, %arg3: memref<1x128xf32, #tpu.memory_space<vmem>>, %arg4: memref<1x128xf32, #tpu.memory_space<vmem>>, %arg5: memref<32x128xf32, #tpu.memory_space<vmem>>) attributes {dimension_semantics = [#tpu.dimension_semantics<arbitrary>], iteration_bounds = array<i64: 1>, scalar_prefetch = 0 : i64, scratch_operands = 0 : i64, tpu.core_type = #tpu.core_type<tc>, window_params = [{pipeline_mode = #tpu.pipeline_mode<synchronous>, transform_indices = @transform_0, window_bounds = array<i64: 32, 32>}, {pipeline_mode = #tpu.pipeline_mode<synchronous>, transform_indices = @transform_1, window_bounds = array<i64: 32, 128>}, {pipeline_mode = #tpu.pipeline_mode<synchronous>, transform_indices = @transform_2, window_bounds = array<i64: 1, 128>}, {pipeline_mode = #tpu.pipeline_mode<synchronous>, transform_indices = @transform_3, window_bounds = array<i64: 1, 128>}, {pipeline_mode = #tpu.pipeline_mode<synchronous>, transform_indices = @transform_4, window_bounds = array<i64: 32, 128>}]} {
    %c0 = arith.constant 0 : index
    %c0_0 = arith.constant 0 : index
    %0 = vector.load %arg1[%c0, %c0_0] : memref<32x32xbf16, #tpu.memory_space<vmem>>, vector<32x32xbf16>
    %c0_1 = arith.constant 0 : index
    %c0_2 = arith.constant 0 : index
    %1 = vector.load %arg2[%c0_1, %c0_2] : memref<32x128xbf16, #tpu.memory_space<vmem>>, vector<32x128xbf16>
    %cst = arith.constant dense<0.000000e+00> : vector<32x128xf32>
    %2 = tpu.matmul %0, %1, %cst {dimension_numbers = #tpu.dot_dimension_numbers<[1], [0], [0], [1], [0, 0, 1, 1], [], []>} : vector<32x32xbf16>, vector<32x128xbf16>, vector<32x128xf32> -> vector<32x128xf32>
    %cst_3 = arith.constant dense<0.000000e+00> : vector<128xf32>
    %3 = vector.multi_reduction <add>, %2, %cst_3 [0] : vector<32x128xf32> to vector<128xf32>
    %4 = vector.shape_cast %3 : vector<128xf32> to vector<1x128xf32>
    %cst_4 = arith.constant 3.200000e+01 : f32
    %5 = vector.broadcast %cst_4 : f32 to vector<1x128xf32>
    %6 = arith.divf %4, %5 : vector<1x128xf32>
    %7 = vector.broadcast %6 : vector<1x128xf32> to vector<32x128xf32>
    %8 = arith.subf %2, %7 : vector<32x128xf32>
    %9 = arith.mulf %8, %8 : vector<32x128xf32>
    %cst_5 = arith.constant dense<0.000000e+00> : vector<128xf32>
    %10 = vector.multi_reduction <add>, %9, %cst_5 [0] : vector<32x128xf32> to vector<128xf32>
    %11 = vector.shape_cast %10 : vector<128xf32> to vector<1x128xf32>
    %cst_6 = arith.constant 3.200000e+01 : f32
    %12 = vector.broadcast %cst_6 : f32 to vector<1x128xf32>
    %13 = arith.divf %11, %12 : vector<1x128xf32>
    %c0_7 = arith.constant 0 : index
    %c0_8 = arith.constant 0 : index
    %14 = vector.load %arg3[%c0_7, %c0_8] : memref<1x128xf32, #tpu.memory_space<vmem>>, vector<1x128xf32>
    %cst_9 = arith.constant 9.99999974E-6 : f32
    %15 = vector.broadcast %cst_9 : f32 to vector<1x128xf32>
    %16 = arith.addf %13, %15 : vector<1x128xf32>
    %17 = math.rsqrt %16 : vector<1x128xf32>
    %18 = arith.mulf %14, %17 : vector<1x128xf32>
    %19 = vector.broadcast %6 : vector<1x128xf32> to vector<32x128xf32>
    %20 = arith.subf %2, %19 : vector<32x128xf32>
    %21 = vector.broadcast %18 : vector<1x128xf32> to vector<32x128xf32>
    %22 = arith.mulf %20, %21 : vector<32x128xf32>
    %c0_10 = arith.constant 0 : index
    %c0_11 = arith.constant 0 : index
    %23 = vector.load %arg4[%c0_10, %c0_11] : memref<1x128xf32, #tpu.memory_space<vmem>>, vector<1x128xf32>
    %24 = vector.broadcast %23 : vector<1x128xf32> to vector<32x128xf32>
    %25 = arith.addf %22, %24 : vector<32x128xf32>
    %cst_12 = arith.constant 0.000000e+00 : f32
    %26 = vector.broadcast %cst_12 : f32 to vector<32x128xf32>
    %27 = arith.cmpf ogt, %25, %26 : vector<32x128xf32>
    %cst_13 = arith.constant 1.000000e-01 : f32
    %28 = vector.broadcast %cst_13 : f32 to vector<32x128xf32>
    %29 = arith.mulf %28, %25 : vector<32x128xf32>
    %30 = arith.select %27, %25, %29 : vector<32x128xi1>, vector<32x128xf32>
    %c0_14 = arith.constant 0 : index
    %c0_15 = arith.constant 0 : index
    %31 = vector.load %arg5[%c0_14, %c0_15] : memref<32x128xf32, #tpu.memory_space<vmem>>, vector<32x128xf32>
    tpu.vector_store %arg5[%c0_14, %c0_15], %30 {strides = array<i32>} : memref<32x128xf32, #tpu.memory_space<vmem>>, vector<32x128xf32>,
    return
  }
  func.func @transform_0(%arg0: i32) -> (i32, i32) {
    %c0_i32 = arith.constant 0 : i32
    %c0_i32_0 = arith.constant 0 : i32
    %c0_i32_1 = arith.constant 0 : i32
    return %c0_i32, %c0_i32_0 : i32, i32
  }
  func.func @transform_1(%arg0: i32) -> (i32, i32) {
    %c0_i32 = arith.constant 0 : i32
    %c0_i32_0 = arith.constant 0 : i32
    %c0_i32_1 = arith.constant 0 : i32
    return %c0_i32, %c0_i32_0 : i32, i32
  }
  func.func @transform_2(%arg0: i32) -> (i32, i32) {
    %c0_i32 = arith.constant 0 : i32
    %c0_i32_0 = arith.constant 0 : i32
    %c0_i32_1 = arith.constant 0 : i32
    return %c0_i32, %c0_i32_0 : i32, i32
  }
  func.func @transform_3(%arg0: i32) -> (i32, i32) {
    %c0_i32 = arith.constant 0 : i32
    %c0_i32_0 = arith.constant 0 : i32
    %c0_i32_1 = arith.constant 0 : i32
    return %c0_i32, %c0_i32_0 : i32, i32
  }
  func.func @transform_4(%arg0: i32) -> (i32, i32) {
    %c0_i32 = arith.constant 0 : i32
    %c0_i32_0 = arith.constant 0 : i32
    %c0_i32_1 = arith.constant 0 : i32
    return %c0_i32, %c0_i32_0 : i32, i32
  }
}

module attributes {stable_mosaic.version = 11 : i64} {
  func.func @_conv_bn_act_kernel(%arg0: i32, %arg1: memref<32x1152xbf16, #tpu.memory_space<vmem>>, %arg2: memref<1152x128xbf16, #tpu.memory_space<vmem>>, %arg3: memref<1x128xf32, #tpu.memory_space<vmem>>, %arg4: memref<1x128xf32, #tpu.memory_space<vmem>>, %arg5: memref<32x128xf32, #tpu.memory_space<vmem>>) attributes {dimension_semantics = [#tpu.dimension_semantics<arbitrary>], iteration_bounds = array<i64: 1>, scalar_prefetch = 0 : i64, scratch_operands = 0 : i64, tpu.core_type = #tpu.core_type<tc>, window_params = [{pipeline_mode = #tpu.pipeline_mode<synchronous>, transform_indices = @transform_0, window_bounds = array<i64: 32, 1152>}, {pipeline_mode = #tpu.pipeline_mode<synchronous>, transform_indices = @transform_1, window_bounds = array<i64: 1152, 128>}, {pipeline_mode = #tpu.pipeline_mode<synchronous>, transform_indices = @transform_2, window_bounds = array<i64: 1, 128>}, {pipeline_mode = #tpu.pipeline_mode<synchronous>, transform_indices = @transform_3, window_bounds = array<i64: 1, 128>}, {pipeline_mode = #tpu.pipeline_mode<synchronous>, transform_indices = @transform_4, window_bounds = array<i64: 32, 128>}]} {
    %c0 = arith.constant 0 : index
    %c0_0 = arith.constant 0 : index
    %0 = vector.load %arg1[%c0, %c0_0] : memref<32x1152xbf16, #tpu.memory_space<vmem>>, vector<32x1152xbf16>
    %c0_1 = arith.constant 0 : index
    %c0_2 = arith.constant 0 : index
    %1 = vector.load %arg2[%c0_1, %c0_2] : memref<1152x128xbf16, #tpu.memory_space<vmem>>, vector<1152x128xbf16>
    %cst = arith.constant dense<0.000000e+00> : vector<32x128xf32>
    %2 = tpu.matmul %0, %1, %cst {dimension_numbers = #tpu.dot_dimension_numbers<[1], [0], [0], [1], [0, 0, 1, 1], [], []>} : vector<32x1152xbf16>, vector<1152x128xbf16>, vector<32x128xf32> -> vector<32x128xf32>
    %cst_3 = arith.constant dense<0.000000e+00> : vector<128xf32>
    %3 = vector.multi_reduction <add>, %2, %cst_3 [0] : vector<32x128xf32> to vector<128xf32>
    %4 = vector.shape_cast %3 : vector<128xf32> to vector<1x128xf32>
    %cst_4 = arith.constant 3.200000e+01 : f32
    %5 = vector.broadcast %cst_4 : f32 to vector<1x128xf32>
    %6 = arith.divf %4, %5 : vector<1x128xf32>
    %7 = vector.broadcast %6 : vector<1x128xf32> to vector<32x128xf32>
    %8 = arith.subf %2, %7 : vector<32x128xf32>
    %9 = arith.mulf %8, %8 : vector<32x128xf32>
    %cst_5 = arith.constant dense<0.000000e+00> : vector<128xf32>
    %10 = vector.multi_reduction <add>, %9, %cst_5 [0] : vector<32x128xf32> to vector<128xf32>
    %11 = vector.shape_cast %10 : vector<128xf32> to vector<1x128xf32>
    %cst_6 = arith.constant 3.200000e+01 : f32
    %12 = vector.broadcast %cst_6 : f32 to vector<1x128xf32>
    %13 = arith.divf %11, %12 : vector<1x128xf32>
    %c0_7 = arith.constant 0 : index
    %c0_8 = arith.constant 0 : index
    %14 = vector.load %arg3[%c0_7, %c0_8] : memref<1x128xf32, #tpu.memory_space<vmem>>, vector<1x128xf32>
    %cst_9 = arith.constant 9.99999974E-6 : f32
    %15 = vector.broadcast %cst_9 : f32 to vector<1x128xf32>
    %16 = arith.addf %13, %15 : vector<1x128xf32>
    %17 = math.rsqrt %16 : vector<1x128xf32>
    %18 = arith.mulf %14, %17 : vector<1x128xf32>
    %19 = vector.broadcast %6 : vector<1x128xf32> to vector<32x128xf32>
    %20 = arith.subf %2, %19 : vector<32x128xf32>
    %21 = vector.broadcast %18 : vector<1x128xf32> to vector<32x128xf32>
    %22 = arith.mulf %20, %21 : vector<32x128xf32>
    %c0_10 = arith.constant 0 : index
    %c0_11 = arith.constant 0 : index
    %23 = vector.load %arg4[%c0_10, %c0_11] : memref<1x128xf32, #tpu.memory_space<vmem>>, vector<1x128xf32>
    %24 = vector.broadcast %23 : vector<1x128xf32> to vector<32x128xf32>
    %25 = arith.addf %22, %24 : vector<32x128xf32>
    %cst_12 = arith.constant 0.000000e+00 : f32
    %26 = vector.broadcast %cst_12 : f32 to vector<32x128xf32>
    %27 = arith.cmpf ogt, %25, %26 : vector<32x128xf32>
    %cst_13 = arith.constant 1.000000e-01 : f32
    %28 = vector.broadcast %cst_13 : f32 to vector<32x128xf32>
    %29 = arith.mulf %28, %25 : vector<32x128xf32>
    %30 = arith.select %27, %25, %29 : vector<32x128xi1>, vector<32x128xf32>
    %c0_14 = arith.constant 0 : index
    %c0_15 = arith.constant 0 : index
    %31 = vector.load %arg5[%c0_14, %c0_15] : memref<32x128xf32, #tpu.memory_space<vmem>>, vector<32x128xf32>
    tpu.vector_store %arg5[%c0_14, %c0_15], %30 {strides = array<i32>} : memref<32x128xf32, #tpu.memory_space<vmem>>, vector<32x128xf32>,
    return
  }
  func.func @transform_0(%arg0: i32) -> (i32, i32) {
    %c0_i32 = arith.constant 0 : i32
    %c0_i32_0 = arith.constant 0 : i32
    %c0_i32_1 = arith.constant 0 : i32
    return %c0_i32, %c0_i32_0 : i32, i32
  }
  func.func @transform_1(%arg0: i32) -> (i32, i32) {
    %c0_i32 = arith.constant 0 : i32
    %c0_i32_0 = arith.constant 0 : i32
    %c0_i32_1 = arith.constant 0 : i32
    return %c0_i32, %c0_i32_0 : i32, i32
  }
  func.func @transform_2(%arg0: i32) -> (i32, i32) {
    %c0_i32 = arith.constant 0 : i32
    %c0_i32_0 = arith.constant 0 : i32
    %c0_i32_1 = arith.constant 0 : i32
    return %c0_i32, %c0_i32_0 : i32, i32
  }
  func.func @transform_3(%arg0: i32) -> (i32, i32) {
    %c0_i32 = arith.constant 0 : i32
    %c0_i32_0 = arith.constant 0 : i32
    %c0_i32_1 = arith.constant 0 : i32
    return %c0_i32, %c0_i32_0 : i32, i32
  }
  func.func @transform_4(%arg0: i32) -> (i32, i32) {
    %c0_i32 = arith.constant 0 : i32
    %c0_i32_0 = arith.constant 0 : i32
    %c0_i32_1 = arith.constant 0 : i32
    return %c0_i32, %c0_i32_0 : i32, i32
  }
}

module attributes {stable_mosaic.version = 11 : i64} {
  func.func @_conv_bn_act_kernel(%arg0: i32, %arg1: memref<32x128xbf16, #tpu.memory_space<vmem>>, %arg2: memref<128x128xbf16, #tpu.memory_space<vmem>>, %arg3: memref<1x128xf32, #tpu.memory_space<vmem>>, %arg4: memref<1x128xf32, #tpu.memory_space<vmem>>, %arg5: memref<32x128xf32, #tpu.memory_space<vmem>>) attributes {dimension_semantics = [#tpu.dimension_semantics<arbitrary>], iteration_bounds = array<i64: 1>, scalar_prefetch = 0 : i64, scratch_operands = 0 : i64, tpu.core_type = #tpu.core_type<tc>, window_params = [{pipeline_mode = #tpu.pipeline_mode<synchronous>, transform_indices = @transform_0, window_bounds = array<i64: 32, 128>}, {pipeline_mode = #tpu.pipeline_mode<synchronous>, transform_indices = @transform_1, window_bounds = array<i64: 128, 128>}, {pipeline_mode = #tpu.pipeline_mode<synchronous>, transform_indices = @transform_2, window_bounds = array<i64: 1, 128>}, {pipeline_mode = #tpu.pipeline_mode<synchronous>, transform_indices = @transform_3, window_bounds = array<i64: 1, 128>}, {pipeline_mode = #tpu.pipeline_mode<synchronous>, transform_indices = @transform_4, window_bounds = array<i64: 32, 128>}]} {
    %c0 = arith.constant 0 : index
    %c0_0 = arith.constant 0 : index
    %0 = vector.load %arg1[%c0, %c0_0] : memref<32x128xbf16, #tpu.memory_space<vmem>>, vector<32x128xbf16>
    %c0_1 = arith.constant 0 : index
    %c0_2 = arith.constant 0 : index
    %1 = vector.load %arg2[%c0_1, %c0_2] : memref<128x128xbf16, #tpu.memory_space<vmem>>, vector<128x128xbf16>
    %cst = arith.constant dense<0.000000e+00> : vector<32x128xf32>
    %2 = tpu.matmul %0, %1, %cst {dimension_numbers = #tpu.dot_dimension_numbers<[1], [0], [0], [1], [0, 0, 1, 1], [], []>} : vector<32x128xbf16>, vector<128x128xbf16>, vector<32x128xf32> -> vector<32x128xf32>
    %cst_3 = arith.constant dense<0.000000e+00> : vector<128xf32>
    %3 = vector.multi_reduction <add>, %2, %cst_3 [0] : vector<32x128xf32> to vector<128xf32>
    %4 = vector.shape_cast %3 : vector<128xf32> to vector<1x128xf32>
    %cst_4 = arith.constant 3.200000e+01 : f32
    %5 = vector.broadcast %cst_4 : f32 to vector<1x128xf32>
    %6 = arith.divf %4, %5 : vector<1x128xf32>
    %7 = vector.broadcast %6 : vector<1x128xf32> to vector<32x128xf32>
    %8 = arith.subf %2, %7 : vector<32x128xf32>
    %9 = arith.mulf %8, %8 : vector<32x128xf32>
    %cst_5 = arith.constant dense<0.000000e+00> : vector<128xf32>
    %10 = vector.multi_reduction <add>, %9, %cst_5 [0] : vector<32x128xf32> to vector<128xf32>
    %11 = vector.shape_cast %10 : vector<128xf32> to vector<1x128xf32>
    %cst_6 = arith.constant 3.200000e+01 : f32
    %12 = vector.broadcast %cst_6 : f32 to vector<1x128xf32>
    %13 = arith.divf %11, %12 : vector<1x128xf32>
    %c0_7 = arith.constant 0 : index
    %c0_8 = arith.constant 0 : index
    %14 = vector.load %arg3[%c0_7, %c0_8] : memref<1x128xf32, #tpu.memory_space<vmem>>, vector<1x128xf32>
    %cst_9 = arith.constant 9.99999974E-6 : f32
    %15 = vector.broadcast %cst_9 : f32 to vector<1x128xf32>
    %16 = arith.addf %13, %15 : vector<1x128xf32>
    %17 = math.rsqrt %16 : vector<1x128xf32>
    %18 = arith.mulf %14, %17 : vector<1x128xf32>
    %19 = vector.broadcast %6 : vector<1x128xf32> to vector<32x128xf32>
    %20 = arith.subf %2, %19 : vector<32x128xf32>
    %21 = vector.broadcast %18 : vector<1x128xf32> to vector<32x128xf32>
    %22 = arith.mulf %20, %21 : vector<32x128xf32>
    %c0_10 = arith.constant 0 : index
    %c0_11 = arith.constant 0 : index
    %23 = vector.load %arg4[%c0_10, %c0_11] : memref<1x128xf32, #tpu.memory_space<vmem>>, vector<1x128xf32>
    %24 = vector.broadcast %23 : vector<1x128xf32> to vector<32x128xf32>
    %25 = arith.addf %22, %24 : vector<32x128xf32>
    %cst_12 = arith.constant 0.000000e+00 : f32
    %26 = vector.broadcast %cst_12 : f32 to vector<32x128xf32>
    %27 = arith.cmpf ogt, %25, %26 : vector<32x128xf32>
    %cst_13 = arith.constant 1.000000e-01 : f32
    %28 = vector.broadcast %cst_13 : f32 to vector<32x128xf32>
    %29 = arith.mulf %28, %25 : vector<32x128xf32>
    %30 = arith.select %27, %25, %29 : vector<32x128xi1>, vector<32x128xf32>
    %c0_14 = arith.constant 0 : index
    %c0_15 = arith.constant 0 : index
    %31 = vector.load %arg5[%c0_14, %c0_15] : memref<32x128xf32, #tpu.memory_space<vmem>>, vector<32x128xf32>
    tpu.vector_store %arg5[%c0_14, %c0_15], %30 {strides = array<i32>} : memref<32x128xf32, #tpu.memory_space<vmem>>, vector<32x128xf32>,
    return
  }
  func.func @transform_0(%arg0: i32) -> (i32, i32) {
    %c0_i32 = arith.constant 0 : i32
    %c0_i32_0 = arith.constant 0 : i32
    %c0_i32_1 = arith.constant 0 : i32
    return %c0_i32, %c0_i32_0 : i32, i32
  }
  func.func @transform_1(%arg0: i32) -> (i32, i32) {
    %c0_i32 = arith.constant 0 : i32
    %c0_i32_0 = arith.constant 0 : i32
    %c0_i32_1 = arith.constant 0 : i32
    return %c0_i32, %c0_i32_0 : i32, i32
  }
  func.func @transform_2(%arg0: i32) -> (i32, i32) {
    %c0_i32 = arith.constant 0 : i32
    %c0_i32_0 = arith.constant 0 : i32
    %c0_i32_1 = arith.constant 0 : i32
    return %c0_i32, %c0_i32_0 : i32, i32
  }
  func.func @transform_3(%arg0: i32) -> (i32, i32) {
    %c0_i32 = arith.constant 0 : i32
    %c0_i32_0 = arith.constant 0 : i32
    %c0_i32_1 = arith.constant 0 : i32
    return %c0_i32, %c0_i32_0 : i32, i32
  }
  func.func @transform_4(%arg0: i32) -> (i32, i32) {
    %c0_i32 = arith.constant 0 : i32
    %c0_i32_0 = arith.constant 0 : i32
    %c0_i32_1 = arith.constant 0 : i32
    return %c0_i32, %c0_i32_0 : i32, i32
  }
}

module attributes {stable_mosaic.version = 11 : i64} {
  func.func @_conv_bias_act_kernel(%arg0: i32, %arg1: memref<16x128xbf16, #tpu.memory_space<vmem>>, %arg2: memref<128x128xbf16, #tpu.memory_space<vmem>>, %arg3: memref<1x128xf32, #tpu.memory_space<vmem>>, %arg4: memref<16x128xf32, #tpu.memory_space<vmem>>) attributes {dimension_semantics = [#tpu.dimension_semantics<parallel>], iteration_bounds = array<i64: 2>, scalar_prefetch = 0 : i64, scratch_operands = 0 : i64, tpu.core_type = #tpu.core_type<tc>, window_params = [{transform_indices = @transform_0, window_bounds = array<i64: 16, 128>}, {pipeline_mode = #tpu.pipeline_mode<synchronous>, transform_indices = @transform_1, window_bounds = array<i64: 128, 128>}, {pipeline_mode = #tpu.pipeline_mode<synchronous>, transform_indices = @transform_2, window_bounds = array<i64: 1, 128>}, {transform_indices = @transform_3, window_bounds = array<i64: 16, 128>}]} {
    %c0 = arith.constant 0 : index
    %c0_0 = arith.constant 0 : index
    %0 = vector.load %arg1[%c0, %c0_0] : memref<16x128xbf16, #tpu.memory_space<vmem>>, vector<16x128xbf16>
    %c0_1 = arith.constant 0 : index
    %c0_2 = arith.constant 0 : index
    %1 = vector.load %arg2[%c0_1, %c0_2] : memref<128x128xbf16, #tpu.memory_space<vmem>>, vector<128x128xbf16>
    %cst = arith.constant dense<0.000000e+00> : vector<16x128xf32>
    %2 = tpu.matmul %0, %1, %cst {dimension_numbers = #tpu.dot_dimension_numbers<[1], [0], [0], [1], [0, 0, 1, 1], [], []>} : vector<16x128xbf16>, vector<128x128xbf16>, vector<16x128xf32> -> vector<16x128xf32>
    %c0_3 = arith.constant 0 : index
    %c0_4 = arith.constant 0 : index
    %3 = vector.load %arg3[%c0_3, %c0_4] : memref<1x128xf32, #tpu.memory_space<vmem>>, vector<1x128xf32>
    %4 = vector.broadcast %3 : vector<1x128xf32> to vector<16x128xf32>
    %5 = arith.addf %2, %4 : vector<16x128xf32>
    %c0_5 = arith.constant 0 : index
    %c0_6 = arith.constant 0 : index
    %6 = vector.load %arg4[%c0_5, %c0_6] : memref<16x128xf32, #tpu.memory_space<vmem>>, vector<16x128xf32>
    tpu.vector_store %arg4[%c0_5, %c0_6], %5 {strides = array<i32>} : memref<16x128xf32, #tpu.memory_space<vmem>>, vector<16x128xf32>,
    return
  }
  func.func @transform_0(%arg0: i32) -> (i32, i32) {
    %c0_i32 = arith.constant 0 : i32
    %c0_i32_0 = arith.constant 0 : i32
    return %arg0, %c0_i32 : i32, i32
  }
  func.func @transform_1(%arg0: i32) -> (i32, i32) {
    %c0_i32 = arith.constant 0 : i32
    %c0_i32_0 = arith.constant 0 : i32
    %c0_i32_1 = arith.constant 0 : i32
    return %c0_i32, %c0_i32_0 : i32, i32
  }
  func.func @transform_2(%arg0: i32) -> (i32, i32) {
    %c0_i32 = arith.constant 0 : i32
    %c0_i32_0 = arith.constant 0 : i32
    %c0_i32_1 = arith.constant 0 : i32
    return %c0_i32, %c0_i32_0 : i32, i32
  }
  func.func @transform_3(%arg0: i32) -> (i32, i32) {
    %c0_i32 = arith.constant 0 : i32
    %c0_i32_0 = arith.constant 0 : i32
    return %arg0, %c0_i32 : i32, i32
  }
}

module attributes {stable_mosaic.version = 11 : i64} {
  func.func @_conv_bn_act_kernel(%arg0: i32, %arg1: memref<128x432xbf16, #tpu.memory_space<vmem>>, %arg2: memref<432x128xbf16, #tpu.memory_space<vmem>>, %arg3: memref<1x128xf32, #tpu.memory_space<vmem>>, %arg4: memref<1x128xf32, #tpu.memory_space<vmem>>, %arg5: memref<128x128xf32, #tpu.memory_space<vmem>>) attributes {dimension_semantics = [#tpu.dimension_semantics<arbitrary>], iteration_bounds = array<i64: 1>, scalar_prefetch = 0 : i64, scratch_operands = 0 : i64, tpu.core_type = #tpu.core_type<tc>, window_params = [{pipeline_mode = #tpu.pipeline_mode<synchronous>, transform_indices = @transform_0, window_bounds = array<i64: 128, 432>}, {pipeline_mode = #tpu.pipeline_mode<synchronous>, transform_indices = @transform_1, window_bounds = array<i64: 432, 128>}, {pipeline_mode = #tpu.pipeline_mode<synchronous>, transform_indices = @transform_2, window_bounds = array<i64: 1, 128>}, {pipeline_mode = #tpu.pipeline_mode<synchronous>, transform_indices = @transform_3, window_bounds = array<i64: 1, 128>}, {pipeline_mode = #tpu.pipeline_mode<synchronous>, transform_indices = @transform_4, window_bounds = array<i64: 128, 128>}]} {
    %c0 = arith.constant 0 : index
    %c0_0 = arith.constant 0 : index
    %0 = vector.load %arg1[%c0, %c0_0] : memref<128x432xbf16, #tpu.memory_space<vmem>>, vector<128x432xbf16>
    %c0_1 = arith.constant 0 : index
    %c0_2 = arith.constant 0 : index
    %1 = vector.load %arg2[%c0_1, %c0_2] : memref<432x128xbf16, #tpu.memory_space<vmem>>, vector<432x128xbf16>
    %cst = arith.constant dense<0.000000e+00> : vector<128x128xf32>
    %2 = tpu.matmul %0, %1, %cst {dimension_numbers = #tpu.dot_dimension_numbers<[1], [0], [0], [1], [0, 0, 1, 1], [], []>} : vector<128x432xbf16>, vector<432x128xbf16>, vector<128x128xf32> -> vector<128x128xf32>
    %cst_3 = arith.constant dense<0.000000e+00> : vector<128xf32>
    %3 = vector.multi_reduction <add>, %2, %cst_3 [0] : vector<128x128xf32> to vector<128xf32>
    %4 = vector.shape_cast %3 : vector<128xf32> to vector<1x128xf32>
    %cst_4 = arith.constant 1.280000e+02 : f32
    %5 = vector.broadcast %cst_4 : f32 to vector<1x128xf32>
    %6 = arith.divf %4, %5 : vector<1x128xf32>
    %7 = vector.broadcast %6 : vector<1x128xf32> to vector<128x128xf32>
    %8 = arith.subf %2, %7 : vector<128x128xf32>
    %9 = arith.mulf %8, %8 : vector<128x128xf32>
    %cst_5 = arith.constant dense<0.000000e+00> : vector<128xf32>
    %10 = vector.multi_reduction <add>, %9, %cst_5 [0] : vector<128x128xf32> to vector<128xf32>
    %11 = vector.shape_cast %10 : vector<128xf32> to vector<1x128xf32>
    %cst_6 = arith.constant 1.280000e+02 : f32
    %12 = vector.broadcast %cst_6 : f32 to vector<1x128xf32>
    %13 = arith.divf %11, %12 : vector<1x128xf32>
    %c0_7 = arith.constant 0 : index
    %c0_8 = arith.constant 0 : index
    %14 = vector.load %arg3[%c0_7, %c0_8] : memref<1x128xf32, #tpu.memory_space<vmem>>, vector<1x128xf32>
    %cst_9 = arith.constant 9.99999974E-6 : f32
    %15 = vector.broadcast %cst_9 : f32 to vector<1x128xf32>
    %16 = arith.addf %13, %15 : vector<1x128xf32>
    %17 = math.rsqrt %16 : vector<1x128xf32>
    %18 = arith.mulf %14, %17 : vector<1x128xf32>
    %19 = vector.broadcast %6 : vector<1x128xf32> to vector<128x128xf32>
    %20 = arith.subf %2, %19 : vector<128x128xf32>
    %21 = vector.broadcast %18 : vector<1x128xf32> to vector<128x128xf32>
    %22 = arith.mulf %20, %21 : vector<128x128xf32>
    %c0_10 = arith.constant 0 : index
    %c0_11 = arith.constant 0 : index
    %23 = vector.load %arg4[%c0_10, %c0_11] : memref<1x128xf32, #tpu.memory_space<vmem>>, vector<1x128xf32>
    %24 = vector.broadcast %23 : vector<1x128xf32> to vector<128x128xf32>
    %25 = arith.addf %22, %24 : vector<128x128xf32>
    %cst_12 = arith.constant 0.000000e+00 : f32
    %26 = vector.broadcast %cst_12 : f32 to vector<128x128xf32>
    %27 = arith.cmpf ogt, %25, %26 : vector<128x128xf32>
    %cst_13 = arith.constant 1.000000e-01 : f32
    %28 = vector.broadcast %cst_13 : f32 to vector<128x128xf32>
    %29 = arith.mulf %28, %25 : vector<128x128xf32>
    %30 = arith.select %27, %25, %29 : vector<128x128xi1>, vector<128x128xf32>
    %c0_14 = arith.constant 0 : index
    %c0_15 = arith.constant 0 : index
    %31 = vector.load %arg5[%c0_14, %c0_15] : memref<128x128xf32, #tpu.memory_space<vmem>>, vector<128x128xf32>
    tpu.vector_store %arg5[%c0_14, %c0_15], %30 {strides = array<i32>} : memref<128x128xf32, #tpu.memory_space<vmem>>, vector<128x128xf32>,
    return
  }
  func.func @transform_0(%arg0: i32) -> (i32, i32) {
    %c0_i32 = arith.constant 0 : i32
    %c0_i32_0 = arith.constant 0 : i32
    %c0_i32_1 = arith.constant 0 : i32
    return %c0_i32, %c0_i32_0 : i32, i32
  }
  func.func @transform_1(%arg0: i32) -> (i32, i32) {
    %c0_i32 = arith.constant 0 : i32
    %c0_i32_0 = arith.constant 0 : i32
    %c0_i32_1 = arith.constant 0 : i32
    return %c0_i32, %c0_i32_0 : i32, i32
  }
  func.func @transform_2(%arg0: i32) -> (i32, i32) {
    %c0_i32 = arith.constant 0 : i32
    %c0_i32_0 = arith.constant 0 : i32
    %c0_i32_1 = arith.constant 0 : i32
    return %c0_i32, %c0_i32_0 : i32, i32
  }
  func.func @transform_3(%arg0: i32) -> (i32, i32) {
    %c0_i32 = arith.constant 0 : i32
    %c0_i32_0 = arith.constant 0 : i32
    %c0_i32_1 = arith.constant 0 : i32
    return %c0_i32, %c0_i32_0 : i32, i32
  }
  func.func @transform_4(%arg0: i32) -> (i32, i32) {
    %c0_i32 = arith.constant 0 : i32
    %c0_i32_0 = arith.constant 0 : i32
    %c0_i32_1 = arith.constant 0 : i32
    return %c0_i32, %c0_i32_0 : i32, i32
  }
}

module attributes {stable_mosaic.version = 11 : i64} {
  func.func @_conv_bias_act_kernel(%arg0: i32, %arg1: memref<64x128xbf16, #tpu.memory_space<vmem>>, %arg2: memref<128x128xbf16, #tpu.memory_space<vmem>>, %arg3: memref<1x128xf32, #tpu.memory_space<vmem>>, %arg4: memref<64x128xf32, #tpu.memory_space<vmem>>) attributes {dimension_semantics = [#tpu.dimension_semantics<parallel>], iteration_bounds = array<i64: 2>, scalar_prefetch = 0 : i64, scratch_operands = 0 : i64, tpu.core_type = #tpu.core_type<tc>, window_params = [{transform_indices = @transform_0, window_bounds = array<i64: 64, 128>}, {pipeline_mode = #tpu.pipeline_mode<synchronous>, transform_indices = @transform_1, window_bounds = array<i64: 128, 128>}, {pipeline_mode = #tpu.pipeline_mode<synchronous>, transform_indices = @transform_2, window_bounds = array<i64: 1, 128>}, {transform_indices = @transform_3, window_bounds = array<i64: 64, 128>}]} {
    %c0 = arith.constant 0 : index
    %c0_0 = arith.constant 0 : index
    %0 = vector.load %arg1[%c0, %c0_0] : memref<64x128xbf16, #tpu.memory_space<vmem>>, vector<64x128xbf16>
    %c0_1 = arith.constant 0 : index
    %c0_2 = arith.constant 0 : index
    %1 = vector.load %arg2[%c0_1, %c0_2] : memref<128x128xbf16, #tpu.memory_space<vmem>>, vector<128x128xbf16>
    %cst = arith.constant dense<0.000000e+00> : vector<64x128xf32>
    %2 = tpu.matmul %0, %1, %cst {dimension_numbers = #tpu.dot_dimension_numbers<[1], [0], [0], [1], [0, 0, 1, 1], [], []>} : vector<64x128xbf16>, vector<128x128xbf16>, vector<64x128xf32> -> vector<64x128xf32>
    %c0_3 = arith.constant 0 : index
    %c0_4 = arith.constant 0 : index
    %3 = vector.load %arg3[%c0_3, %c0_4] : memref<1x128xf32, #tpu.memory_space<vmem>>, vector<1x128xf32>
    %4 = vector.broadcast %3 : vector<1x128xf32> to vector<64x128xf32>
    %5 = arith.addf %2, %4 : vector<64x128xf32>
    %c0_5 = arith.constant 0 : index
    %c0_6 = arith.constant 0 : index
    %6 = vector.load %arg4[%c0_5, %c0_6] : memref<64x128xf32, #tpu.memory_space<vmem>>, vector<64x128xf32>
    tpu.vector_store %arg4[%c0_5, %c0_6], %5 {strides = array<i32>} : memref<64x128xf32, #tpu.memory_space<vmem>>, vector<64x128xf32>,
    return
  }
  func.func @transform_0(%arg0: i32) -> (i32, i32) {
    %c0_i32 = arith.constant 0 : i32
    %c0_i32_0 = arith.constant 0 : i32
    return %arg0, %c0_i32 : i32, i32
  }
  func.func @transform_1(%arg0: i32) -> (i32, i32) {
    %c0_i32 = arith.constant 0 : i32
    %c0_i32_0 = arith.constant 0 : i32
    %c0_i32_1 = arith.constant 0 : i32
    return %c0_i32, %c0_i32_0 : i32, i32
  }
  func.func @transform_2(%arg0: i32) -> (i32, i32) {
    %c0_i32 = arith.constant 0 : i32
    %c0_i32_0 = arith.constant 0 : i32
    %c0_i32_1 = arith.constant 0 : i32
    return %c0_i32, %c0_i32_0 : i32, i32
  }
  func.func @transform_3(%arg0: i32) -> (i32, i32) {
    %c0_i32 = arith.constant 0 : i32
    %c0_i32_0 = arith.constant 0 : i32
    return %arg0, %c0_i32 : i32, i32
  }
}

</mosaic_0001>

<llo_original>
// kernel: _lambda_.10
$region0: #{_lambda_.10}
  #allocation0 [shape = 'u32[]', space=smem, size = 0x4, offset = 0x4, fixed_abs, tag = 'smem constant byte address 0x4 - core index']
  #allocation1 [shape = 'u32[72,128]{1,0:T(1,128)}', space=vmem, size = 0x9000, scoped, tag = 'internal scratch']
  %s0 = inlined_call_operand.vmem [shape: bf16[512,27], index: 0, kind: input, shape index: {}]
  %s1 = inlined_call_operand.vmem [shape: bf16[27,128], index: 1, kind: input, shape index: {}]
  %s2 = inlined_call_operand.vmem [shape: f32[1,128], index: 2, kind: input, shape index: {}]
  %s3 = inlined_call_operand.vmem [shape: f32[1,128], index: 3, kind: input, shape index: {}]
  %s4 = inlined_call_operand.vmem [shape: f32[512,128], index: 4, kind: output, shape index: {}]
  %s5 = sld [smem:[#allocation0]]
  $region26: #{_lambda_.10} parent=0
    _
  %s7 = ssub.s32 1, %s5
  %s8 = scalar_select 0, %s7, %s5
  // Predicated region
  $region2: #{_lambda_.10} parent=0 // pred_check
    _
  $region3: #{_lambda_.10} parent=0 // pred_check_branch
    %10 = sbr.rel (0) target = $region5
  $region4: #{_lambda_.10} parent=0 // pred_region
    _
  $region5: #{_lambda_.10} parent=0 // pred_fallthru
    _
  // Predicated region
  $region6: #{_lambda_.10} parent=0 // pred_check
    _
  $region7: #{_lambda_.10} parent=0 // pred_check_branch
    %12 = sbr.rel (0) target = $region9
  $region8: #{_lambda_.10} parent=0 // pred_region
    _
  $region9: #{_lambda_.10} parent=0 // pred_fallthru
    _
  // Predicated region
  $region10: #{_lambda_.10} parent=0 // pred_check
    _
  $region11: #{_lambda_.10} parent=0 // pred_check_branch
    %14 = sbr.rel (0) target = $region13
  $region12: #{_lambda_.10} parent=0 // pred_region
    _
  $region13: #{_lambda_.10} parent=0 // pred_fallthru
    _
  // Predicated region
  $region14: #{_lambda_.10} parent=0 // pred_check
    _
  $region15: #{_lambda_.10} parent=0 // pred_check_branch
    %16 = sbr.rel (0) target = $region17
  $region16: #{_lambda_.10} parent=0 // pred_region
    _
  $region17: #{_lambda_.10} parent=0 // pred_fallthru
    _
  %v18 = vld [vmem:[%s0] sm:$0xf]
  %v19 = vld [vmem:[%s0 + $0x4] sm:$0xf]
  %v20 = vld [vmem:[%s0 + $0x8] sm:$0xf]
  %v21 = vld [vmem:[%s0 + $0xc] sm:$0xf]
  %v22 = vld [vmem:[%s0 + $0x10] sm:$0xf]
  %v23 = vld [vmem:[%s0 + $0x14] sm:$0xf]
  %v24 = vld [vmem:[%s0 + $0x18] sm:$0xf]
  %v25 = vld [vmem:[%s0 + $0x1c] sm:$0xf]
  %v26 = vld [vmem:[%s0 + $0x20] sm:$0xf]
  %v27 = vld [vmem:[%s0 + $0x24] sm:$0xf]
  %v28 = vld [vmem:[%s0 + $0x28] sm:$0xf]
  %v29 = vld [vmem:[%s0 + $0x2c] sm:$0xf]
  %v30 = vld [vmem:[%s0 + $0x30] sm:$0xf]
  %v31 = vld [vmem:[%s0 + $0x34] sm:$0xf]
  %v32 = vld [vmem:[%s0 + $0x38] sm:$0xf]
  %v33 = vld [vmem:[%s0 + $0x3c] sm:$0xf]
  %v34 = vld [vmem:[%s0 + $0x40] sm:$0xf]
  %v35 = vld [vmem:[%s0 + $0x44] sm:$0xf]
  %v36 = vld [vmem:[%s0 + $0x48] sm:$0xf]
  %v37 = vld [vmem:[%s0 + $0x4c] sm:$0xf]
  %v38 = vld [vmem:[%s0 + $0x50] sm:$0xf]
  %v39 = vld [vmem:[%s0 + $0x54] sm:$0xf]
  %v40 = vld [vmem:[%s0 + $0x58] sm:$0xf]
  %v41 = vld [vmem:[%s0 + $0x5c] sm:$0xf]
  %v42 = vld [vmem:[%s0 + $0x60] sm:$0xf]
  %v43 = vld [vmem:[%s0 + $0x64] sm:$0xf]
  %v44 = vld [vmem:[%s0 + $0x68] sm:$0xf]
  %v45 = vld [vmem:[%s0 + $0x6c] sm:$0xf]
  %v46 = vld [vmem:[%s0 + $0x70] sm:$0xf]
  %v47 = vld [vmem:[%s0 + $0x74] sm:$0xf]
  %v48 = vld [vmem:[%s0 + $0x78] sm:$0xf]
  %v49 = vld [vmem:[%s0 + $0x7c] sm:$0xf]
  %v50 = vld [vmem:[%s0 + $0x80] sm:$0xf]
  %v51 = vld [vmem:[%s0 + $0x84] sm:$0xf]
  %v52 = vld [vmem:[%s0 + $0x88] sm:$0xf]
  %v53 = vld [vmem:[%s0 + $0x8c] sm:$0xf]
  %v54 = vld [vmem:[%s0 + $0x90] sm:$0xf]
  %v55 = vld [vmem:[%s0 + $0x94] sm:$0xf]
  %v56 = vld [vmem:[%s0 + $0x98] sm:$0xf]
  %v57 = vld [vmem:[%s0 + $0x9c] sm:$0xf]
  %v58 = vld [vmem:[%s0 + $0xa0] sm:$0xf]
  %v59 = vld [vmem:[%s0 + $0xa4] sm:$0xf]
  %v60 = vld [vmem:[%s0 + $0xa8] sm:$0xf]
  %v61 = vld [vmem:[%s0 + $0xac] sm:$0xf]
  %v62 = vld [vmem:[%s0 + $0xb0] sm:$0xf]
  %v63 = vld [vmem:[%s0 + $0xb4] sm:$0xf]
  %v64 = vld [vmem:[%s0 + $0xb8] sm:$0xf]
  %v65 = vld [vmem:[%s0 + $0xbc] sm:$0xf]
  %v66 = vld [vmem:[%s0 + $0xc0] sm:$0xf]
  %v67 = vld [vmem:[%s0 + $0xc4] sm:$0xf]
  %v68 = vld [vmem:[%s0 + $0xc8] sm:$0xf]
  %v69 = vld [vmem:[%s0 + $0xcc] sm:$0xf]
  %v70 = vld [vmem:[%s0 + $0xd0] sm:$0xf]
  %v71 = vld [vmem:[%s0 + $0xd4] sm:$0xf]
  %v72 = vld [vmem:[%s0 + $0xd8] sm:$0xf]
  %v73 = vld [vmem:[%s0 + $0xdc] sm:$0xf]
  %v74 = vld [vmem:[%s0 + $0xe0] sm:$0xf]
  %v75 = vld [vmem:[%s0 + $0xe4] sm:$0xf]
  %v76 = vld [vmem:[%s0 + $0xe8] sm:$0xf]
  %v77 = vld [vmem:[%s0 + $0xec] sm:$0xf]
  %v78 = vld [vmem:[%s0 + $0xf0] sm:$0xf]
  %v79 = vld [vmem:[%s0 + $0xf4] sm:$0xf]
  %v80 = vld [vmem:[%s0 + $0xf8] sm:$0xf]
  %v81 = vld [vmem:[%s0 + $0xfc] sm:$0xf]
  %v82 = vld [vmem:[%s1] sm:$0xf]
  %v83 = vld [vmem:[%s1 + $0x4] sm:$0xf]
  %v84 = vld [vmem:[%s1 + $0x8] sm:$0xf]
  %v85 = vld [vmem:[%s1 + $0xc] sm:$0x3]
  %v150 = vunpack.c.l.b16 %v18
  %v151 = vunpack.c.l.b16 %v19
  %v152 = vunpack.c.l.b16 %v20
  %v153 = vunpack.c.l.b16 %v21
  %v154 = vunpack.c.l.b16 %v22
  %v155 = vunpack.c.l.b16 %v23
  %v156 = vunpack.c.l.b16 %v24
  %v157 = vunpack.c.l.b16 %v25
  %v158 = vunpack.c.l.b16 %v26
  %v159 = vunpack.c.l.b16 %v27
  %v160 = vunpack.c.l.b16 %v28
  %v161 = vunpack.c.l.b16 %v29
  %v162 = vunpack.c.l.b16 %v30
  %v163 = vunpack.c.l.b16 %v31
  %v164 = vunpack.c.l.b16 %v32
  %v165 = vunpack.c.l.b16 %v33
  %v166 = vunpack.c.l.b16 %v34
  %v167 = vunpack.c.l.b16 %v35
  %v168 = vunpack.c.l.b16 %v36
  %v169 = vunpack.c.l.b16 %v37
  %v170 = vunpack.c.l.b16 %v38
  %v171 = vunpack.c.l.b16 %v39
  %v172 = vunpack.c.l.b16 %v40
  %v173 = vunpack.c.l.b16 %v41
  %v174 = vunpack.c.l.b16 %v42
  %v175 = vunpack.c.l.b16 %v43
  %v176 = vunpack.c.l.b16 %v44
  %v177 = vunpack.c.l.b16 %v45
  %v178 = vunpack.c.l.b16 %v46
  %v179 = vunpack.c.l.b16 %v47
  %v180 = vunpack.c.l.b16 %v48
  %v181 = vunpack.c.l.b16 %v49
  %v182 = vunpack.c.l.b16 %v50
  %v183 = vunpack.c.l.b16 %v51
  %v184 = vunpack.c.l.b16 %v52
  %v185 = vunpack.c.l.b16 %v53
  %v186 = vunpack.c.l.b16 %v54
  %v187 = vunpack.c.l.b16 %v55
  %v188 = vunpack.c.l.b16 %v56
  %v189 = vunpack.c.l.b16 %v57
  %v190 = vunpack.c.l.b16 %v58
  %v191 = vunpack.c.l.b16 %v59
  %v192 = vunpack.c.l.b16 %v60
  %v193 = vunpack.c.l.b16 %v61
  %v194 = vunpack.c.l.b16 %v62
  %v195 = vunpack.c.l.b16 %v63
  %v196 = vunpack.c.l.b16 %v64
  %v197 = vunpack.c.l.b16 %v65
  %v198 = vunpack.c.l.b16 %v66
  %v199 = vunpack.c.l.b16 %v67
  %v200 = vunpack.c.l.b16 %v68
  %v201 = vunpack.c.l.b16 %v69
  %v202 = vunpack.c.l.b16 %v70
  %v203 = vunpack.c.l.b16 %v71
  %v204 = vunpack.c.l.b16 %v72
  %v205 = vunpack.c.l.b16 %v73
  %v206 = vunpack.c.l.b16 %v74
  %v207 = vunpack.c.l.b16 %v75
  %v208 = vunpack.c.l.b16 %v76
  %v209 = vunpack.c.l.b16 %v77
  %v210 = vunpack.c.l.b16 %v78
  %v211 = vunpack.c.l.b16 %v79
  %v212 = vunpack.c.l.b16 %v80
  %v213 = vunpack.c.l.b16 %v81
  %v214 = vpack.c.b16 %v151, %v150
  %v215 = vpack.c.b16 %v153, %v152
  %v216 = vpack.c.b16 %v155, %v154
  %v217 = vpack.c.b16 %v157, %v156
  %v218 = vpack.c.b16 %v159, %v158
  %v219 = vpack.c.b16 %v161, %v160
  %v220 = vpack.c.b16 %v163, %v162
  %v221 = vpack.c.b16 %v165, %v164
  %v222 = vpack.c.b16 %v167, %v166
  %v223 = vpack.c.b16 %v169, %v168
  %v224 = vpack.c.b16 %v171, %v170
  %v225 = vpack.c.b16 %v173, %v172
  %v226 = vpack.c.b16 %v175, %v174
  %v227 = vpack.c.b16 %v177, %v176
  %v228 = vpack.c.b16 %v179, %v178
  %v229 = vpack.c.b16 %v181, %v180
  %v230 = vpack.c.b16 %v183, %v182
  %v231 = vpack.c.b16 %v185, %v184
  %v232 = vpack.c.b16 %v187, %v186
  %v233 = vpack.c.b16 %v189, %v188
  %v234 = vpack.c.b16 %v191, %v190
  %v235 = vpack.c.b16 %v193, %v192
  %v236 = vpack.c.b16 %v195, %v194
  %v237 = vpack.c.b16 %v197, %v196
  %v238 = vpack.c.b16 %v199, %v198
  %v239 = vpack.c.b16 %v201, %v200
  %v240 = vpack.c.b16 %v203, %v202
  %v241 = vpack.c.b16 %v205, %v204
  %v242 = vpack.c.b16 %v207, %v206
  %v243 = vpack.c.b16 %v209, %v208
  %v244 = vpack.c.b16 %v211, %v210
  %v245 = vpack.c.b16 %v213, %v212
  %v250 = vunpack.c.l.b16 %v82
  %v251 = vunpack.c.l.b16 %v83
  %v252 = vunpack.c.l.b16 %v84
  %v253 = vunpack.c.l.b16 %v85
  %v254 = vpack.c.b16 %v251, %v250
  %v255 = vpack.c.b16 %v253, %v252
  %vm257 = vcmask 220160
  %v259 = vsel %vm257, %v214, 0
  %v262 = vsel %vm257, %v215, 0
  %v265 = vsel %vm257, %v216, 0
  %v268 = vsel %vm257, %v217, 0
  %v271 = vsel %vm257, %v218, 0
  %v274 = vsel %vm257, %v219, 0
  %v277 = vsel %vm257, %v220, 0
  %v280 = vsel %vm257, %v221, 0
  %v283 = vsel %vm257, %v222, 0
  %v286 = vsel %vm257, %v223, 0
  %v289 = vsel %vm257, %v224, 0
  %v292 = vsel %vm257, %v225, 0
  %v295 = vsel %vm257, %v226, 0
  %v298 = vsel %vm257, %v227, 0
  %v301 = vsel %vm257, %v228, 0
  %v304 = vsel %vm257, %v229, 0
  %v307 = vsel %vm257, %v230, 0
  %v310 = vsel %vm257, %v231, 0
  %v313 = vsel %vm257, %v232, 0
  %v316 = vsel %vm257, %v233, 0
  %v319 = vsel %vm257, %v234, 0
  %v322 = vsel %vm257, %v235, 0
  %v325 = vsel %vm257, %v236, 0
  %v328 = vsel %vm257, %v237, 0
  %v331 = vsel %vm257, %v238, 0
  %v334 = vsel %vm257, %v239, 0
  %v337 = vsel %vm257, %v240, 0
  %v340 = vsel %vm257, %v241, 0
  %v343 = vsel %vm257, %v242, 0
  %v346 = vsel %vm257, %v243, 0
  %v349 = vsel %vm257, %v244, 0
  %v352 = vsel %vm257, %v245, 0
  %vm354 = vcmask 1044480
  %vm355 = vcmask 1045504
  %v356 = vsel %vm354, 4294967295, 65535
  %v357 = vsel %vm355, %v356, 0
  %v359 = vand.u32 %v255, %v357
  %361 = vmatpush.bf16.msra.mxu0 0
  %362 = vmatpush.bf16.msra.mxu0 0
  %363 = vmatpush.bf16.msra.mxu0 0
  %364 = vmatpush.bf16.msra.mxu0 0
  %365 = vmatpush.bf16.msra.mxu0 0
  %366 = vmatpush.bf16.msra.mxu0 0
  %367 = vmatpush.bf16.msra.mxu0 %v359
  %368 = vmatpush.bf16.msra.mxu0 %v254
  %369 = vmatmul.bf16.gmra.mxu0 %v259
  %v370 = vpop.f32.mrf.mxu0
  %v371 = vadd.f32 0.0, %v370
  %v372 = vpop.f32.mrf.mxu0
  %v373 = vadd.f32 0.0, %v372
  %374 = vmatmul.bf16.gmra.mxu0 %v262
  %v375 = vpop.f32.mrf.mxu0
  %v376 = vadd.f32 0.0, %v375
  %v377 = vpop.f32.mrf.mxu0
  %v378 = vadd.f32 0.0, %v377
  %379 = vmatmul.bf16.gmra.mxu0 %v265
  %v380 = vpop.f32.mrf.mxu0
  %v381 = vadd.f32 0.0, %v380
  %v382 = vpop.f32.mrf.mxu0
  %v383 = vadd.f32 0.0, %v382
  %384 = vmatmul.bf16.gmra.mxu0 %v268
  %v385 = vpop.f32.mrf.mxu0
  %v386 = vadd.f32 0.0, %v385
  %v387 = vpop.f32.mrf.mxu0
  %v388 = vadd.f32 0.0, %v387
  %389 = vmatmul.bf16.gmra.mxu0 %v271
  %v390 = vpop.f32.mrf.mxu0
  %v391 = vadd.f32 0.0, %v390
  %v392 = vpop.f32.mrf.mxu0
  %v393 = vadd.f32 0.0, %v392
  %394 = vmatmul.bf16.gmra.mxu0 %v274
  %v395 = vpop.f32.mrf.mxu0
  %v396 = vadd.f32 0.0, %v395
  %v397 = vpop.f32.mrf.mxu0
  %v398 = vadd.f32 0.0, %v397
  %399 = vmatmul.bf16.gmra.mxu0 %v277
  %v400 = vpop.f32.mrf.mxu0
  %v401 = vadd.f32 0.0, %v400
  %v402 = vpop.f32.mrf.mxu0
  %v403 = vadd.f32 0.0, %v402
  %404 = vmatmul.bf16.gmra.mxu0 %v280
  %v405 = vpop.f32.mrf.mxu0
  %v406 = vadd.f32 0.0, %v405
  %v407 = vpop.f32.mrf.mxu0
  %v408 = vadd.f32 0.0, %v407
  %409 = vmatmul.bf16.gmra.mxu0 %v283
  %v410 = vpop.f32.mrf.mxu0
  %v411 = vadd.f32 0.0, %v410
  %v412 = vpop.f32.mrf.mxu0
  %v413 = vadd.f32 0.0, %v412
  %414 = vmatmul.bf16.gmra.mxu0 %v286
  %v415 = vpop.f32.mrf.mxu0
  %v416 = vadd.f32 0.0, %v415
  %v417 = vpop.f32.mrf.mxu0
  %v418 = vadd.f32 0.0, %v417
  %419 = vmatmul.bf16.gmra.mxu0 %v289
  %v420 = vpop.f32.mrf.mxu0
  %v421 = vadd.f32 0.0, %v420
  %v422 = vpop.f32.mrf.mxu0
  %v423 = vadd.f32 0.0, %v422
  %424 = vmatmul.bf16.gmra.mxu0 %v292
  %v425 = vpop.f32.mrf.mxu0
  %v426 = vadd.f32 0.0, %v425
  %v427 = vpop.f32.mrf.mxu0
  %v428 = vadd.f32 0.0, %v427
  %429 = vmatmul.bf16.gmra.mxu0 %v295
  %v430 = vpop.f32.mrf.mxu0
  %v431 = vadd.f32 0.0, %v430
  %v432 = vpop.f32.mrf.mxu0
  %v433 = vadd.f32 0.0, %v432
  %434 = vmatmul.bf16.gmra.mxu0 %v298
  %v435 = vpop.f32.mrf.mxu0
  %v436 = vadd.f32 0.0, %v435
  %v437 = vpop.f32.mrf.mxu0
  %v438 = vadd.f32 0.0, %v437
  %439 = vmatmul.bf16.gmra.mxu0 %v301
  %v440 = vpop.f32.mrf.mxu0
  %v441 = vadd.f32 0.0, %v440
  %v442 = vpop.f32.mrf.mxu0
  %v443 = vadd.f32 0.0, %v442
  %444 = vmatmul.bf16.gmra.mxu0 %v304
  %v445 = vpop.f32.mrf.mxu0
  %v446 = vadd.f32 0.0, %v445
  %v447 = vpop.f32.mrf.mxu0
  %v448 = vadd.f32 0.0, %v447
  %449 = vmatmul.bf16.gmra.mxu0 %v307
  %v450 = vpop.f32.mrf.mxu0
  %v451 = vadd.f32 0.0, %v450
  %v452 = vpop.f32.mrf.mxu0
  %v453 = vadd.f32 0.0, %v452
  %454 = vmatmul.bf16.gmra.mxu0 %v310
  %v455 = vpop.f32.mrf.mxu0
  %v456 = vadd.f32 0.0, %v455
  %v457 = vpop.f32.mrf.mxu0
  %v458 = vadd.f32 0.0, %v457
  %459 = vmatmul.bf16.gmra.mxu0 %v313
  %v460 = vpop.f32.mrf.mxu0
  %v461 = vadd.f32 0.0, %v460
  %v462 = vpop.f32.mrf.mxu0
  %v463 = vadd.f32 0.0, %v462
  %464 = vmatmul.bf16.gmra.mxu0 %v316
  %v465 = vpop.f32.mrf.mxu0
  %v466 = vadd.f32 0.0, %v465
  %v467 = vpop.f32.mrf.mxu0
  %v468 = vadd.f32 0.0, %v467
  %469 = vmatmul.bf16.gmra.mxu0 %v319
  %v470 = vpop.f32.mrf.mxu0
  %v471 = vadd.f32 0.0, %v470
  %v472 = vpop.f32.mrf.mxu0
  %v473 = vadd.f32 0.0, %v472
  %474 = vmatmul.bf16.gmra.mxu0 %v322
  %v475 = vpop.f32.mrf.mxu0
  %v476 = vadd.f32 0.0, %v475
  %v477 = vpop.f32.mrf.mxu0
  %v478 = vadd.f32 0.0, %v477
  %479 = vmatmul.bf16.gmra.mxu0 %v325
  %v480 = vpop.f32.mrf.mxu0
  %v481 = vadd.f32 0.0, %v480
  %v482 = vpop.f32.mrf.mxu0
  %v483 = vadd.f32 0.0, %v482
  %484 = vmatmul.bf16.gmra.mxu0 %v328
  %v485 = vpop.f32.mrf.mxu0
  %v486 = vadd.f32 0.0, %v485
  %v487 = vpop.f32.mrf.mxu0
  %v488 = vadd.f32 0.0, %v487
  %489 = vmatmul.bf16.gmra.mxu0 %v331
  %v490 = vpop.f32.mrf.mxu0
  %v491 = vadd.f32 0.0, %v490
  %v492 = vpop.f32.mrf.mxu0
  %v493 = vadd.f32 0.0, %v492
  %494 = vmatmul.bf16.gmra.mxu0 %v334
  %v495 = vpop.f32.mrf.mxu0
  %v496 = vadd.f32 0.0, %v495
  %v497 = vpop.f32.mrf.mxu0
  %v498 = vadd.f32 0.0, %v497
  %499 = vmatmul.bf16.gmra.mxu0 %v337
  %v500 = vpop.f32.mrf.mxu0
  %v501 = vadd.f32 0.0, %v500
  %v502 = vpop.f32.mrf.mxu0
  %v503 = vadd.f32 0.0, %v502
  %504 = vmatmul.bf16.gmra.mxu0 %v340
  %v505 = vpop.f32.mrf.mxu0
  %v506 = vadd.f32 0.0, %v505
  %v507 = vpop.f32.mrf.mxu0
  %v508 = vadd.f32 0.0, %v507
  %509 = vmatmul.bf16.gmra.mxu0 %v343
  %v510 = vpop.f32.mrf.mxu0
  %v511 = vadd.f32 0.0, %v510
  %v512 = vpop.f32.mrf.mxu0
  %v513 = vadd.f32 0.0, %v512
  %514 = vmatmul.bf16.gmra.mxu0 %v346
  %v515 = vpop.f32.mrf.mxu0
  %v516 = vadd.f32 0.0, %v515
  %v517 = vpop.f32.mrf.mxu0
  %v518 = vadd.f32 0.0, %v517
  %519 = vmatmul.bf16.gmra.mxu0 %v349
  %v520 = vpop.f32.mrf.mxu0
  %v521 = vadd.f32 0.0, %v520
  %v522 = vpop.f32.mrf.mxu0
  %v523 = vadd.f32 0.0, %v522
  %524 = vmatmul.bf16.gmra.mxu0 %v352
  %v525 = vpop.f32.mrf.mxu0
  %v526 = vadd.f32 0.0, %v525
  %v527 = vpop.f32.mrf.mxu0
  %v528 = vadd.f32 0.0, %v527
  %529 = vdwg.mxu0
  %v530 = vadd.f32 %v371, %v373
  %v531 = vadd.f32 %v530, %v376
  %v532 = vadd.f32 %v531, %v378
  %v533 = vadd.f32 %v532, %v381
  %v534 = vadd.f32 %v533, %v383
  %v535 = vadd.f32 %v534, %v386
  %v536 = vadd.f32 %v535, %v388
  %v537 = vadd.f32 %v536, %v391
  %v538 = vadd.f32 %v537, %v393
  %v539 = vadd.f32 %v538, %v396
  %v540 = vadd.f32 %v539, %v398
  %v541 = vadd.f32 %v540, %v401
  %v542 = vadd.f32 %v541, %v403
  %v543 = vadd.f32 %v542, %v406
  %v544 = vadd.f32 %v543, %v408
  %v545 = vadd.f32 %v544, %v411
  %v546 = vadd.f32 %v545, %v413
  %v547 = vadd.f32 %v546, %v416
  %v548 = vadd.f32 %v547, %v418
  %v549 = vadd.f32 %v548, %v421
  %v550 = vadd.f32 %v549, %v423
  %v551 = vadd.f32 %v550, %v426
  %v552 = vadd.f32 %v551, %v428
  %v553 = vadd.f32 %v552, %v431
  %v554 = vadd.f32 %v553, %v433
  %v555 = vadd.f32 %v554, %v436
  %v556 = vadd.f32 %v555, %v438
  %v557 = vadd.f32 %v556, %v441
  %v558 = vadd.f32 %v557, %v443
  %v559 = vadd.f32 %v558, %v446
  %v560 = vadd.f32 %v559, %v448
  %v561 = vadd.f32 %v560, %v451
  %v562 = vadd.f32 %v561, %v453
  %v563 = vadd.f32 %v562, %v456
  %v564 = vadd.f32 %v563, %v458
  %v565 = vadd.f32 %v564, %v461
  %v566 = vadd.f32 %v565, %v463
  %v567 = vadd.f32 %v566, %v466
  %v568 = vadd.f32 %v567, %v468
  %v569 = vadd.f32 %v568, %v471
  %v570 = vadd.f32 %v569, %v473
  %v571 = vadd.f32 %v570, %v476
  %v572 = vadd.f32 %v571, %v478
  %v573 = vadd.f32 %v572, %v481
  %v574 = vadd.f32 %v573, %v483
  %v575 = vadd.f32 %v574, %v486
  %v576 = vadd.f32 %v575, %v488
  %v577 = vadd.f32 %v576, %v491
  %v578 = vadd.f32 %v577, %v493
  %v579 = vadd.f32 %v578, %v496
  %v580 = vadd.f32 %v579, %v498
  %v581 = vadd.f32 %v580, %v501
  %v582 = vadd.f32 %v581, %v503
  %v583 = vadd.f32 %v582, %v506
  %v584 = vadd.f32 %v583, %v508
  %v585 = vadd.f32 %v584, %v511
  %v586 = vadd.f32 %v585, %v513
  %v587 = vadd.f32 %v586, %v516
  %v588 = vadd.f32 %v587, %v518
  %v589 = vadd.f32 %v588, %v521
  %v590 = vadd.f32 %v589, %v523
  %v591 = vadd.f32 %v590, %v526
  %v592 = vadd.f32 %v591, %v528
  %v593 = vrot.slane %v592, 4
  %v594 = vadd.f32 %v592, %v593
  %v595 = vrot.slane %v594, 2
  %v596 = vadd.f32 %v594, %v595
  %v597 = vrot.slane %v596, 1
  %v598 = vadd.f32 %v596, %v597
  %v599 = vrcp.pop 512.0
  %v600 = vmul.f32 512.0, %v599
  %v601 = vsub.f32 1.0, %v600
  %v602 = vmul.f32 %v599, %v601
  %v603 = vadd.f32 %v599, %v602
  %vm604 = vweird.f32 %v599
  %v605 = vsel %vm604, %v599, %v603
  %v606 = vmul.f32 %v598, %v605
  %v607 = vsub.f32 %v371, %v606
  %v608 = vsub.f32 %v373, %v606
  %v609 = vsub.f32 %v376, %v606
  %v610 = vsub.f32 %v378, %v606
  %v611 = vsub.f32 %v381, %v606
  %v612 = vsub.f32 %v383, %v606
  %v613 = vsub.f32 %v386, %v606
  %v614 = vsub.f32 %v388, %v606
  %v615 = vsub.f32 %v391, %v606
  %v616 = vsub.f32 %v393, %v606
  %v617 = vsub.f32 %v396, %v606
  %v618 = vsub.f32 %v398, %v606
  %v619 = vsub.f32 %v401, %v606
  %v620 = vsub.f32 %v403, %v606
  %v621 = vsub.f32 %v406, %v606
  %v622 = vsub.f32 %v408, %v606
  %v623 = vsub.f32 %v411, %v606
  %v624 = vsub.f32 %v413, %v606
  %v625 = vsub.f32 %v416, %v606
  %v626 = vsub.f32 %v418, %v606
  %v627 = vsub.f32 %v421, %v606
  %v628 = vsub.f32 %v423, %v606
  %v629 = vsub.f32 %v426, %v606
  %v630 = vsub.f32 %v428, %v606
  %v631 = vsub.f32 %v431, %v606
  %v632 = vsub.f32 %v433, %v606
  %v633 = vsub.f32 %v436, %v606
  %v634 = vsub.f32 %v438, %v606
  %v635 = vsub.f32 %v441, %v606
  %v636 = vsub.f32 %v443, %v606
  %v637 = vsub.f32 %v446, %v606
  %v638 = vsub.f32 %v448, %v606
  %v639 = vsub.f32 %v451, %v606
  %v640 = vsub.f32 %v453, %v606
  %v641 = vsub.f32 %v456, %v606
  %v642 = vsub.f32 %v458, %v606
  %v643 = vsub.f32 %v461, %v606
  %v644 = vsub.f32 %v463, %v606
  %v645 = vsub.f32 %v466, %v606
  %v646 = vsub.f32 %v468, %v606
  %v647 = vsub.f32 %v471, %v606
  %v648 = vsub.f32 %v473, %v606
  %v649 = vsub.f32 %v476, %v606
  %v650 = vsub.f32 %v478, %v606
  %v651 = vsub.f32 %v481, %v606
  %v652 = vsub.f32 %v483, %v606
  %v653 = vsub.f32 %v486, %v606
  %v654 = vsub.f32 %v488, %v606
  %v655 = vsub.f32 %v491, %v606
  %v656 = vsub.f32 %v493, %v606
  %v657 = vsub.f32 %v496, %v606
  %v658 = vsub.f32 %v498, %v606
  %v659 = vsub.f32 %v501, %v606
  %v660 = vsub.f32 %v503, %v606
  %v661 = vsub.f32 %v506, %v606
  %v662 = vsub.f32 %v508, %v606
  %v663 = vsub.f32 %v511, %v606
  %v664 = vsub.f32 %v513, %v606
  %v665 = vsub.f32 %v516, %v606
  %v666 = vsub.f32 %v518, %v606
  %v667 = vsub.f32 %v521, %v606
  %v668 = vsub.f32 %v523, %v606
  %v669 = vsub.f32 %v526, %v606
  %v670 = vsub.f32 %v528, %v606
  %v671 = vmul.f32 %v607, %v607
  %v672 = vmul.f32 %v608, %v608
  %v673 = vmul.f32 %v609, %v609
  %v674 = vmul.f32 %v610, %v610
  %v675 = vmul.f32 %v611, %v611
  %v676 = vmul.f32 %v612, %v612
  %v677 = vmul.f32 %v613, %v613
  %v678 = vmul.f32 %v614, %v614
  %v679 = vmul.f32 %v615, %v615
  %v680 = vmul.f32 %v616, %v616
  %v681 = vmul.f32 %v617, %v617
  %v682 = vmul.f32 %v618, %v618
  %v683 = vmul.f32 %v619, %v619
  %v684 = vmul.f32 %v620, %v620
  %v685 = vmul.f32 %v621, %v621
  %v686 = vmul.f32 %v622, %v622
  %v687 = vmul.f32 %v623, %v623
  %v688 = vmul.f32 %v624, %v624
  %v689 = vmul.f32 %v625, %v625
  %v690 = vmul.f32 %v626, %v626
  %v691 = vmul.f32 %v627, %v627
  %v692 = vmul.f32 %v628, %v628
  %v693 = vmul.f32 %v629, %v629
  %v694 = vmul.f32 %v630, %v630
  %v695 = vmul.f32 %v631, %v631
  %v696 = vmul.f32 %v632, %v632
  %v697 = vmul.f32 %v633, %v633
  %v698 = vmul.f32 %v634, %v634
  %v699 = vmul.f32 %v635, %v635
  %v700 = vmul.f32 %v636, %v636
  %v701 = vmul.f32 %v637, %v637
  %v702 = vmul.f32 %v638, %v638
  %v703 = vmul.f32 %v639, %v639
  %v704 = vmul.f32 %v640, %v640
  %v705 = vmul.f32 %v641, %v641
  %v706 = vmul.f32 %v642, %v642
  %v707 = vmul.f32 %v643, %v643
  %v708 = vmul.f32 %v644, %v644
  %v709 = vmul.f32 %v645, %v645
  %v710 = vmul.f32 %v646, %v646
  %v711 = vmul.f32 %v647, %v647
  %v712 = vmul.f32 %v648, %v648
  %v713 = vmul.f32 %v649, %v649
  %v714 = vmul.f32 %v650, %v650
  %v715 = vmul.f32 %v651, %v651
  %v716 = vmul.f32 %v652, %v652
  %v717 = vmul.f32 %v653, %v653
  %v718 = vmul.f32 %v654, %v654
  %v719 = vmul.f32 %v655, %v655
  %v720 = vmul.f32 %v656, %v656
  %v721 = vmul.f32 %v657, %v657
  %v722 = vmul.f32 %v658, %v658
  %v723 = vmul.f32 %v659, %v659
  %v724 = vmul.f32 %v660, %v660
  %v725 = vmul.f32 %v661, %v661
  %v726 = vmul.f32 %v662, %v662
  %v727 = vmul.f32 %v663, %v663
  %v728 = vmul.f32 %v664, %v664
  %v729 = vmul.f32 %v665, %v665
  %v730 = vmul.f32 %v666, %v666
  %v731 = vmul.f32 %v667, %v667
  %v732 = vmul.f32 %v668, %v668
  %v733 = vmul.f32 %v669, %v669
  %v734 = vmul.f32 %v670, %v670
  %v735 = vadd.f32 %v671, %v672
  %v736 = vadd.f32 %v735, %v673
  %v737 = vadd.f32 %v736, %v674
  %v738 = vadd.f32 %v737, %v675
  %v739 = vadd.f32 %v738, %v676
  %v740 = vadd.f32 %v739, %v677
  %v741 = vadd.f32 %v740, %v678
  %v742 = vadd.f32 %v741, %v679
  %v743 = vadd.f32 %v742, %v680
  %v744 = vadd.f32 %v743, %v681
  %v745 = vadd.f32 %v744, %v682
  %v746 = vadd.f32 %v745, %v683
  %v747 = vadd.f32 %v746, %v684
  %v748 = vadd.f32 %v747, %v685
  %v749 = vadd.f32 %v748, %v686
  %v750 = vadd.f32 %v749, %v687
  %v751 = vadd.f32 %v750, %v688
  %v752 = vadd.f32 %v751, %v689
  %v753 = vadd.f32 %v752, %v690
  %v754 = vadd.f32 %v753, %v691
  %v755 = vadd.f32 %v754, %v692
  %v756 = vadd.f32 %v755, %v693
  %v757 = vadd.f32 %v756, %v694
  %v758 = vadd.f32 %v757, %v695
  %v759 = vadd.f32 %v758, %v696
  %v760 = vadd.f32 %v759, %v697
  %v761 = vadd.f32 %v760, %v698
  %v762 = vadd.f32 %v761, %v699
  %v763 = vadd.f32 %v762, %v700
  %v764 = vadd.f32 %v763, %v701
  %v765 = vadd.f32 %v764, %v702
  %v766 = vadd.f32 %v765, %v703
  %v767 = vadd.f32 %v766, %v704
  %v768 = vadd.f32 %v767, %v705
  %v769 = vadd.f32 %v768, %v706
  %v770 = vadd.f32 %v769, %v707
  %v771 = vadd.f32 %v770, %v708
  %v772 = vadd.f32 %v771, %v709
  %v773 = vadd.f32 %v772, %v710
  %v774 = vadd.f32 %v773, %v711
  %v775 = vadd.f32 %v774, %v712
  %v776 = vadd.f32 %v775, %v713
  %v777 = vadd.f32 %v776, %v714
  %v778 = vadd.f32 %v777, %v715
  %v779 = vadd.f32 %v778, %v716
  %v780 = vadd.f32 %v779, %v717
  %v781 = vadd.f32 %v780, %v718
  %v782 = vadd.f32 %v781, %v719
  %v783 = vadd.f32 %v782, %v720
  %v784 = vadd.f32 %v783, %v721
  %v785 = vadd.f32 %v784, %v722
  %v786 = vadd.f32 %v785, %v723
  %v787 = vadd.f32 %v786, %v724
  %v788 = vadd.f32 %v787, %v725
  %v789 = vadd.f32 %v788, %v726
  %v790 = vadd.f32 %v789, %v727
  %v791 = vadd.f32 %v790, %v728
  %v792 = vadd.f32 %v791, %v729
  %v793 = vadd.f32 %v792, %v730
  %v794 = vadd.f32 %v793, %v731
  %v795 = vadd.f32 %v794, %v732
  %v796 = vadd.f32 %v795, %v733
  %v797 = vadd.f32 %v796, %v734
  %v798 = vrot.slane %v797, 4
  %v799 = vadd.f32 %v797, %v798
  %v800 = vrot.slane %v799, 2
  %v801 = vadd.f32 %v799, %v800
  %v802 = vrot.slane %v801, 1
  %v803 = vadd.f32 %v801, %v802
  %v804 = vmul.f32 %v803, %v605
  %v805 = vld [vmem:[%s2] sm:$0x1]
  %v806 = vadd.f32 %v804, 1e-05
  %v807 = vrsqrt.pop %v806
  %v808 = vmul.f32 %v807, %v806
  %v809 = vmul.f32 %v808, %v807
  %v810 = vmul.f32 0.5, %v809
  %v811 = vsub.f32 1.5, %v810
  %v812 = vmul.f32 %v807, %v811
  %vm813 = vweird.f32 %v806
  %vm814 = vweird.f32 %v807
  %vm815 = vmor %vm813, %vm814
  %v816 = vsel %vm815, %v807, %v812
  %v817 = vmul.f32 %v805, %v816
  %v819 = vperm.slane %v817, 0
  %v821 = vmul.f32 %v607, %v819
  %v822 = vmul.f32 %v608, %v819
  %v823 = vmul.f32 %v609, %v819
  %v824 = vmul.f32 %v610, %v819
  %v825 = vmul.f32 %v611, %v819
  %v826 = vmul.f32 %v612, %v819
  %v827 = vmul.f32 %v613, %v819
  %v828 = vmul.f32 %v614, %v819
  %v829 = vmul.f32 %v615, %v819
  %v830 = vmul.f32 %v616, %v819
  %v831 = vmul.f32 %v617, %v819
  %v832 = vmul.f32 %v618, %v819
  %v833 = vmul.f32 %v619, %v819
  %v834 = vmul.f32 %v620, %v819
  %v835 = vmul.f32 %v621, %v819
  %v836 = vmul.f32 %v622, %v819
  %v837 = vmul.f32 %v623, %v819
  %v838 = vmul.f32 %v624, %v819
  %v839 = vmul.f32 %v625, %v819
  %v840 = vmul.f32 %v626, %v819
  %v841 = vmul.f32 %v627, %v819
  %v842 = vmul.f32 %v628, %v819
  %v843 = vmul.f32 %v629, %v819
  %v844 = vmul.f32 %v630, %v819
  %v845 = vmul.f32 %v631, %v819
  %v846 = vmul.f32 %v632, %v819
  %v847 = vmul.f32 %v633, %v819
  %v848 = vmul.f32 %v634, %v819
  %v849 = vmul.f32 %v635, %v819
  %v850 = vmul.f32 %v636, %v819
  %v851 = vmul.f32 %v637, %v819
  %v852 = vmul.f32 %v638, %v819
  %v853 = vmul.f32 %v639, %v819
  %v854 = vmul.f32 %v640, %v819
  %v855 = vmul.f32 %v641, %v819
  %v856 = vmul.f32 %v642, %v819
  %v857 = vmul.f32 %v643, %v819
  %v858 = vmul.f32 %v644, %v819
  %v859 = vmul.f32 %v645, %v819
  %v860 = vmul.f32 %v646, %v819
  %v861 = vmul.f32 %v647, %v819
  %v862 = vmul.f32 %v648, %v819
  %v863 = vmul.f32 %v649, %v819
  %v864 = vmul.f32 %v650, %v819
  %v865 = vmul.f32 %v651, %v819
  %v866 = vmul.f32 %v652, %v819
  %v867 = vmul.f32 %v653, %v819
  %v868 = vmul.f32 %v654, %v819
  %v869 = vmul.f32 %v655, %v819
  %v870 = vmul.f32 %v656, %v819
  %v871 = vmul.f32 %v657, %v819
  %v872 = vmul.f32 %v658, %v819
  %v873 = vmul.f32 %v659, %v819
  %v874 = vmul.f32 %v660, %v819
  %v875 = vmul.f32 %v661, %v819
  %v876 = vmul.f32 %v662, %v819
  %v877 = vmul.f32 %v663, %v819
  %v878 = vmul.f32 %v664, %v819
  %v879 = vmul.f32 %v665, %v819
  %v880 = vmul.f32 %v666, %v819
  %v881 = vmul.f32 %v667, %v819
  %v882 = vmul.f32 %v668, %v819
  %v883 = vmul.f32 %v669, %v819
  %v884 = vmul.f32 %v670, %v819
  %v885 = vld [vmem:[%s3] sm:$0x1]
  %v887 = vperm.slane %v885, 0
  %v889 = vadd.f32 %v821, %v887
  %v890 = vadd.f32 %v822, %v887
  %v891 = vadd.f32 %v823, %v887
  %v892 = vadd.f32 %v824, %v887
  %v893 = vadd.f32 %v825, %v887
  %v894 = vadd.f32 %v826, %v887
  %v895 = vadd.f32 %v827, %v887
  %v896 = vadd.f32 %v828, %v887
  %v897 = vadd.f32 %v829, %v887
  %v898 = vadd.f32 %v830, %v887
  %v899 = vadd.f32 %v831, %v887
  %v900 = vadd.f32 %v832, %v887
  %v901 = vadd.f32 %v833, %v887
  %v902 = vadd.f32 %v834, %v887
  %v903 = vadd.f32 %v835, %v887
  %v904 = vadd.f32 %v836, %v887
  %v905 = vadd.f32 %v837, %v887
  %v906 = vadd.f32 %v838, %v887
  %v907 = vadd.f32 %v839, %v887
  %v908 = vadd.f32 %v840, %v887
  %v909 = vadd.f32 %v841, %v887
  %v910 = vadd.f32 %v842, %v887
  %v911 = vadd.f32 %v843, %v887
  %v912 = vadd.f32 %v844, %v887
  %v913 = vadd.f32 %v845, %v887
  %v914 = vadd.f32 %v846, %v887
  %v915 = vadd.f32 %v847, %v887
  %v916 = vadd.f32 %v848, %v887
  %v917 = vadd.f32 %v849, %v887
  %v918 = vadd.f32 %v850, %v887
  %v919 = vadd.f32 %v851, %v887
  %v920 = vadd.f32 %v852, %v887
  %v921 = vadd.f32 %v853, %v887
  %v922 = vadd.f32 %v854, %v887
  %v923 = vadd.f32 %v855, %v887
  %v924 = vadd.f32 %v856, %v887
  %v925 = vadd.f32 %v857, %v887
  %v926 = vadd.f32 %v858, %v887
  %v927 = vadd.f32 %v859, %v887
  %v928 = vadd.f32 %v860, %v887
  %v929 = vadd.f32 %v861, %v887
  %v930 = vadd.f32 %v862, %v887
  %v931 = vadd.f32 %v863, %v887
  %v932 = vadd.f32 %v864, %v887
  %v933 = vadd.f32 %v865, %v887
  %v934 = vadd.f32 %v866, %v887
  %v935 = vadd.f32 %v867, %v887
  %v936 = vadd.f32 %v868, %v887
  %v937 = vadd.f32 %v869, %v887
  %v938 = vadd.f32 %v870, %v887
  %v939 = vadd.f32 %v871, %v887
  %v940 = vadd.f32 %v872, %v887
  %v941 = vadd.f32 %v873, %v887
  %v942 = vadd.f32 %v874, %v887
  %v943 = vadd.f32 %v875, %v887
  %v944 = vadd.f32 %v876, %v887
  %v945 = vadd.f32 %v877, %v887
  %v946 = vadd.f32 %v878, %v887
  %v947 = vadd.f32 %v879, %v887
  %v948 = vadd.f32 %v880, %v887
  %v949 = vadd.f32 %v881, %v887
  %v950 = vadd.f32 %v882, %v887
  %v951 = vadd.f32 %v883, %v887
  %v952 = vadd.f32 %v884, %v887
  %vm953 = vcmp.gt.f32.partialorder %v889, 0.0
  %vm954 = vcmp.gt.f32.partialorder %v890, 0.0
  %vm955 = vcmp.gt.f32.partialorder %v891, 0.0
  %vm956 = vcmp.gt.f32.partialorder %v892, 0.0
  %vm957 = vcmp.gt.f32.partialorder %v893, 0.0
  %vm958 = vcmp.gt.f32.partialorder %v894, 0.0
  %vm959 = vcmp.gt.f32.partialorder %v895, 0.0
  %vm960 = vcmp.gt.f32.partialorder %v896, 0.0
  %vm961 = vcmp.gt.f32.partialorder %v897, 0.0
  %vm962 = vcmp.gt.f32.partialorder %v898, 0.0
  %vm963 = vcmp.gt.f32.partialorder %v899, 0.0
  %vm964 = vcmp.gt.f32.partialorder %v900, 0.0
  %vm965 = vcmp.gt.f32.partialorder %v901, 0.0
  %vm966 = vcmp.gt.f32.partialorder %v902, 0.0
  %vm967 = vcmp.gt.f32.partialorder %v903, 0.0
  %vm968 = vcmp.gt.f32.partialorder %v904, 0.0
  %vm969 = vcmp.gt.f32.partialorder %v905, 0.0
  %vm970 = vcmp.gt.f32.partialorder %v906, 0.0
  %vm971 = vcmp.gt.f32.partialorder %v907, 0.0
  %vm972 = vcmp.gt.f32.partialorder %v908, 0.0
  %vm973 = vcmp.gt.f32.partialorder %v909, 0.0
  %vm974 = vcmp.gt.f32.partialorder %v910, 0.0
  %vm975 = vcmp.gt.f32.partialorder %v911, 0.0
  %vm976 = vcmp.gt.f32.partialorder %v912, 0.0
  %vm977 = vcmp.gt.f32.partialorder %v913, 0.0
  %vm978 = vcmp.gt.f32.partialorder %v914, 0.0
  %vm979 = vcmp.gt.f32.partialorder %v915, 0.0
  %vm980 = vcmp.gt.f32.partialorder %v916, 0.0
  %vm981 = vcmp.gt.f32.partialorder %v917, 0.0
  %vm982 = vcmp.gt.f32.partialorder %v918, 0.0
  %vm983 = vcmp.gt.f32.partialorder %v919, 0.0
  %vm984 = vcmp.gt.f32.partialorder %v920, 0.0
  %vm985 = vcmp.gt.f32.partialorder %v921, 0.0
  %vm986 = vcmp.gt.f32.partialorder %v922, 0.0
  %vm987 = vcmp.gt.f32.partialorder %v923, 0.0
  %vm988 = vcmp.gt.f32.partialorder %v924, 0.0
  %vm989 = vcmp.gt.f32.partialorder %v925, 0.0
  %vm990 = vcmp.gt.f32.partialorder %v926, 0.0
  %vm991 = vcmp.gt.f32.partialorder %v927, 0.0
  %vm992 = vcmp.gt.f32.partialorder %v928, 0.0
  %vm993 = vcmp.gt.f32.partialorder %v929, 0.0
  %vm994 = vcmp.gt.f32.partialorder %v930, 0.0
  %vm995 = vcmp.gt.f32.partialorder %v931, 0.0
  %vm996 = vcmp.gt.f32.partialorder %v932, 0.0
  %vm997 = vcmp.gt.f32.partialorder %v933, 0.0
  %vm998 = vcmp.gt.f32.partialorder %v934, 0.0
  %vm999 = vcmp.gt.f32.partialorder %v935, 0.0
  %vm1000 = vcmp.gt.f32.partialorder %v936, 0.0
  %vm1001 = vcmp.gt.f32.partialorder %v937, 0.0
  %vm1002 = vcmp.gt.f32.partialorder %v938, 0.0
  %vm1003 = vcmp.gt.f32.partialorder %v939, 0.0
  %vm1004 = vcmp.gt.f32.partialorder %v940, 0.0
  %vm1005 = vcmp.gt.f32.partialorder %v941, 0.0
  %vm1006 = vcmp.gt.f32.partialorder %v942, 0.0
  %vm1007 = vcmp.gt.f32.partialorder %v943, 0.0
  %vm1008 = vcmp.gt.f32.partialorder %v944, 0.0
  %vm1009 = vcmp.gt.f32.partialorder %v945, 0.0
  %vm1010 = vcmp.gt.f32.partialorder %v946, 0.0
  %vm1011 = vcmp.gt.f32.partialorder %v947, 0.0
  %vm1012 = vcmp.gt.f32.partialorder %v948, 0.0
  %vm1013 = vcmp.gt.f32.partialorder %v949, 0.0
  %vm1014 = vcmp.gt.f32.partialorder %v950, 0.0
  %vm1015 = vcmp.gt.f32.partialorder %v951, 0.0
  %vm1016 = vcmp.gt.f32.partialorder %v952, 0.0
  %v1017 = vmul.f32 %v889, 0.1
  %v1018 = vmul.f32 %v890, 0.1
  %v1019 = vmul.f32 %v891, 0.1
  %v1020 = vmul.f32 %v892, 0.1
  %v1021 = vmul.f32 %v893, 0.1
  %v1022 = vmul.f32 %v894, 0.1
  %v1023 = vmul.f32 %v895, 0.1
  %v1024 = vmul.f32 %v896, 0.1
  %v1025 = vmul.f32 %v897, 0.1
  %v1026 = vmul.f32 %v898, 0.1
  %v1027 = vmul.f32 %v899, 0.1
  %v1028 = vmul.f32 %v900, 0.1
  %v1029 = vmul.f32 %v901, 0.1
  %v1030 = vmul.f32 %v902, 0.1
  %v1031 = vmul.f32 %v903, 0.1
  %v1032 = vmul.f32 %v904, 0.1
  %v1033 = vmul.f32 %v905, 0.1
  %v1034 = vmul.f32 %v906, 0.1
  %v1035 = vmul.f32 %v907, 0.1
  %v1036 = vmul.f32 %v908, 0.1
  %v1037 = vmul.f32 %v909, 0.1
  %v1038 = vmul.f32 %v910, 0.1
  %v1039 = vmul.f32 %v911, 0.1
  %v1040 = vmul.f32 %v912, 0.1
  %v1041 = vmul.f32 %v913, 0.1
  %v1042 = vmul.f32 %v914, 0.1
  %v1043 = vmul.f32 %v915, 0.1
  %v1044 = vmul.f32 %v916, 0.1
  %v1045 = vmul.f32 %v917, 0.1
  %v1046 = vmul.f32 %v918, 0.1
  %v1047 = vmul.f32 %v919, 0.1
  %v1048 = vmul.f32 %v920, 0.1
  %v1049 = vmul.f32 %v921, 0.1
  %v1050 = vmul.f32 %v922, 0.1
  %v1051 = vmul.f32 %v923, 0.1
  %v1052 = vmul.f32 %v924, 0.1
  %v1053 = vmul.f32 %v925, 0.1
  %v1054 = vmul.f32 %v926, 0.1
  %v1055 = vmul.f32 %v927, 0.1
  %v1056 = vmul.f32 %v928, 0.1
  %v1057 = vmul.f32 %v929, 0.1
  %v1058 = vmul.f32 %v930, 0.1
  %v1059 = vmul.f32 %v931, 0.1
  %v1060 = vmul.f32 %v932, 0.1
  %v1061 = vmul.f32 %v933, 0.1
  %v1062 = vmul.f32 %v934, 0.1
  %v1063 = vmul.f32 %v935, 0.1
  %v1064 = vmul.f32 %v936, 0.1
  %v1065 = vmul.f32 %v937, 0.1
  %v1066 = vmul.f32 %v938, 0.1
  %v1067 = vmul.f32 %v939, 0.1
  %v1068 = vmul.f32 %v940, 0.1
  %v1069 = vmul.f32 %v941, 0.1
  %v1070 = vmul.f32 %v942, 0.1
  %v1071 = vmul.f32 %v943, 0.1
  %v1072 = vmul.f32 %v944, 0.1
  %v1073 = vmul.f32 %v945, 0.1
  %v1074 = vmul.f32 %v946, 0.1
  %v1075 = vmul.f32 %v947, 0.1
  %v1076 = vmul.f32 %v948, 0.1
  %v1077 = vmul.f32 %v949, 0.1
  %v1078 = vmul.f32 %v950, 0.1
  %v1079 = vmul.f32 %v951, 0.1
  %v1080 = vmul.f32 %v952, 0.1
  %v1081 = vsel %vm953, %v889, %v1017
  %v1082 = vsel %vm954, %v890, %v1018
  %v1083 = vsel %vm955, %v891, %v1019
  %v1084 = vsel %vm956, %v892, %v1020
  %v1085 = vsel %vm957, %v893, %v1021
  %v1086 = vsel %vm958, %v894, %v1022
  %v1087 = vsel %vm959, %v895, %v1023
  %v1088 = vsel %vm960, %v896, %v1024
  %v1089 = vsel %vm961, %v897, %v1025
  %v1090 = vsel %vm962, %v898, %v1026
  %v1091 = vsel %vm963, %v899, %v1027
  %v1092 = vsel %vm964, %v900, %v1028
  %v1093 = vsel %vm965, %v901, %v1029
  %v1094 = vsel %vm966, %v902, %v1030
  %v1095 = vsel %vm967, %v903, %v1031
  %v1096 = vsel %vm968, %v904, %v1032
  %v1097 = vsel %vm969, %v905, %v1033
  %v1098 = vsel %vm970, %v906, %v1034
  %v1099 = vsel %vm971, %v907, %v1035
  %v1100 = vsel %vm972, %v908, %v1036
  %v1101 = vsel %vm973, %v909, %v1037
  %v1102 = vsel %vm974, %v910, %v1038
  %v1103 = vsel %vm975, %v911, %v1039
  %v1104 = vsel %vm976, %v912, %v1040
  %v1105 = vsel %vm977, %v913, %v1041
  %v1106 = vsel %vm978, %v914, %v1042
  %v1107 = vsel %vm979, %v915, %v1043
  %v1108 = vsel %vm980, %v916, %v1044
  %v1109 = vsel %vm981, %v917, %v1045
  %v1110 = vsel %vm982, %v918, %v1046
  %v1111 = vsel %vm983, %v919, %v1047
  %v1112 = vsel %vm984, %v920, %v1048
  %v1113 = vsel %vm985, %v921, %v1049
  %v1114 = vsel %vm986, %v922, %v1050
  %v1115 = vsel %vm987, %v923, %v1051
  %v1116 = vsel %vm988, %v924, %v1052
  %v1117 = vsel %vm989, %v925, %v1053
  %v1118 = vsel %vm990, %v926, %v1054
  %v1119 = vsel %vm991, %v927, %v1055
  %v1120 = vsel %vm992, %v928, %v1056
  %v1121 = vsel %vm993, %v929, %v1057
  %v1122 = vsel %vm994, %v930, %v1058
  %v1123 = vsel %vm995, %v931, %v1059
  %v1124 = vsel %vm996, %v932, %v1060
  %v1125 = vsel %vm997, %v933, %v1061
  %v1126 = vsel %vm998, %v934, %v1062
  %v1127 = vsel %vm999, %v935, %v1063
  %v1128 = vsel %vm1000, %v936, %v1064
  %v1129 = vsel %vm1001, %v937, %v1065
  %v1130 = vsel %vm1002, %v938, %v1066
  %v1131 = vsel %vm1003, %v939, %v1067
  %v1132 = vsel %vm1004, %v940, %v1068
  %v1133 = vsel %vm1005, %v941, %v1069
  %v1134 = vsel %vm1006, %v942, %v1070
  %v1135 = vsel %vm1007, %v943, %v1071
  %v1136 = vsel %vm1008, %v944, %v1072
  %v1137 = vsel %vm1009, %v945, %v1073
  %v1138 = vsel %vm1010, %v946, %v1074
  %v1139 = vsel %vm1011, %v947, %v1075
  %v1140 = vsel %vm1012, %v948, %v1076
  %v1141 = vsel %vm1013, %v949, %v1077
  %v1142 = vsel %vm1014, %v950, %v1078
  %v1143 = vsel %vm1015, %v951, %v1079
  %v1144 = vsel %vm1016, %v952, %v1080
  %1145 = vst [vmem:[%s4] sm:$0xff] %v1081
  %1146 = vst [vmem:[%s4 + $0x8] sm:$0xff] %v1082
  %1147 = vst [vmem:[%s4 + $0x10] sm:$0xff] %v1083
  %1148 = vst [vmem:[%s4 + $0x18] sm:$0xff] %v1084
  %1149 = vst [vmem:[%s4 + $0x20] sm:$0xff] %v1085
  %1150 = vst [vmem:[%s4 + $0x28] sm:$0xff] %v1086
  %1151 = vst [vmem:[%s4 + $0x30] sm:$0xff] %v1087
  %1152 = vst [vmem:[%s4 + $0x38] sm:$0xff] %v1088
  %1153 = vst [vmem:[%s4 + $0x40] sm:$0xff] %v1089
  %1154 = vst [vmem:[%s4 + $0x48] sm:$0xff] %v1090
  %1155 = vst [vmem:[%s4 + $0x50] sm:$0xff] %v1091
  %1156 = vst [vmem:[%s4 + $0x58] sm:$0xff] %v1092
  %1157 = vst [vmem:[%s4 + $0x60] sm:$0xff] %v1093
  %1158 = vst [vmem:[%s4 + $0x68] sm:$0xff] %v1094
  %1159 = vst [vmem:[%s4 + $0x70] sm:$0xff] %v1095
  %1160 = vst [vmem:[%s4 + $0x78] sm:$0xff] %v1096
  %1161 = vst [vmem:[%s4 + $0x80] sm:$0xff] %v1097
  %1162 = vst [vmem:[%s4 + $0x88] sm:$0xff] %v1098
  %1163 = vst [vmem:[%s4 + $0x90] sm:$0xff] %v1099
  %1164 = vst [vmem:[%s4 + $0x98] sm:$0xff] %v1100
  %1165 = vst [vmem:[%s4 + $0xa0] sm:$0xff] %v1101
  %1166 = vst [vmem:[%s4 + $0xa8] sm:$0xff] %v1102
  %1167 = vst [vmem:[%s4 + $0xb0] sm:$0xff] %v1103
  %1168 = vst [vmem:[%s4 + $0xb8] sm:$0xff] %v1104
  %1169 = vst [vmem:[%s4 + $0xc0] sm:$0xff] %v1105
  %1170 = vst [vmem:[%s4 + $0xc8] sm:$0xff] %v1106
  %1171 = vst [vmem:[%s4 + $0xd0] sm:$0xff] %v1107
  %1172 = vst [vmem:[%s4 + $0xd8] sm:$0xff] %v1108
  %1173 = vst [vmem:[%s4 + $0xe0] sm:$0xff] %v1109
  %1174 = vst [vmem:[%s4 + $0xe8] sm:$0xff] %v1110
  %1175 = vst [vmem:[%s4 + $0xf0] sm:$0xff] %v1111
  %1176 = vst [vmem:[%s4 + $0xf8] sm:$0xff] %v1112
  %1177 = vst [vmem:[%s4 + $0x100] sm:$0xff] %v1113
  %1178 = vst [vmem:[%s4 + $0x108] sm:$0xff] %v1114
  %1179 = vst [vmem:[%s4 + $0x110] sm:$0xff] %v1115
  %1180 = vst [vmem:[%s4 + $0x118] sm:$0xff] %v1116
  %1181 = vst [vmem:[%s4 + $0x120] sm:$0xff] %v1117
  %1182 = vst [vmem:[%s4 + $0x128] sm:$0xff] %v1118
  %1183 = vst [vmem:[%s4 + $0x130] sm:$0xff] %v1119
  %1184 = vst [vmem:[%s4 + $0x138] sm:$0xff] %v1120
  %1185 = vst [vmem:[%s4 + $0x140] sm:$0xff] %v1121
  %1186 = vst [vmem:[%s4 + $0x148] sm:$0xff] %v1122
  %1187 = vst [vmem:[%s4 + $0x150] sm:$0xff] %v1123
  %1188 = vst [vmem:[%s4 + $0x158] sm:$0xff] %v1124
  %1189 = vst [vmem:[%s4 + $0x160] sm:$0xff] %v1125
  %1190 = vst [vmem:[%s4 + $0x168] sm:$0xff] %v1126
  %1191 = vst [vmem:[%s4 + $0x170] sm:$0xff] %v1127
  %1192 = vst [vmem:[%s4 + $0x178] sm:$0xff] %v1128
  %1193 = vst [vmem:[%s4 + $0x180] sm:$0xff] %v1129
  %1194 = vst [vmem:[%s4 + $0x188] sm:$0xff] %v1130
  %1195 = vst [vmem:[%s4 + $0x190] sm:$0xff] %v1131
  %1196 = vst [vmem:[%s4 + $0x198] sm:$0xff] %v1132
  %1197 = vst [vmem:[%s4 + $0x1a0] sm:$0xff] %v1133
  %1198 = vst [vmem:[%s4 + $0x1a8] sm:$0xff] %v1134
  %1199 = vst [vmem:[%s4 + $0x1b0] sm:$0xff] %v1135
  %1200 = vst [vmem:[%s4 + $0x1b8] sm:$0xff] %v1136
  %1201 = vst [vmem:[%s4 + $0x1c0] sm:$0xff] %v1137
  %1202 = vst [vmem:[%s4 + $0x1c8] sm:$0xff] %v1138
  %1203 = vst [vmem:[%s4 + $0x1d0] sm:$0xff] %v1139
  %1204 = vst [vmem:[%s4 + $0x1d8] sm:$0xff] %v1140
  %1205 = vst [vmem:[%s4 + $0x1e0] sm:$0xff] %v1141
  %1206 = vst [vmem:[%s4 + $0x1e8] sm:$0xff] %v1142
  %1207 = vst [vmem:[%s4 + $0x1f0] sm:$0xff] %v1143
  %1208 = vst [vmem:[%s4 + $0x1f8] sm:$0xff] %v1144
  // Predicated region
  $region18: #{_lambda_.10} parent=0 // pred_check
    _
  $region19: #{_lambda_.10} parent=0 // pred_check_branch
    %1210 = sbr.rel (0) target = $region21
  $region20: #{_lambda_.10} parent=0 // pred_region
    _
  $region21: #{_lambda_.10} parent=0 // pred_fallthru
    _
  // Predicated region
  $region22: #{_lambda_.10} parent=0 // pred_check
    _
  $region23: #{_lambda_.10} parent=0 // pred_check_branch
    %1212 = sbr.rel (0) target = $region25
  $region24: #{_lambda_.10} parent=0 // pred_region
    _
  $region25: #{_lambda_.10} parent=0 // pred_fallthru
    _

// kernel: _lambda_.12
$region0: #{_lambda_.12}
  #allocation0 [shape = 'u32[]', space=smem, size = 0x4, offset = 0x4, fixed_abs, tag = 'smem constant byte address 0x4 - core index']
  #allocation1 [shape = 'u32[72,128]{1,0:T(1,128)}', space=vmem, size = 0x9000, scoped, tag = 'internal scratch']
  %s0 = inlined_call_operand.vmem [shape: bf16[128,128], index: 0, kind: input, shape index: {}]
  %s1 = inlined_call_operand.vmem [shape: bf16[128,128], index: 1, kind: input, shape index: {}]
  %s2 = inlined_call_operand.vmem [shape: f32[1,128], index: 2, kind: input, shape index: {}]
  %s3 = inlined_call_operand.vmem [shape: f32[1,128], index: 3, kind: input, shape index: {}]
  %s4 = inlined_call_operand.vmem [shape: f32[128,128], index: 4, kind: output, shape index: {}]
  %s5 = sld [smem:[#allocation0]]
  $region26: #{_lambda_.12} parent=0
    _
  %s7 = ssub.s32 1, %s5
  %s8 = scalar_select 0, %s7, %s5
  // Predicated region
  $region2: #{_lambda_.12} parent=0 // pred_check
    _
  $region3: #{_lambda_.12} parent=0 // pred_check_branch
    %10 = sbr.rel (0) target = $region5
  $region4: #{_lambda_.12} parent=0 // pred_region
    _
  $region5: #{_lambda_.12} parent=0 // pred_fallthru
    _
  // Predicated region
  $region6: #{_lambda_.12} parent=0 // pred_check
    _
  $region7: #{_lambda_.12} parent=0 // pred_check_branch
    %12 = sbr.rel (0) target = $region9
  $region8: #{_lambda_.12} parent=0 // pred_region
    _
  $region9: #{_lambda_.12} parent=0 // pred_fallthru
    _
  // Predicated region
  $region10: #{_lambda_.12} parent=0 // pred_check
    _
  $region11: #{_lambda_.12} parent=0 // pred_check_branch
    %14 = sbr.rel (0) target = $region13
  $region12: #{_lambda_.12} parent=0 // pred_region
    _
  $region13: #{_lambda_.12} parent=0 // pred_fallthru
    _
  // Predicated region
  $region14: #{_lambda_.12} parent=0 // pred_check
    _
  $region15: #{_lambda_.12} parent=0 // pred_check_branch
    %16 = sbr.rel (0) target = $region17
  $region16: #{_lambda_.12} parent=0 // pred_region
    _
  $region17: #{_lambda_.12} parent=0 // pred_fallthru
    _
  %v17 = vld [vmem:[%s0] sm:$0xf]
  %v18 = vld [vmem:[%s0 + $0x4] sm:$0xf]
  %v19 = vld [vmem:[%s0 + $0x8] sm:$0xf]
  %v20 = vld [vmem:[%s0 + $0xc] sm:$0xf]
  %v21 = vld [vmem:[%s0 + $0x10] sm:$0xf]
  %v22 = vld [vmem:[%s0 + $0x14] sm:$0xf]
  %v23 = vld [vmem:[%s0 + $0x18] sm:$0xf]
  %v24 = vld [vmem:[%s0 + $0x1c] sm:$0xf]
  %v25 = vld [vmem:[%s0 + $0x20] sm:$0xf]
  %v26 = vld [vmem:[%s0 + $0x24] sm:$0xf]
  %v27 = vld [vmem:[%s0 + $0x28] sm:$0xf]
  %v28 = vld [vmem:[%s0 + $0x2c] sm:$0xf]
  %v29 = vld [vmem:[%s0 + $0x30] sm:$0xf]
  %v30 = vld [vmem:[%s0 + $0x34] sm:$0xf]
  %v31 = vld [vmem:[%s0 + $0x38] sm:$0xf]
  %v32 = vld [vmem:[%s0 + $0x3c] sm:$0xf]
  %v33 = vld [vmem:[%s1] sm:$0xf]
  %v34 = vld [vmem:[%s1 + $0x4] sm:$0xf]
  %v35 = vld [vmem:[%s1 + $0x8] sm:$0xf]
  %v36 = vld [vmem:[%s1 + $0xc] sm:$0xf]
  %v37 = vld [vmem:[%s1 + $0x10] sm:$0xf]
  %v38 = vld [vmem:[%s1 + $0x14] sm:$0xf]
  %v39 = vld [vmem:[%s1 + $0x18] sm:$0xf]
  %v40 = vld [vmem:[%s1 + $0x1c] sm:$0xf]
  %v41 = vld [vmem:[%s1 + $0x20] sm:$0xf]
  %v42 = vld [vmem:[%s1 + $0x24] sm:$0xf]
  %v43 = vld [vmem:[%s1 + $0x28] sm:$0xf]
  %v44 = vld [vmem:[%s1 + $0x2c] sm:$0xf]
  %v45 = vld [vmem:[%s1 + $0x30] sm:$0xf]
  %v46 = vld [vmem:[%s1 + $0x34] sm:$0xf]
  %v47 = vld [vmem:[%s1 + $0x38] sm:$0xf]
  %v48 = vld [vmem:[%s1 + $0x3c] sm:$0xf]
  %v65 = vunpack.c.l.b16 %v17
  %v66 = vunpack.c.l.b16 %v18
  %v67 = vunpack.c.l.b16 %v19
  %v68 = vunpack.c.l.b16 %v20
  %v69 = vunpack.c.l.b16 %v21
  %v70 = vunpack.c.l.b16 %v22
  %v71 = vunpack.c.l.b16 %v23
  %v72 = vunpack.c.l.b16 %v24
  %v73 = vunpack.c.l.b16 %v25
  %v74 = vunpack.c.l.b16 %v26
  %v75 = vunpack.c.l.b16 %v27
  %v76 = vunpack.c.l.b16 %v28
  %v77 = vunpack.c.l.b16 %v29
  %v78 = vunpack.c.l.b16 %v30
  %v79 = vunpack.c.l.b16 %v31
  %v80 = vunpack.c.l.b16 %v32
  %v81 = vpack.c.b16 %v66, %v65
  %v82 = vpack.c.b16 %v68, %v67
  %v83 = vpack.c.b16 %v70, %v69
  %v84 = vpack.c.b16 %v72, %v71
  %v85 = vpack.c.b16 %v74, %v73
  %v86 = vpack.c.b16 %v76, %v75
  %v87 = vpack.c.b16 %v78, %v77
  %v88 = vpack.c.b16 %v80, %v79
  %v113 = vunpack.c.l.b16 %v33
  %v114 = vunpack.c.l.b16 %v34
  %v115 = vunpack.c.l.b16 %v35
  %v116 = vunpack.c.l.b16 %v36
  %v117 = vunpack.c.l.b16 %v37
  %v118 = vunpack.c.l.b16 %v38
  %v119 = vunpack.c.l.b16 %v39
  %v120 = vunpack.c.l.b16 %v40
  %v121 = vunpack.c.l.b16 %v41
  %v122 = vunpack.c.l.b16 %v42
  %v123 = vunpack.c.l.b16 %v43
  %v124 = vunpack.c.l.b16 %v44
  %v125 = vunpack.c.l.b16 %v45
  %v126 = vunpack.c.l.b16 %v46
  %v127 = vunpack.c.l.b16 %v47
  %v128 = vunpack.c.l.b16 %v48
  %v129 = vpack.c.b16 %v114, %v113
  %v130 = vpack.c.b16 %v116, %v115
  %v131 = vpack.c.b16 %v118, %v117
  %v132 = vpack.c.b16 %v120, %v119
  %v133 = vpack.c.b16 %v122, %v121
  %v134 = vpack.c.b16 %v124, %v123
  %v135 = vpack.c.b16 %v126, %v125
  %v136 = vpack.c.b16 %v128, %v127
  %145 = vmatpush.bf16.msra.mxu0 %v136
  %146 = vmatpush.bf16.msra.mxu0 %v135
  %147 = vmatpush.bf16.msra.mxu0 %v134
  %148 = vmatpush.bf16.msra.mxu0 %v133
  %149 = vmatpush.bf16.msra.mxu0 %v132
  %150 = vmatpush.bf16.msra.mxu0 %v131
  %151 = vmatpush.bf16.msra.mxu0 %v130
  %152 = vmatpush.bf16.msra.mxu0 %v129
  %153 = vmatmul.bf16.gmra.mxu0 %v81
  %v154 = vpop.f32.mrf.mxu0
  %v155 = vadd.f32 0.0, %v154
  %v156 = vpop.f32.mrf.mxu0
  %v157 = vadd.f32 0.0, %v156
  %158 = vmatmul.bf16.gmra.mxu0 %v82
  %v159 = vpop.f32.mrf.mxu0
  %v160 = vadd.f32 0.0, %v159
  %v161 = vpop.f32.mrf.mxu0
  %v162 = vadd.f32 0.0, %v161
  %163 = vmatmul.bf16.gmra.mxu0 %v83
  %v164 = vpop.f32.mrf.mxu0
  %v165 = vadd.f32 0.0, %v164
  %v166 = vpop.f32.mrf.mxu0
  %v167 = vadd.f32 0.0, %v166
  %168 = vmatmul.bf16.gmra.mxu0 %v84
  %v169 = vpop.f32.mrf.mxu0
  %v170 = vadd.f32 0.0, %v169
  %v171 = vpop.f32.mrf.mxu0
  %v172 = vadd.f32 0.0, %v171
  %173 = vmatmul.bf16.gmra.mxu0 %v85
  %v174 = vpop.f32.mrf.mxu0
  %v175 = vadd.f32 0.0, %v174
  %v176 = vpop.f32.mrf.mxu0
  %v177 = vadd.f32 0.0, %v176
  %178 = vmatmul.bf16.gmra.mxu0 %v86
  %v179 = vpop.f32.mrf.mxu0
  %v180 = vadd.f32 0.0, %v179
  %v181 = vpop.f32.mrf.mxu0
  %v182 = vadd.f32 0.0, %v181
  %183 = vmatmul.bf16.gmra.mxu0 %v87
  %v184 = vpop.f32.mrf.mxu0
  %v185 = vadd.f32 0.0, %v184
  %v186 = vpop.f32.mrf.mxu0
  %v187 = vadd.f32 0.0, %v186
  %188 = vmatmul.bf16.gmra.mxu0 %v88
  %v189 = vpop.f32.mrf.mxu0
  %v190 = vadd.f32 0.0, %v189
  %v191 = vpop.f32.mrf.mxu0
  %v192 = vadd.f32 0.0, %v191
  %193 = vdwg.mxu0
  %v194 = vadd.f32 %v155, %v157
  %v195 = vadd.f32 %v194, %v160
  %v196 = vadd.f32 %v195, %v162
  %v197 = vadd.f32 %v196, %v165
  %v198 = vadd.f32 %v197, %v167
  %v199 = vadd.f32 %v198, %v170
  %v200 = vadd.f32 %v199, %v172
  %v201 = vadd.f32 %v200, %v175
  %v202 = vadd.f32 %v201, %v177
  %v203 = vadd.f32 %v202, %v180
  %v204 = vadd.f32 %v203, %v182
  %v205 = vadd.f32 %v204, %v185
  %v206 = vadd.f32 %v205, %v187
  %v207 = vadd.f32 %v206, %v190
  %v208 = vadd.f32 %v207, %v192
  %v209 = vrot.slane %v208, 4
  %v210 = vadd.f32 %v208, %v209
  %v211 = vrot.slane %v210, 2
  %v212 = vadd.f32 %v210, %v211
  %v213 = vrot.slane %v212, 1
  %v214 = vadd.f32 %v212, %v213
  %v215 = vrcp.pop 128.0
  %v216 = vmul.f32 128.0, %v215
  %v217 = vsub.f32 1.0, %v216
  %v218 = vmul.f32 %v215, %v217
  %v219 = vadd.f32 %v215, %v218
  %vm220 = vweird.f32 %v215
  %v221 = vsel %vm220, %v215, %v219
  %v222 = vmul.f32 %v214, %v221
  %v223 = vsub.f32 %v155, %v222
  %v224 = vsub.f32 %v157, %v222
  %v225 = vsub.f32 %v160, %v222
  %v226 = vsub.f32 %v162, %v222
  %v227 = vsub.f32 %v165, %v222
  %v228 = vsub.f32 %v167, %v222
  %v229 = vsub.f32 %v170, %v222
  %v230 = vsub.f32 %v172, %v222
  %v231 = vsub.f32 %v175, %v222
  %v232 = vsub.f32 %v177, %v222
  %v233 = vsub.f32 %v180, %v222
  %v234 = vsub.f32 %v182, %v222
  %v235 = vsub.f32 %v185, %v222
  %v236 = vsub.f32 %v187, %v222
  %v237 = vsub.f32 %v190, %v222
  %v238 = vsub.f32 %v192, %v222
  %v239 = vmul.f32 %v223, %v223
  %v240 = vmul.f32 %v224, %v224
  %v241 = vmul.f32 %v225, %v225
  %v242 = vmul.f32 %v226, %v226
  %v243 = vmul.f32 %v227, %v227
  %v244 = vmul.f32 %v228, %v228
  %v245 = vmul.f32 %v229, %v229
  %v246 = vmul.f32 %v230, %v230
  %v247 = vmul.f32 %v231, %v231
  %v248 = vmul.f32 %v232, %v232
  %v249 = vmul.f32 %v233, %v233
  %v250 = vmul.f32 %v234, %v234
  %v251 = vmul.f32 %v235, %v235
  %v252 = vmul.f32 %v236, %v236
  %v253 = vmul.f32 %v237, %v237
  %v254 = vmul.f32 %v238, %v238
  %v255 = vadd.f32 %v239, %v240
  %v256 = vadd.f32 %v255, %v241
  %v257 = vadd.f32 %v256, %v242
  %v258 = vadd.f32 %v257, %v243
  %v259 = vadd.f32 %v258, %v244
  %v260 = vadd.f32 %v259, %v245
  %v261 = vadd.f32 %v260, %v246
  %v262 = vadd.f32 %v261, %v247
  %v263 = vadd.f32 %v262, %v248
  %v264 = vadd.f32 %v263, %v249
  %v265 = vadd.f32 %v264, %v250
  %v266 = vadd.f32 %v265, %v251
  %v267 = vadd.f32 %v266, %v252
  %v268 = vadd.f32 %v267, %v253
  %v269 = vadd.f32 %v268, %v254
  %v270 = vrot.slane %v269, 4
  %v271 = vadd.f32 %v269, %v270
  %v272 = vrot.slane %v271, 2
  %v273 = vadd.f32 %v271, %v272
  %v274 = vrot.slane %v273, 1
  %v275 = vadd.f32 %v273, %v274
  %v276 = vmul.f32 %v275, %v221
  %v277 = vld [vmem:[%s2] sm:$0x1]
  %v278 = vadd.f32 %v276, 1e-05
  %v279 = vrsqrt.pop %v278
  %v280 = vmul.f32 %v279, %v278
  %v281 = vmul.f32 %v280, %v279
  %v282 = vmul.f32 0.5, %v281
  %v283 = vsub.f32 1.5, %v282
  %v284 = vmul.f32 %v279, %v283
  %vm285 = vweird.f32 %v278
  %vm286 = vweird.f32 %v279
  %vm287 = vmor %vm285, %vm286
  %v288 = vsel %vm287, %v279, %v284
  %v289 = vmul.f32 %v277, %v288
  %v291 = vperm.slane %v289, 0
  %v293 = vmul.f32 %v223, %v291
  %v294 = vmul.f32 %v224, %v291
  %v295 = vmul.f32 %v225, %v291
  %v296 = vmul.f32 %v226, %v291
  %v297 = vmul.f32 %v227, %v291
  %v298 = vmul.f32 %v228, %v291
  %v299 = vmul.f32 %v229, %v291
  %v300 = vmul.f32 %v230, %v291
  %v301 = vmul.f32 %v231, %v291
  %v302 = vmul.f32 %v232, %v291
  %v303 = vmul.f32 %v233, %v291
  %v304 = vmul.f32 %v234, %v291
  %v305 = vmul.f32 %v235, %v291
  %v306 = vmul.f32 %v236, %v291
  %v307 = vmul.f32 %v237, %v291
  %v308 = vmul.f32 %v238, %v291
  %v309 = vld [vmem:[%s3] sm:$0x1]
  %v311 = vperm.slane %v309, 0
  %v313 = vadd.f32 %v293, %v311
  %v314 = vadd.f32 %v294, %v311
  %v315 = vadd.f32 %v295, %v311
  %v316 = vadd.f32 %v296, %v311
  %v317 = vadd.f32 %v297, %v311
  %v318 = vadd.f32 %v298, %v311
  %v319 = vadd.f32 %v299, %v311
  %v320 = vadd.f32 %v300, %v311
  %v321 = vadd.f32 %v301, %v311
  %v322 = vadd.f32 %v302, %v311
  %v323 = vadd.f32 %v303, %v311
  %v324 = vadd.f32 %v304, %v311
  %v325 = vadd.f32 %v305, %v311
  %v326 = vadd.f32 %v306, %v311
  %v327 = vadd.f32 %v307, %v311
  %v328 = vadd.f32 %v308, %v311
  %vm329 = vcmp.gt.f32.partialorder %v313, 0.0
  %vm330 = vcmp.gt.f32.partialorder %v314, 0.0
  %vm331 = vcmp.gt.f32.partialorder %v315, 0.0
  %vm332 = vcmp.gt.f32.partialorder %v316, 0.0
  %vm333 = vcmp.gt.f32.partialorder %v317, 0.0
  %vm334 = vcmp.gt.f32.partialorder %v318, 0.0
  %vm335 = vcmp.gt.f32.partialorder %v319, 0.0
  %vm336 = vcmp.gt.f32.partialorder %v320, 0.0
  %vm337 = vcmp.gt.f32.partialorder %v321, 0.0
  %vm338 = vcmp.gt.f32.partialorder %v322, 0.0
  %vm339 = vcmp.gt.f32.partialorder %v323, 0.0
  %vm340 = vcmp.gt.f32.partialorder %v324, 0.0
  %vm341 = vcmp.gt.f32.partialorder %v325, 0.0
  %vm342 = vcmp.gt.f32.partialorder %v326, 0.0
  %vm343 = vcmp.gt.f32.partialorder %v327, 0.0
  %vm344 = vcmp.gt.f32.partialorder %v328, 0.0
  %v345 = vmul.f32 %v313, 0.1
  %v346 = vmul.f32 %v314, 0.1
  %v347 = vmul.f32 %v315, 0.1
  %v348 = vmul.f32 %v316, 0.1
  %v349 = vmul.f32 %v317, 0.1
  %v350 = vmul.f32 %v318, 0.1
  %v351 = vmul.f32 %v319, 0.1
  %v352 = vmul.f32 %v320, 0.1
  %v353 = vmul.f32 %v321, 0.1
  %v354 = vmul.f32 %v322, 0.1
  %v355 = vmul.f32 %v323, 0.1
  %v356 = vmul.f32 %v324, 0.1
  %v357 = vmul.f32 %v325, 0.1
  %v358 = vmul.f32 %v326, 0.1
  %v359 = vmul.f32 %v327, 0.1
  %v360 = vmul.f32 %v328, 0.1
  %v361 = vsel %vm329, %v313, %v345
  %v362 = vsel %vm330, %v314, %v346
  %v363 = vsel %vm331, %v315, %v347
  %v364 = vsel %vm332, %v316, %v348
  %v365 = vsel %vm333, %v317, %v349
  %v366 = vsel %vm334, %v318, %v350
  %v367 = vsel %vm335, %v319, %v351
  %v368 = vsel %vm336, %v320, %v352
  %v369 = vsel %vm337, %v321, %v353
  %v370 = vsel %vm338, %v322, %v354
  %v371 = vsel %vm339, %v323, %v355
  %v372 = vsel %vm340, %v324, %v356
  %v373 = vsel %vm341, %v325, %v357
  %v374 = vsel %vm342, %v326, %v358
  %v375 = vsel %vm343, %v327, %v359
  %v376 = vsel %vm344, %v328, %v360
  %377 = vst [vmem:[%s4] sm:$0xff] %v361
  %378 = vst [vmem:[%s4 + $0x8] sm:$0xff] %v362
  %379 = vst [vmem:[%s4 + $0x10] sm:$0xff] %v363
  %380 = vst [vmem:[%s4 + $0x18] sm:$0xff] %v364
  %381 = vst [vmem:[%s4 + $0x20] sm:$0xff] %v365
  %382 = vst [vmem:[%s4 + $0x28] sm:$0xff] %v366
  %383 = vst [vmem:[%s4 + $0x30] sm:$0xff] %v367
  %384 = vst [vmem:[%s4 + $0x38] sm:$0xff] %v368
  %385 = vst [vmem:[%s4 + $0x40] sm:$0xff] %v369
  %386 = vst [vmem:[%s4 + $0x48] sm:$0xff] %v370
  %387 = vst [vmem:[%s4 + $0x50] sm:$0xff] %v371
  %388 = vst [vmem:[%s4 + $0x58] sm:$0xff] %v372
  %389 = vst [vmem:[%s4 + $0x60] sm:$0xff] %v373
  %390 = vst [vmem:[%s4 + $0x68] sm:$0xff] %v374
  %391 = vst [vmem:[%s4 + $0x70] sm:$0xff] %v375
  %392 = vst [vmem:[%s4 + $0x78] sm:$0xff] %v376
  // Predicated region
  $region18: #{_lambda_.12} parent=0 // pred_check
    _
  $region19: #{_lambda_.12} parent=0 // pred_check_branch
    %394 = sbr.rel (0) target = $region21
  $region20: #{_lambda_.12} parent=0 // pred_region
    _
  $region21: #{_lambda_.12} parent=0 // pred_fallthru
    _
  // Predicated region
  $region22: #{_lambda_.12} parent=0 // pred_check
    _
  $region23: #{_lambda_.12} parent=0 // pred_check_branch
    %396 = sbr.rel (0) target = $region25
  $region24: #{_lambda_.12} parent=0 // pred_region
    _
  $region25: #{_lambda_.12} parent=0 // pred_fallthru
    _

// kernel: _lambda_.11
$region0: #{_lambda_.11}
  #allocation0 [shape = 'u32[]', space=smem, size = 0x4, offset = 0x4, fixed_abs, tag = 'smem constant byte address 0x4 - core index']
  #allocation1 [shape = 'u32[72,128]{1,0:T(1,128)}', space=vmem, size = 0x9000, scoped, tag = 'internal scratch']
  %s0 = inlined_call_operand.vmem [shape: bf16[128,1152], index: 0, kind: input, shape index: {}]
  %s1 = inlined_call_operand.vmem [shape: bf16[1152,128], index: 1, kind: input, shape index: {}]
  %s2 = inlined_call_operand.vmem [shape: f32[1,128], index: 2, kind: input, shape index: {}]
  %s3 = inlined_call_operand.vmem [shape: f32[1,128], index: 3, kind: input, shape index: {}]
  %s4 = inlined_call_operand.vmem [shape: f32[128,128], index: 4, kind: output, shape index: {}]
  %s5 = sld [smem:[#allocation0]]
  $region26: #{_lambda_.11} parent=0
    _
  %s7 = ssub.s32 1, %s5
  %s8 = scalar_select 0, %s7, %s5
  // Predicated region
  $region2: #{_lambda_.11} parent=0 // pred_check
    _
  $region3: #{_lambda_.11} parent=0 // pred_check_branch
    %10 = sbr.rel (0) target = $region5
  $region4: #{_lambda_.11} parent=0 // pred_region
    _
  $region5: #{_lambda_.11} parent=0 // pred_fallthru
    _
  // Predicated region
  $region6: #{_lambda_.11} parent=0 // pred_check
    _
  $region7: #{_lambda_.11} parent=0 // pred_check_branch
    %12 = sbr.rel (0) target = $region9
  $region8: #{_lambda_.11} parent=0 // pred_region
    _
  $region9: #{_lambda_.11} parent=0 // pred_fallthru
    _
  // Predicated region
  $region10: #{_lambda_.11} parent=0 // pred_check
    _
  $region11: #{_lambda_.11} parent=0 // pred_check_branch
    %14 = sbr.rel (0) target = $region13
  $region12: #{_lambda_.11} parent=0 // pred_region
    _
  $region13: #{_lambda_.11} parent=0 // pred_fallthru
    _
  // Predicated region
  $region14: #{_lambda_.11} parent=0 // pred_check
    _
  $region15: #{_lambda_.11} parent=0 // pred_check_branch
    %16 = sbr.rel (0) target = $region17
  $region16: #{_lambda_.11} parent=0 // pred_region
    _
  $region17: #{_lambda_.11} parent=0 // pred_fallthru
    _
  %v17 = vld [vmem:[%s0] sm:$0xff]
  %v18 = vld [vmem:[%s0 + $0x8] sm:$0xff]
  %v19 = vld [vmem:[%s0 + $0x10] sm:$0xff]
  %v20 = vld [vmem:[%s0 + $0x18] sm:$0xff]
  %v21 = vld [vmem:[%s0 + $0x20] sm:$0xf]
  %v22 = vld [vmem:[%s0 + $0x24] sm:$0xff]
  %v23 = vld [vmem:[%s0 + $0x2c] sm:$0xff]
  %v24 = vld [vmem:[%s0 + $0x34] sm:$0xff]
  %v25 = vld [vmem:[%s0 + $0x3c] sm:$0xff]
  %v26 = vld [vmem:[%s0 + $0x44] sm:$0xf]
  %v27 = vld [vmem:[%s0 + $0x48] sm:$0xff]
  %v28 = vld [vmem:[%s0 + $0x50] sm:$0xff]
  %v29 = vld [vmem:[%s0 + $0x58] sm:$0xff]
  %v30 = vld [vmem:[%s0 + $0x60] sm:$0xff]
  %v31 = vld [vmem:[%s0 + $0x68] sm:$0xf]
  %v32 = vld [vmem:[%s0 + $0x6c] sm:$0xff]
  %v33 = vld [vmem:[%s0 + $0x74] sm:$0xff]
  %v34 = vld [vmem:[%s0 + $0x7c] sm:$0xff]
  %v35 = vld [vmem:[%s0 + $0x84] sm:$0xff]
  %v36 = vld [vmem:[%s0 + $0x8c] sm:$0xf]
  %v37 = vld [vmem:[%s0 + $0x90] sm:$0xff]
  %v38 = vld [vmem:[%s0 + $0x98] sm:$0xff]
  %v39 = vld [vmem:[%s0 + $0xa0] sm:$0xff]
  %v40 = vld [vmem:[%s0 + $0xa8] sm:$0xff]
  %v41 = vld [vmem:[%s0 + $0xb0] sm:$0xf]
  %v42 = vld [vmem:[%s0 + $0xb4] sm:$0xff]
  %v43 = vld [vmem:[%s0 + $0xbc] sm:$0xff]
  %v44 = vld [vmem:[%s0 + $0xc4] sm:$0xff]
  %v45 = vld [vmem:[%s0 + $0xcc] sm:$0xff]
  %v46 = vld [vmem:[%s0 + $0xd4] sm:$0xf]
  %v47 = vld [vmem:[%s0 + $0xd8] sm:$0xff]
  %v48 = vld [vmem:[%s0 + $0xe0] sm:$0xff]
  %v49 = vld [vmem:[%s0 + $0xe8] sm:$0xff]
  %v50 = vld [vmem:[%s0 + $0xf0] sm:$0xff]
  %v51 = vld [vmem:[%s0 + $0xf8] sm:$0xf]
  %v52 = vld [vmem:[%s0 + $0xfc] sm:$0xff]
  %v53 = vld [vmem:[%s0 + $0x104] sm:$0xff]
  %v54 = vld [vmem:[%s0 + $0x10c] sm:$0xff]
  %v55 = vld [vmem:[%s0 + $0x114] sm:$0xff]
  %v56 = vld [vmem:[%s0 + $0x11c] sm:$0xf]
  %v57 = vld [vmem:[%s0 + $0x120] sm:$0xff]
  %v58 = vld [vmem:[%s0 + $0x128] sm:$0xff]
  %v59 = vld [vmem:[%s0 + $0x130] sm:$0xff]
  %v60 = vld [vmem:[%s0 + $0x138] sm:$0xff]
  %v61 = vld [vmem:[%s0 + $0x140] sm:$0xf]
  %v62 = vld [vmem:[%s0 + $0x144] sm:$0xff]
  %v63 = vld [vmem:[%s0 + $0x14c] sm:$0xff]
  %v64 = vld [vmem:[%s0 + $0x154] sm:$0xff]
  %v65 = vld [vmem:[%s0 + $0x15c] sm:$0xff]
  %v66 = vld [vmem:[%s0 + $0x164] sm:$0xf]
  %v67 = vld [vmem:[%s0 + $0x168] sm:$0xff]
  %v68 = vld [vmem:[%s0 + $0x170] sm:$0xff]
  %v69 = vld [vmem:[%s0 + $0x178] sm:$0xff]
  %v70 = vld [vmem:[%s0 + $0x180] sm:$0xff]
  %v71 = vld [vmem:[%s0 + $0x188] sm:$0xf]
  %v72 = vld [vmem:[%s0 + $0x18c] sm:$0xff]
  %v73 = vld [vmem:[%s0 + $0x194] sm:$0xff]
  %v74 = vld [vmem:[%s0 + $0x19c] sm:$0xff]
  %v75 = vld [vmem:[%s0 + $0x1a4] sm:$0xff]
  %v76 = vld [vmem:[%s0 + $0x1ac] sm:$0xf]
  %v77 = vld [vmem:[%s0 + $0x1b0] sm:$0xff]
  %v78 = vld [vmem:[%s0 + $0x1b8] sm:$0xff]
  %v79 = vld [vmem:[%s0 + $0x1c0] sm:$0xff]
  %v80 = vld [vmem:[%s0 + $0x1c8] sm:$0xff]
  %v81 = vld [vmem:[%s0 + $0x1d0] sm:$0xf]
  %v82 = vld [vmem:[%s0 + $0x1d4] sm:$0xff]
  %v83 = vld [vmem:[%s0 + $0x1dc] sm:$0xff]
  %v84 = vld [vmem:[%s0 + $0x1e4] sm:$0xff]
  %v85 = vld [vmem:[%s0 + $0x1ec] sm:$0xff]
  %v86 = vld [vmem:[%s0 + $0x1f4] sm:$0xf]
  %v87 = vld [vmem:[%s0 + $0x1f8] sm:$0xff]
  %v88 = vld [vmem:[%s0 + $0x200] sm:$0xff]
  %v89 = vld [vmem:[%s0 + $0x208] sm:$0xff]
  %v90 = vld [vmem:[%s0 + $0x210] sm:$0xff]
  %v91 = vld [vmem:[%s0 + $0x218] sm:$0xf]
  %v92 = vld [vmem:[%s0 + $0x21c] sm:$0xff]
  %v93 = vld [vmem:[%s0 + $0x224] sm:$0xff]
  %v94 = vld [vmem:[%s0 + $0x22c] sm:$0xff]
  %v95 = vld [vmem:[%s0 + $0x234] sm:$0xff]
  %v96 = vld [vmem:[%s0 + $0x23c] sm:$0xf]
  %v97 = vld [vmem:[%s1] sm:$0xf]
  %v98 = vld [vmem:[%s1 + $0x4] sm:$0xf]
  %v99 = vld [vmem:[%s1 + $0x8] sm:$0xf]
  %v100 = vld [vmem:[%s1 + $0xc] sm:$0xf]
  %v101 = vld [vmem:[%s1 + $0x10] sm:$0xf]
  %v102 = vld [vmem:[%s1 + $0x14] sm:$0xf]
  %v103 = vld [vmem:[%s1 + $0x18] sm:$0xf]
  %v104 = vld [vmem:[%s1 + $0x1c] sm:$0xf]
  %v105 = vld [vmem:[%s1 + $0x20] sm:$0xf]
  %v106 = vld [vmem:[%s1 + $0x24] sm:$0xf]
  %v107 = vld [vmem:[%s1 + $0x28] sm:$0xf]
  %v108 = vld [vmem:[%s1 + $0x2c] sm:$0xf]
  %v109 = vld [vmem:[%s1 + $0x30] sm:$0xf]
  %v110 = vld [vmem:[%s1 + $0x34] sm:$0xf]
  %v111 = vld [vmem:[%s1 + $0x38] sm:$0xf]
  %v112 = vld [vmem:[%s1 + $0x3c] sm:$0xf]
  %v113 = vld [vmem:[%s1 + $0x40] sm:$0xf]
  %v114 = vld [vmem:[%s1 + $0x44] sm:$0xf]
  %v115 = vld [vmem:[%s1 + $0x48] sm:$0xf]
  %v116 = vld [vmem:[%s1 + $0x4c] sm:$0xf]
  %v117 = vld [vmem:[%s1 + $0x50] sm:$0xf]
  %v118 = vld [vmem:[%s1 + $0x54] sm:$0xf]
  %v119 = vld [vmem:[%s1 + $0x58] sm:$0xf]
  %v120 = vld [vmem:[%s1 + $0x5c] sm:$0xf]
  %v121 = vld [vmem:[%s1 + $0x60] sm:$0xf]
  %v122 = vld [vmem:[%s1 + $0x64] sm:$0xf]
  %v123 = vld [vmem:[%s1 + $0x68] sm:$0xf]
  %v124 = vld [vmem:[%s1 + $0x6c] sm:$0xf]
  %v125 = vld [vmem:[%s1 + $0x70] sm:$0xf]
  %v126 = vld [vmem:[%s1 + $0x74] sm:$0xf]
  %v127 = vld [vmem:[%s1 + $0x78] sm:$0xf]
  %v128 = vld [vmem:[%s1 + $0x7c] sm:$0xf]
  %v129 = vld [vmem:[%s1 + $0x80] sm:$0xf]
  %v130 = vld [vmem:[%s1 + $0x84] sm:$0xf]
  %v131 = vld [vmem:[%s1 + $0x88] sm:$0xf]
  %v132 = vld [vmem:[%s1 + $0x8c] sm:$0xf]
  %v133 = vld [vmem:[%s1 + $0x90] sm:$0xf]
  %v134 = vld [vmem:[%s1 + $0x94] sm:$0xf]
  %v135 = vld [vmem:[%s1 + $0x98] sm:$0xf]
  %v136 = vld [vmem:[%s1 + $0x9c] sm:$0xf]
  %v137 = vld [vmem:[%s1 + $0xa0] sm:$0xf]
  %v138 = vld [vmem:[%s1 + $0xa4] sm:$0xf]
  %v139 = vld [vmem:[%s1 + $0xa8] sm:$0xf]
  %v140 = vld [vmem:[%s1 + $0xac] sm:$0xf]
  %v141 = vld [vmem:[%s1 + $0xb0] sm:$0xf]
  %v142 = vld [vmem:[%s1 + $0xb4] sm:$0xf]
  %v143 = vld [vmem:[%s1 + $0xb8] sm:$0xf]
  %v144 = vld [vmem:[%s1 + $0xbc] sm:$0xf]
  %v145 = vld [vmem:[%s1 + $0xc0] sm:$0xf]
  %v146 = vld [vmem:[%s1 + $0xc4] sm:$0xf]
  %v147 = vld [vmem:[%s1 + $0xc8] sm:$0xf]
  %v148 = vld [vmem:[%s1 + $0xcc] sm:$0xf]
  %v149 = vld [vmem:[%s1 + $0xd0] sm:$0xf]
  %v150 = vld [vmem:[%s1 + $0xd4] sm:$0xf]
  %v151 = vld [vmem:[%s1 + $0xd8] sm:$0xf]
  %v152 = vld [vmem:[%s1 + $0xdc] sm:$0xf]
  %v153 = vld [vmem:[%s1 + $0xe0] sm:$0xf]
  %v154 = vld [vmem:[%s1 + $0xe4] sm:$0xf]
  %v155 = vld [vmem:[%s1 + $0xe8] sm:$0xf]
  %v156 = vld [vmem:[%s1 + $0xec] sm:$0xf]
  %v157 = vld [vmem:[%s1 + $0xf0] sm:$0xf]
  %v158 = vld [vmem:[%s1 + $0xf4] sm:$0xf]
  %v159 = vld [vmem:[%s1 + $0xf8] sm:$0xf]
  %v160 = vld [vmem:[%s1 + $0xfc] sm:$0xf]
  %v161 = vld [vmem:[%s1 + $0x100] sm:$0xf]
  %v162 = vld [vmem:[%s1 + $0x104] sm:$0xf]
  %v163 = vld [vmem:[%s1 + $0x108] sm:$0xf]
  %v164 = vld [vmem:[%s1 + $0x10c] sm:$0xf]
  %v165 = vld [vmem:[%s1 + $0x110] sm:$0xf]
  %v166 = vld [vmem:[%s1 + $0x114] sm:$0xf]
  %v167 = vld [vmem:[%s1 + $0x118] sm:$0xf]
  %v168 = vld [vmem:[%s1 + $0x11c] sm:$0xf]
  %v169 = vld [vmem:[%s1 + $0x120] sm:$0xf]
  %v170 = vld [vmem:[%s1 + $0x124] sm:$0xf]
  %v171 = vld [vmem:[%s1 + $0x128] sm:$0xf]
  %v172 = vld [vmem:[%s1 + $0x12c] sm:$0xf]
  %v173 = vld [vmem:[%s1 + $0x130] sm:$0xf]
  %v174 = vld [vmem:[%s1 + $0x134] sm:$0xf]
  %v175 = vld [vmem:[%s1 + $0x138] sm:$0xf]
  %v176 = vld [vmem:[%s1 + $0x13c] sm:$0xf]
  %v177 = vld [vmem:[%s1 + $0x140] sm:$0xf]
  %v178 = vld [vmem:[%s1 + $0x144] sm:$0xf]
  %v179 = vld [vmem:[%s1 + $0x148] sm:$0xf]
  %v180 = vld [vmem:[%s1 + $0x14c] sm:$0xf]
  %v181 = vld [vmem:[%s1 + $0x150] sm:$0xf]
  %v182 = vld [vmem:[%s1 + $0x154] sm:$0xf]
  %v183 = vld [vmem:[%s1 + $0x158] sm:$0xf]
  %v184 = vld [vmem:[%s1 + $0x15c] sm:$0xf]
  %v185 = vld [vmem:[%s1 + $0x160] sm:$0xf]
  %v186 = vld [vmem:[%s1 + $0x164] sm:$0xf]
  %v187 = vld [vmem:[%s1 + $0x168] sm:$0xf]
  %v188 = vld [vmem:[%s1 + $0x16c] sm:$0xf]
  %v189 = vld [vmem:[%s1 + $0x170] sm:$0xf]
  %v190 = vld [vmem:[%s1 + $0x174] sm:$0xf]
  %v191 = vld [vmem:[%s1 + $0x178] sm:$0xf]
  %v192 = vld [vmem:[%s1 + $0x17c] sm:$0xf]
  %v193 = vld [vmem:[%s1 + $0x180] sm:$0xf]
  %v194 = vld [vmem:[%s1 + $0x184] sm:$0xf]
  %v195 = vld [vmem:[%s1 + $0x188] sm:$0xf]
  %v196 = vld [vmem:[%s1 + $0x18c] sm:$0xf]
  %v197 = vld [vmem:[%s1 + $0x190] sm:$0xf]
  %v198 = vld [vmem:[%s1 + $0x194] sm:$0xf]
  %v199 = vld [vmem:[%s1 + $0x198] sm:$0xf]
  %v200 = vld [vmem:[%s1 + $0x19c] sm:$0xf]
  %v201 = vld [vmem:[%s1 + $0x1a0] sm:$0xf]
  %v202 = vld [vmem:[%s1 + $0x1a4] sm:$0xf]
  %v203 = vld [vmem:[%s1 + $0x1a8] sm:$0xf]
  %v204 = vld [vmem:[%s1 + $0x1ac] sm:$0xf]
  %v205 = vld [vmem:[%s1 + $0x1b0] sm:$0xf]
  %v206 = vld [vmem:[%s1 + $0x1b4] sm:$0xf]
  %v207 = vld [vmem:[%s1 + $0x1b8] sm:$0xf]
  %v208 = vld [vmem:[%s1 + $0x1bc] sm:$0xf]
  %v209 = vld [vmem:[%s1 + $0x1c0] sm:$0xf]
  %v210 = vld [vmem:[%s1 + $0x1c4] sm:$0xf]
  %v211 = vld [vmem:[%s1 + $0x1c8] sm:$0xf]
  %v212 = vld [vmem:[%s1 + $0x1cc] sm:$0xf]
  %v213 = vld [vmem:[%s1 + $0x1d0] sm:$0xf]
  %v214 = vld [vmem:[%s1 + $0x1d4] sm:$0xf]
  %v215 = vld [vmem:[%s1 + $0x1d8] sm:$0xf]
  %v216 = vld [vmem:[%s1 + $0x1dc] sm:$0xf]
  %v217 = vld [vmem:[%s1 + $0x1e0] sm:$0xf]
  %v218 = vld [vmem:[%s1 + $0x1e4] sm:$0xf]
  %v219 = vld [vmem:[%s1 + $0x1e8] sm:$0xf]
  %v220 = vld [vmem:[%s1 + $0x1ec] sm:$0xf]
  %v221 = vld [vmem:[%s1 + $0x1f0] sm:$0xf]
  %v222 = vld [vmem:[%s1 + $0x1f4] sm:$0xf]
  %v223 = vld [vmem:[%s1 + $0x1f8] sm:$0xf]
  %v224 = vld [vmem:[%s1 + $0x1fc] sm:$0xf]
  %v225 = vld [vmem:[%s1 + $0x200] sm:$0xf]
  %v226 = vld [vmem:[%s1 + $0x204] sm:$0xf]
  %v227 = vld [vmem:[%s1 + $0x208] sm:$0xf]
  %v228 = vld [vmem:[%s1 + $0x20c] sm:$0xf]
  %v229 = vld [vmem:[%s1 + $0x210] sm:$0xf]
  %v230 = vld [vmem:[%s1 + $0x214] sm:$0xf]
  %v231 = vld [vmem:[%s1 + $0x218] sm:$0xf]
  %v232 = vld [vmem:[%s1 + $0x21c] sm:$0xf]
  %v233 = vld [vmem:[%s1 + $0x220] sm:$0xf]
  %v234 = vld [vmem:[%s1 + $0x224] sm:$0xf]
  %v235 = vld [vmem:[%s1 + $0x228] sm:$0xf]
  %v236 = vld [vmem:[%s1 + $0x22c] sm:$0xf]
  %v237 = vld [vmem:[%s1 + $0x230] sm:$0xf]
  %v238 = vld [vmem:[%s1 + $0x234] sm:$0xf]
  %v239 = vld [vmem:[%s1 + $0x238] sm:$0xf]
  %v240 = vld [vmem:[%s1 + $0x23c] sm:$0xf]
  %v321 = vunpack.c.l.b16 %v17
  %v322 = vunpack.c.h.b16 %v17
  %v323 = vunpack.c.l.b16 %v18
  %v324 = vunpack.c.h.b16 %v18
  %v325 = vunpack.c.l.b16 %v19
  %v326 = vunpack.c.h.b16 %v19
  %v327 = vunpack.c.l.b16 %v20
  %v328 = vunpack.c.h.b16 %v20
  %v329 = vunpack.c.l.b16 %v21
  %v330 = vunpack.c.l.b16 %v22
  %v331 = vunpack.c.h.b16 %v22
  %v332 = vunpack.c.l.b16 %v23
  %v333 = vunpack.c.h.b16 %v23
  %v334 = vunpack.c.l.b16 %v24
  %v335 = vunpack.c.h.b16 %v24
  %v336 = vunpack.c.l.b16 %v25
  %v337 = vunpack.c.h.b16 %v25
  %v338 = vunpack.c.l.b16 %v26
  %v339 = vunpack.c.l.b16 %v27
  %v340 = vunpack.c.h.b16 %v27
  %v341 = vunpack.c.l.b16 %v28
  %v342 = vunpack.c.h.b16 %v28
  %v343 = vunpack.c.l.b16 %v29
  %v344 = vunpack.c.h.b16 %v29
  %v345 = vunpack.c.l.b16 %v30
  %v346 = vunpack.c.h.b16 %v30
  %v347 = vunpack.c.l.b16 %v31
  %v348 = vunpack.c.l.b16 %v32
  %v349 = vunpack.c.h.b16 %v32
  %v350 = vunpack.c.l.b16 %v33
  %v351 = vunpack.c.h.b16 %v33
  %v352 = vunpack.c.l.b16 %v34
  %v353 = vunpack.c.h.b16 %v34
  %v354 = vunpack.c.l.b16 %v35
  %v355 = vunpack.c.h.b16 %v35
  %v356 = vunpack.c.l.b16 %v36
  %v357 = vunpack.c.l.b16 %v37
  %v358 = vunpack.c.h.b16 %v37
  %v359 = vunpack.c.l.b16 %v38
  %v360 = vunpack.c.h.b16 %v38
  %v361 = vunpack.c.l.b16 %v39
  %v362 = vunpack.c.h.b16 %v39
  %v363 = vunpack.c.l.b16 %v40
  %v364 = vunpack.c.h.b16 %v40
  %v365 = vunpack.c.l.b16 %v41
  %v366 = vunpack.c.l.b16 %v42
  %v367 = vunpack.c.h.b16 %v42
  %v368 = vunpack.c.l.b16 %v43
  %v369 = vunpack.c.h.b16 %v43
  %v370 = vunpack.c.l.b16 %v44
  %v371 = vunpack.c.h.b16 %v44
  %v372 = vunpack.c.l.b16 %v45
  %v373 = vunpack.c.h.b16 %v45
  %v374 = vunpack.c.l.b16 %v46
  %v375 = vunpack.c.l.b16 %v47
  %v376 = vunpack.c.h.b16 %v47
  %v377 = vunpack.c.l.b16 %v48
  %v378 = vunpack.c.h.b16 %v48
  %v379 = vunpack.c.l.b16 %v49
  %v380 = vunpack.c.h.b16 %v49
  %v381 = vunpack.c.l.b16 %v50
  %v382 = vunpack.c.h.b16 %v50
  %v383 = vunpack.c.l.b16 %v51
  %v384 = vunpack.c.l.b16 %v52
  %v385 = vunpack.c.h.b16 %v52
  %v386 = vunpack.c.l.b16 %v53
  %v387 = vunpack.c.h.b16 %v53
  %v388 = vunpack.c.l.b16 %v54
  %v389 = vunpack.c.h.b16 %v54
  %v390 = vunpack.c.l.b16 %v55
  %v391 = vunpack.c.h.b16 %v55
  %v392 = vunpack.c.l.b16 %v56
  %v393 = vunpack.c.l.b16 %v57
  %v394 = vunpack.c.h.b16 %v57
  %v395 = vunpack.c.l.b16 %v58
  %v396 = vunpack.c.h.b16 %v58
  %v397 = vunpack.c.l.b16 %v59
  %v398 = vunpack.c.h.b16 %v59
  %v399 = vunpack.c.l.b16 %v60
  %v400 = vunpack.c.h.b16 %v60
  %v401 = vunpack.c.l.b16 %v61
  %v402 = vunpack.c.l.b16 %v62
  %v403 = vunpack.c.h.b16 %v62
  %v404 = vunpack.c.l.b16 %v63
  %v405 = vunpack.c.h.b16 %v63
  %v406 = vunpack.c.l.b16 %v64
  %v407 = vunpack.c.h.b16 %v64
  %v408 = vunpack.c.l.b16 %v65
  %v409 = vunpack.c.h.b16 %v65
  %v410 = vunpack.c.l.b16 %v66
  %v411 = vunpack.c.l.b16 %v67
  %v412 = vunpack.c.h.b16 %v67
  %v413 = vunpack.c.l.b16 %v68
  %v414 = vunpack.c.h.b16 %v68
  %v415 = vunpack.c.l.b16 %v69
  %v416 = vunpack.c.h.b16 %v69
  %v417 = vunpack.c.l.b16 %v70
  %v418 = vunpack.c.h.b16 %v70
  %v419 = vunpack.c.l.b16 %v71
  %v420 = vunpack.c.l.b16 %v72
  %v421 = vunpack.c.h.b16 %v72
  %v422 = vunpack.c.l.b16 %v73
  %v423 = vunpack.c.h.b16 %v73
  %v424 = vunpack.c.l.b16 %v74
  %v425 = vunpack.c.h.b16 %v74
  %v426 = vunpack.c.l.b16 %v75
  %v427 = vunpack.c.h.b16 %v75
  %v428 = vunpack.c.l.b16 %v76
  %v429 = vunpack.c.l.b16 %v77
  %v430 = vunpack.c.h.b16 %v77
  %v431 = vunpack.c.l.b16 %v78
  %v432 = vunpack.c.h.b16 %v78
  %v433 = vunpack.c.l.b16 %v79
  %v434 = vunpack.c.h.b16 %v79
  %v435 = vunpack.c.l.b16 %v80
  %v436 = vunpack.c.h.b16 %v80
  %v437 = vunpack.c.l.b16 %v81
  %v438 = vunpack.c.l.b16 %v82
  %v439 = vunpack.c.h.b16 %v82
  %v440 = vunpack.c.l.b16 %v83
  %v441 = vunpack.c.h.b16 %v83
  %v442 = vunpack.c.l.b16 %v84
  %v443 = vunpack.c.h.b16 %v84
  %v444 = vunpack.c.l.b16 %v85
  %v445 = vunpack.c.h.b16 %v85
  %v446 = vunpack.c.l.b16 %v86
  %v447 = vunpack.c.l.b16 %v87
  %v448 = vunpack.c.h.b16 %v87
  %v449 = vunpack.c.l.b16 %v88
  %v450 = vunpack.c.h.b16 %v88
  %v451 = vunpack.c.l.b16 %v89
  %v452 = vunpack.c.h.b16 %v89
  %v453 = vunpack.c.l.b16 %v90
  %v454 = vunpack.c.h.b16 %v90
  %v455 = vunpack.c.l.b16 %v91
  %v456 = vunpack.c.l.b16 %v92
  %v457 = vunpack.c.h.b16 %v92
  %v458 = vunpack.c.l.b16 %v93
  %v459 = vunpack.c.h.b16 %v93
  %v460 = vunpack.c.l.b16 %v94
  %v461 = vunpack.c.h.b16 %v94
  %v462 = vunpack.c.l.b16 %v95
  %v463 = vunpack.c.h.b16 %v95
  %v464 = vunpack.c.l.b16 %v96
  %v465 = vpack.c.b16 %v330, %v321
  %v466 = vpack.c.b16 %v331, %v322
  %v467 = vpack.c.b16 %v332, %v323
  %v468 = vpack.c.b16 %v333, %v324
  %v469 = vpack.c.b16 %v334, %v325
  %v470 = vpack.c.b16 %v335, %v326
  %v471 = vpack.c.b16 %v336, %v327
  %v472 = vpack.c.b16 %v337, %v328
  %v473 = vpack.c.b16 %v338, %v329
  %v474 = vpack.c.b16 %v348, %v339
  %v475 = vpack.c.b16 %v349, %v340
  %v476 = vpack.c.b16 %v350, %v341
  %v477 = vpack.c.b16 %v351, %v342
  %v478 = vpack.c.b16 %v352, %v343
  %v479 = vpack.c.b16 %v353, %v344
  %v480 = vpack.c.b16 %v354, %v345
  %v481 = vpack.c.b16 %v355, %v346
  %v482 = vpack.c.b16 %v356, %v347
  %v483 = vpack.c.b16 %v366, %v357
  %v484 = vpack.c.b16 %v367, %v358
  %v485 = vpack.c.b16 %v368, %v359
  %v486 = vpack.c.b16 %v369, %v360
  %v487 = vpack.c.b16 %v370, %v361
  %v488 = vpack.c.b16 %v371, %v362
  %v489 = vpack.c.b16 %v372, %v363
  %v490 = vpack.c.b16 %v373, %v364
  %v491 = vpack.c.b16 %v374, %v365
  %v492 = vpack.c.b16 %v384, %v375
  %v493 = vpack.c.b16 %v385, %v376
  %v494 = vpack.c.b16 %v386, %v377
  %v495 = vpack.c.b16 %v387, %v378
  %v496 = vpack.c.b16 %v388, %v379
  %v497 = vpack.c.b16 %v389, %v380
  %v498 = vpack.c.b16 %v390, %v381
  %v499 = vpack.c.b16 %v391, %v382
  %v500 = vpack.c.b16 %v392, %v383
  %v501 = vpack.c.b16 %v402, %v393
  %v502 = vpack.c.b16 %v403, %v394
  %v503 = vpack.c.b16 %v404, %v395
  %v504 = vpack.c.b16 %v405, %v396
  %v505 = vpack.c.b16 %v406, %v397
  %v506 = vpack.c.b16 %v407, %v398
  %v507 = vpack.c.b16 %v408, %v399
  %v508 = vpack.c.b16 %v409, %v400
  %v509 = vpack.c.b16 %v410, %v401
  %v510 = vpack.c.b16 %v420, %v411
  %v511 = vpack.c.b16 %v421, %v412
  %v512 = vpack.c.b16 %v422, %v413
  %v513 = vpack.c.b16 %v423, %v414
  %v514 = vpack.c.b16 %v424, %v415
  %v515 = vpack.c.b16 %v425, %v416
  %v516 = vpack.c.b16 %v426, %v417
  %v517 = vpack.c.b16 %v427, %v418
  %v518 = vpack.c.b16 %v428, %v419
  %v519 = vpack.c.b16 %v438, %v429
  %v520 = vpack.c.b16 %v439, %v430
  %v521 = vpack.c.b16 %v440, %v431
  %v522 = vpack.c.b16 %v441, %v432
  %v523 = vpack.c.b16 %v442, %v433
  %v524 = vpack.c.b16 %v443, %v434
  %v525 = vpack.c.b16 %v444, %v435
  %v526 = vpack.c.b16 %v445, %v436
  %v527 = vpack.c.b16 %v446, %v437
  %v528 = vpack.c.b16 %v456, %v447
  %v529 = vpack.c.b16 %v457, %v448
  %v530 = vpack.c.b16 %v458, %v449
  %v531 = vpack.c.b16 %v459, %v450
  %v532 = vpack.c.b16 %v460, %v451
  %v533 = vpack.c.b16 %v461, %v452
  %v534 = vpack.c.b16 %v462, %v453
  %v535 = vpack.c.b16 %v463, %v454
  %v536 = vpack.c.b16 %v464, %v455
  %v753 = vunpack.c.l.b16 %v97
  %v754 = vunpack.c.l.b16 %v98
  %v755 = vunpack.c.l.b16 %v99
  %v756 = vunpack.c.l.b16 %v100
  %v757 = vunpack.c.l.b16 %v101
  %v758 = vunpack.c.l.b16 %v102
  %v759 = vunpack.c.l.b16 %v103
  %v760 = vunpack.c.l.b16 %v104
  %v761 = vunpack.c.l.b16 %v105
  %v762 = vunpack.c.l.b16 %v106
  %v763 = vunpack.c.l.b16 %v107
  %v764 = vunpack.c.l.b16 %v108
  %v765 = vunpack.c.l.b16 %v109
  %v766 = vunpack.c.l.b16 %v110
  %v767 = vunpack.c.l.b16 %v111
  %v768 = vunpack.c.l.b16 %v112
  %v769 = vunpack.c.l.b16 %v113
  %v770 = vunpack.c.l.b16 %v114
  %v771 = vunpack.c.l.b16 %v115
  %v772 = vunpack.c.l.b16 %v116
  %v773 = vunpack.c.l.b16 %v117
  %v774 = vunpack.c.l.b16 %v118
  %v775 = vunpack.c.l.b16 %v119
  %v776 = vunpack.c.l.b16 %v120
  %v777 = vunpack.c.l.b16 %v121
  %v778 = vunpack.c.l.b16 %v122
  %v779 = vunpack.c.l.b16 %v123
  %v780 = vunpack.c.l.b16 %v124
  %v781 = vunpack.c.l.b16 %v125
  %v782 = vunpack.c.l.b16 %v126
  %v783 = vunpack.c.l.b16 %v127
  %v784 = vunpack.c.l.b16 %v128
  %v785 = vunpack.c.l.b16 %v129
  %v786 = vunpack.c.l.b16 %v130
  %v787 = vunpack.c.l.b16 %v131
  %v788 = vunpack.c.l.b16 %v132
  %v789 = vunpack.c.l.b16 %v133
  %v790 = vunpack.c.l.b16 %v134
  %v791 = vunpack.c.l.b16 %v135
  %v792 = vunpack.c.l.b16 %v136
  %v793 = vunpack.c.l.b16 %v137
  %v794 = vunpack.c.l.b16 %v138
  %v795 = vunpack.c.l.b16 %v139
  %v796 = vunpack.c.l.b16 %v140
  %v797 = vunpack.c.l.b16 %v141
  %v798 = vunpack.c.l.b16 %v142
  %v799 = vunpack.c.l.b16 %v143
  %v800 = vunpack.c.l.b16 %v144
  %v801 = vunpack.c.l.b16 %v145
  %v802 = vunpack.c.l.b16 %v146
  %v803 = vunpack.c.l.b16 %v147
  %v804 = vunpack.c.l.b16 %v148
  %v805 = vunpack.c.l.b16 %v149
  %v806 = vunpack.c.l.b16 %v150
  %v807 = vunpack.c.l.b16 %v151
  %v808 = vunpack.c.l.b16 %v152
  %v809 = vunpack.c.l.b16 %v153
  %v810 = vunpack.c.l.b16 %v154
  %v811 = vunpack.c.l.b16 %v155
  %v812 = vunpack.c.l.b16 %v156
  %v813 = vunpack.c.l.b16 %v157
  %v814 = vunpack.c.l.b16 %v158
  %v815 = vunpack.c.l.b16 %v159
  %v816 = vunpack.c.l.b16 %v160
  %v817 = vunpack.c.l.b16 %v161
  %v818 = vunpack.c.l.b16 %v162
  %v819 = vunpack.c.l.b16 %v163
  %v820 = vunpack.c.l.b16 %v164
  %v821 = vunpack.c.l.b16 %v165
  %v822 = vunpack.c.l.b16 %v166
  %v823 = vunpack.c.l.b16 %v167
  %v824 = vunpack.c.l.b16 %v168
  %v825 = vunpack.c.l.b16 %v169
  %v826 = vunpack.c.l.b16 %v170
  %v827 = vunpack.c.l.b16 %v171
  %v828 = vunpack.c.l.b16 %v172
  %v829 = vunpack.c.l.b16 %v173
  %v830 = vunpack.c.l.b16 %v174
  %v831 = vunpack.c.l.b16 %v175
  %v832 = vunpack.c.l.b16 %v176
  %v833 = vunpack.c.l.b16 %v177
  %v834 = vunpack.c.l.b16 %v178
  %v835 = vunpack.c.l.b16 %v179
  %v836 = vunpack.c.l.b16 %v180
  %v837 = vunpack.c.l.b16 %v181
  %v838 = vunpack.c.l.b16 %v182
  %v839 = vunpack.c.l.b16 %v183
  %v840 = vunpack.c.l.b16 %v184
  %v841 = vunpack.c.l.b16 %v185
  %v842 = vunpack.c.l.b16 %v186
  %v843 = vunpack.c.l.b16 %v187
  %v844 = vunpack.c.l.b16 %v188
  %v845 = vunpack.c.l.b16 %v189
  %v846 = vunpack.c.l.b16 %v190
  %v847 = vunpack.c.l.b16 %v191
  %v848 = vunpack.c.l.b16 %v192
  %v849 = vunpack.c.l.b16 %v193
  %v850 = vunpack.c.l.b16 %v194
  %v851 = vunpack.c.l.b16 %v195
  %v852 = vunpack.c.l.b16 %v196
  %v853 = vunpack.c.l.b16 %v197
  %v854 = vunpack.c.l.b16 %v198
  %v855 = vunpack.c.l.b16 %v199
  %v856 = vunpack.c.l.b16 %v200
  %v857 = vunpack.c.l.b16 %v201
  %v858 = vunpack.c.l.b16 %v202
  %v859 = vunpack.c.l.b16 %v203
  %v860 = vunpack.c.l.b16 %v204
  %v861 = vunpack.c.l.b16 %v205
  %v862 = vunpack.c.l.b16 %v206
  %v863 = vunpack.c.l.b16 %v207
  %v864 = vunpack.c.l.b16 %v208
  %v865 = vunpack.c.l.b16 %v209
  %v866 = vunpack.c.l.b16 %v210
  %v867 = vunpack.c.l.b16 %v211
  %v868 = vunpack.c.l.b16 %v212
  %v869 = vunpack.c.l.b16 %v213
  %v870 = vunpack.c.l.b16 %v214
  %v871 = vunpack.c.l.b16 %v215
  %v872 = vunpack.c.l.b16 %v216
  %v873 = vunpack.c.l.b16 %v217
  %v874 = vunpack.c.l.b16 %v218
  %v875 = vunpack.c.l.b16 %v219
  %v876 = vunpack.c.l.b16 %v220
  %v877 = vunpack.c.l.b16 %v221
  %v878 = vunpack.c.l.b16 %v222
  %v879 = vunpack.c.l.b16 %v223
  %v880 = vunpack.c.l.b16 %v224
  %v881 = vunpack.c.l.b16 %v225
  %v882 = vunpack.c.l.b16 %v226
  %v883 = vunpack.c.l.b16 %v227
  %v884 = vunpack.c.l.b16 %v228
  %v885 = vunpack.c.l.b16 %v229
  %v886 = vunpack.c.l.b16 %v230
  %v887 = vunpack.c.l.b16 %v231
  %v888 = vunpack.c.l.b16 %v232
  %v889 = vunpack.c.l.b16 %v233
  %v890 = vunpack.c.l.b16 %v234
  %v891 = vunpack.c.l.b16 %v235
  %v892 = vunpack.c.l.b16 %v236
  %v893 = vunpack.c.l.b16 %v237
  %v894 = vunpack.c.l.b16 %v238
  %v895 = vunpack.c.l.b16 %v239
  %v896 = vunpack.c.l.b16 %v240
  %v897 = vpack.c.b16 %v754, %v753
  %v898 = vpack.c.b16 %v756, %v755
  %v899 = vpack.c.b16 %v758, %v757
  %v900 = vpack.c.b16 %v760, %v759
  %v901 = vpack.c.b16 %v762, %v761
  %v902 = vpack.c.b16 %v764, %v763
  %v903 = vpack.c.b16 %v766, %v765
  %v904 = vpack.c.b16 %v768, %v767
  %v905 = vpack.c.b16 %v770, %v769
  %v906 = vpack.c.b16 %v772, %v771
  %v907 = vpack.c.b16 %v774, %v773
  %v908 = vpack.c.b16 %v776, %v775
  %v909 = vpack.c.b16 %v778, %v777
  %v910 = vpack.c.b16 %v780, %v779
  %v911 = vpack.c.b16 %v782, %v781
  %v912 = vpack.c.b16 %v784, %v783
  %v913 = vpack.c.b16 %v786, %v785
  %v914 = vpack.c.b16 %v788, %v787
  %v915 = vpack.c.b16 %v790, %v789
  %v916 = vpack.c.b16 %v792, %v791
  %v917 = vpack.c.b16 %v794, %v793
  %v918 = vpack.c.b16 %v796, %v795
  %v919 = vpack.c.b16 %v798, %v797
  %v920 = vpack.c.b16 %v800, %v799
  %v921 = vpack.c.b16 %v802, %v801
  %v922 = vpack.c.b16 %v804, %v803
  %v923 = vpack.c.b16 %v806, %v805
  %v924 = vpack.c.b16 %v808, %v807
  %v925 = vpack.c.b16 %v810, %v809
  %v926 = vpack.c.b16 %v812, %v811
  %v927 = vpack.c.b16 %v814, %v813
  %v928 = vpack.c.b16 %v816, %v815
  %v929 = vpack.c.b16 %v818, %v817
  %v930 = vpack.c.b16 %v820, %v819
  %v931 = vpack.c.b16 %v822, %v821
  %v932 = vpack.c.b16 %v824, %v823
  %v933 = vpack.c.b16 %v826, %v825
  %v934 = vpack.c.b16 %v828, %v827
  %v935 = vpack.c.b16 %v830, %v829
  %v936 = vpack.c.b16 %v832, %v831
  %v937 = vpack.c.b16 %v834, %v833
  %v938 = vpack.c.b16 %v836, %v835
  %v939 = vpack.c.b16 %v838, %v837
  %v940 = vpack.c.b16 %v840, %v839
  %v941 = vpack.c.b16 %v842, %v841
  %v942 = vpack.c.b16 %v844, %v843
  %v943 = vpack.c.b16 %v846, %v845
  %v944 = vpack.c.b16 %v848, %v847
  %v945 = vpack.c.b16 %v850, %v849
  %v946 = vpack.c.b16 %v852, %v851
  %v947 = vpack.c.b16 %v854, %v853
  %v948 = vpack.c.b16 %v856, %v855
  %v949 = vpack.c.b16 %v858, %v857
  %v950 = vpack.c.b16 %v860, %v859
  %v951 = vpack.c.b16 %v862, %v861
  %v952 = vpack.c.b16 %v864, %v863
  %v953 = vpack.c.b16 %v866, %v865
  %v954 = vpack.c.b16 %v868, %v867
  %v955 = vpack.c.b16 %v870, %v869
  %v956 = vpack.c.b16 %v872, %v871
  %v957 = vpack.c.b16 %v874, %v873
  %v958 = vpack.c.b16 %v876, %v875
  %v959 = vpack.c.b16 %v878, %v877
  %v960 = vpack.c.b16 %v880, %v879
  %v961 = vpack.c.b16 %v882, %v881
  %v962 = vpack.c.b16 %v884, %v883
  %v963 = vpack.c.b16 %v886, %v885
  %v964 = vpack.c.b16 %v888, %v887
  %v965 = vpack.c.b16 %v890, %v889
  %v966 = vpack.c.b16 %v892, %v891
  %v967 = vpack.c.b16 %v894, %v893
  %v968 = vpack.c.b16 %v896, %v895
  %1041 = vmatpush.bf16.msra.mxu0 %v904
  %1042 = vmatpush.bf16.msra.mxu0 %v903
  %1043 = vmatpush.bf16.msra.mxu0 %v902
  %1044 = vmatpush.bf16.msra.mxu0 %v901
  %1045 = vmatpush.bf16.msra.mxu0 %v900
  %1046 = vmatpush.bf16.msra.mxu0 %v899
  %1047 = vmatpush.bf16.msra.mxu0 %v898
  %1048 = vmatpush.bf16.msra.mxu0 %v897
  %1049 = vmatmul.bf16.gmra.mxu0 %v465
  %v1050 = vpop.f32.mrf.mxu0
  %v1051 = vadd.f32 0.0, %v1050
  %v1052 = vpop.f32.mrf.mxu0
  %v1053 = vadd.f32 0.0, %v1052
  %1054 = vmatmul.bf16.gmra.mxu0 %v474
  %v1055 = vpop.f32.mrf.mxu0
  %v1056 = vadd.f32 0.0, %v1055
  %v1057 = vpop.f32.mrf.mxu0
  %v1058 = vadd.f32 0.0, %v1057
  %1059 = vmatmul.bf16.gmra.mxu0 %v483
  %v1060 = vpop.f32.mrf.mxu0
  %v1061 = vadd.f32 0.0, %v1060
  %v1062 = vpop.f32.mrf.mxu0
  %v1063 = vadd.f32 0.0, %v1062
  %1064 = vmatmul.bf16.gmra.mxu0 %v492
  %v1065 = vpop.f32.mrf.mxu0
  %v1066 = vadd.f32 0.0, %v1065
  %v1067 = vpop.f32.mrf.mxu0
  %v1068 = vadd.f32 0.0, %v1067
  %1069 = vmatmul.bf16.gmra.mxu0 %v501
  %v1070 = vpop.f32.mrf.mxu0
  %v1071 = vadd.f32 0.0, %v1070
  %v1072 = vpop.f32.mrf.mxu0
  %v1073 = vadd.f32 0.0, %v1072
  %1074 = vmatmul.bf16.gmra.mxu0 %v510
  %v1075 = vpop.f32.mrf.mxu0
  %v1076 = vadd.f32 0.0, %v1075
  %v1077 = vpop.f32.mrf.mxu0
  %v1078 = vadd.f32 0.0, %v1077
  %1079 = vmatmul.bf16.gmra.mxu0 %v519
  %v1080 = vpop.f32.mrf.mxu0
  %v1081 = vadd.f32 0.0, %v1080
  %v1082 = vpop.f32.mrf.mxu0
  %v1083 = vadd.f32 0.0, %v1082
  %1084 = vmatmul.bf16.gmra.mxu0 %v528
  %v1085 = vpop.f32.mrf.mxu0
  %v1086 = vadd.f32 0.0, %v1085
  %v1087 = vpop.f32.mrf.mxu0
  %v1088 = vadd.f32 0.0, %v1087
  %1089 = vdwg.mxu0
  %1090 = vmatpush.bf16.msra.mxu0 %v912
  %1091 = vmatpush.bf16.msra.mxu0 %v911
  %1092 = vmatpush.bf16.msra.mxu0 %v910
  %1093 = vmatpush.bf16.msra.mxu0 %v909
  %1094 = vmatpush.bf16.msra.mxu0 %v908
  %1095 = vmatpush.bf16.msra.mxu0 %v907
  %1096 = vmatpush.bf16.msra.mxu0 %v906
  %1097 = vmatpush.bf16.msra.mxu0 %v905
  %1098 = vmatmul.bf16.gmra.mxu0 %v466
  %v1099 = vpop.f32.mrf.mxu0
  %v1100 = vadd.f32 %v1051, %v1099
  %v1101 = vpop.f32.mrf.mxu0
  %v1102 = vadd.f32 %v1053, %v1101
  %1103 = vmatmul.bf16.gmra.mxu0 %v475
  %v1104 = vpop.f32.mrf.mxu0
  %v1105 = vadd.f32 %v1056, %v1104
  %v1106 = vpop.f32.mrf.mxu0
  %v1107 = vadd.f32 %v1058, %v1106
  %1108 = vmatmul.bf16.gmra.mxu0 %v484
  %v1109 = vpop.f32.mrf.mxu0
  %v1110 = vadd.f32 %v1061, %v1109
  %v1111 = vpop.f32.mrf.mxu0
  %v1112 = vadd.f32 %v1063, %v1111
  %1113 = vmatmul.bf16.gmra.mxu0 %v493
  %v1114 = vpop.f32.mrf.mxu0
  %v1115 = vadd.f32 %v1066, %v1114
  %v1116 = vpop.f32.mrf.mxu0
  %v1117 = vadd.f32 %v1068, %v1116
  %1118 = vmatmul.bf16.gmra.mxu0 %v502
  %v1119 = vpop.f32.mrf.mxu0
  %v1120 = vadd.f32 %v1071, %v1119
  %v1121 = vpop.f32.mrf.mxu0
  %v1122 = vadd.f32 %v1073, %v1121
  %1123 = vmatmul.bf16.gmra.mxu0 %v511
  %v1124 = vpop.f32.mrf.mxu0
  %v1125 = vadd.f32 %v1076, %v1124
  %v1126 = vpop.f32.mrf.mxu0
  %v1127 = vadd.f32 %v1078, %v1126
  %1128 = vmatmul.bf16.gmra.mxu0 %v520
  %v1129 = vpop.f32.mrf.mxu0
  %v1130 = vadd.f32 %v1081, %v1129
  %v1131 = vpop.f32.mrf.mxu0
  %v1132 = vadd.f32 %v1083, %v1131
  %1133 = vmatmul.bf16.gmra.mxu0 %v529
  %v1134 = vpop.f32.mrf.mxu0
  %v1135 = vadd.f32 %v1086, %v1134
  %v1136 = vpop.f32.mrf.mxu0
  %v1137 = vadd.f32 %v1088, %v1136
  %1138 = vdwg.mxu0
  %1139 = vmatpush.bf16.msra.mxu0 %v920
  %1140 = vmatpush.bf16.msra.mxu0 %v919
  %1141 = vmatpush.bf16.msra.mxu0 %v918
  %1142 = vmatpush.bf16.msra.mxu0 %v917
  %1143 = vmatpush.bf16.msra.mxu0 %v916
  %1144 = vmatpush.bf16.msra.mxu0 %v915
  %1145 = vmatpush.bf16.msra.mxu0 %v914
  %1146 = vmatpush.bf16.msra.mxu0 %v913
  %1147 = vmatmul.bf16.gmra.mxu0 %v467
  %v1148 = vpop.f32.mrf.mxu0
  %v1149 = vadd.f32 %v1100, %v1148
  %v1150 = vpop.f32.mrf.mxu0
  %v1151 = vadd.f32 %v1102, %v1150
  %1152 = vmatmul.bf16.gmra.mxu0 %v476
  %v1153 = vpop.f32.mrf.mxu0
  %v1154 = vadd.f32 %v1105, %v1153
  %v1155 = vpop.f32.mrf.mxu0
  %v1156 = vadd.f32 %v1107, %v1155
  %1157 = vmatmul.bf16.gmra.mxu0 %v485
  %v1158 = vpop.f32.mrf.mxu0
  %v1159 = vadd.f32 %v1110, %v1158
  %v1160 = vpop.f32.mrf.mxu0
  %v1161 = vadd.f32 %v1112, %v1160
  %1162 = vmatmul.bf16.gmra.mxu0 %v494
  %v1163 = vpop.f32.mrf.mxu0
  %v1164 = vadd.f32 %v1115, %v1163
  %v1165 = vpop.f32.mrf.mxu0
  %v1166 = vadd.f32 %v1117, %v1165
  %1167 = vmatmul.bf16.gmra.mxu0 %v503
  %v1168 = vpop.f32.mrf.mxu0
  %v1169 = vadd.f32 %v1120, %v1168
  %v1170 = vpop.f32.mrf.mxu0
  %v1171 = vadd.f32 %v1122, %v1170
  %1172 = vmatmul.bf16.gmra.mxu0 %v512
  %v1173 = vpop.f32.mrf.mxu0
  %v1174 = vadd.f32 %v1125, %v1173
  %v1175 = vpop.f32.mrf.mxu0
  %v1176 = vadd.f32 %v1127, %v1175
  %1177 = vmatmul.bf16.gmra.mxu0 %v521
  %v1178 = vpop.f32.mrf.mxu0
  %v1179 = vadd.f32 %v1130, %v1178
  %v1180 = vpop.f32.mrf.mxu0
  %v1181 = vadd.f32 %v1132, %v1180
  %1182 = vmatmul.bf16.gmra.mxu0 %v530
  %v1183 = vpop.f32.mrf.mxu0
  %v1184 = vadd.f32 %v1135, %v1183
  %v1185 = vpop.f32.mrf.mxu0
  %v1186 = vadd.f32 %v1137, %v1185
  %1187 = vdwg.mxu0
  %1188 = vmatpush.bf16.msra.mxu0 %v928
  %1189 = vmatpush.bf16.msra.mxu0 %v927
  %1190 = vmatpush.bf16.msra.mxu0 %v926
  %1191 = vmatpush.bf16.msra.mxu0 %v925
  %1192 = vmatpush.bf16.msra.mxu0 %v924
  %1193 = vmatpush.bf16.msra.mxu0 %v923
  %1194 = vmatpush.bf16.msra.mxu0 %v922
  %1195 = vmatpush.bf16.msra.mxu0 %v921
  %1196 = vmatmul.bf16.gmra.mxu0 %v468
  %v1197 = vpop.f32.mrf.mxu0
  %v1198 = vadd.f32 %v1149, %v1197
  %v1199 = vpop.f32.mrf.mxu0
  %v1200 = vadd.f32 %v1151, %v1199
  %1201 = vmatmul.bf16.gmra.mxu0 %v477
  %v1202 = vpop.f32.mrf.mxu0
  %v1203 = vadd.f32 %v1154, %v1202
  %v1204 = vpop.f32.mrf.mxu0
  %v1205 = vadd.f32 %v1156, %v1204
  %1206 = vmatmul.bf16.gmra.mxu0 %v486
  %v1207 = vpop.f32.mrf.mxu0
  %v1208 = vadd.f32 %v1159, %v1207
  %v1209 = vpop.f32.mrf.mxu0
  %v1210 = vadd.f32 %v1161, %v1209
  %1211 = vmatmul.bf16.gmra.mxu0 %v495
  %v1212 = vpop.f32.mrf.mxu0
  %v1213 = vadd.f32 %v1164, %v1212
  %v1214 = vpop.f32.mrf.mxu0
  %v1215 = vadd.f32 %v1166, %v1214
  %1216 = vmatmul.bf16.gmra.mxu0 %v504
  %v1217 = vpop.f32.mrf.mxu0
  %v1218 = vadd.f32 %v1169, %v1217
  %v1219 = vpop.f32.mrf.mxu0
  %v1220 = vadd.f32 %v1171, %v1219
  %1221 = vmatmul.bf16.gmra.mxu0 %v513
  %v1222 = vpop.f32.mrf.mxu0
  %v1223 = vadd.f32 %v1174, %v1222
  %v1224 = vpop.f32.mrf.mxu0
  %v1225 = vadd.f32 %v1176, %v1224
  %1226 = vmatmul.bf16.gmra.mxu0 %v522
  %v1227 = vpop.f32.mrf.mxu0
  %v1228 = vadd.f32 %v1179, %v1227
  %v1229 = vpop.f32.mrf.mxu0
  %v1230 = vadd.f32 %v1181, %v1229
  %1231 = vmatmul.bf16.gmra.mxu0 %v531
  %v1232 = vpop.f32.mrf.mxu0
  %v1233 = vadd.f32 %v1184, %v1232
  %v1234 = vpop.f32.mrf.mxu0
  %v1235 = vadd.f32 %v1186, %v1234
  %1236 = vdwg.mxu0
  %1237 = vmatpush.bf16.msra.mxu0 %v936
  %1238 = vmatpush.bf16.msra.mxu0 %v935
  %1239 = vmatpush.bf16.msra.mxu0 %v934
  %1240 = vmatpush.bf16.msra.mxu0 %v933
  %1241 = vmatpush.bf16.msra.mxu0 %v932
  %1242 = vmatpush.bf16.msra.mxu0 %v931
  %1243 = vmatpush.bf16.msra.mxu0 %v930
  %1244 = vmatpush.bf16.msra.mxu0 %v929
  %1245 = vmatmul.bf16.gmra.mxu0 %v469
  %v1246 = vpop.f32.mrf.mxu0
  %v1247 = vadd.f32 %v1198, %v1246
  %v1248 = vpop.f32.mrf.mxu0
  %v1249 = vadd.f32 %v1200, %v1248
  %1250 = vmatmul.bf16.gmra.mxu0 %v478
  %v1251 = vpop.f32.mrf.mxu0
  %v1252 = vadd.f32 %v1203, %v1251
  %v1253 = vpop.f32.mrf.mxu0
  %v1254 = vadd.f32 %v1205, %v1253
  %1255 = vmatmul.bf16.gmra.mxu0 %v487
  %v1256 = vpop.f32.mrf.mxu0
  %v1257 = vadd.f32 %v1208, %v1256
  %v1258 = vpop.f32.mrf.mxu0
  %v1259 = vadd.f32 %v1210, %v1258
  %1260 = vmatmul.bf16.gmra.mxu0 %v496
  %v1261 = vpop.f32.mrf.mxu0
  %v1262 = vadd.f32 %v1213, %v1261
  %v1263 = vpop.f32.mrf.mxu0
  %v1264 = vadd.f32 %v1215, %v1263
  %1265 = vmatmul.bf16.gmra.mxu0 %v505
  %v1266 = vpop.f32.mrf.mxu0
  %v1267 = vadd.f32 %v1218, %v1266
  %v1268 = vpop.f32.mrf.mxu0
  %v1269 = vadd.f32 %v1220, %v1268
  %1270 = vmatmul.bf16.gmra.mxu0 %v514
  %v1271 = vpop.f32.mrf.mxu0
  %v1272 = vadd.f32 %v1223, %v1271
  %v1273 = vpop.f32.mrf.mxu0
  %v1274 = vadd.f32 %v1225, %v1273
  %1275 = vmatmul.bf16.gmra.mxu0 %v523
  %v1276 = vpop.f32.mrf.mxu0
  %v1277 = vadd.f32 %v1228, %v1276
  %v1278 = vpop.f32.mrf.mxu0
  %v1279 = vadd.f32 %v1230, %v1278
  %1280 = vmatmul.bf16.gmra.mxu0 %v532
  %v1281 = vpop.f32.mrf.mxu0
  %v1282 = vadd.f32 %v1233, %v1281
  %v1283 = vpop.f32.mrf.mxu0
  %v1284 = vadd.f32 %v1235, %v1283
  %1285 = vdwg.mxu0
  %1286 = vmatpush.bf16.msra.mxu0 %v944
  %1287 = vmatpush.bf16.msra.mxu0 %v943
  %1288 = vmatpush.bf16.msra.mxu0 %v942
  %1289 = vmatpush.bf16.msra.mxu0 %v941
  %1290 = vmatpush.bf16.msra.mxu0 %v940
  %1291 = vmatpush.bf16.msra.mxu0 %v939
  %1292 = vmatpush.bf16.msra.mxu0 %v938
  %1293 = vmatpush.bf16.msra.mxu0 %v937
  %1294 = vmatmul.bf16.gmra.mxu0 %v470
  %v1295 = vpop.f32.mrf.mxu0
  %v1296 = vadd.f32 %v1247, %v1295
  %v1297 = vpop.f32.mrf.mxu0
  %v1298 = vadd.f32 %v1249, %v1297
  %1299 = vmatmul.bf16.gmra.mxu0 %v479
  %v1300 = vpop.f32.mrf.mxu0
  %v1301 = vadd.f32 %v1252, %v1300
  %v1302 = vpop.f32.mrf.mxu0
  %v1303 = vadd.f32 %v1254, %v1302
  %1304 = vmatmul.bf16.gmra.mxu0 %v488
  %v1305 = vpop.f32.mrf.mxu0
  %v1306 = vadd.f32 %v1257, %v1305
  %v1307 = vpop.f32.mrf.mxu0
  %v1308 = vadd.f32 %v1259, %v1307
  %1309 = vmatmul.bf16.gmra.mxu0 %v497
  %v1310 = vpop.f32.mrf.mxu0
  %v1311 = vadd.f32 %v1262, %v1310
  %v1312 = vpop.f32.mrf.mxu0
  %v1313 = vadd.f32 %v1264, %v1312
  %1314 = vmatmul.bf16.gmra.mxu0 %v506
  %v1315 = vpop.f32.mrf.mxu0
  %v1316 = vadd.f32 %v1267, %v1315
  %v1317 = vpop.f32.mrf.mxu0
  %v1318 = vadd.f32 %v1269, %v1317
  %1319 = vmatmul.bf16.gmra.mxu0 %v515
  %v1320 = vpop.f32.mrf.mxu0
  %v1321 = vadd.f32 %v1272, %v1320
  %v1322 = vpop.f32.mrf.mxu0
  %v1323 = vadd.f32 %v1274, %v1322
  %1324 = vmatmul.bf16.gmra.mxu0 %v524
  %v1325 = vpop.f32.mrf.mxu0
  %v1326 = vadd.f32 %v1277, %v1325
  %v1327 = vpop.f32.mrf.mxu0
  %v1328 = vadd.f32 %v1279, %v1327
  %1329 = vmatmul.bf16.gmra.mxu0 %v533
  %v1330 = vpop.f32.mrf.mxu0
  %v1331 = vadd.f32 %v1282, %v1330
  %v1332 = vpop.f32.mrf.mxu0
  %v1333 = vadd.f32 %v1284, %v1332
  %1334 = vdwg.mxu0
  %1335 = vmatpush.bf16.msra.mxu0 %v952
  %1336 = vmatpush.bf16.msra.mxu0 %v951
  %1337 = vmatpush.bf16.msra.mxu0 %v950
  %1338 = vmatpush.bf16.msra.mxu0 %v949
  %1339 = vmatpush.bf16.msra.mxu0 %v948
  %1340 = vmatpush.bf16.msra.mxu0 %v947
  %1341 = vmatpush.bf16.msra.mxu0 %v946
  %1342 = vmatpush.bf16.msra.mxu0 %v945
  %1343 = vmatmul.bf16.gmra.mxu0 %v471
  %v1344 = vpop.f32.mrf.mxu0
  %v1345 = vadd.f32 %v1296, %v1344
  %v1346 = vpop.f32.mrf.mxu0
  %v1347 = vadd.f32 %v1298, %v1346
  %1348 = vmatmul.bf16.gmra.mxu0 %v480
  %v1349 = vpop.f32.mrf.mxu0
  %v1350 = vadd.f32 %v1301, %v1349
  %v1351 = vpop.f32.mrf.mxu0
  %v1352 = vadd.f32 %v1303, %v1351
  %1353 = vmatmul.bf16.gmra.mxu0 %v489
  %v1354 = vpop.f32.mrf.mxu0
  %v1355 = vadd.f32 %v1306, %v1354
  %v1356 = vpop.f32.mrf.mxu0
  %v1357 = vadd.f32 %v1308, %v1356
  %1358 = vmatmul.bf16.gmra.mxu0 %v498
  %v1359 = vpop.f32.mrf.mxu0
  %v1360 = vadd.f32 %v1311, %v1359
  %v1361 = vpop.f32.mrf.mxu0
  %v1362 = vadd.f32 %v1313, %v1361
  %1363 = vmatmul.bf16.gmra.mxu0 %v507
  %v1364 = vpop.f32.mrf.mxu0
  %v1365 = vadd.f32 %v1316, %v1364
  %v1366 = vpop.f32.mrf.mxu0
  %v1367 = vadd.f32 %v1318, %v1366
  %1368 = vmatmul.bf16.gmra.mxu0 %v516
  %v1369 = vpop.f32.mrf.mxu0
  %v1370 = vadd.f32 %v1321, %v1369
  %v1371 = vpop.f32.mrf.mxu0
  %v1372 = vadd.f32 %v1323, %v1371
  %1373 = vmatmul.bf16.gmra.mxu0 %v525
  %v1374 = vpop.f32.mrf.mxu0
  %v1375 = vadd.f32 %v1326, %v1374
  %v1376 = vpop.f32.mrf.mxu0
  %v1377 = vadd.f32 %v1328, %v1376
  %1378 = vmatmul.bf16.gmra.mxu0 %v534
  %v1379 = vpop.f32.mrf.mxu0
  %v1380 = vadd.f32 %v1331, %v1379
  %v1381 = vpop.f32.mrf.mxu0
  %v1382 = vadd.f32 %v1333, %v1381
  %1383 = vdwg.mxu0
  %1384 = vmatpush.bf16.msra.mxu0 %v960
  %1385 = vmatpush.bf16.msra.mxu0 %v959
  %1386 = vmatpush.bf16.msra.mxu0 %v958
  %1387 = vmatpush.bf16.msra.mxu0 %v957
  %1388 = vmatpush.bf16.msra.mxu0 %v956
  %1389 = vmatpush.bf16.msra.mxu0 %v955
  %1390 = vmatpush.bf16.msra.mxu0 %v954
  %1391 = vmatpush.bf16.msra.mxu0 %v953
  %1392 = vmatmul.bf16.gmra.mxu0 %v472
  %v1393 = vpop.f32.mrf.mxu0
  %v1394 = vadd.f32 %v1345, %v1393
  %v1395 = vpop.f32.mrf.mxu0
  %v1396 = vadd.f32 %v1347, %v1395
  %1397 = vmatmul.bf16.gmra.mxu0 %v481
  %v1398 = vpop.f32.mrf.mxu0
  %v1399 = vadd.f32 %v1350, %v1398
  %v1400 = vpop.f32.mrf.mxu0
  %v1401 = vadd.f32 %v1352, %v1400
  %1402 = vmatmul.bf16.gmra.mxu0 %v490
  %v1403 = vpop.f32.mrf.mxu0
  %v1404 = vadd.f32 %v1355, %v1403
  %v1405 = vpop.f32.mrf.mxu0
  %v1406 = vadd.f32 %v1357, %v1405
  %1407 = vmatmul.bf16.gmra.mxu0 %v499
  %v1408 = vpop.f32.mrf.mxu0
  %v1409 = vadd.f32 %v1360, %v1408
  %v1410 = vpop.f32.mrf.mxu0
  %v1411 = vadd.f32 %v1362, %v1410
  %1412 = vmatmul.bf16.gmra.mxu0 %v508
  %v1413 = vpop.f32.mrf.mxu0
  %v1414 = vadd.f32 %v1365, %v1413
  %v1415 = vpop.f32.mrf.mxu0
  %v1416 = vadd.f32 %v1367, %v1415
  %1417 = vmatmul.bf16.gmra.mxu0 %v517
  %v1418 = vpop.f32.mrf.mxu0
  %v1419 = vadd.f32 %v1370, %v1418
  %v1420 = vpop.f32.mrf.mxu0
  %v1421 = vadd.f32 %v1372, %v1420
  %1422 = vmatmul.bf16.gmra.mxu0 %v526
  %v1423 = vpop.f32.mrf.mxu0
  %v1424 = vadd.f32 %v1375, %v1423
  %v1425 = vpop.f32.mrf.mxu0
  %v1426 = vadd.f32 %v1377, %v1425
  %1427 = vmatmul.bf16.gmra.mxu0 %v535
  %v1428 = vpop.f32.mrf.mxu0
  %v1429 = vadd.f32 %v1380, %v1428
  %v1430 = vpop.f32.mrf.mxu0
  %v1431 = vadd.f32 %v1382, %v1430
  %1432 = vdwg.mxu0
  %1433 = vmatpush.bf16.msra.mxu0 %v968
  %1434 = vmatpush.bf16.msra.mxu0 %v967
  %1435 = vmatpush.bf16.msra.mxu0 %v966
  %1436 = vmatpush.bf16.msra.mxu0 %v965
  %1437 = vmatpush.bf16.msra.mxu0 %v964
  %1438 = vmatpush.bf16.msra.mxu0 %v963
  %1439 = vmatpush.bf16.msra.mxu0 %v962
  %1440 = vmatpush.bf16.msra.mxu0 %v961
  %1441 = vmatmul.bf16.gmra.mxu0 %v473
  %v1442 = vpop.f32.mrf.mxu0
  %v1443 = vadd.f32 %v1394, %v1442
  %v1444 = vpop.f32.mrf.mxu0
  %v1445 = vadd.f32 %v1396, %v1444
  %1446 = vmatmul.bf16.gmra.mxu0 %v482
  %v1447 = vpop.f32.mrf.mxu0
  %v1448 = vadd.f32 %v1399, %v1447
  %v1449 = vpop.f32.mrf.mxu0
  %v1450 = vadd.f32 %v1401, %v1449
  %1451 = vmatmul.bf16.gmra.mxu0 %v491
  %v1452 = vpop.f32.mrf.mxu0
  %v1453 = vadd.f32 %v1404, %v1452
  %v1454 = vpop.f32.mrf.mxu0
  %v1455 = vadd.f32 %v1406, %v1454
  %1456 = vmatmul.bf16.gmra.mxu0 %v500
  %v1457 = vpop.f32.mrf.mxu0
  %v1458 = vadd.f32 %v1409, %v1457
  %v1459 = vpop.f32.mrf.mxu0
  %v1460 = vadd.f32 %v1411, %v1459
  %1461 = vmatmul.bf16.gmra.mxu0 %v509
  %v1462 = vpop.f32.mrf.mxu0
  %v1463 = vadd.f32 %v1414, %v1462
  %v1464 = vpop.f32.mrf.mxu0
  %v1465 = vadd.f32 %v1416, %v1464
  %1466 = vmatmul.bf16.gmra.mxu0 %v518
  %v1467 = vpop.f32.mrf.mxu0
  %v1468 = vadd.f32 %v1419, %v1467
  %v1469 = vpop.f32.mrf.mxu0
  %v1470 = vadd.f32 %v1421, %v1469
  %1471 = vmatmul.bf16.gmra.mxu0 %v527
  %v1472 = vpop.f32.mrf.mxu0
  %v1473 = vadd.f32 %v1424, %v1472
  %v1474 = vpop.f32.mrf.mxu0
  %v1475 = vadd.f32 %v1426, %v1474
  %1476 = vmatmul.bf16.gmra.mxu0 %v536
  %v1477 = vpop.f32.mrf.mxu0
  %v1478 = vadd.f32 %v1429, %v1477
  %v1479 = vpop.f32.mrf.mxu0
  %v1480 = vadd.f32 %v1431, %v1479
  %1481 = vdwg.mxu0
  %v1482 = vadd.f32 %v1443, %v1445
  %v1483 = vadd.f32 %v1482, %v1448
  %v1484 = vadd.f32 %v1483, %v1450
  %v1485 = vadd.f32 %v1484, %v1453
  %v1486 = vadd.f32 %v1485, %v1455
  %v1487 = vadd.f32 %v1486, %v1458
  %v1488 = vadd.f32 %v1487, %v1460
  %v1489 = vadd.f32 %v1488, %v1463
  %v1490 = vadd.f32 %v1489, %v1465
  %v1491 = vadd.f32 %v1490, %v1468
  %v1492 = vadd.f32 %v1491, %v1470
  %v1493 = vadd.f32 %v1492, %v1473
  %v1494 = vadd.f32 %v1493, %v1475
  %v1495 = vadd.f32 %v1494, %v1478
  %v1496 = vadd.f32 %v1495, %v1480
  %v1497 = vrot.slane %v1496, 4
  %v1498 = vadd.f32 %v1496, %v1497
  %v1499 = vrot.slane %v1498, 2
  %v1500 = vadd.f32 %v1498, %v1499
  %v1501 = vrot.slane %v1500, 1
  %v1502 = vadd.f32 %v1500, %v1501
  %v1503 = vrcp.pop 128.0
  %v1504 = vmul.f32 128.0, %v1503
  %v1505 = vsub.f32 1.0, %v1504
  %v1506 = vmul.f32 %v1503, %v1505
  %v1507 = vadd.f32 %v1503, %v1506
  %vm1508 = vweird.f32 %v1503
  %v1509 = vsel %vm1508, %v1503, %v1507
  %v1510 = vmul.f32 %v1502, %v1509
  %v1511 = vsub.f32 %v1443, %v1510
  %v1512 = vsub.f32 %v1445, %v1510
  %v1513 = vsub.f32 %v1448, %v1510
  %v1514 = vsub.f32 %v1450, %v1510
  %v1515 = vsub.f32 %v1453, %v1510
  %v1516 = vsub.f32 %v1455, %v1510
  %v1517 = vsub.f32 %v1458, %v1510
  %v1518 = vsub.f32 %v1460, %v1510
  %v1519 = vsub.f32 %v1463, %v1510
  %v1520 = vsub.f32 %v1465, %v1510
  %v1521 = vsub.f32 %v1468, %v1510
  %v1522 = vsub.f32 %v1470, %v1510
  %v1523 = vsub.f32 %v1473, %v1510
  %v1524 = vsub.f32 %v1475, %v1510
  %v1525 = vsub.f32 %v1478, %v1510
  %v1526 = vsub.f32 %v1480, %v1510
  %v1527 = vmul.f32 %v1511, %v1511
  %v1528 = vmul.f32 %v1512, %v1512
  %v1529 = vmul.f32 %v1513, %v1513
  %v1530 = vmul.f32 %v1514, %v1514
  %v1531 = vmul.f32 %v1515, %v1515
  %v1532 = vmul.f32 %v1516, %v1516
  %v1533 = vmul.f32 %v1517, %v1517
  %v1534 = vmul.f32 %v1518, %v1518
  %v1535 = vmul.f32 %v1519, %v1519
  %v1536 = vmul.f32 %v1520, %v1520
  %v1537 = vmul.f32 %v1521, %v1521
  %v1538 = vmul.f32 %v1522, %v1522
  %v1539 = vmul.f32 %v1523, %v1523
  %v1540 = vmul.f32 %v1524, %v1524
  %v1541 = vmul.f32 %v1525, %v1525
  %v1542 = vmul.f32 %v1526, %v1526
  %v1543 = vadd.f32 %v1527, %v1528
  %v1544 = vadd.f32 %v1543, %v1529
  %v1545 = vadd.f32 %v1544, %v1530
  %v1546 = vadd.f32 %v1545, %v1531
  %v1547 = vadd.f32 %v1546, %v1532
  %v1548 = vadd.f32 %v1547, %v1533
  %v1549 = vadd.f32 %v1548, %v1534
  %v1550 = vadd.f32 %v1549, %v1535
  %v1551 = vadd.f32 %v1550, %v1536
  %v1552 = vadd.f32 %v1551, %v1537
  %v1553 = vadd.f32 %v1552, %v1538
  %v1554 = vadd.f32 %v1553, %v1539
  %v1555 = vadd.f32 %v1554, %v1540
  %v1556 = vadd.f32 %v1555, %v1541
  %v1557 = vadd.f32 %v1556, %v1542
  %v1558 = vrot.slane %v1557, 4
  %v1559 = vadd.f32 %v1557, %v1558
  %v1560 = vrot.slane %v1559, 2
  %v1561 = vadd.f32 %v1559, %v1560
  %v1562 = vrot.slane %v1561, 1
  %v1563 = vadd.f32 %v1561, %v1562
  %v1564 = vmul.f32 %v1563, %v1509
  %v1565 = vld [vmem:[%s2] sm:$0x1]
  %v1566 = vadd.f32 %v1564, 1e-05
  %v1567 = vrsqrt.pop %v1566
  %v1568 = vmul.f32 %v1567, %v1566
  %v1569 = vmul.f32 %v1568, %v1567
  %v1570 = vmul.f32 0.5, %v1569
  %v1571 = vsub.f32 1.5, %v1570
  %v1572 = vmul.f32 %v1567, %v1571
  %vm1573 = vweird.f32 %v1566
  %vm1574 = vweird.f32 %v1567
  %vm1575 = vmor %vm1573, %vm1574
  %v1576 = vsel %vm1575, %v1567, %v1572
  %v1577 = vmul.f32 %v1565, %v1576
  %v1579 = vperm.slane %v1577, 0
  %v1581 = vmul.f32 %v1511, %v1579
  %v1582 = vmul.f32 %v1512, %v1579
  %v1583 = vmul.f32 %v1513, %v1579
  %v1584 = vmul.f32 %v1514, %v1579
  %v1585 = vmul.f32 %v1515, %v1579
  %v1586 = vmul.f32 %v1516, %v1579
  %v1587 = vmul.f32 %v1517, %v1579
  %v1588 = vmul.f32 %v1518, %v1579
  %v1589 = vmul.f32 %v1519, %v1579
  %v1590 = vmul.f32 %v1520, %v1579
  %v1591 = vmul.f32 %v1521, %v1579
  %v1592 = vmul.f32 %v1522, %v1579
  %v1593 = vmul.f32 %v1523, %v1579
  %v1594 = vmul.f32 %v1524, %v1579
  %v1595 = vmul.f32 %v1525, %v1579
  %v1596 = vmul.f32 %v1526, %v1579
  %v1597 = vld [vmem:[%s3] sm:$0x1]
  %v1599 = vperm.slane %v1597, 0
  %v1601 = vadd.f32 %v1581, %v1599
  %v1602 = vadd.f32 %v1582, %v1599
  %v1603 = vadd.f32 %v1583, %v1599
  %v1604 = vadd.f32 %v1584, %v1599
  %v1605 = vadd.f32 %v1585, %v1599
  %v1606 = vadd.f32 %v1586, %v1599
  %v1607 = vadd.f32 %v1587, %v1599
  %v1608 = vadd.f32 %v1588, %v1599
  %v1609 = vadd.f32 %v1589, %v1599
  %v1610 = vadd.f32 %v1590, %v1599
  %v1611 = vadd.f32 %v1591, %v1599
  %v1612 = vadd.f32 %v1592, %v1599
  %v1613 = vadd.f32 %v1593, %v1599
  %v1614 = vadd.f32 %v1594, %v1599
  %v1615 = vadd.f32 %v1595, %v1599
  %v1616 = vadd.f32 %v1596, %v1599
  %vm1617 = vcmp.gt.f32.partialorder %v1601, 0.0
  %vm1618 = vcmp.gt.f32.partialorder %v1602, 0.0
  %vm1619 = vcmp.gt.f32.partialorder %v1603, 0.0
  %vm1620 = vcmp.gt.f32.partialorder %v1604, 0.0
  %vm1621 = vcmp.gt.f32.partialorder %v1605, 0.0
  %vm1622 = vcmp.gt.f32.partialorder %v1606, 0.0
  %vm1623 = vcmp.gt.f32.partialorder %v1607, 0.0
  %vm1624 = vcmp.gt.f32.partialorder %v1608, 0.0
  %vm1625 = vcmp.gt.f32.partialorder %v1609, 0.0
  %vm1626 = vcmp.gt.f32.partialorder %v1610, 0.0
  %vm1627 = vcmp.gt.f32.partialorder %v1611, 0.0
  %vm1628 = vcmp.gt.f32.partialorder %v1612, 0.0
  %vm1629 = vcmp.gt.f32.partialorder %v1613, 0.0
  %vm1630 = vcmp.gt.f32.partialorder %v1614, 0.0
  %vm1631 = vcmp.gt.f32.partialorder %v1615, 0.0
  %vm1632 = vcmp.gt.f32.partialorder %v1616, 0.0
  %v1633 = vmul.f32 %v1601, 0.1
  %v1634 = vmul.f32 %v1602, 0.1
  %v1635 = vmul.f32 %v1603, 0.1
  %v1636 = vmul.f32 %v1604, 0.1
  %v1637 = vmul.f32 %v1605, 0.1
  %v1638 = vmul.f32 %v1606, 0.1
  %v1639 = vmul.f32 %v1607, 0.1
  %v1640 = vmul.f32 %v1608, 0.1
  %v1641 = vmul.f32 %v1609, 0.1
  %v1642 = vmul.f32 %v1610, 0.1
  %v1643 = vmul.f32 %v1611, 0.1
  %v1644 = vmul.f32 %v1612, 0.1
  %v1645 = vmul.f32 %v1613, 0.1
  %v1646 = vmul.f32 %v1614, 0.1
  %v1647 = vmul.f32 %v1615, 0.1
  %v1648 = vmul.f32 %v1616, 0.1
  %v1649 = vsel %vm1617, %v1601, %v1633
  %v1650 = vsel %vm1618, %v1602, %v1634
  %v1651 = vsel %vm1619, %v1603, %v1635
  %v1652 = vsel %vm1620, %v1604, %v1636
  %v1653 = vsel %vm1621, %v1605, %v1637
  %v1654 = vsel %vm1622, %v1606, %v1638
  %v1655 = vsel %vm1623, %v1607, %v1639
  %v1656 = vsel %vm1624, %v1608, %v1640
  %v1657 = vsel %vm1625, %v1609, %v1641
  %v1658 = vsel %vm1626, %v1610, %v1642
  %v1659 = vsel %vm1627, %v1611, %v1643
  %v1660 = vsel %vm1628, %v1612, %v1644
  %v1661 = vsel %vm1629, %v1613, %v1645
  %v1662 = vsel %vm1630, %v1614, %v1646
  %v1663 = vsel %vm1631, %v1615, %v1647
  %v1664 = vsel %vm1632, %v1616, %v1648
  %1665 = vst [vmem:[%s4] sm:$0xff] %v1649
  %1666 = vst [vmem:[%s4 + $0x8] sm:$0xff] %v1650
  %1667 = vst [vmem:[%s4 + $0x10] sm:$0xff] %v1651
  %1668 = vst [vmem:[%s4 + $0x18] sm:$0xff] %v1652
  %1669 = vst [vmem:[%s4 + $0x20] sm:$0xff] %v1653
  %1670 = vst [vmem:[%s4 + $0x28] sm:$0xff] %v1654
  %1671 = vst [vmem:[%s4 + $0x30] sm:$0xff] %v1655
  %1672 = vst [vmem:[%s4 + $0x38] sm:$0xff] %v1656
  %1673 = vst [vmem:[%s4 + $0x40] sm:$0xff] %v1657
  %1674 = vst [vmem:[%s4 + $0x48] sm:$0xff] %v1658
  %1675 = vst [vmem:[%s4 + $0x50] sm:$0xff] %v1659
  %1676 = vst [vmem:[%s4 + $0x58] sm:$0xff] %v1660
  %1677 = vst [vmem:[%s4 + $0x60] sm:$0xff] %v1661
  %1678 = vst [vmem:[%s4 + $0x68] sm:$0xff] %v1662
  %1679 = vst [vmem:[%s4 + $0x70] sm:$0xff] %v1663
  %1680 = vst [vmem:[%s4 + $0x78] sm:$0xff] %v1664
  // Predicated region
  $region18: #{_lambda_.11} parent=0 // pred_check
    _
  $region19: #{_lambda_.11} parent=0 // pred_check_branch
    %1682 = sbr.rel (0) target = $region21
  $region20: #{_lambda_.11} parent=0 // pred_region
    _
  $region21: #{_lambda_.11} parent=0 // pred_fallthru
    _
  // Predicated region
  $region22: #{_lambda_.11} parent=0 // pred_check
    _
  $region23: #{_lambda_.11} parent=0 // pred_check_branch
    %1684 = sbr.rel (0) target = $region25
  $region24: #{_lambda_.11} parent=0 // pred_region
    _
  $region25: #{_lambda_.11} parent=0 // pred_fallthru
    _

// kernel: _lambda_.15
$region0: #{_lambda_.15}
  #allocation0 [shape = 'u32[]', space=smem, size = 0x4, offset = 0x4, fixed_abs, tag = 'smem constant byte address 0x4 - core index']
  #allocation1 [shape = 'u32[72,128]{1,0:T(1,128)}', space=vmem, size = 0x9000, scoped, tag = 'internal scratch']
  %s0 = inlined_call_operand.vmem [shape: bf16[32,128], index: 0, kind: input, shape index: {}]
  %s1 = inlined_call_operand.vmem [shape: bf16[128,128], index: 1, kind: input, shape index: {}]
  %s2 = inlined_call_operand.vmem [shape: f32[1,128], index: 2, kind: input, shape index: {}]
  %s3 = inlined_call_operand.vmem [shape: f32[1,128], index: 3, kind: input, shape index: {}]
  %s4 = inlined_call_operand.vmem [shape: f32[32,128], index: 4, kind: output, shape index: {}]
  %s5 = sld [smem:[#allocation0]]
  $region26: #{_lambda_.15} parent=0
    _
  %s7 = ssub.s32 1, %s5
  %s8 = scalar_select 0, %s7, %s5
  // Predicated region
  $region2: #{_lambda_.15} parent=0 // pred_check
    _
  $region3: #{_lambda_.15} parent=0 // pred_check_branch
    %10 = sbr.rel (0) target = $region5
  $region4: #{_lambda_.15} parent=0 // pred_region
    _
  $region5: #{_lambda_.15} parent=0 // pred_fallthru
    _
  // Predicated region
  $region6: #{_lambda_.15} parent=0 // pred_check
    _
  $region7: #{_lambda_.15} parent=0 // pred_check_branch
    %12 = sbr.rel (0) target = $region9
  $region8: #{_lambda_.15} parent=0 // pred_region
    _
  $region9: #{_lambda_.15} parent=0 // pred_fallthru
    _
  // Predicated region
  $region10: #{_lambda_.15} parent=0 // pred_check
    _
  $region11: #{_lambda_.15} parent=0 // pred_check_branch
    %14 = sbr.rel (0) target = $region13
  $region12: #{_lambda_.15} parent=0 // pred_region
    _
  $region13: #{_lambda_.15} parent=0 // pred_fallthru
    _
  // Predicated region
  $region14: #{_lambda_.15} parent=0 // pred_check
    _
  $region15: #{_lambda_.15} parent=0 // pred_check_branch
    %16 = sbr.rel (0) target = $region17
  $region16: #{_lambda_.15} parent=0 // pred_region
    _
  $region17: #{_lambda_.15} parent=0 // pred_fallthru
    _
  %v17 = vld [vmem:[%s0] sm:$0xf]
  %v18 = vld [vmem:[%s0 + $0x4] sm:$0xf]
  %v19 = vld [vmem:[%s0 + $0x8] sm:$0xf]
  %v20 = vld [vmem:[%s0 + $0xc] sm:$0xf]
  %v21 = vld [vmem:[%s1] sm:$0xf]
  %v22 = vld [vmem:[%s1 + $0x4] sm:$0xf]
  %v23 = vld [vmem:[%s1 + $0x8] sm:$0xf]
  %v24 = vld [vmem:[%s1 + $0xc] sm:$0xf]
  %v25 = vld [vmem:[%s1 + $0x10] sm:$0xf]
  %v26 = vld [vmem:[%s1 + $0x14] sm:$0xf]
  %v27 = vld [vmem:[%s1 + $0x18] sm:$0xf]
  %v28 = vld [vmem:[%s1 + $0x1c] sm:$0xf]
  %v29 = vld [vmem:[%s1 + $0x20] sm:$0xf]
  %v30 = vld [vmem:[%s1 + $0x24] sm:$0xf]
  %v31 = vld [vmem:[%s1 + $0x28] sm:$0xf]
  %v32 = vld [vmem:[%s1 + $0x2c] sm:$0xf]
  %v33 = vld [vmem:[%s1 + $0x30] sm:$0xf]
  %v34 = vld [vmem:[%s1 + $0x34] sm:$0xf]
  %v35 = vld [vmem:[%s1 + $0x38] sm:$0xf]
  %v36 = vld [vmem:[%s1 + $0x3c] sm:$0xf]
  %v41 = vunpack.c.l.b16 %v17
  %v42 = vunpack.c.l.b16 %v18
  %v43 = vunpack.c.l.b16 %v19
  %v44 = vunpack.c.l.b16 %v20
  %v45 = vpack.c.b16 %v42, %v41
  %v46 = vpack.c.b16 %v44, %v43
  %v65 = vunpack.c.l.b16 %v21
  %v66 = vunpack.c.l.b16 %v22
  %v67 = vunpack.c.l.b16 %v23
  %v68 = vunpack.c.l.b16 %v24
  %v69 = vunpack.c.l.b16 %v25
  %v70 = vunpack.c.l.b16 %v26
  %v71 = vunpack.c.l.b16 %v27
  %v72 = vunpack.c.l.b16 %v28
  %v73 = vunpack.c.l.b16 %v29
  %v74 = vunpack.c.l.b16 %v30
  %v75 = vunpack.c.l.b16 %v31
  %v76 = vunpack.c.l.b16 %v32
  %v77 = vunpack.c.l.b16 %v33
  %v78 = vunpack.c.l.b16 %v34
  %v79 = vunpack.c.l.b16 %v35
  %v80 = vunpack.c.l.b16 %v36
  %v81 = vpack.c.b16 %v66, %v65
  %v82 = vpack.c.b16 %v68, %v67
  %v83 = vpack.c.b16 %v70, %v69
  %v84 = vpack.c.b16 %v72, %v71
  %v85 = vpack.c.b16 %v74, %v73
  %v86 = vpack.c.b16 %v76, %v75
  %v87 = vpack.c.b16 %v78, %v77
  %v88 = vpack.c.b16 %v80, %v79
  %97 = vmatpush.bf16.msra.mxu0 %v88
  %98 = vmatpush.bf16.msra.mxu0 %v87
  %99 = vmatpush.bf16.msra.mxu0 %v86
  %100 = vmatpush.bf16.msra.mxu0 %v85
  %101 = vmatpush.bf16.msra.mxu0 %v84
  %102 = vmatpush.bf16.msra.mxu0 %v83
  %103 = vmatpush.bf16.msra.mxu0 %v82
  %104 = vmatpush.bf16.msra.mxu0 %v81
  %105 = vmatmul.bf16.gmra.mxu0 %v45
  %v106 = vpop.f32.mrf.mxu0
  %v107 = vadd.f32 0.0, %v106
  %v108 = vpop.f32.mrf.mxu0
  %v109 = vadd.f32 0.0, %v108
  %110 = vmatmul.bf16.gmra.mxu0 %v46
  %v111 = vpop.f32.mrf.mxu0
  %v112 = vadd.f32 0.0, %v111
  %v113 = vpop.f32.mrf.mxu0
  %v114 = vadd.f32 0.0, %v113
  %115 = vdwg.mxu0
  %v116 = vadd.f32 %v107, %v109
  %v117 = vadd.f32 %v116, %v112
  %v118 = vadd.f32 %v117, %v114
  %v119 = vrot.slane %v118, 4
  %v120 = vadd.f32 %v118, %v119
  %v121 = vrot.slane %v120, 2
  %v122 = vadd.f32 %v120, %v121
  %v123 = vrot.slane %v122, 1
  %v124 = vadd.f32 %v122, %v123
  %v125 = vrcp.pop 32.0
  %v126 = vmul.f32 32.0, %v125
  %v127 = vsub.f32 1.0, %v126
  %v128 = vmul.f32 %v125, %v127
  %v129 = vadd.f32 %v125, %v128
  %vm130 = vweird.f32 %v125
  %v131 = vsel %vm130, %v125, %v129
  %v132 = vmul.f32 %v124, %v131
  %v133 = vsub.f32 %v107, %v132
  %v134 = vsub.f32 %v109, %v132
  %v135 = vsub.f32 %v112, %v132
  %v136 = vsub.f32 %v114, %v132
  %v137 = vmul.f32 %v133, %v133
  %v138 = vmul.f32 %v134, %v134
  %v139 = vmul.f32 %v135, %v135
  %v140 = vmul.f32 %v136, %v136
  %v141 = vadd.f32 %v137, %v138
  %v142 = vadd.f32 %v141, %v139
  %v143 = vadd.f32 %v142, %v140
  %v144 = vrot.slane %v143, 4
  %v145 = vadd.f32 %v143, %v144
  %v146 = vrot.slane %v145, 2
  %v147 = vadd.f32 %v145, %v146
  %v148 = vrot.slane %v147, 1
  %v149 = vadd.f32 %v147, %v148
  %v150 = vmul.f32 %v149, %v131
  %v151 = vld [vmem:[%s2] sm:$0x1]
  %v152 = vadd.f32 %v150, 1e-05
  %v153 = vrsqrt.pop %v152
  %v154 = vmul.f32 %v153, %v152
  %v155 = vmul.f32 %v154, %v153
  %v156 = vmul.f32 0.5, %v155
  %v157 = vsub.f32 1.5, %v156
  %v158 = vmul.f32 %v153, %v157
  %vm159 = vweird.f32 %v152
  %vm160 = vweird.f32 %v153
  %vm161 = vmor %vm159, %vm160
  %v162 = vsel %vm161, %v153, %v158
  %v163 = vmul.f32 %v151, %v162
  %v165 = vperm.slane %v163, 0
  %v167 = vmul.f32 %v133, %v165
  %v168 = vmul.f32 %v134, %v165
  %v169 = vmul.f32 %v135, %v165
  %v170 = vmul.f32 %v136, %v165
  %v171 = vld [vmem:[%s3] sm:$0x1]
  %v173 = vperm.slane %v171, 0
  %v175 = vadd.f32 %v167, %v173
  %v176 = vadd.f32 %v168, %v173
  %v177 = vadd.f32 %v169, %v173
  %v178 = vadd.f32 %v170, %v173
  %vm179 = vcmp.gt.f32.partialorder %v175, 0.0
  %vm180 = vcmp.gt.f32.partialorder %v176, 0.0
  %vm181 = vcmp.gt.f32.partialorder %v177, 0.0
  %vm182 = vcmp.gt.f32.partialorder %v178, 0.0
  %v183 = vmul.f32 %v175, 0.1
  %v184 = vmul.f32 %v176, 0.1
  %v185 = vmul.f32 %v177, 0.1
  %v186 = vmul.f32 %v178, 0.1
  %v187 = vsel %vm179, %v175, %v183
  %v188 = vsel %vm180, %v176, %v184
  %v189 = vsel %vm181, %v177, %v185
  %v190 = vsel %vm182, %v178, %v186
  %191 = vst [vmem:[%s4] sm:$0xff] %v187
  %192 = vst [vmem:[%s4 + $0x8] sm:$0xff] %v188
  %193 = vst [vmem:[%s4 + $0x10] sm:$0xff] %v189
  %194 = vst [vmem:[%s4 + $0x18] sm:$0xff] %v190
  // Predicated region
  $region18: #{_lambda_.15} parent=0 // pred_check
    _
  $region19: #{_lambda_.15} parent=0 // pred_check_branch
    %196 = sbr.rel (0) target = $region21
  $region20: #{_lambda_.15} parent=0 // pred_region
    _
  $region21: #{_lambda_.15} parent=0 // pred_fallthru
    _
  // Predicated region
  $region22: #{_lambda_.15} parent=0 // pred_check
    _
  $region23: #{_lambda_.15} parent=0 // pred_check_branch
    %198 = sbr.rel (0) target = $region25
  $region24: #{_lambda_.15} parent=0 // pred_region
    _
  $region25: #{_lambda_.15} parent=0 // pred_fallthru
    _

// kernel: _lambda_.17
$region0: #{_lambda_.17}
  #allocation0 [shape = 'u32[]', space=smem, size = 0x4, offset = 0x4, fixed_abs, tag = 'smem constant byte address 0x4 - core index']
  #allocation1 [shape = 'u32[72,128]{1,0:T(1,128)}', space=vmem, size = 0x9000, scoped, tag = 'internal scratch']
  %s0 = inlined_call_operand.vmem [shape: bf16[32,32], index: 0, kind: input, shape index: {}]
  %s1 = inlined_call_operand.vmem [shape: bf16[32,128], index: 1, kind: input, shape index: {}]
  %s2 = inlined_call_operand.vmem [shape: f32[1,128], index: 2, kind: input, shape index: {}]
  %s3 = inlined_call_operand.vmem [shape: f32[1,128], index: 3, kind: input, shape index: {}]
  %s4 = inlined_call_operand.vmem [shape: f32[32,128], index: 4, kind: output, shape index: {}]
  %s5 = sld [smem:[#allocation0]]
  $region26: #{_lambda_.17} parent=0
    _
  %s7 = ssub.s32 1, %s5
  %s8 = scalar_select 0, %s7, %s5
  // Predicated region
  $region2: #{_lambda_.17} parent=0 // pred_check
    _
  $region3: #{_lambda_.17} parent=0 // pred_check_branch
    %10 = sbr.rel (0) target = $region5
  $region4: #{_lambda_.17} parent=0 // pred_region
    _
  $region5: #{_lambda_.17} parent=0 // pred_fallthru
    _
  // Predicated region
  $region6: #{_lambda_.17} parent=0 // pred_check
    _
  $region7: #{_lambda_.17} parent=0 // pred_check_branch
    %12 = sbr.rel (0) target = $region9
  $region8: #{_lambda_.17} parent=0 // pred_region
    _
  $region9: #{_lambda_.17} parent=0 // pred_fallthru
    _
  // Predicated region
  $region10: #{_lambda_.17} parent=0 // pred_check
    _
  $region11: #{_lambda_.17} parent=0 // pred_check_branch
    %14 = sbr.rel (0) target = $region13
  $region12: #{_lambda_.17} parent=0 // pred_region
    _
  $region13: #{_lambda_.17} parent=0 // pred_fallthru
    _
  // Predicated region
  $region14: #{_lambda_.17} parent=0 // pred_check
    _
  $region15: #{_lambda_.17} parent=0 // pred_check_branch
    %16 = sbr.rel (0) target = $region17
  $region16: #{_lambda_.17} parent=0 // pred_region
    _
  $region17: #{_lambda_.17} parent=0 // pred_fallthru
    _
  %v18 = vld [vmem:[%s0] sm:$0xf]
  %v19 = vld [vmem:[%s0 + $0x4] sm:$0xf]
  %v20 = vld [vmem:[%s0 + $0x8] sm:$0xf]
  %v21 = vld [vmem:[%s0 + $0xc] sm:$0xf]
  %v22 = vld [vmem:[%s1] sm:$0xf]
  %v23 = vld [vmem:[%s1 + $0x4] sm:$0xf]
  %v24 = vld [vmem:[%s1 + $0x8] sm:$0xf]
  %v25 = vld [vmem:[%s1 + $0xc] sm:$0xf]
  %v30 = vunpack.c.l.b16 %v18
  %v31 = vunpack.c.l.b16 %v19
  %v32 = vunpack.c.l.b16 %v20
  %v33 = vunpack.c.l.b16 %v21
  %v34 = vpack.c.b16 %v31, %v30
  %v35 = vpack.c.b16 %v33, %v32
  %v40 = vunpack.c.l.b16 %v22
  %v41 = vunpack.c.l.b16 %v23
  %v42 = vunpack.c.l.b16 %v24
  %v43 = vunpack.c.l.b16 %v25
  %v44 = vpack.c.b16 %v41, %v40
  %v45 = vpack.c.b16 %v43, %v42
  %vm48 = vcmask 261120
  %v50 = vsel %vm48, %v34, 0
  %v53 = vsel %vm48, %v35, 0
  %55 = vmatpush.bf16.msra.mxu0 0
  %56 = vmatpush.bf16.msra.mxu0 0
  %57 = vmatpush.bf16.msra.mxu0 0
  %58 = vmatpush.bf16.msra.mxu0 0
  %59 = vmatpush.bf16.msra.mxu0 0
  %60 = vmatpush.bf16.msra.mxu0 0
  %61 = vmatpush.bf16.msra.mxu0 %v45
  %62 = vmatpush.bf16.msra.mxu0 %v44
  %63 = vmatmul.bf16.gmra.mxu0 %v50
  %v64 = vpop.f32.mrf.mxu0
  %v65 = vadd.f32 0.0, %v64
  %v66 = vpop.f32.mrf.mxu0
  %v67 = vadd.f32 0.0, %v66
  %68 = vmatmul.bf16.gmra.mxu0 %v53
  %v69 = vpop.f32.mrf.mxu0
  %v70 = vadd.f32 0.0, %v69
  %v71 = vpop.f32.mrf.mxu0
  %v72 = vadd.f32 0.0, %v71
  %73 = vdwg.mxu0
  %v74 = vadd.f32 %v65, %v67
  %v75 = vadd.f32 %v74, %v70
  %v76 = vadd.f32 %v75, %v72
  %v77 = vrot.slane %v76, 4
  %v78 = vadd.f32 %v76, %v77
  %v79 = vrot.slane %v78, 2
  %v80 = vadd.f32 %v78, %v79
  %v81 = vrot.slane %v80, 1
  %v82 = vadd.f32 %v80, %v81
  %v83 = vrcp.pop 32.0
  %v84 = vmul.f32 32.0, %v83
  %v85 = vsub.f32 1.0, %v84
  %v86 = vmul.f32 %v83, %v85
  %v87 = vadd.f32 %v83, %v86
  %vm88 = vweird.f32 %v83
  %v89 = vsel %vm88, %v83, %v87
  %v90 = vmul.f32 %v82, %v89
  %v91 = vsub.f32 %v65, %v90
  %v92 = vsub.f32 %v67, %v90
  %v93 = vsub.f32 %v70, %v90
  %v94 = vsub.f32 %v72, %v90
  %v95 = vmul.f32 %v91, %v91
  %v96 = vmul.f32 %v92, %v92
  %v97 = vmul.f32 %v93, %v93
  %v98 = vmul.f32 %v94, %v94
  %v99 = vadd.f32 %v95, %v96
  %v100 = vadd.f32 %v99, %v97
  %v101 = vadd.f32 %v100, %v98
  %v102 = vrot.slane %v101, 4
  %v103 = vadd.f32 %v101, %v102
  %v104 = vrot.slane %v103, 2
  %v105 = vadd.f32 %v103, %v104
  %v106 = vrot.slane %v105, 1
  %v107 = vadd.f32 %v105, %v106
  %v108 = vmul.f32 %v107, %v89
  %v109 = vld [vmem:[%s2] sm:$0x1]
  %v110 = vadd.f32 %v108, 1e-05
  %v111 = vrsqrt.pop %v110
  %v112 = vmul.f32 %v111, %v110
  %v113 = vmul.f32 %v112, %v111
  %v114 = vmul.f32 0.5, %v113
  %v115 = vsub.f32 1.5, %v114
  %v116 = vmul.f32 %v111, %v115
  %vm117 = vweird.f32 %v110
  %vm118 = vweird.f32 %v111
  %vm119 = vmor %vm117, %vm118
  %v120 = vsel %vm119, %v111, %v116
  %v121 = vmul.f32 %v109, %v120
  %v123 = vperm.slane %v121, 0
  %v125 = vmul.f32 %v91, %v123
  %v126 = vmul.f32 %v92, %v123
  %v127 = vmul.f32 %v93, %v123
  %v128 = vmul.f32 %v94, %v123
  %v129 = vld [vmem:[%s3] sm:$0x1]
  %v131 = vperm.slane %v129, 0
  %v133 = vadd.f32 %v125, %v131
  %v134 = vadd.f32 %v126, %v131
  %v135 = vadd.f32 %v127, %v131
  %v136 = vadd.f32 %v128, %v131
  %vm137 = vcmp.gt.f32.partialorder %v133, 0.0
  %vm138 = vcmp.gt.f32.partialorder %v134, 0.0
  %vm139 = vcmp.gt.f32.partialorder %v135, 0.0
  %vm140 = vcmp.gt.f32.partialorder %v136, 0.0
  %v141 = vmul.f32 %v133, 0.1
  %v142 = vmul.f32 %v134, 0.1
  %v143 = vmul.f32 %v135, 0.1
  %v144 = vmul.f32 %v136, 0.1
  %v145 = vsel %vm137, %v133, %v141
  %v146 = vsel %vm138, %v134, %v142
  %v147 = vsel %vm139, %v135, %v143
  %v148 = vsel %vm140, %v136, %v144
  %149 = vst [vmem:[%s4] sm:$0xff] %v145
  %150 = vst [vmem:[%s4 + $0x8] sm:$0xff] %v146
  %151 = vst [vmem:[%s4 + $0x10] sm:$0xff] %v147
  %152 = vst [vmem:[%s4 + $0x18] sm:$0xff] %v148
  // Predicated region
  $region18: #{_lambda_.17} parent=0 // pred_check
    _
  $region19: #{_lambda_.17} parent=0 // pred_check_branch
    %154 = sbr.rel (0) target = $region21
  $region20: #{_lambda_.17} parent=0 // pred_region
    _
  $region21: #{_lambda_.17} parent=0 // pred_fallthru
    _
  // Predicated region
  $region22: #{_lambda_.17} parent=0 // pred_check
    _
  $region23: #{_lambda_.17} parent=0 // pred_check_branch
    %156 = sbr.rel (0) target = $region25
  $region24: #{_lambda_.17} parent=0 // pred_region
    _
  $region25: #{_lambda_.17} parent=0 // pred_fallthru
    _

// kernel: _lambda_.13
$region0: #{_lambda_.13}
  #allocation0 [shape = 'u32[]', space=smem, size = 0x4, offset = 0x4, fixed_abs, tag = 'smem constant byte address 0x4 - core index']
  #allocation1 [shape = 'u32[72,128]{1,0:T(1,128)}', space=vmem, size = 0x9000, scoped, tag = 'internal scratch']
  %s0 = inlined_call_operand.vmem [shape: bf16[128,1152], index: 0, kind: input, shape index: {}]
  %s1 = inlined_call_operand.vmem [shape: bf16[1152,128], index: 1, kind: input, shape index: {}]
  %s2 = inlined_call_operand.vmem [shape: f32[1,128], index: 2, kind: input, shape index: {}]
  %s3 = inlined_call_operand.vmem [shape: f32[1,128], index: 3, kind: input, shape index: {}]
  %s4 = inlined_call_operand.vmem [shape: f32[128,128], index: 4, kind: input, shape index: {}]
  %s5 = inlined_call_operand.vmem [shape: f32[128,128], index: 5, kind: output, shape index: {}]
  %s6 = sld [smem:[#allocation0]]
  $region30: #{_lambda_.13} parent=0
    _
  %s8 = ssub.s32 1, %s6
  %s9 = scalar_select 0, %s8, %s6
  // Predicated region
  $region2: #{_lambda_.13} parent=0 // pred_check
    _
  $region3: #{_lambda_.13} parent=0 // pred_check_branch
    %11 = sbr.rel (0) target = $region5
  $region4: #{_lambda_.13} parent=0 // pred_region
    _
  $region5: #{_lambda_.13} parent=0 // pred_fallthru
    _
  // Predicated region
  $region6: #{_lambda_.13} parent=0 // pred_check
    _
  $region7: #{_lambda_.13} parent=0 // pred_check_branch
    %13 = sbr.rel (0) target = $region9
  $region8: #{_lambda_.13} parent=0 // pred_region
    _
  $region9: #{_lambda_.13} parent=0 // pred_fallthru
    _
  // Predicated region
  $region10: #{_lambda_.13} parent=0 // pred_check
    _
  $region11: #{_lambda_.13} parent=0 // pred_check_branch
    %15 = sbr.rel (0) target = $region13
  $region12: #{_lambda_.13} parent=0 // pred_region
    _
  $region13: #{_lambda_.13} parent=0 // pred_fallthru
    _
  // Predicated region
  $region14: #{_lambda_.13} parent=0 // pred_check
    _
  $region15: #{_lambda_.13} parent=0 // pred_check_branch
    %17 = sbr.rel (0) target = $region17
  $region16: #{_lambda_.13} parent=0 // pred_region
    _
  $region17: #{_lambda_.13} parent=0 // pred_fallthru
    _
  // Predicated region
  $region18: #{_lambda_.13} parent=0 // pred_check
    _
  $region19: #{_lambda_.13} parent=0 // pred_check_branch
    %19 = sbr.rel (0) target = $region21
  $region20: #{_lambda_.13} parent=0 // pred_region
    _
  $region21: #{_lambda_.13} parent=0 // pred_fallthru
    _
  %v20 = vld [vmem:[%s0] sm:$0xff]
  %v21 = vld [vmem:[%s0 + $0x8] sm:$0xff]
  %v22 = vld [vmem:[%s0 + $0x10] sm:$0xff]
  %v23 = vld [vmem:[%s0 + $0x18] sm:$0xff]
  %v24 = vld [vmem:[%s0 + $0x20] sm:$0xf]
  %v25 = vld [vmem:[%s0 + $0x24] sm:$0xff]
  %v26 = vld [vmem:[%s0 + $0x2c] sm:$0xff]
  %v27 = vld [vmem:[%s0 + $0x34] sm:$0xff]
  %v28 = vld [vmem:[%s0 + $0x3c] sm:$0xff]
  %v29 = vld [vmem:[%s0 + $0x44] sm:$0xf]
  %v30 = vld [vmem:[%s0 + $0x48] sm:$0xff]
  %v31 = vld [vmem:[%s0 + $0x50] sm:$0xff]
  %v32 = vld [vmem:[%s0 + $0x58] sm:$0xff]
  %v33 = vld [vmem:[%s0 + $0x60] sm:$0xff]
  %v34 = vld [vmem:[%s0 + $0x68] sm:$0xf]
  %v35 = vld [vmem:[%s0 + $0x6c] sm:$0xff]
  %v36 = vld [vmem:[%s0 + $0x74] sm:$0xff]
  %v37 = vld [vmem:[%s0 + $0x7c] sm:$0xff]
  %v38 = vld [vmem:[%s0 + $0x84] sm:$0xff]
  %v39 = vld [vmem:[%s0 + $0x8c] sm:$0xf]
  %v40 = vld [vmem:[%s0 + $0x90] sm:$0xff]
  %v41 = vld [vmem:[%s0 + $0x98] sm:$0xff]
  %v42 = vld [vmem:[%s0 + $0xa0] sm:$0xff]
  %v43 = vld [vmem:[%s0 + $0xa8] sm:$0xff]
  %v44 = vld [vmem:[%s0 + $0xb0] sm:$0xf]
  %v45 = vld [vmem:[%s0 + $0xb4] sm:$0xff]
  %v46 = vld [vmem:[%s0 + $0xbc] sm:$0xff]
  %v47 = vld [vmem:[%s0 + $0xc4] sm:$0xff]
  %v48 = vld [vmem:[%s0 + $0xcc] sm:$0xff]
  %v49 = vld [vmem:[%s0 + $0xd4] sm:$0xf]
  %v50 = vld [vmem:[%s0 + $0xd8] sm:$0xff]
  %v51 = vld [vmem:[%s0 + $0xe0] sm:$0xff]
  %v52 = vld [vmem:[%s0 + $0xe8] sm:$0xff]
  %v53 = vld [vmem:[%s0 + $0xf0] sm:$0xff]
  %v54 = vld [vmem:[%s0 + $0xf8] sm:$0xf]
  %v55 = vld [vmem:[%s0 + $0xfc] sm:$0xff]
  %v56 = vld [vmem:[%s0 + $0x104] sm:$0xff]
  %v57 = vld [vmem:[%s0 + $0x10c] sm:$0xff]
  %v58 = vld [vmem:[%s0 + $0x114] sm:$0xff]
  %v59 = vld [vmem:[%s0 + $0x11c] sm:$0xf]
  %v60 = vld [vmem:[%s0 + $0x120] sm:$0xff]
  %v61 = vld [vmem:[%s0 + $0x128] sm:$0xff]
  %v62 = vld [vmem:[%s0 + $0x130] sm:$0xff]
  %v63 = vld [vmem:[%s0 + $0x138] sm:$0xff]
  %v64 = vld [vmem:[%s0 + $0x140] sm:$0xf]
  %v65 = vld [vmem:[%s0 + $0x144] sm:$0xff]
  %v66 = vld [vmem:[%s0 + $0x14c] sm:$0xff]
  %v67 = vld [vmem:[%s0 + $0x154] sm:$0xff]
  %v68 = vld [vmem:[%s0 + $0x15c] sm:$0xff]
  %v69 = vld [vmem:[%s0 + $0x164] sm:$0xf]
  %v70 = vld [vmem:[%s0 + $0x168] sm:$0xff]
  %v71 = vld [vmem:[%s0 + $0x170] sm:$0xff]
  %v72 = vld [vmem:[%s0 + $0x178] sm:$0xff]
  %v73 = vld [vmem:[%s0 + $0x180] sm:$0xff]
  %v74 = vld [vmem:[%s0 + $0x188] sm:$0xf]
  %v75 = vld [vmem:[%s0 + $0x18c] sm:$0xff]
  %v76 = vld [vmem:[%s0 + $0x194] sm:$0xff]
  %v77 = vld [vmem:[%s0 + $0x19c] sm:$0xff]
  %v78 = vld [vmem:[%s0 + $0x1a4] sm:$0xff]
  %v79 = vld [vmem:[%s0 + $0x1ac] sm:$0xf]
  %v80 = vld [vmem:[%s0 + $0x1b0] sm:$0xff]
  %v81 = vld [vmem:[%s0 + $0x1b8] sm:$0xff]
  %v82 = vld [vmem:[%s0 + $0x1c0] sm:$0xff]
  %v83 = vld [vmem:[%s0 + $0x1c8] sm:$0xff]
  %v84 = vld [vmem:[%s0 + $0x1d0] sm:$0xf]
  %v85 = vld [vmem:[%s0 + $0x1d4] sm:$0xff]
  %v86 = vld [vmem:[%s0 + $0x1dc] sm:$0xff]
  %v87 = vld [vmem:[%s0 + $0x1e4] sm:$0xff]
  %v88 = vld [vmem:[%s0 + $0x1ec] sm:$0xff]
  %v89 = vld [vmem:[%s0 + $0x1f4] sm:$0xf]
  %v90 = vld [vmem:[%s0 + $0x1f8] sm:$0xff]
  %v91 = vld [vmem:[%s0 + $0x200] sm:$0xff]
  %v92 = vld [vmem:[%s0 + $0x208] sm:$0xff]
  %v93 = vld [vmem:[%s0 + $0x210] sm:$0xff]
  %v94 = vld [vmem:[%s0 + $0x218] sm:$0xf]
  %v95 = vld [vmem:[%s0 + $0x21c] sm:$0xff]
  %v96 = vld [vmem:[%s0 + $0x224] sm:$0xff]
  %v97 = vld [vmem:[%s0 + $0x22c] sm:$0xff]
  %v98 = vld [vmem:[%s0 + $0x234] sm:$0xff]
  %v99 = vld [vmem:[%s0 + $0x23c] sm:$0xf]
  %v100 = vld [vmem:[%s1] sm:$0xf]
  %v101 = vld [vmem:[%s1 + $0x4] sm:$0xf]
  %v102 = vld [vmem:[%s1 + $0x8] sm:$0xf]
  %v103 = vld [vmem:[%s1 + $0xc] sm:$0xf]
  %v104 = vld [vmem:[%s1 + $0x10] sm:$0xf]
  %v105 = vld [vmem:[%s1 + $0x14] sm:$0xf]
  %v106 = vld [vmem:[%s1 + $0x18] sm:$0xf]
  %v107 = vld [vmem:[%s1 + $0x1c] sm:$0xf]
  %v108 = vld [vmem:[%s1 + $0x20] sm:$0xf]
  %v109 = vld [vmem:[%s1 + $0x24] sm:$0xf]
  %v110 = vld [vmem:[%s1 + $0x28] sm:$0xf]
  %v111 = vld [vmem:[%s1 + $0x2c] sm:$0xf]
  %v112 = vld [vmem:[%s1 + $0x30] sm:$0xf]
  %v113 = vld [vmem:[%s1 + $0x34] sm:$0xf]
  %v114 = vld [vmem:[%s1 + $0x38] sm:$0xf]
  %v115 = vld [vmem:[%s1 + $0x3c] sm:$0xf]
  %v116 = vld [vmem:[%s1 + $0x40] sm:$0xf]
  %v117 = vld [vmem:[%s1 + $0x44] sm:$0xf]
  %v118 = vld [vmem:[%s1 + $0x48] sm:$0xf]
  %v119 = vld [vmem:[%s1 + $0x4c] sm:$0xf]
  %v120 = vld [vmem:[%s1 + $0x50] sm:$0xf]
  %v121 = vld [vmem:[%s1 + $0x54] sm:$0xf]
  %v122 = vld [vmem:[%s1 + $0x58] sm:$0xf]
  %v123 = vld [vmem:[%s1 + $0x5c] sm:$0xf]
  %v124 = vld [vmem:[%s1 + $0x60] sm:$0xf]
  %v125 = vld [vmem:[%s1 + $0x64] sm:$0xf]
  %v126 = vld [vmem:[%s1 + $0x68] sm:$0xf]
  %v127 = vld [vmem:[%s1 + $0x6c] sm:$0xf]
  %v128 = vld [vmem:[%s1 + $0x70] sm:$0xf]
  %v129 = vld [vmem:[%s1 + $0x74] sm:$0xf]
  %v130 = vld [vmem:[%s1 + $0x78] sm:$0xf]
  %v131 = vld [vmem:[%s1 + $0x7c] sm:$0xf]
  %v132 = vld [vmem:[%s1 + $0x80] sm:$0xf]
  %v133 = vld [vmem:[%s1 + $0x84] sm:$0xf]
  %v134 = vld [vmem:[%s1 + $0x88] sm:$0xf]
  %v135 = vld [vmem:[%s1 + $0x8c] sm:$0xf]
  %v136 = vld [vmem:[%s1 + $0x90] sm:$0xf]
  %v137 = vld [vmem:[%s1 + $0x94] sm:$0xf]
  %v138 = vld [vmem:[%s1 + $0x98] sm:$0xf]
  %v139 = vld [vmem:[%s1 + $0x9c] sm:$0xf]
  %v140 = vld [vmem:[%s1 + $0xa0] sm:$0xf]
  %v141 = vld [vmem:[%s1 + $0xa4] sm:$0xf]
  %v142 = vld [vmem:[%s1 + $0xa8] sm:$0xf]
  %v143 = vld [vmem:[%s1 + $0xac] sm:$0xf]
  %v144 = vld [vmem:[%s1 + $0xb0] sm:$0xf]
  %v145 = vld [vmem:[%s1 + $0xb4] sm:$0xf]
  %v146 = vld [vmem:[%s1 + $0xb8] sm:$0xf]
  %v147 = vld [vmem:[%s1 + $0xbc] sm:$0xf]
  %v148 = vld [vmem:[%s1 + $0xc0] sm:$0xf]
  %v149 = vld [vmem:[%s1 + $0xc4] sm:$0xf]
  %v150 = vld [vmem:[%s1 + $0xc8] sm:$0xf]
  %v151 = vld [vmem:[%s1 + $0xcc] sm:$0xf]
  %v152 = vld [vmem:[%s1 + $0xd0] sm:$0xf]
  %v153 = vld [vmem:[%s1 + $0xd4] sm:$0xf]
  %v154 = vld [vmem:[%s1 + $0xd8] sm:$0xf]
  %v155 = vld [vmem:[%s1 + $0xdc] sm:$0xf]
  %v156 = vld [vmem:[%s1 + $0xe0] sm:$0xf]
  %v157 = vld [vmem:[%s1 + $0xe4] sm:$0xf]
  %v158 = vld [vmem:[%s1 + $0xe8] sm:$0xf]
  %v159 = vld [vmem:[%s1 + $0xec] sm:$0xf]
  %v160 = vld [vmem:[%s1 + $0xf0] sm:$0xf]
  %v161 = vld [vmem:[%s1 + $0xf4] sm:$0xf]
  %v162 = vld [vmem:[%s1 + $0xf8] sm:$0xf]
  %v163 = vld [vmem:[%s1 + $0xfc] sm:$0xf]
  %v164 = vld [vmem:[%s1 + $0x100] sm:$0xf]
  %v165 = vld [vmem:[%s1 + $0x104] sm:$0xf]
  %v166 = vld [vmem:[%s1 + $0x108] sm:$0xf]
  %v167 = vld [vmem:[%s1 + $0x10c] sm:$0xf]
  %v168 = vld [vmem:[%s1 + $0x110] sm:$0xf]
  %v169 = vld [vmem:[%s1 + $0x114] sm:$0xf]
  %v170 = vld [vmem:[%s1 + $0x118] sm:$0xf]
  %v171 = vld [vmem:[%s1 + $0x11c] sm:$0xf]
  %v172 = vld [vmem:[%s1 + $0x120] sm:$0xf]
  %v173 = vld [vmem:[%s1 + $0x124] sm:$0xf]
  %v174 = vld [vmem:[%s1 + $0x128] sm:$0xf]
  %v175 = vld [vmem:[%s1 + $0x12c] sm:$0xf]
  %v176 = vld [vmem:[%s1 + $0x130] sm:$0xf]
  %v177 = vld [vmem:[%s1 + $0x134] sm:$0xf]
  %v178 = vld [vmem:[%s1 + $0x138] sm:$0xf]
  %v179 = vld [vmem:[%s1 + $0x13c] sm:$0xf]
  %v180 = vld [vmem:[%s1 + $0x140] sm:$0xf]
  %v181 = vld [vmem:[%s1 + $0x144] sm:$0xf]
  %v182 = vld [vmem:[%s1 + $0x148] sm:$0xf]
  %v183 = vld [vmem:[%s1 + $0x14c] sm:$0xf]
  %v184 = vld [vmem:[%s1 + $0x150] sm:$0xf]
  %v185 = vld [vmem:[%s1 + $0x154] sm:$0xf]
  %v186 = vld [vmem:[%s1 + $0x158] sm:$0xf]
  %v187 = vld [vmem:[%s1 + $0x15c] sm:$0xf]
  %v188 = vld [vmem:[%s1 + $0x160] sm:$0xf]
  %v189 = vld [vmem:[%s1 + $0x164] sm:$0xf]
  %v190 = vld [vmem:[%s1 + $0x168] sm:$0xf]
  %v191 = vld [vmem:[%s1 + $0x16c] sm:$0xf]
  %v192 = vld [vmem:[%s1 + $0x170] sm:$0xf]
  %v193 = vld [vmem:[%s1 + $0x174] sm:$0xf]
  %v194 = vld [vmem:[%s1 + $0x178] sm:$0xf]
  %v195 = vld [vmem:[%s1 + $0x17c] sm:$0xf]
  %v196 = vld [vmem:[%s1 + $0x180] sm:$0xf]
  %v197 = vld [vmem:[%s1 + $0x184] sm:$0xf]
  %v198 = vld [vmem:[%s1 + $0x188] sm:$0xf]
  %v199 = vld [vmem:[%s1 + $0x18c] sm:$0xf]
  %v200 = vld [vmem:[%s1 + $0x190] sm:$0xf]
  %v201 = vld [vmem:[%s1 + $0x194] sm:$0xf]
  %v202 = vld [vmem:[%s1 + $0x198] sm:$0xf]
  %v203 = vld [vmem:[%s1 + $0x19c] sm:$0xf]
  %v204 = vld [vmem:[%s1 + $0x1a0] sm:$0xf]
  %v205 = vld [vmem:[%s1 + $0x1a4] sm:$0xf]
  %v206 = vld [vmem:[%s1 + $0x1a8] sm:$0xf]
  %v207 = vld [vmem:[%s1 + $0x1ac] sm:$0xf]
  %v208 = vld [vmem:[%s1 + $0x1b0] sm:$0xf]
  %v209 = vld [vmem:[%s1 + $0x1b4] sm:$0xf]
  %v210 = vld [vmem:[%s1 + $0x1b8] sm:$0xf]
  %v211 = vld [vmem:[%s1 + $0x1bc] sm:$0xf]
  %v212 = vld [vmem:[%s1 + $0x1c0] sm:$0xf]
  %v213 = vld [vmem:[%s1 + $0x1c4] sm:$0xf]
  %v214 = vld [vmem:[%s1 + $0x1c8] sm:$0xf]
  %v215 = vld [vmem:[%s1 + $0x1cc] sm:$0xf]
  %v216 = vld [vmem:[%s1 + $0x1d0] sm:$0xf]
  %v217 = vld [vmem:[%s1 + $0x1d4] sm:$0xf]
  %v218 = vld [vmem:[%s1 + $0x1d8] sm:$0xf]
  %v219 = vld [vmem:[%s1 + $0x1dc] sm:$0xf]
  %v220 = vld [vmem:[%s1 + $0x1e0] sm:$0xf]
  %v221 = vld [vmem:[%s1 + $0x1e4] sm:$0xf]
  %v222 = vld [vmem:[%s1 + $0x1e8] sm:$0xf]
  %v223 = vld [vmem:[%s1 + $0x1ec] sm:$0xf]
  %v224 = vld [vmem:[%s1 + $0x1f0] sm:$0xf]
  %v225 = vld [vmem:[%s1 + $0x1f4] sm:$0xf]
  %v226 = vld [vmem:[%s1 + $0x1f8] sm:$0xf]
  %v227 = vld [vmem:[%s1 + $0x1fc] sm:$0xf]
  %v228 = vld [vmem:[%s1 + $0x200] sm:$0xf]
  %v229 = vld [vmem:[%s1 + $0x204] sm:$0xf]
  %v230 = vld [vmem:[%s1 + $0x208] sm:$0xf]
  %v231 = vld [vmem:[%s1 + $0x20c] sm:$0xf]
  %v232 = vld [vmem:[%s1 + $0x210] sm:$0xf]
  %v233 = vld [vmem:[%s1 + $0x214] sm:$0xf]
  %v234 = vld [vmem:[%s1 + $0x218] sm:$0xf]
  %v235 = vld [vmem:[%s1 + $0x21c] sm:$0xf]
  %v236 = vld [vmem:[%s1 + $0x220] sm:$0xf]
  %v237 = vld [vmem:[%s1 + $0x224] sm:$0xf]
  %v238 = vld [vmem:[%s1 + $0x228] sm:$0xf]
  %v239 = vld [vmem:[%s1 + $0x22c] sm:$0xf]
  %v240 = vld [vmem:[%s1 + $0x230] sm:$0xf]
  %v241 = vld [vmem:[%s1 + $0x234] sm:$0xf]
  %v242 = vld [vmem:[%s1 + $0x238] sm:$0xf]
  %v243 = vld [vmem:[%s1 + $0x23c] sm:$0xf]
  %v324 = vunpack.c.l.b16 %v20
  %v325 = vunpack.c.h.b16 %v20
  %v326 = vunpack.c.l.b16 %v21
  %v327 = vunpack.c.h.b16 %v21
  %v328 = vunpack.c.l.b16 %v22
  %v329 = vunpack.c.h.b16 %v22
  %v330 = vunpack.c.l.b16 %v23
  %v331 = vunpack.c.h.b16 %v23
  %v332 = vunpack.c.l.b16 %v24
  %v333 = vunpack.c.l.b16 %v25
  %v334 = vunpack.c.h.b16 %v25
  %v335 = vunpack.c.l.b16 %v26
  %v336 = vunpack.c.h.b16 %v26
  %v337 = vunpack.c.l.b16 %v27
  %v338 = vunpack.c.h.b16 %v27
  %v339 = vunpack.c.l.b16 %v28
  %v340 = vunpack.c.h.b16 %v28
  %v341 = vunpack.c.l.b16 %v29
  %v342 = vunpack.c.l.b16 %v30
  %v343 = vunpack.c.h.b16 %v30
  %v344 = vunpack.c.l.b16 %v31
  %v345 = vunpack.c.h.b16 %v31
  %v346 = vunpack.c.l.b16 %v32
  %v347 = vunpack.c.h.b16 %v32
  %v348 = vunpack.c.l.b16 %v33
  %v349 = vunpack.c.h.b16 %v33
  %v350 = vunpack.c.l.b16 %v34
  %v351 = vunpack.c.l.b16 %v35
  %v352 = vunpack.c.h.b16 %v35
  %v353 = vunpack.c.l.b16 %v36
  %v354 = vunpack.c.h.b16 %v36
  %v355 = vunpack.c.l.b16 %v37
  %v356 = vunpack.c.h.b16 %v37
  %v357 = vunpack.c.l.b16 %v38
  %v358 = vunpack.c.h.b16 %v38
  %v359 = vunpack.c.l.b16 %v39
  %v360 = vunpack.c.l.b16 %v40
  %v361 = vunpack.c.h.b16 %v40
  %v362 = vunpack.c.l.b16 %v41
  %v363 = vunpack.c.h.b16 %v41
  %v364 = vunpack.c.l.b16 %v42
  %v365 = vunpack.c.h.b16 %v42
  %v366 = vunpack.c.l.b16 %v43
  %v367 = vunpack.c.h.b16 %v43
  %v368 = vunpack.c.l.b16 %v44
  %v369 = vunpack.c.l.b16 %v45
  %v370 = vunpack.c.h.b16 %v45
  %v371 = vunpack.c.l.b16 %v46
  %v372 = vunpack.c.h.b16 %v46
  %v373 = vunpack.c.l.b16 %v47
  %v374 = vunpack.c.h.b16 %v47
  %v375 = vunpack.c.l.b16 %v48
  %v376 = vunpack.c.h.b16 %v48
  %v377 = vunpack.c.l.b16 %v49
  %v378 = vunpack.c.l.b16 %v50
  %v379 = vunpack.c.h.b16 %v50
  %v380 = vunpack.c.l.b16 %v51
  %v381 = vunpack.c.h.b16 %v51
  %v382 = vunpack.c.l.b16 %v52
  %v383 = vunpack.c.h.b16 %v52
  %v384 = vunpack.c.l.b16 %v53
  %v385 = vunpack.c.h.b16 %v53
  %v386 = vunpack.c.l.b16 %v54
  %v387 = vunpack.c.l.b16 %v55
  %v388 = vunpack.c.h.b16 %v55
  %v389 = vunpack.c.l.b16 %v56
  %v390 = vunpack.c.h.b16 %v56
  %v391 = vunpack.c.l.b16 %v57
  %v392 = vunpack.c.h.b16 %v57
  %v393 = vunpack.c.l.b16 %v58
  %v394 = vunpack.c.h.b16 %v58
  %v395 = vunpack.c.l.b16 %v59
  %v396 = vunpack.c.l.b16 %v60
  %v397 = vunpack.c.h.b16 %v60
  %v398 = vunpack.c.l.b16 %v61
  %v399 = vunpack.c.h.b16 %v61
  %v400 = vunpack.c.l.b16 %v62
  %v401 = vunpack.c.h.b16 %v62
  %v402 = vunpack.c.l.b16 %v63
  %v403 = vunpack.c.h.b16 %v63
  %v404 = vunpack.c.l.b16 %v64
  %v405 = vunpack.c.l.b16 %v65
  %v406 = vunpack.c.h.b16 %v65
  %v407 = vunpack.c.l.b16 %v66
  %v408 = vunpack.c.h.b16 %v66
  %v409 = vunpack.c.l.b16 %v67
  %v410 = vunpack.c.h.b16 %v67
  %v411 = vunpack.c.l.b16 %v68
  %v412 = vunpack.c.h.b16 %v68
  %v413 = vunpack.c.l.b16 %v69
  %v414 = vunpack.c.l.b16 %v70
  %v415 = vunpack.c.h.b16 %v70
  %v416 = vunpack.c.l.b16 %v71
  %v417 = vunpack.c.h.b16 %v71
  %v418 = vunpack.c.l.b16 %v72
  %v419 = vunpack.c.h.b16 %v72
  %v420 = vunpack.c.l.b16 %v73
  %v421 = vunpack.c.h.b16 %v73
  %v422 = vunpack.c.l.b16 %v74
  %v423 = vunpack.c.l.b16 %v75
  %v424 = vunpack.c.h.b16 %v75
  %v425 = vunpack.c.l.b16 %v76
  %v426 = vunpack.c.h.b16 %v76
  %v427 = vunpack.c.l.b16 %v77
  %v428 = vunpack.c.h.b16 %v77
  %v429 = vunpack.c.l.b16 %v78
  %v430 = vunpack.c.h.b16 %v78
  %v431 = vunpack.c.l.b16 %v79
  %v432 = vunpack.c.l.b16 %v80
  %v433 = vunpack.c.h.b16 %v80
  %v434 = vunpack.c.l.b16 %v81
  %v435 = vunpack.c.h.b16 %v81
  %v436 = vunpack.c.l.b16 %v82
  %v437 = vunpack.c.h.b16 %v82
  %v438 = vunpack.c.l.b16 %v83
  %v439 = vunpack.c.h.b16 %v83
  %v440 = vunpack.c.l.b16 %v84
  %v441 = vunpack.c.l.b16 %v85
  %v442 = vunpack.c.h.b16 %v85
  %v443 = vunpack.c.l.b16 %v86
  %v444 = vunpack.c.h.b16 %v86
  %v445 = vunpack.c.l.b16 %v87
  %v446 = vunpack.c.h.b16 %v87
  %v447 = vunpack.c.l.b16 %v88
  %v448 = vunpack.c.h.b16 %v88
  %v449 = vunpack.c.l.b16 %v89
  %v450 = vunpack.c.l.b16 %v90
  %v451 = vunpack.c.h.b16 %v90
  %v452 = vunpack.c.l.b16 %v91
  %v453 = vunpack.c.h.b16 %v91
  %v454 = vunpack.c.l.b16 %v92
  %v455 = vunpack.c.h.b16 %v92
  %v456 = vunpack.c.l.b16 %v93
  %v457 = vunpack.c.h.b16 %v93
  %v458 = vunpack.c.l.b16 %v94
  %v459 = vunpack.c.l.b16 %v95
  %v460 = vunpack.c.h.b16 %v95
  %v461 = vunpack.c.l.b16 %v96
  %v462 = vunpack.c.h.b16 %v96
  %v463 = vunpack.c.l.b16 %v97
  %v464 = vunpack.c.h.b16 %v97
  %v465 = vunpack.c.l.b16 %v98
  %v466 = vunpack.c.h.b16 %v98
  %v467 = vunpack.c.l.b16 %v99
  %v468 = vpack.c.b16 %v333, %v324
  %v469 = vpack.c.b16 %v334, %v325
  %v470 = vpack.c.b16 %v335, %v326
  %v471 = vpack.c.b16 %v336, %v327
  %v472 = vpack.c.b16 %v337, %v328
  %v473 = vpack.c.b16 %v338, %v329
  %v474 = vpack.c.b16 %v339, %v330
  %v475 = vpack.c.b16 %v340, %v331
  %v476 = vpack.c.b16 %v341, %v332
  %v477 = vpack.c.b16 %v351, %v342
  %v478 = vpack.c.b16 %v352, %v343
  %v479 = vpack.c.b16 %v353, %v344
  %v480 = vpack.c.b16 %v354, %v345
  %v481 = vpack.c.b16 %v355, %v346
  %v482 = vpack.c.b16 %v356, %v347
  %v483 = vpack.c.b16 %v357, %v348
  %v484 = vpack.c.b16 %v358, %v349
  %v485 = vpack.c.b16 %v359, %v350
  %v486 = vpack.c.b16 %v369, %v360
  %v487 = vpack.c.b16 %v370, %v361
  %v488 = vpack.c.b16 %v371, %v362
  %v489 = vpack.c.b16 %v372, %v363
  %v490 = vpack.c.b16 %v373, %v364
  %v491 = vpack.c.b16 %v374, %v365
  %v492 = vpack.c.b16 %v375, %v366
  %v493 = vpack.c.b16 %v376, %v367
  %v494 = vpack.c.b16 %v377, %v368
  %v495 = vpack.c.b16 %v387, %v378
  %v496 = vpack.c.b16 %v388, %v379
  %v497 = vpack.c.b16 %v389, %v380
  %v498 = vpack.c.b16 %v390, %v381
  %v499 = vpack.c.b16 %v391, %v382
  %v500 = vpack.c.b16 %v392, %v383
  %v501 = vpack.c.b16 %v393, %v384
  %v502 = vpack.c.b16 %v394, %v385
  %v503 = vpack.c.b16 %v395, %v386
  %v504 = vpack.c.b16 %v405, %v396
  %v505 = vpack.c.b16 %v406, %v397
  %v506 = vpack.c.b16 %v407, %v398
  %v507 = vpack.c.b16 %v408, %v399
  %v508 = vpack.c.b16 %v409, %v400
  %v509 = vpack.c.b16 %v410, %v401
  %v510 = vpack.c.b16 %v411, %v402
  %v511 = vpack.c.b16 %v412, %v403
  %v512 = vpack.c.b16 %v413, %v404
  %v513 = vpack.c.b16 %v423, %v414
  %v514 = vpack.c.b16 %v424, %v415
  %v515 = vpack.c.b16 %v425, %v416
  %v516 = vpack.c.b16 %v426, %v417
  %v517 = vpack.c.b16 %v427, %v418
  %v518 = vpack.c.b16 %v428, %v419
  %v519 = vpack.c.b16 %v429, %v420
  %v520 = vpack.c.b16 %v430, %v421
  %v521 = vpack.c.b16 %v431, %v422
  %v522 = vpack.c.b16 %v441, %v432
  %v523 = vpack.c.b16 %v442, %v433
  %v524 = vpack.c.b16 %v443, %v434
  %v525 = vpack.c.b16 %v444, %v435
  %v526 = vpack.c.b16 %v445, %v436
  %v527 = vpack.c.b16 %v446, %v437
  %v528 = vpack.c.b16 %v447, %v438
  %v529 = vpack.c.b16 %v448, %v439
  %v530 = vpack.c.b16 %v449, %v440
  %v531 = vpack.c.b16 %v459, %v450
  %v532 = vpack.c.b16 %v460, %v451
  %v533 = vpack.c.b16 %v461, %v452
  %v534 = vpack.c.b16 %v462, %v453
  %v535 = vpack.c.b16 %v463, %v454
  %v536 = vpack.c.b16 %v464, %v455
  %v537 = vpack.c.b16 %v465, %v456
  %v538 = vpack.c.b16 %v466, %v457
  %v539 = vpack.c.b16 %v467, %v458
  %v756 = vunpack.c.l.b16 %v100
  %v757 = vunpack.c.l.b16 %v101
  %v758 = vunpack.c.l.b16 %v102
  %v759 = vunpack.c.l.b16 %v103
  %v760 = vunpack.c.l.b16 %v104
  %v761 = vunpack.c.l.b16 %v105
  %v762 = vunpack.c.l.b16 %v106
  %v763 = vunpack.c.l.b16 %v107
  %v764 = vunpack.c.l.b16 %v108
  %v765 = vunpack.c.l.b16 %v109
  %v766 = vunpack.c.l.b16 %v110
  %v767 = vunpack.c.l.b16 %v111
  %v768 = vunpack.c.l.b16 %v112
  %v769 = vunpack.c.l.b16 %v113
  %v770 = vunpack.c.l.b16 %v114
  %v771 = vunpack.c.l.b16 %v115
  %v772 = vunpack.c.l.b16 %v116
  %v773 = vunpack.c.l.b16 %v117
  %v774 = vunpack.c.l.b16 %v118
  %v775 = vunpack.c.l.b16 %v119
  %v776 = vunpack.c.l.b16 %v120
  %v777 = vunpack.c.l.b16 %v121
  %v778 = vunpack.c.l.b16 %v122
  %v779 = vunpack.c.l.b16 %v123
  %v780 = vunpack.c.l.b16 %v124
  %v781 = vunpack.c.l.b16 %v125
  %v782 = vunpack.c.l.b16 %v126
  %v783 = vunpack.c.l.b16 %v127
  %v784 = vunpack.c.l.b16 %v128
  %v785 = vunpack.c.l.b16 %v129
  %v786 = vunpack.c.l.b16 %v130
  %v787 = vunpack.c.l.b16 %v131
  %v788 = vunpack.c.l.b16 %v132
  %v789 = vunpack.c.l.b16 %v133
  %v790 = vunpack.c.l.b16 %v134
  %v791 = vunpack.c.l.b16 %v135
  %v792 = vunpack.c.l.b16 %v136
  %v793 = vunpack.c.l.b16 %v137
  %v794 = vunpack.c.l.b16 %v138
  %v795 = vunpack.c.l.b16 %v139
  %v796 = vunpack.c.l.b16 %v140
  %v797 = vunpack.c.l.b16 %v141
  %v798 = vunpack.c.l.b16 %v142
  %v799 = vunpack.c.l.b16 %v143
  %v800 = vunpack.c.l.b16 %v144
  %v801 = vunpack.c.l.b16 %v145
  %v802 = vunpack.c.l.b16 %v146
  %v803 = vunpack.c.l.b16 %v147
  %v804 = vunpack.c.l.b16 %v148
  %v805 = vunpack.c.l.b16 %v149
  %v806 = vunpack.c.l.b16 %v150
  %v807 = vunpack.c.l.b16 %v151
  %v808 = vunpack.c.l.b16 %v152
  %v809 = vunpack.c.l.b16 %v153
  %v810 = vunpack.c.l.b16 %v154
  %v811 = vunpack.c.l.b16 %v155
  %v812 = vunpack.c.l.b16 %v156
  %v813 = vunpack.c.l.b16 %v157
  %v814 = vunpack.c.l.b16 %v158
  %v815 = vunpack.c.l.b16 %v159
  %v816 = vunpack.c.l.b16 %v160
  %v817 = vunpack.c.l.b16 %v161
  %v818 = vunpack.c.l.b16 %v162
  %v819 = vunpack.c.l.b16 %v163
  %v820 = vunpack.c.l.b16 %v164
  %v821 = vunpack.c.l.b16 %v165
  %v822 = vunpack.c.l.b16 %v166
  %v823 = vunpack.c.l.b16 %v167
  %v824 = vunpack.c.l.b16 %v168
  %v825 = vunpack.c.l.b16 %v169
  %v826 = vunpack.c.l.b16 %v170
  %v827 = vunpack.c.l.b16 %v171
  %v828 = vunpack.c.l.b16 %v172
  %v829 = vunpack.c.l.b16 %v173
  %v830 = vunpack.c.l.b16 %v174
  %v831 = vunpack.c.l.b16 %v175
  %v832 = vunpack.c.l.b16 %v176
  %v833 = vunpack.c.l.b16 %v177
  %v834 = vunpack.c.l.b16 %v178
  %v835 = vunpack.c.l.b16 %v179
  %v836 = vunpack.c.l.b16 %v180
  %v837 = vunpack.c.l.b16 %v181
  %v838 = vunpack.c.l.b16 %v182
  %v839 = vunpack.c.l.b16 %v183
  %v840 = vunpack.c.l.b16 %v184
  %v841 = vunpack.c.l.b16 %v185
  %v842 = vunpack.c.l.b16 %v186
  %v843 = vunpack.c.l.b16 %v187
  %v844 = vunpack.c.l.b16 %v188
  %v845 = vunpack.c.l.b16 %v189
  %v846 = vunpack.c.l.b16 %v190
  %v847 = vunpack.c.l.b16 %v191
  %v848 = vunpack.c.l.b16 %v192
  %v849 = vunpack.c.l.b16 %v193
  %v850 = vunpack.c.l.b16 %v194
  %v851 = vunpack.c.l.b16 %v195
  %v852 = vunpack.c.l.b16 %v196
  %v853 = vunpack.c.l.b16 %v197
  %v854 = vunpack.c.l.b16 %v198
  %v855 = vunpack.c.l.b16 %v199
  %v856 = vunpack.c.l.b16 %v200
  %v857 = vunpack.c.l.b16 %v201
  %v858 = vunpack.c.l.b16 %v202
  %v859 = vunpack.c.l.b16 %v203
  %v860 = vunpack.c.l.b16 %v204
  %v861 = vunpack.c.l.b16 %v205
  %v862 = vunpack.c.l.b16 %v206
  %v863 = vunpack.c.l.b16 %v207
  %v864 = vunpack.c.l.b16 %v208
  %v865 = vunpack.c.l.b16 %v209
  %v866 = vunpack.c.l.b16 %v210
  %v867 = vunpack.c.l.b16 %v211
  %v868 = vunpack.c.l.b16 %v212
  %v869 = vunpack.c.l.b16 %v213
  %v870 = vunpack.c.l.b16 %v214
  %v871 = vunpack.c.l.b16 %v215
  %v872 = vunpack.c.l.b16 %v216
  %v873 = vunpack.c.l.b16 %v217
  %v874 = vunpack.c.l.b16 %v218
  %v875 = vunpack.c.l.b16 %v219
  %v876 = vunpack.c.l.b16 %v220
  %v877 = vunpack.c.l.b16 %v221
  %v878 = vunpack.c.l.b16 %v222
  %v879 = vunpack.c.l.b16 %v223
  %v880 = vunpack.c.l.b16 %v224
  %v881 = vunpack.c.l.b16 %v225
  %v882 = vunpack.c.l.b16 %v226
  %v883 = vunpack.c.l.b16 %v227
  %v884 = vunpack.c.l.b16 %v228
  %v885 = vunpack.c.l.b16 %v229
  %v886 = vunpack.c.l.b16 %v230
  %v887 = vunpack.c.l.b16 %v231
  %v888 = vunpack.c.l.b16 %v232
  %v889 = vunpack.c.l.b16 %v233
  %v890 = vunpack.c.l.b16 %v234
  %v891 = vunpack.c.l.b16 %v235
  %v892 = vunpack.c.l.b16 %v236
  %v893 = vunpack.c.l.b16 %v237
  %v894 = vunpack.c.l.b16 %v238
  %v895 = vunpack.c.l.b16 %v239
  %v896 = vunpack.c.l.b16 %v240
  %v897 = vunpack.c.l.b16 %v241
  %v898 = vunpack.c.l.b16 %v242
  %v899 = vunpack.c.l.b16 %v243
  %v900 = vpack.c.b16 %v757, %v756
  %v901 = vpack.c.b16 %v759, %v758
  %v902 = vpack.c.b16 %v761, %v760
  %v903 = vpack.c.b16 %v763, %v762
  %v904 = vpack.c.b16 %v765, %v764
  %v905 = vpack.c.b16 %v767, %v766
  %v906 = vpack.c.b16 %v769, %v768
  %v907 = vpack.c.b16 %v771, %v770
  %v908 = vpack.c.b16 %v773, %v772
  %v909 = vpack.c.b16 %v775, %v774
  %v910 = vpack.c.b16 %v777, %v776
  %v911 = vpack.c.b16 %v779, %v778
  %v912 = vpack.c.b16 %v781, %v780
  %v913 = vpack.c.b16 %v783, %v782
  %v914 = vpack.c.b16 %v785, %v784
  %v915 = vpack.c.b16 %v787, %v786
  %v916 = vpack.c.b16 %v789, %v788
  %v917 = vpack.c.b16 %v791, %v790
  %v918 = vpack.c.b16 %v793, %v792
  %v919 = vpack.c.b16 %v795, %v794
  %v920 = vpack.c.b16 %v797, %v796
  %v921 = vpack.c.b16 %v799, %v798
  %v922 = vpack.c.b16 %v801, %v800
  %v923 = vpack.c.b16 %v803, %v802
  %v924 = vpack.c.b16 %v805, %v804
  %v925 = vpack.c.b16 %v807, %v806
  %v926 = vpack.c.b16 %v809, %v808
  %v927 = vpack.c.b16 %v811, %v810
  %v928 = vpack.c.b16 %v813, %v812
  %v929 = vpack.c.b16 %v815, %v814
  %v930 = vpack.c.b16 %v817, %v816
  %v931 = vpack.c.b16 %v819, %v818
  %v932 = vpack.c.b16 %v821, %v820
  %v933 = vpack.c.b16 %v823, %v822
  %v934 = vpack.c.b16 %v825, %v824
  %v935 = vpack.c.b16 %v827, %v826
  %v936 = vpack.c.b16 %v829, %v828
  %v937 = vpack.c.b16 %v831, %v830
  %v938 = vpack.c.b16 %v833, %v832
  %v939 = vpack.c.b16 %v835, %v834
  %v940 = vpack.c.b16 %v837, %v836
  %v941 = vpack.c.b16 %v839, %v838
  %v942 = vpack.c.b16 %v841, %v840
  %v943 = vpack.c.b16 %v843, %v842
  %v944 = vpack.c.b16 %v845, %v844
  %v945 = vpack.c.b16 %v847, %v846
  %v946 = vpack.c.b16 %v849, %v848
  %v947 = vpack.c.b16 %v851, %v850
  %v948 = vpack.c.b16 %v853, %v852
  %v949 = vpack.c.b16 %v855, %v854
  %v950 = vpack.c.b16 %v857, %v856
  %v951 = vpack.c.b16 %v859, %v858
  %v952 = vpack.c.b16 %v861, %v860
  %v953 = vpack.c.b16 %v863, %v862
  %v954 = vpack.c.b16 %v865, %v864
  %v955 = vpack.c.b16 %v867, %v866
  %v956 = vpack.c.b16 %v869, %v868
  %v957 = vpack.c.b16 %v871, %v870
  %v958 = vpack.c.b16 %v873, %v872
  %v959 = vpack.c.b16 %v875, %v874
  %v960 = vpack.c.b16 %v877, %v876
  %v961 = vpack.c.b16 %v879, %v878
  %v962 = vpack.c.b16 %v881, %v880
  %v963 = vpack.c.b16 %v883, %v882
  %v964 = vpack.c.b16 %v885, %v884
  %v965 = vpack.c.b16 %v887, %v886
  %v966 = vpack.c.b16 %v889, %v888
  %v967 = vpack.c.b16 %v891, %v890
  %v968 = vpack.c.b16 %v893, %v892
  %v969 = vpack.c.b16 %v895, %v894
  %v970 = vpack.c.b16 %v897, %v896
  %v971 = vpack.c.b16 %v899, %v898
  %1044 = vmatpush.bf16.msra.mxu0 %v907
  %1045 = vmatpush.bf16.msra.mxu0 %v906
  %1046 = vmatpush.bf16.msra.mxu0 %v905
  %1047 = vmatpush.bf16.msra.mxu0 %v904
  %1048 = vmatpush.bf16.msra.mxu0 %v903
  %1049 = vmatpush.bf16.msra.mxu0 %v902
  %1050 = vmatpush.bf16.msra.mxu0 %v901
  %1051 = vmatpush.bf16.msra.mxu0 %v900
  %1052 = vmatmul.bf16.gmra.mxu0 %v468
  %v1053 = vpop.f32.mrf.mxu0
  %v1054 = vadd.f32 0.0, %v1053
  %v1055 = vpop.f32.mrf.mxu0
  %v1056 = vadd.f32 0.0, %v1055
  %1057 = vmatmul.bf16.gmra.mxu0 %v477
  %v1058 = vpop.f32.mrf.mxu0
  %v1059 = vadd.f32 0.0, %v1058
  %v1060 = vpop.f32.mrf.mxu0
  %v1061 = vadd.f32 0.0, %v1060
  %1062 = vmatmul.bf16.gmra.mxu0 %v486
  %v1063 = vpop.f32.mrf.mxu0
  %v1064 = vadd.f32 0.0, %v1063
  %v1065 = vpop.f32.mrf.mxu0
  %v1066 = vadd.f32 0.0, %v1065
  %1067 = vmatmul.bf16.gmra.mxu0 %v495
  %v1068 = vpop.f32.mrf.mxu0
  %v1069 = vadd.f32 0.0, %v1068
  %v1070 = vpop.f32.mrf.mxu0
  %v1071 = vadd.f32 0.0, %v1070
  %1072 = vmatmul.bf16.gmra.mxu0 %v504
  %v1073 = vpop.f32.mrf.mxu0
  %v1074 = vadd.f32 0.0, %v1073
  %v1075 = vpop.f32.mrf.mxu0
  %v1076 = vadd.f32 0.0, %v1075
  %1077 = vmatmul.bf16.gmra.mxu0 %v513
  %v1078 = vpop.f32.mrf.mxu0
  %v1079 = vadd.f32 0.0, %v1078
  %v1080 = vpop.f32.mrf.mxu0
  %v1081 = vadd.f32 0.0, %v1080
  %1082 = vmatmul.bf16.gmra.mxu0 %v522
  %v1083 = vpop.f32.mrf.mxu0
  %v1084 = vadd.f32 0.0, %v1083
  %v1085 = vpop.f32.mrf.mxu0
  %v1086 = vadd.f32 0.0, %v1085
  %1087 = vmatmul.bf16.gmra.mxu0 %v531
  %v1088 = vpop.f32.mrf.mxu0
  %v1089 = vadd.f32 0.0, %v1088
  %v1090 = vpop.f32.mrf.mxu0
  %v1091 = vadd.f32 0.0, %v1090
  %1092 = vdwg.mxu0
  %1093 = vmatpush.bf16.msra.mxu0 %v915
  %1094 = vmatpush.bf16.msra.mxu0 %v914
  %1095 = vmatpush.bf16.msra.mxu0 %v913
  %1096 = vmatpush.bf16.msra.mxu0 %v912
  %1097 = vmatpush.bf16.msra.mxu0 %v911
  %1098 = vmatpush.bf16.msra.mxu0 %v910
  %1099 = vmatpush.bf16.msra.mxu0 %v909
  %1100 = vmatpush.bf16.msra.mxu0 %v908
  %1101 = vmatmul.bf16.gmra.mxu0 %v469
  %v1102 = vpop.f32.mrf.mxu0
  %v1103 = vadd.f32 %v1054, %v1102
  %v1104 = vpop.f32.mrf.mxu0
  %v1105 = vadd.f32 %v1056, %v1104
  %1106 = vmatmul.bf16.gmra.mxu0 %v478
  %v1107 = vpop.f32.mrf.mxu0
  %v1108 = vadd.f32 %v1059, %v1107
  %v1109 = vpop.f32.mrf.mxu0
  %v1110 = vadd.f32 %v1061, %v1109
  %1111 = vmatmul.bf16.gmra.mxu0 %v487
  %v1112 = vpop.f32.mrf.mxu0
  %v1113 = vadd.f32 %v1064, %v1112
  %v1114 = vpop.f32.mrf.mxu0
  %v1115 = vadd.f32 %v1066, %v1114
  %1116 = vmatmul.bf16.gmra.mxu0 %v496
  %v1117 = vpop.f32.mrf.mxu0
  %v1118 = vadd.f32 %v1069, %v1117
  %v1119 = vpop.f32.mrf.mxu0
  %v1120 = vadd.f32 %v1071, %v1119
  %1121 = vmatmul.bf16.gmra.mxu0 %v505
  %v1122 = vpop.f32.mrf.mxu0
  %v1123 = vadd.f32 %v1074, %v1122
  %v1124 = vpop.f32.mrf.mxu0
  %v1125 = vadd.f32 %v1076, %v1124
  %1126 = vmatmul.bf16.gmra.mxu0 %v514
  %v1127 = vpop.f32.mrf.mxu0
  %v1128 = vadd.f32 %v1079, %v1127
  %v1129 = vpop.f32.mrf.mxu0
  %v1130 = vadd.f32 %v1081, %v1129
  %1131 = vmatmul.bf16.gmra.mxu0 %v523
  %v1132 = vpop.f32.mrf.mxu0
  %v1133 = vadd.f32 %v1084, %v1132
  %v1134 = vpop.f32.mrf.mxu0
  %v1135 = vadd.f32 %v1086, %v1134
  %1136 = vmatmul.bf16.gmra.mxu0 %v532
  %v1137 = vpop.f32.mrf.mxu0
  %v1138 = vadd.f32 %v1089, %v1137
  %v1139 = vpop.f32.mrf.mxu0
  %v1140 = vadd.f32 %v1091, %v1139
  %1141 = vdwg.mxu0
  %1142 = vmatpush.bf16.msra.mxu0 %v923
  %1143 = vmatpush.bf16.msra.mxu0 %v922
  %1144 = vmatpush.bf16.msra.mxu0 %v921
  %1145 = vmatpush.bf16.msra.mxu0 %v920
  %1146 = vmatpush.bf16.msra.mxu0 %v919
  %1147 = vmatpush.bf16.msra.mxu0 %v918
  %1148 = vmatpush.bf16.msra.mxu0 %v917
  %1149 = vmatpush.bf16.msra.mxu0 %v916
  %1150 = vmatmul.bf16.gmra.mxu0 %v470
  %v1151 = vpop.f32.mrf.mxu0
  %v1152 = vadd.f32 %v1103, %v1151
  %v1153 = vpop.f32.mrf.mxu0
  %v1154 = vadd.f32 %v1105, %v1153
  %1155 = vmatmul.bf16.gmra.mxu0 %v479
  %v1156 = vpop.f32.mrf.mxu0
  %v1157 = vadd.f32 %v1108, %v1156
  %v1158 = vpop.f32.mrf.mxu0
  %v1159 = vadd.f32 %v1110, %v1158
  %1160 = vmatmul.bf16.gmra.mxu0 %v488
  %v1161 = vpop.f32.mrf.mxu0
  %v1162 = vadd.f32 %v1113, %v1161
  %v1163 = vpop.f32.mrf.mxu0
  %v1164 = vadd.f32 %v1115, %v1163
  %1165 = vmatmul.bf16.gmra.mxu0 %v497
  %v1166 = vpop.f32.mrf.mxu0
  %v1167 = vadd.f32 %v1118, %v1166
  %v1168 = vpop.f32.mrf.mxu0
  %v1169 = vadd.f32 %v1120, %v1168
  %1170 = vmatmul.bf16.gmra.mxu0 %v506
  %v1171 = vpop.f32.mrf.mxu0
  %v1172 = vadd.f32 %v1123, %v1171
  %v1173 = vpop.f32.mrf.mxu0
  %v1174 = vadd.f32 %v1125, %v1173
  %1175 = vmatmul.bf16.gmra.mxu0 %v515
  %v1176 = vpop.f32.mrf.mxu0
  %v1177 = vadd.f32 %v1128, %v1176
  %v1178 = vpop.f32.mrf.mxu0
  %v1179 = vadd.f32 %v1130, %v1178
  %1180 = vmatmul.bf16.gmra.mxu0 %v524
  %v1181 = vpop.f32.mrf.mxu0
  %v1182 = vadd.f32 %v1133, %v1181
  %v1183 = vpop.f32.mrf.mxu0
  %v1184 = vadd.f32 %v1135, %v1183
  %1185 = vmatmul.bf16.gmra.mxu0 %v533
  %v1186 = vpop.f32.mrf.mxu0
  %v1187 = vadd.f32 %v1138, %v1186
  %v1188 = vpop.f32.mrf.mxu0
  %v1189 = vadd.f32 %v1140, %v1188
  %1190 = vdwg.mxu0
  %1191 = vmatpush.bf16.msra.mxu0 %v931
  %1192 = vmatpush.bf16.msra.mxu0 %v930
  %1193 = vmatpush.bf16.msra.mxu0 %v929
  %1194 = vmatpush.bf16.msra.mxu0 %v928
  %1195 = vmatpush.bf16.msra.mxu0 %v927
  %1196 = vmatpush.bf16.msra.mxu0 %v926
  %1197 = vmatpush.bf16.msra.mxu0 %v925
  %1198 = vmatpush.bf16.msra.mxu0 %v924
  %1199 = vmatmul.bf16.gmra.mxu0 %v471
  %v1200 = vpop.f32.mrf.mxu0
  %v1201 = vadd.f32 %v1152, %v1200
  %v1202 = vpop.f32.mrf.mxu0
  %v1203 = vadd.f32 %v1154, %v1202
  %1204 = vmatmul.bf16.gmra.mxu0 %v480
  %v1205 = vpop.f32.mrf.mxu0
  %v1206 = vadd.f32 %v1157, %v1205
  %v1207 = vpop.f32.mrf.mxu0
  %v1208 = vadd.f32 %v1159, %v1207
  %1209 = vmatmul.bf16.gmra.mxu0 %v489
  %v1210 = vpop.f32.mrf.mxu0
  %v1211 = vadd.f32 %v1162, %v1210
  %v1212 = vpop.f32.mrf.mxu0
  %v1213 = vadd.f32 %v1164, %v1212
  %1214 = vmatmul.bf16.gmra.mxu0 %v498
  %v1215 = vpop.f32.mrf.mxu0
  %v1216 = vadd.f32 %v1167, %v1215
  %v1217 = vpop.f32.mrf.mxu0
  %v1218 = vadd.f32 %v1169, %v1217
  %1219 = vmatmul.bf16.gmra.mxu0 %v507
  %v1220 = vpop.f32.mrf.mxu0
  %v1221 = vadd.f32 %v1172, %v1220
  %v1222 = vpop.f32.mrf.mxu0
  %v1223 = vadd.f32 %v1174, %v1222
  %1224 = vmatmul.bf16.gmra.mxu0 %v516
  %v1225 = vpop.f32.mrf.mxu0
  %v1226 = vadd.f32 %v1177, %v1225
  %v1227 = vpop.f32.mrf.mxu0
  %v1228 = vadd.f32 %v1179, %v1227
  %1229 = vmatmul.bf16.gmra.mxu0 %v525
  %v1230 = vpop.f32.mrf.mxu0
  %v1231 = vadd.f32 %v1182, %v1230
  %v1232 = vpop.f32.mrf.mxu0
  %v1233 = vadd.f32 %v1184, %v1232
  %1234 = vmatmul.bf16.gmra.mxu0 %v534
  %v1235 = vpop.f32.mrf.mxu0
  %v1236 = vadd.f32 %v1187, %v1235
  %v1237 = vpop.f32.mrf.mxu0
  %v1238 = vadd.f32 %v1189, %v1237
  %1239 = vdwg.mxu0
  %1240 = vmatpush.bf16.msra.mxu0 %v939
  %1241 = vmatpush.bf16.msra.mxu0 %v938
  %1242 = vmatpush.bf16.msra.mxu0 %v937
  %1243 = vmatpush.bf16.msra.mxu0 %v936
  %1244 = vmatpush.bf16.msra.mxu0 %v935
  %1245 = vmatpush.bf16.msra.mxu0 %v934
  %1246 = vmatpush.bf16.msra.mxu0 %v933
  %1247 = vmatpush.bf16.msra.mxu0 %v932
  %1248 = vmatmul.bf16.gmra.mxu0 %v472
  %v1249 = vpop.f32.mrf.mxu0
  %v1250 = vadd.f32 %v1201, %v1249
  %v1251 = vpop.f32.mrf.mxu0
  %v1252 = vadd.f32 %v1203, %v1251
  %1253 = vmatmul.bf16.gmra.mxu0 %v481
  %v1254 = vpop.f32.mrf.mxu0
  %v1255 = vadd.f32 %v1206, %v1254
  %v1256 = vpop.f32.mrf.mxu0
  %v1257 = vadd.f32 %v1208, %v1256
  %1258 = vmatmul.bf16.gmra.mxu0 %v490
  %v1259 = vpop.f32.mrf.mxu0
  %v1260 = vadd.f32 %v1211, %v1259
  %v1261 = vpop.f32.mrf.mxu0
  %v1262 = vadd.f32 %v1213, %v1261
  %1263 = vmatmul.bf16.gmra.mxu0 %v499
  %v1264 = vpop.f32.mrf.mxu0
  %v1265 = vadd.f32 %v1216, %v1264
  %v1266 = vpop.f32.mrf.mxu0
  %v1267 = vadd.f32 %v1218, %v1266
  %1268 = vmatmul.bf16.gmra.mxu0 %v508
  %v1269 = vpop.f32.mrf.mxu0
  %v1270 = vadd.f32 %v1221, %v1269
  %v1271 = vpop.f32.mrf.mxu0
  %v1272 = vadd.f32 %v1223, %v1271
  %1273 = vmatmul.bf16.gmra.mxu0 %v517
  %v1274 = vpop.f32.mrf.mxu0
  %v1275 = vadd.f32 %v1226, %v1274
  %v1276 = vpop.f32.mrf.mxu0
  %v1277 = vadd.f32 %v1228, %v1276
  %1278 = vmatmul.bf16.gmra.mxu0 %v526
  %v1279 = vpop.f32.mrf.mxu0
  %v1280 = vadd.f32 %v1231, %v1279
  %v1281 = vpop.f32.mrf.mxu0
  %v1282 = vadd.f32 %v1233, %v1281
  %1283 = vmatmul.bf16.gmra.mxu0 %v535
  %v1284 = vpop.f32.mrf.mxu0
  %v1285 = vadd.f32 %v1236, %v1284
  %v1286 = vpop.f32.mrf.mxu0
  %v1287 = vadd.f32 %v1238, %v1286
  %1288 = vdwg.mxu0
  %1289 = vmatpush.bf16.msra.mxu0 %v947
  %1290 = vmatpush.bf16.msra.mxu0 %v946
  %1291 = vmatpush.bf16.msra.mxu0 %v945
  %1292 = vmatpush.bf16.msra.mxu0 %v944
  %1293 = vmatpush.bf16.msra.mxu0 %v943
  %1294 = vmatpush.bf16.msra.mxu0 %v942
  %1295 = vmatpush.bf16.msra.mxu0 %v941
  %1296 = vmatpush.bf16.msra.mxu0 %v940
  %1297 = vmatmul.bf16.gmra.mxu0 %v473
  %v1298 = vpop.f32.mrf.mxu0
  %v1299 = vadd.f32 %v1250, %v1298
  %v1300 = vpop.f32.mrf.mxu0
  %v1301 = vadd.f32 %v1252, %v1300
  %1302 = vmatmul.bf16.gmra.mxu0 %v482
  %v1303 = vpop.f32.mrf.mxu0
  %v1304 = vadd.f32 %v1255, %v1303
  %v1305 = vpop.f32.mrf.mxu0
  %v1306 = vadd.f32 %v1257, %v1305
  %1307 = vmatmul.bf16.gmra.mxu0 %v491
  %v1308 = vpop.f32.mrf.mxu0
  %v1309 = vadd.f32 %v1260, %v1308
  %v1310 = vpop.f32.mrf.mxu0
  %v1311 = vadd.f32 %v1262, %v1310
  %1312 = vmatmul.bf16.gmra.mxu0 %v500
  %v1313 = vpop.f32.mrf.mxu0
  %v1314 = vadd.f32 %v1265, %v1313
  %v1315 = vpop.f32.mrf.mxu0
  %v1316 = vadd.f32 %v1267, %v1315
  %1317 = vmatmul.bf16.gmra.mxu0 %v509
  %v1318 = vpop.f32.mrf.mxu0
  %v1319 = vadd.f32 %v1270, %v1318
  %v1320 = vpop.f32.mrf.mxu0
  %v1321 = vadd.f32 %v1272, %v1320
  %1322 = vmatmul.bf16.gmra.mxu0 %v518
  %v1323 = vpop.f32.mrf.mxu0
  %v1324 = vadd.f32 %v1275, %v1323
  %v1325 = vpop.f32.mrf.mxu0
  %v1326 = vadd.f32 %v1277, %v1325
  %1327 = vmatmul.bf16.gmra.mxu0 %v527
  %v1328 = vpop.f32.mrf.mxu0
  %v1329 = vadd.f32 %v1280, %v1328
  %v1330 = vpop.f32.mrf.mxu0
  %v1331 = vadd.f32 %v1282, %v1330
  %1332 = vmatmul.bf16.gmra.mxu0 %v536
  %v1333 = vpop.f32.mrf.mxu0
  %v1334 = vadd.f32 %v1285, %v1333
  %v1335 = vpop.f32.mrf.mxu0
  %v1336 = vadd.f32 %v1287, %v1335
  %1337 = vdwg.mxu0
  %1338 = vmatpush.bf16.msra.mxu0 %v955
  %1339 = vmatpush.bf16.msra.mxu0 %v954
  %1340 = vmatpush.bf16.msra.mxu0 %v953
  %1341 = vmatpush.bf16.msra.mxu0 %v952
  %1342 = vmatpush.bf16.msra.mxu0 %v951
  %1343 = vmatpush.bf16.msra.mxu0 %v950
  %1344 = vmatpush.bf16.msra.mxu0 %v949
  %1345 = vmatpush.bf16.msra.mxu0 %v948
  %1346 = vmatmul.bf16.gmra.mxu0 %v474
  %v1347 = vpop.f32.mrf.mxu0
  %v1348 = vadd.f32 %v1299, %v1347
  %v1349 = vpop.f32.mrf.mxu0
  %v1350 = vadd.f32 %v1301, %v1349
  %1351 = vmatmul.bf16.gmra.mxu0 %v483
  %v1352 = vpop.f32.mrf.mxu0
  %v1353 = vadd.f32 %v1304, %v1352
  %v1354 = vpop.f32.mrf.mxu0
  %v1355 = vadd.f32 %v1306, %v1354
  %1356 = vmatmul.bf16.gmra.mxu0 %v492
  %v1357 = vpop.f32.mrf.mxu0
  %v1358 = vadd.f32 %v1309, %v1357
  %v1359 = vpop.f32.mrf.mxu0
  %v1360 = vadd.f32 %v1311, %v1359
  %1361 = vmatmul.bf16.gmra.mxu0 %v501
  %v1362 = vpop.f32.mrf.mxu0
  %v1363 = vadd.f32 %v1314, %v1362
  %v1364 = vpop.f32.mrf.mxu0
  %v1365 = vadd.f32 %v1316, %v1364
  %1366 = vmatmul.bf16.gmra.mxu0 %v510
  %v1367 = vpop.f32.mrf.mxu0
  %v1368 = vadd.f32 %v1319, %v1367
  %v1369 = vpop.f32.mrf.mxu0
  %v1370 = vadd.f32 %v1321, %v1369
  %1371 = vmatmul.bf16.gmra.mxu0 %v519
  %v1372 = vpop.f32.mrf.mxu0
  %v1373 = vadd.f32 %v1324, %v1372
  %v1374 = vpop.f32.mrf.mxu0
  %v1375 = vadd.f32 %v1326, %v1374
  %1376 = vmatmul.bf16.gmra.mxu0 %v528
  %v1377 = vpop.f32.mrf.mxu0
  %v1378 = vadd.f32 %v1329, %v1377
  %v1379 = vpop.f32.mrf.mxu0
  %v1380 = vadd.f32 %v1331, %v1379
  %1381 = vmatmul.bf16.gmra.mxu0 %v537
  %v1382 = vpop.f32.mrf.mxu0
  %v1383 = vadd.f32 %v1334, %v1382
  %v1384 = vpop.f32.mrf.mxu0
  %v1385 = vadd.f32 %v1336, %v1384
  %1386 = vdwg.mxu0
  %1387 = vmatpush.bf16.msra.mxu0 %v963
  %1388 = vmatpush.bf16.msra.mxu0 %v962
  %1389 = vmatpush.bf16.msra.mxu0 %v961
  %1390 = vmatpush.bf16.msra.mxu0 %v960
  %1391 = vmatpush.bf16.msra.mxu0 %v959
  %1392 = vmatpush.bf16.msra.mxu0 %v958
  %1393 = vmatpush.bf16.msra.mxu0 %v957
  %1394 = vmatpush.bf16.msra.mxu0 %v956
  %1395 = vmatmul.bf16.gmra.mxu0 %v475
  %v1396 = vpop.f32.mrf.mxu0
  %v1397 = vadd.f32 %v1348, %v1396
  %v1398 = vpop.f32.mrf.mxu0
  %v1399 = vadd.f32 %v1350, %v1398
  %1400 = vmatmul.bf16.gmra.mxu0 %v484
  %v1401 = vpop.f32.mrf.mxu0
  %v1402 = vadd.f32 %v1353, %v1401
  %v1403 = vpop.f32.mrf.mxu0
  %v1404 = vadd.f32 %v1355, %v1403
  %1405 = vmatmul.bf16.gmra.mxu0 %v493
  %v1406 = vpop.f32.mrf.mxu0
  %v1407 = vadd.f32 %v1358, %v1406
  %v1408 = vpop.f32.mrf.mxu0
  %v1409 = vadd.f32 %v1360, %v1408
  %1410 = vmatmul.bf16.gmra.mxu0 %v502
  %v1411 = vpop.f32.mrf.mxu0
  %v1412 = vadd.f32 %v1363, %v1411
  %v1413 = vpop.f32.mrf.mxu0
  %v1414 = vadd.f32 %v1365, %v1413
  %1415 = vmatmul.bf16.gmra.mxu0 %v511
  %v1416 = vpop.f32.mrf.mxu0
  %v1417 = vadd.f32 %v1368, %v1416
  %v1418 = vpop.f32.mrf.mxu0
  %v1419 = vadd.f32 %v1370, %v1418
  %1420 = vmatmul.bf16.gmra.mxu0 %v520
  %v1421 = vpop.f32.mrf.mxu0
  %v1422 = vadd.f32 %v1373, %v1421
  %v1423 = vpop.f32.mrf.mxu0
  %v1424 = vadd.f32 %v1375, %v1423
  %1425 = vmatmul.bf16.gmra.mxu0 %v529
  %v1426 = vpop.f32.mrf.mxu0
  %v1427 = vadd.f32 %v1378, %v1426
  %v1428 = vpop.f32.mrf.mxu0
  %v1429 = vadd.f32 %v1380, %v1428
  %1430 = vmatmul.bf16.gmra.mxu0 %v538
  %v1431 = vpop.f32.mrf.mxu0
  %v1432 = vadd.f32 %v1383, %v1431
  %v1433 = vpop.f32.mrf.mxu0
  %v1434 = vadd.f32 %v1385, %v1433
  %1435 = vdwg.mxu0
  %1436 = vmatpush.bf16.msra.mxu0 %v971
  %1437 = vmatpush.bf16.msra.mxu0 %v970
  %1438 = vmatpush.bf16.msra.mxu0 %v969
  %1439 = vmatpush.bf16.msra.mxu0 %v968
  %1440 = vmatpush.bf16.msra.mxu0 %v967
  %1441 = vmatpush.bf16.msra.mxu0 %v966
  %1442 = vmatpush.bf16.msra.mxu0 %v965
  %1443 = vmatpush.bf16.msra.mxu0 %v964
  %1444 = vmatmul.bf16.gmra.mxu0 %v476
  %v1445 = vpop.f32.mrf.mxu0
  %v1446 = vadd.f32 %v1397, %v1445
  %v1447 = vpop.f32.mrf.mxu0
  %v1448 = vadd.f32 %v1399, %v1447
  %1449 = vmatmul.bf16.gmra.mxu0 %v485
  %v1450 = vpop.f32.mrf.mxu0
  %v1451 = vadd.f32 %v1402, %v1450
  %v1452 = vpop.f32.mrf.mxu0
  %v1453 = vadd.f32 %v1404, %v1452
  %1454 = vmatmul.bf16.gmra.mxu0 %v494
  %v1455 = vpop.f32.mrf.mxu0
  %v1456 = vadd.f32 %v1407, %v1455
  %v1457 = vpop.f32.mrf.mxu0
  %v1458 = vadd.f32 %v1409, %v1457
  %1459 = vmatmul.bf16.gmra.mxu0 %v503
  %v1460 = vpop.f32.mrf.mxu0
  %v1461 = vadd.f32 %v1412, %v1460
  %v1462 = vpop.f32.mrf.mxu0
  %v1463 = vadd.f32 %v1414, %v1462
  %1464 = vmatmul.bf16.gmra.mxu0 %v512
  %v1465 = vpop.f32.mrf.mxu0
  %v1466 = vadd.f32 %v1417, %v1465
  %v1467 = vpop.f32.mrf.mxu0
  %v1468 = vadd.f32 %v1419, %v1467
  %1469 = vmatmul.bf16.gmra.mxu0 %v521
  %v1470 = vpop.f32.mrf.mxu0
  %v1471 = vadd.f32 %v1422, %v1470
  %v1472 = vpop.f32.mrf.mxu0
  %v1473 = vadd.f32 %v1424, %v1472
  %1474 = vmatmul.bf16.gmra.mxu0 %v530
  %v1475 = vpop.f32.mrf.mxu0
  %v1476 = vadd.f32 %v1427, %v1475
  %v1477 = vpop.f32.mrf.mxu0
  %v1478 = vadd.f32 %v1429, %v1477
  %1479 = vmatmul.bf16.gmra.mxu0 %v539
  %v1480 = vpop.f32.mrf.mxu0
  %v1481 = vadd.f32 %v1432, %v1480
  %v1482 = vpop.f32.mrf.mxu0
  %v1483 = vadd.f32 %v1434, %v1482
  %1484 = vdwg.mxu0
  %v1485 = vadd.f32 %v1446, %v1448
  %v1486 = vadd.f32 %v1485, %v1451
  %v1487 = vadd.f32 %v1486, %v1453
  %v1488 = vadd.f32 %v1487, %v1456
  %v1489 = vadd.f32 %v1488, %v1458
  %v1490 = vadd.f32 %v1489, %v1461
  %v1491 = vadd.f32 %v1490, %v1463
  %v1492 = vadd.f32 %v1491, %v1466
  %v1493 = vadd.f32 %v1492, %v1468
  %v1494 = vadd.f32 %v1493, %v1471
  %v1495 = vadd.f32 %v1494, %v1473
  %v1496 = vadd.f32 %v1495, %v1476
  %v1497 = vadd.f32 %v1496, %v1478
  %v1498 = vadd.f32 %v1497, %v1481
  %v1499 = vadd.f32 %v1498, %v1483
  %v1500 = vrot.slane %v1499, 4
  %v1501 = vadd.f32 %v1499, %v1500
  %v1502 = vrot.slane %v1501, 2
  %v1503 = vadd.f32 %v1501, %v1502
  %v1504 = vrot.slane %v1503, 1
  %v1505 = vadd.f32 %v1503, %v1504
  %v1506 = vrcp.pop 128.0
  %v1507 = vmul.f32 128.0, %v1506
  %v1508 = vsub.f32 1.0, %v1507
  %v1509 = vmul.f32 %v1506, %v1508
  %v1510 = vadd.f32 %v1506, %v1509
  %vm1511 = vweird.f32 %v1506
  %v1512 = vsel %vm1511, %v1506, %v1510
  %v1513 = vmul.f32 %v1505, %v1512
  %v1514 = vsub.f32 %v1446, %v1513
  %v1515 = vsub.f32 %v1448, %v1513
  %v1516 = vsub.f32 %v1451, %v1513
  %v1517 = vsub.f32 %v1453, %v1513
  %v1518 = vsub.f32 %v1456, %v1513
  %v1519 = vsub.f32 %v1458, %v1513
  %v1520 = vsub.f32 %v1461, %v1513
  %v1521 = vsub.f32 %v1463, %v1513
  %v1522 = vsub.f32 %v1466, %v1513
  %v1523 = vsub.f32 %v1468, %v1513
  %v1524 = vsub.f32 %v1471, %v1513
  %v1525 = vsub.f32 %v1473, %v1513
  %v1526 = vsub.f32 %v1476, %v1513
  %v1527 = vsub.f32 %v1478, %v1513
  %v1528 = vsub.f32 %v1481, %v1513
  %v1529 = vsub.f32 %v1483, %v1513
  %v1530 = vmul.f32 %v1514, %v1514
  %v1531 = vmul.f32 %v1515, %v1515
  %v1532 = vmul.f32 %v1516, %v1516
  %v1533 = vmul.f32 %v1517, %v1517
  %v1534 = vmul.f32 %v1518, %v1518
  %v1535 = vmul.f32 %v1519, %v1519
  %v1536 = vmul.f32 %v1520, %v1520
  %v1537 = vmul.f32 %v1521, %v1521
  %v1538 = vmul.f32 %v1522, %v1522
  %v1539 = vmul.f32 %v1523, %v1523
  %v1540 = vmul.f32 %v1524, %v1524
  %v1541 = vmul.f32 %v1525, %v1525
  %v1542 = vmul.f32 %v1526, %v1526
  %v1543 = vmul.f32 %v1527, %v1527
  %v1544 = vmul.f32 %v1528, %v1528
  %v1545 = vmul.f32 %v1529, %v1529
  %v1546 = vadd.f32 %v1530, %v1531
  %v1547 = vadd.f32 %v1546, %v1532
  %v1548 = vadd.f32 %v1547, %v1533
  %v1549 = vadd.f32 %v1548, %v1534
  %v1550 = vadd.f32 %v1549, %v1535
  %v1551 = vadd.f32 %v1550, %v1536
  %v1552 = vadd.f32 %v1551, %v1537
  %v1553 = vadd.f32 %v1552, %v1538
  %v1554 = vadd.f32 %v1553, %v1539
  %v1555 = vadd.f32 %v1554, %v1540
  %v1556 = vadd.f32 %v1555, %v1541
  %v1557 = vadd.f32 %v1556, %v1542
  %v1558 = vadd.f32 %v1557, %v1543
  %v1559 = vadd.f32 %v1558, %v1544
  %v1560 = vadd.f32 %v1559, %v1545
  %v1561 = vrot.slane %v1560, 4
  %v1562 = vadd.f32 %v1560, %v1561
  %v1563 = vrot.slane %v1562, 2
  %v1564 = vadd.f32 %v1562, %v1563
  %v1565 = vrot.slane %v1564, 1
  %v1566 = vadd.f32 %v1564, %v1565
  %v1567 = vmul.f32 %v1566, %v1512
  %v1568 = vld [vmem:[%s2] sm:$0x1]
  %v1569 = vadd.f32 %v1567, 1e-05
  %v1570 = vrsqrt.pop %v1569
  %v1571 = vmul.f32 %v1570, %v1569
  %v1572 = vmul.f32 %v1571, %v1570
  %v1573 = vmul.f32 0.5, %v1572
  %v1574 = vsub.f32 1.5, %v1573
  %v1575 = vmul.f32 %v1570, %v1574
  %vm1576 = vweird.f32 %v1569
  %vm1577 = vweird.f32 %v1570
  %vm1578 = vmor %vm1576, %vm1577
  %v1579 = vsel %vm1578, %v1570, %v1575
  %v1580 = vmul.f32 %v1568, %v1579
  %v1582 = vperm.slane %v1580, 0
  %v1584 = vmul.f32 %v1514, %v1582
  %v1585 = vmul.f32 %v1515, %v1582
  %v1586 = vmul.f32 %v1516, %v1582
  %v1587 = vmul.f32 %v1517, %v1582
  %v1588 = vmul.f32 %v1518, %v1582
  %v1589 = vmul.f32 %v1519, %v1582
  %v1590 = vmul.f32 %v1520, %v1582
  %v1591 = vmul.f32 %v1521, %v1582
  %v1592 = vmul.f32 %v1522, %v1582
  %v1593 = vmul.f32 %v1523, %v1582
  %v1594 = vmul.f32 %v1524, %v1582
  %v1595 = vmul.f32 %v1525, %v1582
  %v1596 = vmul.f32 %v1526, %v1582
  %v1597 = vmul.f32 %v1527, %v1582
  %v1598 = vmul.f32 %v1528, %v1582
  %v1599 = vmul.f32 %v1529, %v1582
  %v1600 = vld [vmem:[%s3] sm:$0x1]
  %v1602 = vperm.slane %v1600, 0
  %v1604 = vadd.f32 %v1584, %v1602
  %v1605 = vadd.f32 %v1585, %v1602
  %v1606 = vadd.f32 %v1586, %v1602
  %v1607 = vadd.f32 %v1587, %v1602
  %v1608 = vadd.f32 %v1588, %v1602
  %v1609 = vadd.f32 %v1589, %v1602
  %v1610 = vadd.f32 %v1590, %v1602
  %v1611 = vadd.f32 %v1591, %v1602
  %v1612 = vadd.f32 %v1592, %v1602
  %v1613 = vadd.f32 %v1593, %v1602
  %v1614 = vadd.f32 %v1594, %v1602
  %v1615 = vadd.f32 %v1595, %v1602
  %v1616 = vadd.f32 %v1596, %v1602
  %v1617 = vadd.f32 %v1597, %v1602
  %v1618 = vadd.f32 %v1598, %v1602
  %v1619 = vadd.f32 %v1599, %v1602
  %vm1620 = vcmp.gt.f32.partialorder %v1604, 0.0
  %vm1621 = vcmp.gt.f32.partialorder %v1605, 0.0
  %vm1622 = vcmp.gt.f32.partialorder %v1606, 0.0
  %vm1623 = vcmp.gt.f32.partialorder %v1607, 0.0
  %vm1624 = vcmp.gt.f32.partialorder %v1608, 0.0
  %vm1625 = vcmp.gt.f32.partialorder %v1609, 0.0
  %vm1626 = vcmp.gt.f32.partialorder %v1610, 0.0
  %vm1627 = vcmp.gt.f32.partialorder %v1611, 0.0
  %vm1628 = vcmp.gt.f32.partialorder %v1612, 0.0
  %vm1629 = vcmp.gt.f32.partialorder %v1613, 0.0
  %vm1630 = vcmp.gt.f32.partialorder %v1614, 0.0
  %vm1631 = vcmp.gt.f32.partialorder %v1615, 0.0
  %vm1632 = vcmp.gt.f32.partialorder %v1616, 0.0
  %vm1633 = vcmp.gt.f32.partialorder %v1617, 0.0
  %vm1634 = vcmp.gt.f32.partialorder %v1618, 0.0
  %vm1635 = vcmp.gt.f32.partialorder %v1619, 0.0
  %v1636 = vmul.f32 %v1604, 0.1
  %v1637 = vmul.f32 %v1605, 0.1
  %v1638 = vmul.f32 %v1606, 0.1
  %v1639 = vmul.f32 %v1607, 0.1
  %v1640 = vmul.f32 %v1608, 0.1
  %v1641 = vmul.f32 %v1609, 0.1
  %v1642 = vmul.f32 %v1610, 0.1
  %v1643 = vmul.f32 %v1611, 0.1
  %v1644 = vmul.f32 %v1612, 0.1
  %v1645 = vmul.f32 %v1613, 0.1
  %v1646 = vmul.f32 %v1614, 0.1
  %v1647 = vmul.f32 %v1615, 0.1
  %v1648 = vmul.f32 %v1616, 0.1
  %v1649 = vmul.f32 %v1617, 0.1
  %v1650 = vmul.f32 %v1618, 0.1
  %v1651 = vmul.f32 %v1619, 0.1
  %v1652 = vsel %vm1620, %v1604, %v1636
  %v1653 = vsel %vm1621, %v1605, %v1637
  %v1654 = vsel %vm1622, %v1606, %v1638
  %v1655 = vsel %vm1623, %v1607, %v1639
  %v1656 = vsel %vm1624, %v1608, %v1640
  %v1657 = vsel %vm1625, %v1609, %v1641
  %v1658 = vsel %vm1626, %v1610, %v1642
  %v1659 = vsel %vm1627, %v1611, %v1643
  %v1660 = vsel %vm1628, %v1612, %v1644
  %v1661 = vsel %vm1629, %v1613, %v1645
  %v1662 = vsel %vm1630, %v1614, %v1646
  %v1663 = vsel %vm1631, %v1615, %v1647
  %v1664 = vsel %vm1632, %v1616, %v1648
  %v1665 = vsel %vm1633, %v1617, %v1649
  %v1666 = vsel %vm1634, %v1618, %v1650
  %v1667 = vsel %vm1635, %v1619, %v1651
  %v1668 = vld [vmem:[%s4] sm:$0xff]
  %v1669 = vld [vmem:[%s4 + $0x8] sm:$0xff]
  %v1670 = vld [vmem:[%s4 + $0x10] sm:$0xff]
  %v1671 = vld [vmem:[%s4 + $0x18] sm:$0xff]
  %v1672 = vld [vmem:[%s4 + $0x20] sm:$0xff]
  %v1673 = vld [vmem:[%s4 + $0x28] sm:$0xff]
  %v1674 = vld [vmem:[%s4 + $0x30] sm:$0xff]
  %v1675 = vld [vmem:[%s4 + $0x38] sm:$0xff]
  %v1676 = vld [vmem:[%s4 + $0x40] sm:$0xff]
  %v1677 = vld [vmem:[%s4 + $0x48] sm:$0xff]
  %v1678 = vld [vmem:[%s4 + $0x50] sm:$0xff]
  %v1679 = vld [vmem:[%s4 + $0x58] sm:$0xff]
  %v1680 = vld [vmem:[%s4 + $0x60] sm:$0xff]
  %v1681 = vld [vmem:[%s4 + $0x68] sm:$0xff]
  %v1682 = vld [vmem:[%s4 + $0x70] sm:$0xff]
  %v1683 = vld [vmem:[%s4 + $0x78] sm:$0xff]
  %v1684 = vadd.f32 %v1652, %v1668
  %v1685 = vadd.f32 %v1653, %v1669
  %v1686 = vadd.f32 %v1654, %v1670
  %v1687 = vadd.f32 %v1655, %v1671
  %v1688 = vadd.f32 %v1656, %v1672
  %v1689 = vadd.f32 %v1657, %v1673
  %v1690 = vadd.f32 %v1658, %v1674
  %v1691 = vadd.f32 %v1659, %v1675
  %v1692 = vadd.f32 %v1660, %v1676
  %v1693 = vadd.f32 %v1661, %v1677
  %v1694 = vadd.f32 %v1662, %v1678
  %v1695 = vadd.f32 %v1663, %v1679
  %v1696 = vadd.f32 %v1664, %v1680
  %v1697 = vadd.f32 %v1665, %v1681
  %v1698 = vadd.f32 %v1666, %v1682
  %v1699 = vadd.f32 %v1667, %v1683
  %1700 = vst [vmem:[%s5] sm:$0xff] %v1684
  %1701 = vst [vmem:[%s5 + $0x8] sm:$0xff] %v1685
  %1702 = vst [vmem:[%s5 + $0x10] sm:$0xff] %v1686
  %1703 = vst [vmem:[%s5 + $0x18] sm:$0xff] %v1687
  %1704 = vst [vmem:[%s5 + $0x20] sm:$0xff] %v1688
  %1705 = vst [vmem:[%s5 + $0x28] sm:$0xff] %v1689
  %1706 = vst [vmem:[%s5 + $0x30] sm:$0xff] %v1690
  %1707 = vst [vmem:[%s5 + $0x38] sm:$0xff] %v1691
  %1708 = vst [vmem:[%s5 + $0x40] sm:$0xff] %v1692
  %1709 = vst [vmem:[%s5 + $0x48] sm:$0xff] %v1693
  %1710 = vst [vmem:[%s5 + $0x50] sm:$0xff] %v1694
  %1711 = vst [vmem:[%s5 + $0x58] sm:$0xff] %v1695
  %1712 = vst [vmem:[%s5 + $0x60] sm:$0xff] %v1696
  %1713 = vst [vmem:[%s5 + $0x68] sm:$0xff] %v1697
  %1714 = vst [vmem:[%s5 + $0x70] sm:$0xff] %v1698
  %1715 = vst [vmem:[%s5 + $0x78] sm:$0xff] %v1699
  // Predicated region
  $region22: #{_lambda_.13} parent=0 // pred_check
    _
  $region23: #{_lambda_.13} parent=0 // pred_check_branch
    %1717 = sbr.rel (0) target = $region25
  $region24: #{_lambda_.13} parent=0 // pred_region
    _
  $region25: #{_lambda_.13} parent=0 // pred_fallthru
    _
  // Predicated region
  $region26: #{_lambda_.13} parent=0 // pred_check
    _
  $region27: #{_lambda_.13} parent=0 // pred_check_branch
    %1719 = sbr.rel (0) target = $region29
  $region28: #{_lambda_.13} parent=0 // pred_region
    _
  $region29: #{_lambda_.13} parent=0 // pred_fallthru
    _

// kernel: _lambda_.14
$region0: #{_lambda_.14}
  #allocation0 [shape = 'u32[]', space=smem, size = 0x4, offset = 0x4, fixed_abs, tag = 'smem constant byte address 0x4 - core index']
  #allocation1 [shape = 'u32[72,128]{1,0:T(1,128)}', space=vmem, size = 0x9000, scoped, tag = 'internal scratch']
  %s0 = inlined_call_operand.vmem [shape: bf16[32,1152], index: 0, kind: input, shape index: {}]
  %s1 = inlined_call_operand.vmem [shape: bf16[1152,128], index: 1, kind: input, shape index: {}]
  %s2 = inlined_call_operand.vmem [shape: f32[1,128], index: 2, kind: input, shape index: {}]
  %s3 = inlined_call_operand.vmem [shape: f32[1,128], index: 3, kind: input, shape index: {}]
  %s4 = inlined_call_operand.vmem [shape: f32[32,128], index: 4, kind: output, shape index: {}]
  %s5 = sld [smem:[#allocation0]]
  $region26: #{_lambda_.14} parent=0
    _
  %s7 = ssub.s32 1, %s5
  %s8 = scalar_select 0, %s7, %s5
  // Predicated region
  $region2: #{_lambda_.14} parent=0 // pred_check
    _
  $region3: #{_lambda_.14} parent=0 // pred_check_branch
    %10 = sbr.rel (0) target = $region5
  $region4: #{_lambda_.14} parent=0 // pred_region
    _
  $region5: #{_lambda_.14} parent=0 // pred_fallthru
    _
  // Predicated region
  $region6: #{_lambda_.14} parent=0 // pred_check
    _
  $region7: #{_lambda_.14} parent=0 // pred_check_branch
    %12 = sbr.rel (0) target = $region9
  $region8: #{_lambda_.14} parent=0 // pred_region
    _
  $region9: #{_lambda_.14} parent=0 // pred_fallthru
    _
  // Predicated region
  $region10: #{_lambda_.14} parent=0 // pred_check
    _
  $region11: #{_lambda_.14} parent=0 // pred_check_branch
    %14 = sbr.rel (0) target = $region13
  $region12: #{_lambda_.14} parent=0 // pred_region
    _
  $region13: #{_lambda_.14} parent=0 // pred_fallthru
    _
  // Predicated region
  $region14: #{_lambda_.14} parent=0 // pred_check
    _
  $region15: #{_lambda_.14} parent=0 // pred_check_branch
    %16 = sbr.rel (0) target = $region17
  $region16: #{_lambda_.14} parent=0 // pred_region
    _
  $region17: #{_lambda_.14} parent=0 // pred_fallthru
    _
  %v17 = vld [vmem:[%s0] sm:$0xff]
  %v18 = vld [vmem:[%s0 + $0x8] sm:$0xff]
  %v19 = vld [vmem:[%s0 + $0x10] sm:$0xff]
  %v20 = vld [vmem:[%s0 + $0x18] sm:$0xff]
  %v21 = vld [vmem:[%s0 + $0x20] sm:$0xf]
  %v22 = vld [vmem:[%s0 + $0x24] sm:$0xff]
  %v23 = vld [vmem:[%s0 + $0x2c] sm:$0xff]
  %v24 = vld [vmem:[%s0 + $0x34] sm:$0xff]
  %v25 = vld [vmem:[%s0 + $0x3c] sm:$0xff]
  %v26 = vld [vmem:[%s0 + $0x44] sm:$0xf]
  %v27 = vld [vmem:[%s0 + $0x48] sm:$0xff]
  %v28 = vld [vmem:[%s0 + $0x50] sm:$0xff]
  %v29 = vld [vmem:[%s0 + $0x58] sm:$0xff]
  %v30 = vld [vmem:[%s0 + $0x60] sm:$0xff]
  %v31 = vld [vmem:[%s0 + $0x68] sm:$0xf]
  %v32 = vld [vmem:[%s0 + $0x6c] sm:$0xff]
  %v33 = vld [vmem:[%s0 + $0x74] sm:$0xff]
  %v34 = vld [vmem:[%s0 + $0x7c] sm:$0xff]
  %v35 = vld [vmem:[%s0 + $0x84] sm:$0xff]
  %v36 = vld [vmem:[%s0 + $0x8c] sm:$0xf]
  %v37 = vld [vmem:[%s1] sm:$0xf]
  %v38 = vld [vmem:[%s1 + $0x4] sm:$0xf]
  %v39 = vld [vmem:[%s1 + $0x8] sm:$0xf]
  %v40 = vld [vmem:[%s1 + $0xc] sm:$0xf]
  %v41 = vld [vmem:[%s1 + $0x10] sm:$0xf]
  %v42 = vld [vmem:[%s1 + $0x14] sm:$0xf]
  %v43 = vld [vmem:[%s1 + $0x18] sm:$0xf]
  %v44 = vld [vmem:[%s1 + $0x1c] sm:$0xf]
  %v45 = vld [vmem:[%s1 + $0x20] sm:$0xf]
  %v46 = vld [vmem:[%s1 + $0x24] sm:$0xf]
  %v47 = vld [vmem:[%s1 + $0x28] sm:$0xf]
  %v48 = vld [vmem:[%s1 + $0x2c] sm:$0xf]
  %v49 = vld [vmem:[%s1 + $0x30] sm:$0xf]
  %v50 = vld [vmem:[%s1 + $0x34] sm:$0xf]
  %v51 = vld [vmem:[%s1 + $0x38] sm:$0xf]
  %v52 = vld [vmem:[%s1 + $0x3c] sm:$0xf]
  %v53 = vld [vmem:[%s1 + $0x40] sm:$0xf]
  %v54 = vld [vmem:[%s1 + $0x44] sm:$0xf]
  %v55 = vld [vmem:[%s1 + $0x48] sm:$0xf]
  %v56 = vld [vmem:[%s1 + $0x4c] sm:$0xf]
  %v57 = vld [vmem:[%s1 + $0x50] sm:$0xf]
  %v58 = vld [vmem:[%s1 + $0x54] sm:$0xf]
  %v59 = vld [vmem:[%s1 + $0x58] sm:$0xf]
  %v60 = vld [vmem:[%s1 + $0x5c] sm:$0xf]
  %v61 = vld [vmem:[%s1 + $0x60] sm:$0xf]
  %v62 = vld [vmem:[%s1 + $0x64] sm:$0xf]
  %v63 = vld [vmem:[%s1 + $0x68] sm:$0xf]
  %v64 = vld [vmem:[%s1 + $0x6c] sm:$0xf]
  %v65 = vld [vmem:[%s1 + $0x70] sm:$0xf]
  %v66 = vld [vmem:[%s1 + $0x74] sm:$0xf]
  %v67 = vld [vmem:[%s1 + $0x78] sm:$0xf]
  %v68 = vld [vmem:[%s1 + $0x7c] sm:$0xf]
  %v69 = vld [vmem:[%s1 + $0x80] sm:$0xf]
  %v70 = vld [vmem:[%s1 + $0x84] sm:$0xf]
  %v71 = vld [vmem:[%s1 + $0x88] sm:$0xf]
  %v72 = vld [vmem:[%s1 + $0x8c] sm:$0xf]
  %v73 = vld [vmem:[%s1 + $0x90] sm:$0xf]
  %v74 = vld [vmem:[%s1 + $0x94] sm:$0xf]
  %v75 = vld [vmem:[%s1 + $0x98] sm:$0xf]
  %v76 = vld [vmem:[%s1 + $0x9c] sm:$0xf]
  %v77 = vld [vmem:[%s1 + $0xa0] sm:$0xf]
  %v78 = vld [vmem:[%s1 + $0xa4] sm:$0xf]
  %v79 = vld [vmem:[%s1 + $0xa8] sm:$0xf]
  %v80 = vld [vmem:[%s1 + $0xac] sm:$0xf]
  %v81 = vld [vmem:[%s1 + $0xb0] sm:$0xf]
  %v82 = vld [vmem:[%s1 + $0xb4] sm:$0xf]
  %v83 = vld [vmem:[%s1 + $0xb8] sm:$0xf]
  %v84 = vld [vmem:[%s1 + $0xbc] sm:$0xf]
  %v85 = vld [vmem:[%s1 + $0xc0] sm:$0xf]
  %v86 = vld [vmem:[%s1 + $0xc4] sm:$0xf]
  %v87 = vld [vmem:[%s1 + $0xc8] sm:$0xf]
  %v88 = vld [vmem:[%s1 + $0xcc] sm:$0xf]
  %v89 = vld [vmem:[%s1 + $0xd0] sm:$0xf]
  %v90 = vld [vmem:[%s1 + $0xd4] sm:$0xf]
  %v91 = vld [vmem:[%s1 + $0xd8] sm:$0xf]
  %v92 = vld [vmem:[%s1 + $0xdc] sm:$0xf]
  %v93 = vld [vmem:[%s1 + $0xe0] sm:$0xf]
  %v94 = vld [vmem:[%s1 + $0xe4] sm:$0xf]
  %v95 = vld [vmem:[%s1 + $0xe8] sm:$0xf]
  %v96 = vld [vmem:[%s1 + $0xec] sm:$0xf]
  %v97 = vld [vmem:[%s1 + $0xf0] sm:$0xf]
  %v98 = vld [vmem:[%s1 + $0xf4] sm:$0xf]
  %v99 = vld [vmem:[%s1 + $0xf8] sm:$0xf]
  %v100 = vld [vmem:[%s1 + $0xfc] sm:$0xf]
  %v101 = vld [vmem:[%s1 + $0x100] sm:$0xf]
  %v102 = vld [vmem:[%s1 + $0x104] sm:$0xf]
  %v103 = vld [vmem:[%s1 + $0x108] sm:$0xf]
  %v104 = vld [vmem:[%s1 + $0x10c] sm:$0xf]
  %v105 = vld [vmem:[%s1 + $0x110] sm:$0xf]
  %v106 = vld [vmem:[%s1 + $0x114] sm:$0xf]
  %v107 = vld [vmem:[%s1 + $0x118] sm:$0xf]
  %v108 = vld [vmem:[%s1 + $0x11c] sm:$0xf]
  %v109 = vld [vmem:[%s1 + $0x120] sm:$0xf]
  %v110 = vld [vmem:[%s1 + $0x124] sm:$0xf]
  %v111 = vld [vmem:[%s1 + $0x128] sm:$0xf]
  %v112 = vld [vmem:[%s1 + $0x12c] sm:$0xf]
  %v113 = vld [vmem:[%s1 + $0x130] sm:$0xf]
  %v114 = vld [vmem:[%s1 + $0x134] sm:$0xf]
  %v115 = vld [vmem:[%s1 + $0x138] sm:$0xf]
  %v116 = vld [vmem:[%s1 + $0x13c] sm:$0xf]
  %v117 = vld [vmem:[%s1 + $0x140] sm:$0xf]
  %v118 = vld [vmem:[%s1 + $0x144] sm:$0xf]
  %v119 = vld [vmem:[%s1 + $0x148] sm:$0xf]
  %v120 = vld [vmem:[%s1 + $0x14c] sm:$0xf]
  %v121 = vld [vmem:[%s1 + $0x150] sm:$0xf]
  %v122 = vld [vmem:[%s1 + $0x154] sm:$0xf]
  %v123 = vld [vmem:[%s1 + $0x158] sm:$0xf]
  %v124 = vld [vmem:[%s1 + $0x15c] sm:$0xf]
  %v125 = vld [vmem:[%s1 + $0x160] sm:$0xf]
  %v126 = vld [vmem:[%s1 + $0x164] sm:$0xf]
  %v127 = vld [vmem:[%s1 + $0x168] sm:$0xf]
  %v128 = vld [vmem:[%s1 + $0x16c] sm:$0xf]
  %v129 = vld [vmem:[%s1 + $0x170] sm:$0xf]
  %v130 = vld [vmem:[%s1 + $0x174] sm:$0xf]
  %v131 = vld [vmem:[%s1 + $0x178] sm:$0xf]
  %v132 = vld [vmem:[%s1 + $0x17c] sm:$0xf]
  %v133 = vld [vmem:[%s1 + $0x180] sm:$0xf]
  %v134 = vld [vmem:[%s1 + $0x184] sm:$0xf]
  %v135 = vld [vmem:[%s1 + $0x188] sm:$0xf]
  %v136 = vld [vmem:[%s1 + $0x18c] sm:$0xf]
  %v137 = vld [vmem:[%s1 + $0x190] sm:$0xf]
  %v138 = vld [vmem:[%s1 + $0x194] sm:$0xf]
  %v139 = vld [vmem:[%s1 + $0x198] sm:$0xf]
  %v140 = vld [vmem:[%s1 + $0x19c] sm:$0xf]
  %v141 = vld [vmem:[%s1 + $0x1a0] sm:$0xf]
  %v142 = vld [vmem:[%s1 + $0x1a4] sm:$0xf]
  %v143 = vld [vmem:[%s1 + $0x1a8] sm:$0xf]
  %v144 = vld [vmem:[%s1 + $0x1ac] sm:$0xf]
  %v145 = vld [vmem:[%s1 + $0x1b0] sm:$0xf]
  %v146 = vld [vmem:[%s1 + $0x1b4] sm:$0xf]
  %v147 = vld [vmem:[%s1 + $0x1b8] sm:$0xf]
  %v148 = vld [vmem:[%s1 + $0x1bc] sm:$0xf]
  %v149 = vld [vmem:[%s1 + $0x1c0] sm:$0xf]
  %v150 = vld [vmem:[%s1 + $0x1c4] sm:$0xf]
  %v151 = vld [vmem:[%s1 + $0x1c8] sm:$0xf]
  %v152 = vld [vmem:[%s1 + $0x1cc] sm:$0xf]
  %v153 = vld [vmem:[%s1 + $0x1d0] sm:$0xf]
  %v154 = vld [vmem:[%s1 + $0x1d4] sm:$0xf]
  %v155 = vld [vmem:[%s1 + $0x1d8] sm:$0xf]
  %v156 = vld [vmem:[%s1 + $0x1dc] sm:$0xf]
  %v157 = vld [vmem:[%s1 + $0x1e0] sm:$0xf]
  %v158 = vld [vmem:[%s1 + $0x1e4] sm:$0xf]
  %v159 = vld [vmem:[%s1 + $0x1e8] sm:$0xf]
  %v160 = vld [vmem:[%s1 + $0x1ec] sm:$0xf]
  %v161 = vld [vmem:[%s1 + $0x1f0] sm:$0xf]
  %v162 = vld [vmem:[%s1 + $0x1f4] sm:$0xf]
  %v163 = vld [vmem:[%s1 + $0x1f8] sm:$0xf]
  %v164 = vld [vmem:[%s1 + $0x1fc] sm:$0xf]
  %v165 = vld [vmem:[%s1 + $0x200] sm:$0xf]
  %v166 = vld [vmem:[%s1 + $0x204] sm:$0xf]
  %v167 = vld [vmem:[%s1 + $0x208] sm:$0xf]
  %v168 = vld [vmem:[%s1 + $0x20c] sm:$0xf]
  %v169 = vld [vmem:[%s1 + $0x210] sm:$0xf]
  %v170 = vld [vmem:[%s1 + $0x214] sm:$0xf]
  %v171 = vld [vmem:[%s1 + $0x218] sm:$0xf]
  %v172 = vld [vmem:[%s1 + $0x21c] sm:$0xf]
  %v173 = vld [vmem:[%s1 + $0x220] sm:$0xf]
  %v174 = vld [vmem:[%s1 + $0x224] sm:$0xf]
  %v175 = vld [vmem:[%s1 + $0x228] sm:$0xf]
  %v176 = vld [vmem:[%s1 + $0x22c] sm:$0xf]
  %v177 = vld [vmem:[%s1 + $0x230] sm:$0xf]
  %v178 = vld [vmem:[%s1 + $0x234] sm:$0xf]
  %v179 = vld [vmem:[%s1 + $0x238] sm:$0xf]
  %v180 = vld [vmem:[%s1 + $0x23c] sm:$0xf]
  %v201 = vunpack.c.l.b16 %v17
  %v202 = vunpack.c.h.b16 %v17
  %v203 = vunpack.c.l.b16 %v18
  %v204 = vunpack.c.h.b16 %v18
  %v205 = vunpack.c.l.b16 %v19
  %v206 = vunpack.c.h.b16 %v19
  %v207 = vunpack.c.l.b16 %v20
  %v208 = vunpack.c.h.b16 %v20
  %v209 = vunpack.c.l.b16 %v21
  %v210 = vunpack.c.l.b16 %v22
  %v211 = vunpack.c.h.b16 %v22
  %v212 = vunpack.c.l.b16 %v23
  %v213 = vunpack.c.h.b16 %v23
  %v214 = vunpack.c.l.b16 %v24
  %v215 = vunpack.c.h.b16 %v24
  %v216 = vunpack.c.l.b16 %v25
  %v217 = vunpack.c.h.b16 %v25
  %v218 = vunpack.c.l.b16 %v26
  %v219 = vunpack.c.l.b16 %v27
  %v220 = vunpack.c.h.b16 %v27
  %v221 = vunpack.c.l.b16 %v28
  %v222 = vunpack.c.h.b16 %v28
  %v223 = vunpack.c.l.b16 %v29
  %v224 = vunpack.c.h.b16 %v29
  %v225 = vunpack.c.l.b16 %v30
  %v226 = vunpack.c.h.b16 %v30
  %v227 = vunpack.c.l.b16 %v31
  %v228 = vunpack.c.l.b16 %v32
  %v229 = vunpack.c.h.b16 %v32
  %v230 = vunpack.c.l.b16 %v33
  %v231 = vunpack.c.h.b16 %v33
  %v232 = vunpack.c.l.b16 %v34
  %v233 = vunpack.c.h.b16 %v34
  %v234 = vunpack.c.l.b16 %v35
  %v235 = vunpack.c.h.b16 %v35
  %v236 = vunpack.c.l.b16 %v36
  %v237 = vpack.c.b16 %v210, %v201
  %v238 = vpack.c.b16 %v211, %v202
  %v239 = vpack.c.b16 %v212, %v203
  %v240 = vpack.c.b16 %v213, %v204
  %v241 = vpack.c.b16 %v214, %v205
  %v242 = vpack.c.b16 %v215, %v206
  %v243 = vpack.c.b16 %v216, %v207
  %v244 = vpack.c.b16 %v217, %v208
  %v245 = vpack.c.b16 %v218, %v209
  %v246 = vpack.c.b16 %v228, %v219
  %v247 = vpack.c.b16 %v229, %v220
  %v248 = vpack.c.b16 %v230, %v221
  %v249 = vpack.c.b16 %v231, %v222
  %v250 = vpack.c.b16 %v232, %v223
  %v251 = vpack.c.b16 %v233, %v224
  %v252 = vpack.c.b16 %v234, %v225
  %v253 = vpack.c.b16 %v235, %v226
  %v254 = vpack.c.b16 %v236, %v227
  %v417 = vunpack.c.l.b16 %v37
  %v418 = vunpack.c.l.b16 %v38
  %v419 = vunpack.c.l.b16 %v39
  %v420 = vunpack.c.l.b16 %v40
  %v421 = vunpack.c.l.b16 %v41
  %v422 = vunpack.c.l.b16 %v42
  %v423 = vunpack.c.l.b16 %v43
  %v424 = vunpack.c.l.b16 %v44
  %v425 = vunpack.c.l.b16 %v45
  %v426 = vunpack.c.l.b16 %v46
  %v427 = vunpack.c.l.b16 %v47
  %v428 = vunpack.c.l.b16 %v48
  %v429 = vunpack.c.l.b16 %v49
  %v430 = vunpack.c.l.b16 %v50
  %v431 = vunpack.c.l.b16 %v51
  %v432 = vunpack.c.l.b16 %v52
  %v433 = vunpack.c.l.b16 %v53
  %v434 = vunpack.c.l.b16 %v54
  %v435 = vunpack.c.l.b16 %v55
  %v436 = vunpack.c.l.b16 %v56
  %v437 = vunpack.c.l.b16 %v57
  %v438 = vunpack.c.l.b16 %v58
  %v439 = vunpack.c.l.b16 %v59
  %v440 = vunpack.c.l.b16 %v60
  %v441 = vunpack.c.l.b16 %v61
  %v442 = vunpack.c.l.b16 %v62
  %v443 = vunpack.c.l.b16 %v63
  %v444 = vunpack.c.l.b16 %v64
  %v445 = vunpack.c.l.b16 %v65
  %v446 = vunpack.c.l.b16 %v66
  %v447 = vunpack.c.l.b16 %v67
  %v448 = vunpack.c.l.b16 %v68
  %v449 = vunpack.c.l.b16 %v69
  %v450 = vunpack.c.l.b16 %v70
  %v451 = vunpack.c.l.b16 %v71
  %v452 = vunpack.c.l.b16 %v72
  %v453 = vunpack.c.l.b16 %v73
  %v454 = vunpack.c.l.b16 %v74
  %v455 = vunpack.c.l.b16 %v75
  %v456 = vunpack.c.l.b16 %v76
  %v457 = vunpack.c.l.b16 %v77
  %v458 = vunpack.c.l.b16 %v78
  %v459 = vunpack.c.l.b16 %v79
  %v460 = vunpack.c.l.b16 %v80
  %v461 = vunpack.c.l.b16 %v81
  %v462 = vunpack.c.l.b16 %v82
  %v463 = vunpack.c.l.b16 %v83
  %v464 = vunpack.c.l.b16 %v84
  %v465 = vunpack.c.l.b16 %v85
  %v466 = vunpack.c.l.b16 %v86
  %v467 = vunpack.c.l.b16 %v87
  %v468 = vunpack.c.l.b16 %v88
  %v469 = vunpack.c.l.b16 %v89
  %v470 = vunpack.c.l.b16 %v90
  %v471 = vunpack.c.l.b16 %v91
  %v472 = vunpack.c.l.b16 %v92
  %v473 = vunpack.c.l.b16 %v93
  %v474 = vunpack.c.l.b16 %v94
  %v475 = vunpack.c.l.b16 %v95
  %v476 = vunpack.c.l.b16 %v96
  %v477 = vunpack.c.l.b16 %v97
  %v478 = vunpack.c.l.b16 %v98
  %v479 = vunpack.c.l.b16 %v99
  %v480 = vunpack.c.l.b16 %v100
  %v481 = vunpack.c.l.b16 %v101
  %v482 = vunpack.c.l.b16 %v102
  %v483 = vunpack.c.l.b16 %v103
  %v484 = vunpack.c.l.b16 %v104
  %v485 = vunpack.c.l.b16 %v105
  %v486 = vunpack.c.l.b16 %v106
  %v487 = vunpack.c.l.b16 %v107
  %v488 = vunpack.c.l.b16 %v108
  %v489 = vunpack.c.l.b16 %v109
  %v490 = vunpack.c.l.b16 %v110
  %v491 = vunpack.c.l.b16 %v111
  %v492 = vunpack.c.l.b16 %v112
  %v493 = vunpack.c.l.b16 %v113
  %v494 = vunpack.c.l.b16 %v114
  %v495 = vunpack.c.l.b16 %v115
  %v496 = vunpack.c.l.b16 %v116
  %v497 = vunpack.c.l.b16 %v117
  %v498 = vunpack.c.l.b16 %v118
  %v499 = vunpack.c.l.b16 %v119
  %v500 = vunpack.c.l.b16 %v120
  %v501 = vunpack.c.l.b16 %v121
  %v502 = vunpack.c.l.b16 %v122
  %v503 = vunpack.c.l.b16 %v123
  %v504 = vunpack.c.l.b16 %v124
  %v505 = vunpack.c.l.b16 %v125
  %v506 = vunpack.c.l.b16 %v126
  %v507 = vunpack.c.l.b16 %v127
  %v508 = vunpack.c.l.b16 %v128
  %v509 = vunpack.c.l.b16 %v129
  %v510 = vunpack.c.l.b16 %v130
  %v511 = vunpack.c.l.b16 %v131
  %v512 = vunpack.c.l.b16 %v132
  %v513 = vunpack.c.l.b16 %v133
  %v514 = vunpack.c.l.b16 %v134
  %v515 = vunpack.c.l.b16 %v135
  %v516 = vunpack.c.l.b16 %v136
  %v517 = vunpack.c.l.b16 %v137
  %v518 = vunpack.c.l.b16 %v138
  %v519 = vunpack.c.l.b16 %v139
  %v520 = vunpack.c.l.b16 %v140
  %v521 = vunpack.c.l.b16 %v141
  %v522 = vunpack.c.l.b16 %v142
  %v523 = vunpack.c.l.b16 %v143
  %v524 = vunpack.c.l.b16 %v144
  %v525 = vunpack.c.l.b16 %v145
  %v526 = vunpack.c.l.b16 %v146
  %v527 = vunpack.c.l.b16 %v147
  %v528 = vunpack.c.l.b16 %v148
  %v529 = vunpack.c.l.b16 %v149
  %v530 = vunpack.c.l.b16 %v150
  %v531 = vunpack.c.l.b16 %v151
  %v532 = vunpack.c.l.b16 %v152
  %v533 = vunpack.c.l.b16 %v153
  %v534 = vunpack.c.l.b16 %v154
  %v535 = vunpack.c.l.b16 %v155
  %v536 = vunpack.c.l.b16 %v156
  %v537 = vunpack.c.l.b16 %v157
  %v538 = vunpack.c.l.b16 %v158
  %v539 = vunpack.c.l.b16 %v159
  %v540 = vunpack.c.l.b16 %v160
  %v541 = vunpack.c.l.b16 %v161
  %v542 = vunpack.c.l.b16 %v162
  %v543 = vunpack.c.l.b16 %v163
  %v544 = vunpack.c.l.b16 %v164
  %v545 = vunpack.c.l.b16 %v165
  %v546 = vunpack.c.l.b16 %v166
  %v547 = vunpack.c.l.b16 %v167
  %v548 = vunpack.c.l.b16 %v168
  %v549 = vunpack.c.l.b16 %v169
  %v550 = vunpack.c.l.b16 %v170
  %v551 = vunpack.c.l.b16 %v171
  %v552 = vunpack.c.l.b16 %v172
  %v553 = vunpack.c.l.b16 %v173
  %v554 = vunpack.c.l.b16 %v174
  %v555 = vunpack.c.l.b16 %v175
  %v556 = vunpack.c.l.b16 %v176
  %v557 = vunpack.c.l.b16 %v177
  %v558 = vunpack.c.l.b16 %v178
  %v559 = vunpack.c.l.b16 %v179
  %v560 = vunpack.c.l.b16 %v180
  %v561 = vpack.c.b16 %v418, %v417
  %v562 = vpack.c.b16 %v420, %v419
  %v563 = vpack.c.b16 %v422, %v421
  %v564 = vpack.c.b16 %v424, %v423
  %v565 = vpack.c.b16 %v426, %v425
  %v566 = vpack.c.b16 %v428, %v427
  %v567 = vpack.c.b16 %v430, %v429
  %v568 = vpack.c.b16 %v432, %v431
  %v569 = vpack.c.b16 %v434, %v433
  %v570 = vpack.c.b16 %v436, %v435
  %v571 = vpack.c.b16 %v438, %v437
  %v572 = vpack.c.b16 %v440, %v439
  %v573 = vpack.c.b16 %v442, %v441
  %v574 = vpack.c.b16 %v444, %v443
  %v575 = vpack.c.b16 %v446, %v445
  %v576 = vpack.c.b16 %v448, %v447
  %v577 = vpack.c.b16 %v450, %v449
  %v578 = vpack.c.b16 %v452, %v451
  %v579 = vpack.c.b16 %v454, %v453
  %v580 = vpack.c.b16 %v456, %v455
  %v581 = vpack.c.b16 %v458, %v457
  %v582 = vpack.c.b16 %v460, %v459
  %v583 = vpack.c.b16 %v462, %v461
  %v584 = vpack.c.b16 %v464, %v463
  %v585 = vpack.c.b16 %v466, %v465
  %v586 = vpack.c.b16 %v468, %v467
  %v587 = vpack.c.b16 %v470, %v469
  %v588 = vpack.c.b16 %v472, %v471
  %v589 = vpack.c.b16 %v474, %v473
  %v590 = vpack.c.b16 %v476, %v475
  %v591 = vpack.c.b16 %v478, %v477
  %v592 = vpack.c.b16 %v480, %v479
  %v593 = vpack.c.b16 %v482, %v481
  %v594 = vpack.c.b16 %v484, %v483
  %v595 = vpack.c.b16 %v486, %v485
  %v596 = vpack.c.b16 %v488, %v487
  %v597 = vpack.c.b16 %v490, %v489
  %v598 = vpack.c.b16 %v492, %v491
  %v599 = vpack.c.b16 %v494, %v493
  %v600 = vpack.c.b16 %v496, %v495
  %v601 = vpack.c.b16 %v498, %v497
  %v602 = vpack.c.b16 %v500, %v499
  %v603 = vpack.c.b16 %v502, %v501
  %v604 = vpack.c.b16 %v504, %v503
  %v605 = vpack.c.b16 %v506, %v505
  %v606 = vpack.c.b16 %v508, %v507
  %v607 = vpack.c.b16 %v510, %v509
  %v608 = vpack.c.b16 %v512, %v511
  %v609 = vpack.c.b16 %v514, %v513
  %v610 = vpack.c.b16 %v516, %v515
  %v611 = vpack.c.b16 %v518, %v517
  %v612 = vpack.c.b16 %v520, %v519
  %v613 = vpack.c.b16 %v522, %v521
  %v614 = vpack.c.b16 %v524, %v523
  %v615 = vpack.c.b16 %v526, %v525
  %v616 = vpack.c.b16 %v528, %v527
  %v617 = vpack.c.b16 %v530, %v529
  %v618 = vpack.c.b16 %v532, %v531
  %v619 = vpack.c.b16 %v534, %v533
  %v620 = vpack.c.b16 %v536, %v535
  %v621 = vpack.c.b16 %v538, %v537
  %v622 = vpack.c.b16 %v540, %v539
  %v623 = vpack.c.b16 %v542, %v541
  %v624 = vpack.c.b16 %v544, %v543
  %v625 = vpack.c.b16 %v546, %v545
  %v626 = vpack.c.b16 %v548, %v547
  %v627 = vpack.c.b16 %v550, %v549
  %v628 = vpack.c.b16 %v552, %v551
  %v629 = vpack.c.b16 %v554, %v553
  %v630 = vpack.c.b16 %v556, %v555
  %v631 = vpack.c.b16 %v558, %v557
  %v632 = vpack.c.b16 %v560, %v559
  %705 = vmatpush.bf16.msra.mxu0 %v568
  %706 = vmatpush.bf16.msra.mxu0 %v567
  %707 = vmatpush.bf16.msra.mxu0 %v566
  %708 = vmatpush.bf16.msra.mxu0 %v565
  %709 = vmatpush.bf16.msra.mxu0 %v564
  %710 = vmatpush.bf16.msra.mxu0 %v563
  %711 = vmatpush.bf16.msra.mxu0 %v562
  %712 = vmatpush.bf16.msra.mxu0 %v561
  %713 = vmatmul.bf16.gmra.mxu0 %v237
  %v714 = vpop.f32.mrf.mxu0
  %v715 = vadd.f32 0.0, %v714
  %v716 = vpop.f32.mrf.mxu0
  %v717 = vadd.f32 0.0, %v716
  %718 = vmatmul.bf16.gmra.mxu0 %v246
  %v719 = vpop.f32.mrf.mxu0
  %v720 = vadd.f32 0.0, %v719
  %v721 = vpop.f32.mrf.mxu0
  %v722 = vadd.f32 0.0, %v721
  %723 = vdwg.mxu0
  %724 = vmatpush.bf16.msra.mxu0 %v576
  %725 = vmatpush.bf16.msra.mxu0 %v575
  %726 = vmatpush.bf16.msra.mxu0 %v574
  %727 = vmatpush.bf16.msra.mxu0 %v573
  %728 = vmatpush.bf16.msra.mxu0 %v572
  %729 = vmatpush.bf16.msra.mxu0 %v571
  %730 = vmatpush.bf16.msra.mxu0 %v570
  %731 = vmatpush.bf16.msra.mxu0 %v569
  %732 = vmatmul.bf16.gmra.mxu0 %v238
  %v733 = vpop.f32.mrf.mxu0
  %v734 = vadd.f32 %v715, %v733
  %v735 = vpop.f32.mrf.mxu0
  %v736 = vadd.f32 %v717, %v735
  %737 = vmatmul.bf16.gmra.mxu0 %v247
  %v738 = vpop.f32.mrf.mxu0
  %v739 = vadd.f32 %v720, %v738
  %v740 = vpop.f32.mrf.mxu0
  %v741 = vadd.f32 %v722, %v740
  %742 = vdwg.mxu0
  %743 = vmatpush.bf16.msra.mxu0 %v584
  %744 = vmatpush.bf16.msra.mxu0 %v583
  %745 = vmatpush.bf16.msra.mxu0 %v582
  %746 = vmatpush.bf16.msra.mxu0 %v581
  %747 = vmatpush.bf16.msra.mxu0 %v580
  %748 = vmatpush.bf16.msra.mxu0 %v579
  %749 = vmatpush.bf16.msra.mxu0 %v578
  %750 = vmatpush.bf16.msra.mxu0 %v577
  %751 = vmatmul.bf16.gmra.mxu0 %v239
  %v752 = vpop.f32.mrf.mxu0
  %v753 = vadd.f32 %v734, %v752
  %v754 = vpop.f32.mrf.mxu0
  %v755 = vadd.f32 %v736, %v754
  %756 = vmatmul.bf16.gmra.mxu0 %v248
  %v757 = vpop.f32.mrf.mxu0
  %v758 = vadd.f32 %v739, %v757
  %v759 = vpop.f32.mrf.mxu0
  %v760 = vadd.f32 %v741, %v759
  %761 = vdwg.mxu0
  %762 = vmatpush.bf16.msra.mxu0 %v592
  %763 = vmatpush.bf16.msra.mxu0 %v591
  %764 = vmatpush.bf16.msra.mxu0 %v590
  %765 = vmatpush.bf16.msra.mxu0 %v589
  %766 = vmatpush.bf16.msra.mxu0 %v588
  %767 = vmatpush.bf16.msra.mxu0 %v587
  %768 = vmatpush.bf16.msra.mxu0 %v586
  %769 = vmatpush.bf16.msra.mxu0 %v585
  %770 = vmatmul.bf16.gmra.mxu0 %v240
  %v771 = vpop.f32.mrf.mxu0
  %v772 = vadd.f32 %v753, %v771
  %v773 = vpop.f32.mrf.mxu0
  %v774 = vadd.f32 %v755, %v773
  %775 = vmatmul.bf16.gmra.mxu0 %v249
  %v776 = vpop.f32.mrf.mxu0
  %v777 = vadd.f32 %v758, %v776
  %v778 = vpop.f32.mrf.mxu0
  %v779 = vadd.f32 %v760, %v778
  %780 = vdwg.mxu0
  %781 = vmatpush.bf16.msra.mxu0 %v600
  %782 = vmatpush.bf16.msra.mxu0 %v599
  %783 = vmatpush.bf16.msra.mxu0 %v598
  %784 = vmatpush.bf16.msra.mxu0 %v597
  %785 = vmatpush.bf16.msra.mxu0 %v596
  %786 = vmatpush.bf16.msra.mxu0 %v595
  %787 = vmatpush.bf16.msra.mxu0 %v594
  %788 = vmatpush.bf16.msra.mxu0 %v593
  %789 = vmatmul.bf16.gmra.mxu0 %v241
  %v790 = vpop.f32.mrf.mxu0
  %v791 = vadd.f32 %v772, %v790
  %v792 = vpop.f32.mrf.mxu0
  %v793 = vadd.f32 %v774, %v792
  %794 = vmatmul.bf16.gmra.mxu0 %v250
  %v795 = vpop.f32.mrf.mxu0
  %v796 = vadd.f32 %v777, %v795
  %v797 = vpop.f32.mrf.mxu0
  %v798 = vadd.f32 %v779, %v797
  %799 = vdwg.mxu0
  %800 = vmatpush.bf16.msra.mxu0 %v608
  %801 = vmatpush.bf16.msra.mxu0 %v607
  %802 = vmatpush.bf16.msra.mxu0 %v606
  %803 = vmatpush.bf16.msra.mxu0 %v605
  %804 = vmatpush.bf16.msra.mxu0 %v604
  %805 = vmatpush.bf16.msra.mxu0 %v603
  %806 = vmatpush.bf16.msra.mxu0 %v602
  %807 = vmatpush.bf16.msra.mxu0 %v601
  %808 = vmatmul.bf16.gmra.mxu0 %v242
  %v809 = vpop.f32.mrf.mxu0
  %v810 = vadd.f32 %v791, %v809
  %v811 = vpop.f32.mrf.mxu0
  %v812 = vadd.f32 %v793, %v811
  %813 = vmatmul.bf16.gmra.mxu0 %v251
  %v814 = vpop.f32.mrf.mxu0
  %v815 = vadd.f32 %v796, %v814
  %v816 = vpop.f32.mrf.mxu0
  %v817 = vadd.f32 %v798, %v816
  %818 = vdwg.mxu0
  %819 = vmatpush.bf16.msra.mxu0 %v616
  %820 = vmatpush.bf16.msra.mxu0 %v615
  %821 = vmatpush.bf16.msra.mxu0 %v614
  %822 = vmatpush.bf16.msra.mxu0 %v613
  %823 = vmatpush.bf16.msra.mxu0 %v612
  %824 = vmatpush.bf16.msra.mxu0 %v611
  %825 = vmatpush.bf16.msra.mxu0 %v610
  %826 = vmatpush.bf16.msra.mxu0 %v609
  %827 = vmatmul.bf16.gmra.mxu0 %v243
  %v828 = vpop.f32.mrf.mxu0
  %v829 = vadd.f32 %v810, %v828
  %v830 = vpop.f32.mrf.mxu0
  %v831 = vadd.f32 %v812, %v830
  %832 = vmatmul.bf16.gmra.mxu0 %v252
  %v833 = vpop.f32.mrf.mxu0
  %v834 = vadd.f32 %v815, %v833
  %v835 = vpop.f32.mrf.mxu0
  %v836 = vadd.f32 %v817, %v835
  %837 = vdwg.mxu0
  %838 = vmatpush.bf16.msra.mxu0 %v624
  %839 = vmatpush.bf16.msra.mxu0 %v623
  %840 = vmatpush.bf16.msra.mxu0 %v622
  %841 = vmatpush.bf16.msra.mxu0 %v621
  %842 = vmatpush.bf16.msra.mxu0 %v620
  %843 = vmatpush.bf16.msra.mxu0 %v619
  %844 = vmatpush.bf16.msra.mxu0 %v618
  %845 = vmatpush.bf16.msra.mxu0 %v617
  %846 = vmatmul.bf16.gmra.mxu0 %v244
  %v847 = vpop.f32.mrf.mxu0
  %v848 = vadd.f32 %v829, %v847
  %v849 = vpop.f32.mrf.mxu0
  %v850 = vadd.f32 %v831, %v849
  %851 = vmatmul.bf16.gmra.mxu0 %v253
  %v852 = vpop.f32.mrf.mxu0
  %v853 = vadd.f32 %v834, %v852
  %v854 = vpop.f32.mrf.mxu0
  %v855 = vadd.f32 %v836, %v854
  %856 = vdwg.mxu0
  %857 = vmatpush.bf16.msra.mxu0 %v632
  %858 = vmatpush.bf16.msra.mxu0 %v631
  %859 = vmatpush.bf16.msra.mxu0 %v630
  %860 = vmatpush.bf16.msra.mxu0 %v629
  %861 = vmatpush.bf16.msra.mxu0 %v628
  %862 = vmatpush.bf16.msra.mxu0 %v627
  %863 = vmatpush.bf16.msra.mxu0 %v626
  %864 = vmatpush.bf16.msra.mxu0 %v625
  %865 = vmatmul.bf16.gmra.mxu0 %v245
  %v866 = vpop.f32.mrf.mxu0
  %v867 = vadd.f32 %v848, %v866
  %v868 = vpop.f32.mrf.mxu0
  %v869 = vadd.f32 %v850, %v868
  %870 = vmatmul.bf16.gmra.mxu0 %v254
  %v871 = vpop.f32.mrf.mxu0
  %v872 = vadd.f32 %v853, %v871
  %v873 = vpop.f32.mrf.mxu0
  %v874 = vadd.f32 %v855, %v873
  %875 = vdwg.mxu0
  %v876 = vadd.f32 %v867, %v869
  %v877 = vadd.f32 %v876, %v872
  %v878 = vadd.f32 %v877, %v874
  %v879 = vrot.slane %v878, 4
  %v880 = vadd.f32 %v878, %v879
  %v881 = vrot.slane %v880, 2
  %v882 = vadd.f32 %v880, %v881
  %v883 = vrot.slane %v882, 1
  %v884 = vadd.f32 %v882, %v883
  %v885 = vrcp.pop 32.0
  %v886 = vmul.f32 32.0, %v885
  %v887 = vsub.f32 1.0, %v886
  %v888 = vmul.f32 %v885, %v887
  %v889 = vadd.f32 %v885, %v888
  %vm890 = vweird.f32 %v885
  %v891 = vsel %vm890, %v885, %v889
  %v892 = vmul.f32 %v884, %v891
  %v893 = vsub.f32 %v867, %v892
  %v894 = vsub.f32 %v869, %v892
  %v895 = vsub.f32 %v872, %v892
  %v896 = vsub.f32 %v874, %v892
  %v897 = vmul.f32 %v893, %v893
  %v898 = vmul.f32 %v894, %v894
  %v899 = vmul.f32 %v895, %v895
  %v900 = vmul.f32 %v896, %v896
  %v901 = vadd.f32 %v897, %v898
  %v902 = vadd.f32 %v901, %v899
  %v903 = vadd.f32 %v902, %v900
  %v904 = vrot.slane %v903, 4
  %v905 = vadd.f32 %v903, %v904
  %v906 = vrot.slane %v905, 2
  %v907 = vadd.f32 %v905, %v906
  %v908 = vrot.slane %v907, 1
  %v909 = vadd.f32 %v907, %v908
  %v910 = vmul.f32 %v909, %v891
  %v911 = vld [vmem:[%s2] sm:$0x1]
  %v912 = vadd.f32 %v910, 1e-05
  %v913 = vrsqrt.pop %v912
  %v914 = vmul.f32 %v913, %v912
  %v915 = vmul.f32 %v914, %v913
  %v916 = vmul.f32 0.5, %v915
  %v917 = vsub.f32 1.5, %v916
  %v918 = vmul.f32 %v913, %v917
  %vm919 = vweird.f32 %v912
  %vm920 = vweird.f32 %v913
  %vm921 = vmor %vm919, %vm920
  %v922 = vsel %vm921, %v913, %v918
  %v923 = vmul.f32 %v911, %v922
  %v925 = vperm.slane %v923, 0
  %v927 = vmul.f32 %v893, %v925
  %v928 = vmul.f32 %v894, %v925
  %v929 = vmul.f32 %v895, %v925
  %v930 = vmul.f32 %v896, %v925
  %v931 = vld [vmem:[%s3] sm:$0x1]
  %v933 = vperm.slane %v931, 0
  %v935 = vadd.f32 %v927, %v933
  %v936 = vadd.f32 %v928, %v933
  %v937 = vadd.f32 %v929, %v933
  %v938 = vadd.f32 %v930, %v933
  %vm939 = vcmp.gt.f32.partialorder %v935, 0.0
  %vm940 = vcmp.gt.f32.partialorder %v936, 0.0
  %vm941 = vcmp.gt.f32.partialorder %v937, 0.0
  %vm942 = vcmp.gt.f32.partialorder %v938, 0.0
  %v943 = vmul.f32 %v935, 0.1
  %v944 = vmul.f32 %v936, 0.1
  %v945 = vmul.f32 %v937, 0.1
  %v946 = vmul.f32 %v938, 0.1
  %v947 = vsel %vm939, %v935, %v943
  %v948 = vsel %vm940, %v936, %v944
  %v949 = vsel %vm941, %v937, %v945
  %v950 = vsel %vm942, %v938, %v946
  %951 = vst [vmem:[%s4] sm:$0xff] %v947
  %952 = vst [vmem:[%s4 + $0x8] sm:$0xff] %v948
  %953 = vst [vmem:[%s4 + $0x10] sm:$0xff] %v949
  %954 = vst [vmem:[%s4 + $0x18] sm:$0xff] %v950
  // Predicated region
  $region18: #{_lambda_.14} parent=0 // pred_check
    _
  $region19: #{_lambda_.14} parent=0 // pred_check_branch
    %956 = sbr.rel (0) target = $region21
  $region20: #{_lambda_.14} parent=0 // pred_region
    _
  $region21: #{_lambda_.14} parent=0 // pred_fallthru
    _
  // Predicated region
  $region22: #{_lambda_.14} parent=0 // pred_check
    _
  $region23: #{_lambda_.14} parent=0 // pred_check_branch
    %958 = sbr.rel (0) target = $region25
  $region24: #{_lambda_.14} parent=0 // pred_region
    _
  $region25: #{_lambda_.14} parent=0 // pred_fallthru
    _

// kernel: _lambda_.16
$region0: #{_lambda_.16}
  #allocation0 [shape = 'u32[]', space=smem, size = 0x4, offset = 0x4, fixed_abs, tag = 'smem constant byte address 0x4 - core index']
  #allocation1 [shape = 'u32[72,128]{1,0:T(1,128)}', space=vmem, size = 0x9000, scoped, tag = 'internal scratch']
  %s0 = inlined_call_operand.vmem [shape: bf16[32,128], index: 0, kind: input, shape index: {}]
  %s1 = inlined_call_operand.vmem [shape: bf16[128,128], index: 1, kind: input, shape index: {}]
  %s2 = inlined_call_operand.vmem [shape: f32[1,128], index: 2, kind: input, shape index: {}]
  %s3 = inlined_call_operand.vmem [shape: f32[32,128], index: 3, kind: output, shape index: {}]
  %s4 = sld [smem:[#allocation0]]
  $region45: #{_lambda_.16} parent=0
    _
  %s6 = ssub.s32 1, %s4
  %s7 = scalar_select 0, %s6, %s4
  loop: start=0, step=1, limit=4
  $region2: #{_lambda_.16} parent=0 // loop_pre_header
    _
  $region3: #{_lambda_.16} parent=0 // loop_header
    %s9 = sphi 0, %s13
    %p10 = scmp.ge.s32.totalorder %s9, 4
    %s19 = sphi 0, %s21
    %s22 = sphi 0, %s19
    %s23 = sphi 0, %s22
    %s39 = sphi 0, %s23
    %s43 = sphi 0, %s43
    %s45 = sphi 0, %s43
    %s46 = sphi 0, %s45
    %s60 = sphi 0, %s46
    %s64 = sphi 0, %s64
    %s66 = sphi 0, %s64
    %s67 = sphi 0, %s66
    %s81 = sphi 0, %s67
    %s87 = sphi 0, %s89
    %s90 = sphi 0, %s87
    %s91 = sphi 0, %s90
    %s107 = sphi 0, %s91
  $region4: #{_lambda_.16} parent=0 // loop_header_branch
    %12 = sbr.rel (%p10) target = $region8
  $region5: #{_lambda_.16} parent=0 // loop_body
    %s14 = ssub.s32 %s9, 1
    %s15 = ssub.s32 %s9, 2
    %s16 = sadd.s32 %s9, 1
    %s17 = ssub.s32 %s9, %s16
    %p18 = scmp.eq.s32.totalorder %s17, 0
    %s20 = sadd.s32 %s19, 1
    %s21 = scalar_select %p18, %s19, %s20
    %p24 = pneg %p18
    %p25 = scmp.eq.s32.totalorder %s9, 1
    %p26 = por %p24, %p25
    %p27 = scmp.ne.s32.totalorder %s19, %s22
    %p28 = scmp.eq.s32.totalorder %s9, 0
    %p29 = por %p27, %p28
    %p30 = scmp.ne.s32.totalorder %s19, %s22
    %p31 = scmp.eq.s32.totalorder %s14, 1
    %p32 = por %p30, %p31
    %p33 = scmp.ne.s32.totalorder %s22, %s23
    %p34 = scmp.eq.s32.totalorder %s14, 0
    %p35 = por %p33, %p34
    %p36 = scmp.ne.s32.totalorder %s22, %s23
    %p37 = scmp.eq.s32.totalorder %s15, 1
    %p38 = por %p36, %p37
    %p40 = scmp.ne.s32.totalorder %s23, %s39
    %p41 = scmp.eq.s32.totalorder %s15, 0
    %p42 = por %p40, %p41
    %s44 = sadd.s32 %s43, 1
    %p47 = scmp.eq.s32.totalorder %s9, 1
    %p48 = scmp.ne.s32.totalorder %s43, %s45
    %p49 = scmp.eq.s32.totalorder %s9, 0
    %p50 = por %p48, %p49
    %p51 = scmp.ne.s32.totalorder %s43, %s45
    %p52 = scmp.eq.s32.totalorder %s14, 1
    %p53 = por %p51, %p52
    %p54 = scmp.ne.s32.totalorder %s45, %s46
    %p55 = scmp.eq.s32.totalorder %s14, 0
    %p56 = por %p54, %p55
    %p57 = scmp.ne.s32.totalorder %s45, %s46
    %p58 = scmp.eq.s32.totalorder %s15, 1
    %p59 = por %p57, %p58
    %p61 = scmp.ne.s32.totalorder %s46, %s60
    %p62 = scmp.eq.s32.totalorder %s15, 0
    %p63 = por %p61, %p62
    %s65 = sadd.s32 %s64, 1
    %p68 = scmp.eq.s32.totalorder %s9, 1
    %p69 = scmp.ne.s32.totalorder %s64, %s66
    %p70 = scmp.eq.s32.totalorder %s9, 0
    %p71 = por %p69, %p70
    %p72 = scmp.ne.s32.totalorder %s64, %s66
    %p73 = scmp.eq.s32.totalorder %s14, 1
    %p74 = por %p72, %p73
    %p75 = scmp.ne.s32.totalorder %s66, %s67
    %p76 = scmp.eq.s32.totalorder %s14, 0
    %p77 = por %p75, %p76
    %p78 = scmp.ne.s32.totalorder %s66, %s67
    %p79 = scmp.eq.s32.totalorder %s15, 1
    %p80 = por %p78, %p79
    %p82 = scmp.ne.s32.totalorder %s67, %s81
    %p83 = scmp.eq.s32.totalorder %s15, 0
    %p84 = por %p82, %p83
    %s85 = ssub.s32 %s9, %s16
    %p86 = scmp.eq.s32.totalorder %s85, 0
    %s88 = sadd.s32 %s87, 1
    %s89 = scalar_select %p86, %s87, %s88
    %p92 = pneg %p86
    %p93 = scmp.eq.s32.totalorder %s9, 1
    %p94 = por %p92, %p93
    %p95 = scmp.ne.s32.totalorder %s87, %s90
    %p96 = scmp.eq.s32.totalorder %s9, 0
    %p97 = por %p95, %p96
    %p98 = scmp.ne.s32.totalorder %s87, %s90
    %p99 = scmp.eq.s32.totalorder %s14, 1
    %p100 = por %p98, %p99
    %p101 = scmp.ne.s32.totalorder %s90, %s91
    %p102 = scmp.eq.s32.totalorder %s14, 0
    %p103 = por %p101, %p102
    %p104 = scmp.ne.s32.totalorder %s90, %s91
    %p105 = scmp.eq.s32.totalorder %s15, 1
    %p106 = por %p104, %p105
    %p108 = scmp.ne.s32.totalorder %s91, %s107
    %p109 = scmp.eq.s32.totalorder %s15, 0
    %p110 = por %p108, %p109
    %p111 = scmp.le.s32.totalorder 1, %s9
    %p112 = scmp.lt.s32.totalorder %s9, 3
    %p113 = pnand %p111, %p112
    %p114 = pneg %p113
    // Predicated region
    $region9: #{_lambda_.16} parent=5 // pred_check
      _
    $region10: #{_lambda_.16} parent=5 // pred_check_branch
      %116 = sbr.rel (%p113) target = $region12
    $region11: #{_lambda_.16} parent=5 // pred_region
      %s117 = ssub.s32 %s9, 1
      // Predicated region
      $region13: #{_lambda_.16} parent=11 // pred_check
        %p118 = pneg %p56
      $region14: #{_lambda_.16} parent=11 // pred_check_branch
        %120 = sbr.rel (%p118) target = $region16
      $region15: #{_lambda_.16} parent=11 // pred_region
        _
      $region16: #{_lambda_.16} parent=11 // pred_fallthru
        _
      // Predicated region
      $region17: #{_lambda_.16} parent=11 // pred_check
        %p121 = pneg %p77
      $region18: #{_lambda_.16} parent=11 // pred_check_branch
        %123 = sbr.rel (%p121) target = $region20
      $region19: #{_lambda_.16} parent=11 // pred_region
        _
      $region20: #{_lambda_.16} parent=11 // pred_fallthru
        _
    $region12: #{_lambda_.16} parent=5 // pred_fallthru
      _
    %p124 = scmp.lt.s32.totalorder %s9, 2
    // Predicated region
    $region21: #{_lambda_.16} parent=5 // pred_check
      %p125 = pneg %p124
    $region22: #{_lambda_.16} parent=5 // pred_check_branch
      %127 = sbr.rel (%p125) target = $region24
    $region23: #{_lambda_.16} parent=5 // pred_region
      // Predicated region
      $region25: #{_lambda_.16} parent=23 // pred_check
        %p128 = pneg %p29
      $region26: #{_lambda_.16} parent=23 // pred_check_branch
        %130 = sbr.rel (%p128) target = $region28
      $region27: #{_lambda_.16} parent=23 // pred_region
        %s131 = smul.u32 2, %s9
        %p132 = scmp.lt.s32.totalorder %s131, 3
        %s133 = scalar_select %p132, %s131, 3
        %s134 = smul.addr %s133, 4
        %s135 = scalar_lea.vmem %s0, %s134
        %s136 = smul.u32 2, %s9
      $region28: #{_lambda_.16} parent=23 // pred_fallthru
        _
    $region24: #{_lambda_.16} parent=5 // pred_fallthru
      _
    %p137 = scmp.le.s32.totalorder 1, %s9
    %p138 = scmp.lt.s32.totalorder %s9, 3
    %p139 = pnand %p137, %p138
    %p140 = pneg %p139
    // Predicated region
    $region29: #{_lambda_.16} parent=5 // pred_check
      _
    $region30: #{_lambda_.16} parent=5 // pred_check_branch
      %142 = sbr.rel (%p139) target = $region32
    $region31: #{_lambda_.16} parent=5 // pred_region
      %s143 = ssub.s32 %s9, 1
      %s144 = smul.u32 2, %s14
      %p145 = scmp.lt.s32.totalorder %s144, 3
      %s146 = scalar_select %p145, %s144, 3
      %s147 = smul.addr %s146, 4
      %s148 = scalar_lea.vmem %s0, %s147
      %p149 = pneg %p35
      %p150 = pneg %p32
      %p151 = pneg %p56
      %p152 = pneg %p53
      %p153 = pneg %p77
      %p154 = pneg %p74
      %p155 = pneg %p103
      %p156 = pneg %p100
      %s157 = smul.u32 2, %s14
      %p158 = scmp.lt.s32.totalorder %s157, 3
      %s159 = scalar_select %p158, %s157, 3
      %s160 = smul.addr %s159, 8
      %s161 = scalar_lea.vmem %s3, %s160
      %s162 = smul.u32 2, %s14
      %p163 = scmp.lt.s32.totalorder %s162, 3
      %s164 = scalar_select %p163, %s162, 3
      %s165 = smul.addr %s164, 4
      %s166 = scalar_lea.vmem %s0, %s165
      %s167 = smul.u32 2, %s14
      %s168 = smul.u32 2, %s14
      %p169 = scmp.lt.s32.totalorder %s168, 3
      %s170 = scalar_select %p169, %s168, 3
      %s171 = smul.addr %s170, 8
      %s172 = scalar_lea.vmem %s3, %s171
      %s173 = smul.u32 2, %s14
      %v174 = vld [vmem:[%s166] sm:$0xf]
      %v175 = vld [vmem:[%s166 + $0x4] sm:$0xf]
      %v176 = vld [vmem:[%s1] sm:$0xf]
      %v177 = vld [vmem:[%s1 + $0x4] sm:$0xf]
      %v178 = vld [vmem:[%s1 + $0x8] sm:$0xf]
      %v179 = vld [vmem:[%s1 + $0xc] sm:$0xf]
      %v180 = vld [vmem:[%s1 + $0x10] sm:$0xf]
      %v181 = vld [vmem:[%s1 + $0x14] sm:$0xf]
      %v182 = vld [vmem:[%s1 + $0x18] sm:$0xf]
      %v183 = vld [vmem:[%s1 + $0x1c] sm:$0xf]
      %v184 = vld [vmem:[%s1 + $0x20] sm:$0xf]
      %v185 = vld [vmem:[%s1 + $0x24] sm:$0xf]
      %v186 = vld [vmem:[%s1 + $0x28] sm:$0xf]
      %v187 = vld [vmem:[%s1 + $0x2c] sm:$0xf]
      %v188 = vld [vmem:[%s1 + $0x30] sm:$0xf]
      %v189 = vld [vmem:[%s1 + $0x34] sm:$0xf]
      %v190 = vld [vmem:[%s1 + $0x38] sm:$0xf]
      %v191 = vld [vmem:[%s1 + $0x3c] sm:$0xf]
      %v192 = vld [vmem:[%s2] sm:$0x1]
      %v194 = vperm.slane %v192, 0
      %v198 = vunpack.c.l.b16 %v174
      %v199 = vunpack.c.l.b16 %v175
      %v200 = vpack.c.b16 %v199, %v198
      %v218 = vunpack.c.l.b16 %v176
      %v219 = vunpack.c.l.b16 %v177
      %v220 = vunpack.c.l.b16 %v178
      %v221 = vunpack.c.l.b16 %v179
      %v222 = vunpack.c.l.b16 %v180
      %v223 = vunpack.c.l.b16 %v181
      %v224 = vunpack.c.l.b16 %v182
      %v225 = vunpack.c.l.b16 %v183
      %v226 = vunpack.c.l.b16 %v184
      %v227 = vunpack.c.l.b16 %v185
      %v228 = vunpack.c.l.b16 %v186
      %v229 = vunpack.c.l.b16 %v187
      %v230 = vunpack.c.l.b16 %v188
      %v231 = vunpack.c.l.b16 %v189
      %v232 = vunpack.c.l.b16 %v190
      %v233 = vunpack.c.l.b16 %v191
      %v234 = vpack.c.b16 %v219, %v218
      %v235 = vpack.c.b16 %v221, %v220
      %v236 = vpack.c.b16 %v223, %v222
      %v237 = vpack.c.b16 %v225, %v224
      %v238 = vpack.c.b16 %v227, %v226
      %v239 = vpack.c.b16 %v229, %v228
      %v240 = vpack.c.b16 %v231, %v230
      %v241 = vpack.c.b16 %v233, %v232
      %250 = vmatpush.bf16.msra.mxu0 %v241
      %251 = vmatpush.bf16.msra.mxu0 %v240
      %252 = vmatpush.bf16.msra.mxu0 %v239
      %253 = vmatpush.bf16.msra.mxu0 %v238
      %254 = vmatpush.bf16.msra.mxu0 %v237
      %255 = vmatpush.bf16.msra.mxu0 %v236
      %256 = vmatpush.bf16.msra.mxu0 %v235
      %257 = vmatpush.bf16.msra.mxu0 %v234
      %258 = vmatmul.bf16.gmra.mxu0 %v200
      %v259 = vpop.f32.mrf.mxu0
      %v260 = vadd.f32 %v194, %v259
      %v261 = vpop.f32.mrf.mxu0
      %v262 = vadd.f32 %v194, %v261
      %263 = vdwg.mxu0
      %264 = vst [vmem:[%s172] sm:$0xff] %v260
      %265 = vst [vmem:[%s172 + $0x8] sm:$0xff] %v262
      %s266 = smul.u32 2, %s14
      %p267 = scmp.lt.s32.totalorder %s266, 3
      %s268 = scalar_select %p267, %s266, 3
      %s269 = smul.addr %s268, 8
      %s270 = scalar_lea.vmem %s3, %s269
      // Predicated region
      $region33: #{_lambda_.16} parent=31 // pred_check
        %p271 = pneg %p100
      $region34: #{_lambda_.16} parent=31 // pred_check_branch
        %273 = sbr.rel (%p271) target = $region36
      $region35: #{_lambda_.16} parent=31 // pred_region
        %s274 = smul.u32 2, %s14
      $region36: #{_lambda_.16} parent=31 // pred_fallthru
        _
    $region32: #{_lambda_.16} parent=5 // pred_fallthru
      _
    %p275 = scmp.le.s32.totalorder 2, %s9
    // Predicated region
    $region37: #{_lambda_.16} parent=5 // pred_check
      %p276 = pneg %p275
    $region38: #{_lambda_.16} parent=5 // pred_check_branch
      %278 = sbr.rel (%p276) target = $region40
    $region39: #{_lambda_.16} parent=5 // pred_region
      %s279 = ssub.s32 %s9, 2
      // Predicated region
      $region41: #{_lambda_.16} parent=39 // pred_check
        %p280 = pneg %p106
      $region42: #{_lambda_.16} parent=39 // pred_check_branch
        %282 = sbr.rel (%p280) target = $region44
      $region43: #{_lambda_.16} parent=39 // pred_region
        %s283 = smul.u32 2, %s15
        %p284 = scmp.lt.s32.totalorder %s283, 3
        %s285 = scalar_select %p284, %s283, 3
        %s286 = smul.addr %s285, 8
        %s287 = scalar_lea.vmem %s3, %s286
      $region44: #{_lambda_.16} parent=39 // pred_fallthru
        _
    $region40: #{_lambda_.16} parent=5 // pred_fallthru
      _
  $region6: #{_lambda_.16} parent=0 // loop_footer
    %s13 = sadd.s32 1, %s9
  $region7: #{_lambda_.16} parent=0 // loop_footer_branch
    %8 = sbr.rel target = $region3
  $region8: #{_lambda_.16} parent=0 // loop_exit
    _

// kernel: _lambda_.18
$region0: #{_lambda_.18}
  #allocation0 [shape = 'u32[]', space=smem, size = 0x4, offset = 0x4, fixed_abs, tag = 'smem constant byte address 0x4 - core index']
  #allocation1 [shape = 'u32[72,128]{1,0:T(1,128)}', space=vmem, size = 0x9000, scoped, tag = 'internal scratch']
  %s0 = inlined_call_operand.vmem [shape: bf16[128,432], index: 0, kind: input, shape index: {}]
  %s1 = inlined_call_operand.vmem [shape: bf16[432,128], index: 1, kind: input, shape index: {}]
  %s2 = inlined_call_operand.vmem [shape: f32[1,128], index: 2, kind: input, shape index: {}]
  %s3 = inlined_call_operand.vmem [shape: f32[1,128], index: 3, kind: input, shape index: {}]
  %s4 = inlined_call_operand.vmem [shape: f32[128,128], index: 4, kind: output, shape index: {}]
  %s5 = sld [smem:[#allocation0]]
  $region26: #{_lambda_.18} parent=0
    _
  %s7 = ssub.s32 1, %s5
  %s8 = scalar_select 0, %s7, %s5
  // Predicated region
  $region2: #{_lambda_.18} parent=0 // pred_check
    _
  $region3: #{_lambda_.18} parent=0 // pred_check_branch
    %10 = sbr.rel (0) target = $region5
  $region4: #{_lambda_.18} parent=0 // pred_region
    _
  $region5: #{_lambda_.18} parent=0 // pred_fallthru
    _
  // Predicated region
  $region6: #{_lambda_.18} parent=0 // pred_check
    _
  $region7: #{_lambda_.18} parent=0 // pred_check_branch
    %12 = sbr.rel (0) target = $region9
  $region8: #{_lambda_.18} parent=0 // pred_region
    _
  $region9: #{_lambda_.18} parent=0 // pred_fallthru
    _
  // Predicated region
  $region10: #{_lambda_.18} parent=0 // pred_check
    _
  $region11: #{_lambda_.18} parent=0 // pred_check_branch
    %14 = sbr.rel (0) target = $region13
  $region12: #{_lambda_.18} parent=0 // pred_region
    _
  $region13: #{_lambda_.18} parent=0 // pred_fallthru
    _
  // Predicated region
  $region14: #{_lambda_.18} parent=0 // pred_check
    _
  $region15: #{_lambda_.18} parent=0 // pred_check_branch
    %16 = sbr.rel (0) target = $region17
  $region16: #{_lambda_.18} parent=0 // pred_region
    _
  $region17: #{_lambda_.18} parent=0 // pred_fallthru
    _
  %v18 = vld [vmem:[%s0] sm:$0xff]
  %v19 = vld [vmem:[%s0 + $0x8] sm:$0xff]
  %v20 = vld [vmem:[%s0 + $0x10] sm:$0xff]
  %v21 = vld [vmem:[%s0 + $0x18] sm:$0xff]
  %v22 = vld [vmem:[%s0 + $0x20] sm:$0xff]
  %v23 = vld [vmem:[%s0 + $0x28] sm:$0xff]
  %v24 = vld [vmem:[%s0 + $0x30] sm:$0xff]
  %v25 = vld [vmem:[%s0 + $0x38] sm:$0xff]
  %v26 = vld [vmem:[%s0 + $0x40] sm:$0xff]
  %v27 = vld [vmem:[%s0 + $0x48] sm:$0xff]
  %v28 = vld [vmem:[%s0 + $0x50] sm:$0xff]
  %v29 = vld [vmem:[%s0 + $0x58] sm:$0xff]
  %v30 = vld [vmem:[%s0 + $0x60] sm:$0xff]
  %v31 = vld [vmem:[%s0 + $0x68] sm:$0xff]
  %v32 = vld [vmem:[%s0 + $0x70] sm:$0xff]
  %v33 = vld [vmem:[%s0 + $0x78] sm:$0xff]
  %v34 = vld [vmem:[%s0 + $0x80] sm:$0xff]
  %v35 = vld [vmem:[%s0 + $0x88] sm:$0xff]
  %v36 = vld [vmem:[%s0 + $0x90] sm:$0xff]
  %v37 = vld [vmem:[%s0 + $0x98] sm:$0xff]
  %v38 = vld [vmem:[%s0 + $0xa0] sm:$0xff]
  %v39 = vld [vmem:[%s0 + $0xa8] sm:$0xff]
  %v40 = vld [vmem:[%s0 + $0xb0] sm:$0xff]
  %v41 = vld [vmem:[%s0 + $0xb8] sm:$0xff]
  %v42 = vld [vmem:[%s0 + $0xc0] sm:$0xff]
  %v43 = vld [vmem:[%s0 + $0xc8] sm:$0xff]
  %v44 = vld [vmem:[%s0 + $0xd0] sm:$0xff]
  %v45 = vld [vmem:[%s0 + $0xd8] sm:$0xff]
  %v46 = vld [vmem:[%s0 + $0xe0] sm:$0xff]
  %v47 = vld [vmem:[%s0 + $0xe8] sm:$0xff]
  %v48 = vld [vmem:[%s0 + $0xf0] sm:$0xff]
  %v49 = vld [vmem:[%s0 + $0xf8] sm:$0xff]
  %v50 = vld [vmem:[%s1] sm:$0xf]
  %v51 = vld [vmem:[%s1 + $0x4] sm:$0xf]
  %v52 = vld [vmem:[%s1 + $0x8] sm:$0xf]
  %v53 = vld [vmem:[%s1 + $0xc] sm:$0xf]
  %v54 = vld [vmem:[%s1 + $0x10] sm:$0xf]
  %v55 = vld [vmem:[%s1 + $0x14] sm:$0xf]
  %v56 = vld [vmem:[%s1 + $0x18] sm:$0xf]
  %v57 = vld [vmem:[%s1 + $0x1c] sm:$0xf]
  %v58 = vld [vmem:[%s1 + $0x20] sm:$0xf]
  %v59 = vld [vmem:[%s1 + $0x24] sm:$0xf]
  %v60 = vld [vmem:[%s1 + $0x28] sm:$0xf]
  %v61 = vld [vmem:[%s1 + $0x2c] sm:$0xf]
  %v62 = vld [vmem:[%s1 + $0x30] sm:$0xf]
  %v63 = vld [vmem:[%s1 + $0x34] sm:$0xf]
  %v64 = vld [vmem:[%s1 + $0x38] sm:$0xf]
  %v65 = vld [vmem:[%s1 + $0x3c] sm:$0xf]
  %v66 = vld [vmem:[%s1 + $0x40] sm:$0xf]
  %v67 = vld [vmem:[%s1 + $0x44] sm:$0xf]
  %v68 = vld [vmem:[%s1 + $0x48] sm:$0xf]
  %v69 = vld [vmem:[%s1 + $0x4c] sm:$0xf]
  %v70 = vld [vmem:[%s1 + $0x50] sm:$0xf]
  %v71 = vld [vmem:[%s1 + $0x54] sm:$0xf]
  %v72 = vld [vmem:[%s1 + $0x58] sm:$0xf]
  %v73 = vld [vmem:[%s1 + $0x5c] sm:$0xf]
  %v74 = vld [vmem:[%s1 + $0x60] sm:$0xf]
  %v75 = vld [vmem:[%s1 + $0x64] sm:$0xf]
  %v76 = vld [vmem:[%s1 + $0x68] sm:$0xf]
  %v77 = vld [vmem:[%s1 + $0x6c] sm:$0xf]
  %v78 = vld [vmem:[%s1 + $0x70] sm:$0xf]
  %v79 = vld [vmem:[%s1 + $0x74] sm:$0xf]
  %v80 = vld [vmem:[%s1 + $0x78] sm:$0xf]
  %v81 = vld [vmem:[%s1 + $0x7c] sm:$0xf]
  %v82 = vld [vmem:[%s1 + $0x80] sm:$0xf]
  %v83 = vld [vmem:[%s1 + $0x84] sm:$0xf]
  %v84 = vld [vmem:[%s1 + $0x88] sm:$0xf]
  %v85 = vld [vmem:[%s1 + $0x8c] sm:$0xf]
  %v86 = vld [vmem:[%s1 + $0x90] sm:$0xf]
  %v87 = vld [vmem:[%s1 + $0x94] sm:$0xf]
  %v88 = vld [vmem:[%s1 + $0x98] sm:$0xf]
  %v89 = vld [vmem:[%s1 + $0x9c] sm:$0xf]
  %v90 = vld [vmem:[%s1 + $0xa0] sm:$0xf]
  %v91 = vld [vmem:[%s1 + $0xa4] sm:$0xf]
  %v92 = vld [vmem:[%s1 + $0xa8] sm:$0xf]
  %v93 = vld [vmem:[%s1 + $0xac] sm:$0xf]
  %v94 = vld [vmem:[%s1 + $0xb0] sm:$0xf]
  %v95 = vld [vmem:[%s1 + $0xb4] sm:$0xf]
  %v96 = vld [vmem:[%s1 + $0xb8] sm:$0xf]
  %v97 = vld [vmem:[%s1 + $0xbc] sm:$0xf]
  %v98 = vld [vmem:[%s1 + $0xc0] sm:$0xf]
  %v99 = vld [vmem:[%s1 + $0xc4] sm:$0xf]
  %v100 = vld [vmem:[%s1 + $0xc8] sm:$0xf]
  %v101 = vld [vmem:[%s1 + $0xcc] sm:$0xf]
  %v102 = vld [vmem:[%s1 + $0xd0] sm:$0xf]
  %v103 = vld [vmem:[%s1 + $0xd4] sm:$0xf]
  %v136 = vunpack.c.l.b16 %v18
  %v137 = vunpack.c.h.b16 %v18
  %v138 = vunpack.c.l.b16 %v19
  %v139 = vunpack.c.h.b16 %v19
  %v140 = vunpack.c.l.b16 %v20
  %v141 = vunpack.c.h.b16 %v20
  %v142 = vunpack.c.l.b16 %v21
  %v143 = vunpack.c.h.b16 %v21
  %v144 = vunpack.c.l.b16 %v22
  %v145 = vunpack.c.h.b16 %v22
  %v146 = vunpack.c.l.b16 %v23
  %v147 = vunpack.c.h.b16 %v23
  %v148 = vunpack.c.l.b16 %v24
  %v149 = vunpack.c.h.b16 %v24
  %v150 = vunpack.c.l.b16 %v25
  %v151 = vunpack.c.h.b16 %v25
  %v152 = vunpack.c.l.b16 %v26
  %v153 = vunpack.c.h.b16 %v26
  %v154 = vunpack.c.l.b16 %v27
  %v155 = vunpack.c.h.b16 %v27
  %v156 = vunpack.c.l.b16 %v28
  %v157 = vunpack.c.h.b16 %v28
  %v158 = vunpack.c.l.b16 %v29
  %v159 = vunpack.c.h.b16 %v29
  %v160 = vunpack.c.l.b16 %v30
  %v161 = vunpack.c.h.b16 %v30
  %v162 = vunpack.c.l.b16 %v31
  %v163 = vunpack.c.h.b16 %v31
  %v164 = vunpack.c.l.b16 %v32
  %v165 = vunpack.c.h.b16 %v32
  %v166 = vunpack.c.l.b16 %v33
  %v167 = vunpack.c.h.b16 %v33
  %v168 = vunpack.c.l.b16 %v34
  %v169 = vunpack.c.h.b16 %v34
  %v170 = vunpack.c.l.b16 %v35
  %v171 = vunpack.c.h.b16 %v35
  %v172 = vunpack.c.l.b16 %v36
  %v173 = vunpack.c.h.b16 %v36
  %v174 = vunpack.c.l.b16 %v37
  %v175 = vunpack.c.h.b16 %v37
  %v176 = vunpack.c.l.b16 %v38
  %v177 = vunpack.c.h.b16 %v38
  %v178 = vunpack.c.l.b16 %v39
  %v179 = vunpack.c.h.b16 %v39
  %v180 = vunpack.c.l.b16 %v40
  %v181 = vunpack.c.h.b16 %v40
  %v182 = vunpack.c.l.b16 %v41
  %v183 = vunpack.c.h.b16 %v41
  %v184 = vunpack.c.l.b16 %v42
  %v185 = vunpack.c.h.b16 %v42
  %v186 = vunpack.c.l.b16 %v43
  %v187 = vunpack.c.h.b16 %v43
  %v188 = vunpack.c.l.b16 %v44
  %v189 = vunpack.c.h.b16 %v44
  %v190 = vunpack.c.l.b16 %v45
  %v191 = vunpack.c.h.b16 %v45
  %v192 = vunpack.c.l.b16 %v46
  %v193 = vunpack.c.h.b16 %v46
  %v194 = vunpack.c.l.b16 %v47
  %v195 = vunpack.c.h.b16 %v47
  %v196 = vunpack.c.l.b16 %v48
  %v197 = vunpack.c.h.b16 %v48
  %v198 = vunpack.c.l.b16 %v49
  %v199 = vunpack.c.h.b16 %v49
  %v200 = vpack.c.b16 %v140, %v136
  %v201 = vpack.c.b16 %v141, %v137
  %v202 = vpack.c.b16 %v142, %v138
  %v203 = vpack.c.b16 %v143, %v139
  %v204 = vpack.c.b16 %v148, %v144
  %v205 = vpack.c.b16 %v149, %v145
  %v206 = vpack.c.b16 %v150, %v146
  %v207 = vpack.c.b16 %v151, %v147
  %v208 = vpack.c.b16 %v156, %v152
  %v209 = vpack.c.b16 %v157, %v153
  %v210 = vpack.c.b16 %v158, %v154
  %v211 = vpack.c.b16 %v159, %v155
  %v212 = vpack.c.b16 %v164, %v160
  %v213 = vpack.c.b16 %v165, %v161
  %v214 = vpack.c.b16 %v166, %v162
  %v215 = vpack.c.b16 %v167, %v163
  %v216 = vpack.c.b16 %v172, %v168
  %v217 = vpack.c.b16 %v173, %v169
  %v218 = vpack.c.b16 %v174, %v170
  %v219 = vpack.c.b16 %v175, %v171
  %v220 = vpack.c.b16 %v180, %v176
  %v221 = vpack.c.b16 %v181, %v177
  %v222 = vpack.c.b16 %v182, %v178
  %v223 = vpack.c.b16 %v183, %v179
  %v224 = vpack.c.b16 %v188, %v184
  %v225 = vpack.c.b16 %v189, %v185
  %v226 = vpack.c.b16 %v190, %v186
  %v227 = vpack.c.b16 %v191, %v187
  %v228 = vpack.c.b16 %v196, %v192
  %v229 = vpack.c.b16 %v197, %v193
  %v230 = vpack.c.b16 %v198, %v194
  %v231 = vpack.c.b16 %v199, %v195
  %v310 = vunpack.c.l.b16 %v50
  %v311 = vunpack.c.l.b16 %v51
  %v312 = vunpack.c.l.b16 %v52
  %v313 = vunpack.c.l.b16 %v53
  %v314 = vunpack.c.l.b16 %v54
  %v315 = vunpack.c.l.b16 %v55
  %v316 = vunpack.c.l.b16 %v56
  %v317 = vunpack.c.l.b16 %v57
  %v318 = vunpack.c.l.b16 %v58
  %v319 = vunpack.c.l.b16 %v59
  %v320 = vunpack.c.l.b16 %v60
  %v321 = vunpack.c.l.b16 %v61
  %v322 = vunpack.c.l.b16 %v62
  %v323 = vunpack.c.l.b16 %v63
  %v324 = vunpack.c.l.b16 %v64
  %v325 = vunpack.c.l.b16 %v65
  %v326 = vunpack.c.l.b16 %v66
  %v327 = vunpack.c.l.b16 %v67
  %v328 = vunpack.c.l.b16 %v68
  %v329 = vunpack.c.l.b16 %v69
  %v330 = vunpack.c.l.b16 %v70
  %v331 = vunpack.c.l.b16 %v71
  %v332 = vunpack.c.l.b16 %v72
  %v333 = vunpack.c.l.b16 %v73
  %v334 = vunpack.c.l.b16 %v74
  %v335 = vunpack.c.l.b16 %v75
  %v336 = vunpack.c.l.b16 %v76
  %v337 = vunpack.c.l.b16 %v77
  %v338 = vunpack.c.l.b16 %v78
  %v339 = vunpack.c.l.b16 %v79
  %v340 = vunpack.c.l.b16 %v80
  %v341 = vunpack.c.l.b16 %v81
  %v342 = vunpack.c.l.b16 %v82
  %v343 = vunpack.c.l.b16 %v83
  %v344 = vunpack.c.l.b16 %v84
  %v345 = vunpack.c.l.b16 %v85
  %v346 = vunpack.c.l.b16 %v86
  %v347 = vunpack.c.l.b16 %v87
  %v348 = vunpack.c.l.b16 %v88
  %v349 = vunpack.c.l.b16 %v89
  %v350 = vunpack.c.l.b16 %v90
  %v351 = vunpack.c.l.b16 %v91
  %v352 = vunpack.c.l.b16 %v92
  %v353 = vunpack.c.l.b16 %v93
  %v354 = vunpack.c.l.b16 %v94
  %v355 = vunpack.c.l.b16 %v95
  %v356 = vunpack.c.l.b16 %v96
  %v357 = vunpack.c.l.b16 %v97
  %v358 = vunpack.c.l.b16 %v98
  %v359 = vunpack.c.l.b16 %v99
  %v360 = vunpack.c.l.b16 %v100
  %v361 = vunpack.c.l.b16 %v101
  %v362 = vunpack.c.l.b16 %v102
  %v363 = vunpack.c.l.b16 %v103
  %v364 = vpack.c.b16 %v311, %v310
  %v365 = vpack.c.b16 %v313, %v312
  %v366 = vpack.c.b16 %v315, %v314
  %v367 = vpack.c.b16 %v317, %v316
  %v368 = vpack.c.b16 %v319, %v318
  %v369 = vpack.c.b16 %v321, %v320
  %v370 = vpack.c.b16 %v323, %v322
  %v371 = vpack.c.b16 %v325, %v324
  %v372 = vpack.c.b16 %v327, %v326
  %v373 = vpack.c.b16 %v329, %v328
  %v374 = vpack.c.b16 %v331, %v330
  %v375 = vpack.c.b16 %v333, %v332
  %v376 = vpack.c.b16 %v335, %v334
  %v377 = vpack.c.b16 %v337, %v336
  %v378 = vpack.c.b16 %v339, %v338
  %v379 = vpack.c.b16 %v341, %v340
  %v380 = vpack.c.b16 %v343, %v342
  %v381 = vpack.c.b16 %v345, %v344
  %v382 = vpack.c.b16 %v347, %v346
  %v383 = vpack.c.b16 %v349, %v348
  %v384 = vpack.c.b16 %v351, %v350
  %v385 = vpack.c.b16 %v353, %v352
  %v386 = vpack.c.b16 %v355, %v354
  %v387 = vpack.c.b16 %v357, %v356
  %v388 = vpack.c.b16 %v359, %v358
  %v389 = vpack.c.b16 %v361, %v360
  %v390 = vpack.c.b16 %v363, %v362
  %vm418 = vcmask 392192
  %v420 = vsel %vm418, %v203, 0
  %v423 = vsel %vm418, %v207, 0
  %v426 = vsel %vm418, %v211, 0
  %v429 = vsel %vm418, %v215, 0
  %v432 = vsel %vm418, %v219, 0
  %v435 = vsel %vm418, %v223, 0
  %v438 = vsel %vm418, %v227, 0
  %v441 = vsel %vm418, %v231, 0
  %443 = vmatpush.bf16.msra.mxu0 %v371
  %444 = vmatpush.bf16.msra.mxu0 %v370
  %445 = vmatpush.bf16.msra.mxu0 %v369
  %446 = vmatpush.bf16.msra.mxu0 %v368
  %447 = vmatpush.bf16.msra.mxu0 %v367
  %448 = vmatpush.bf16.msra.mxu0 %v366
  %449 = vmatpush.bf16.msra.mxu0 %v365
  %450 = vmatpush.bf16.msra.mxu0 %v364
  %451 = vmatmul.bf16.gmra.mxu0 %v200
  %v452 = vpop.f32.mrf.mxu0
  %v453 = vadd.f32 0.0, %v452
  %v454 = vpop.f32.mrf.mxu0
  %v455 = vadd.f32 0.0, %v454
  %456 = vmatmul.bf16.gmra.mxu0 %v204
  %v457 = vpop.f32.mrf.mxu0
  %v458 = vadd.f32 0.0, %v457
  %v459 = vpop.f32.mrf.mxu0
  %v460 = vadd.f32 0.0, %v459
  %461 = vmatmul.bf16.gmra.mxu0 %v208
  %v462 = vpop.f32.mrf.mxu0
  %v463 = vadd.f32 0.0, %v462
  %v464 = vpop.f32.mrf.mxu0
  %v465 = vadd.f32 0.0, %v464
  %466 = vmatmul.bf16.gmra.mxu0 %v212
  %v467 = vpop.f32.mrf.mxu0
  %v468 = vadd.f32 0.0, %v467
  %v469 = vpop.f32.mrf.mxu0
  %v470 = vadd.f32 0.0, %v469
  %471 = vmatmul.bf16.gmra.mxu0 %v216
  %v472 = vpop.f32.mrf.mxu0
  %v473 = vadd.f32 0.0, %v472
  %v474 = vpop.f32.mrf.mxu0
  %v475 = vadd.f32 0.0, %v474
  %476 = vmatmul.bf16.gmra.mxu0 %v220
  %v477 = vpop.f32.mrf.mxu0
  %v478 = vadd.f32 0.0, %v477
  %v479 = vpop.f32.mrf.mxu0
  %v480 = vadd.f32 0.0, %v479
  %481 = vmatmul.bf16.gmra.mxu0 %v224
  %v482 = vpop.f32.mrf.mxu0
  %v483 = vadd.f32 0.0, %v482
  %v484 = vpop.f32.mrf.mxu0
  %v485 = vadd.f32 0.0, %v484
  %486 = vmatmul.bf16.gmra.mxu0 %v228
  %v487 = vpop.f32.mrf.mxu0
  %v488 = vadd.f32 0.0, %v487
  %v489 = vpop.f32.mrf.mxu0
  %v490 = vadd.f32 0.0, %v489
  %491 = vdwg.mxu0
  %492 = vmatpush.bf16.msra.mxu0 %v379
  %493 = vmatpush.bf16.msra.mxu0 %v378
  %494 = vmatpush.bf16.msra.mxu0 %v377
  %495 = vmatpush.bf16.msra.mxu0 %v376
  %496 = vmatpush.bf16.msra.mxu0 %v375
  %497 = vmatpush.bf16.msra.mxu0 %v374
  %498 = vmatpush.bf16.msra.mxu0 %v373
  %499 = vmatpush.bf16.msra.mxu0 %v372
  %500 = vmatmul.bf16.gmra.mxu0 %v201
  %v501 = vpop.f32.mrf.mxu0
  %v502 = vadd.f32 %v453, %v501
  %v503 = vpop.f32.mrf.mxu0
  %v504 = vadd.f32 %v455, %v503
  %505 = vmatmul.bf16.gmra.mxu0 %v205
  %v506 = vpop.f32.mrf.mxu0
  %v507 = vadd.f32 %v458, %v506
  %v508 = vpop.f32.mrf.mxu0
  %v509 = vadd.f32 %v460, %v508
  %510 = vmatmul.bf16.gmra.mxu0 %v209
  %v511 = vpop.f32.mrf.mxu0
  %v512 = vadd.f32 %v463, %v511
  %v513 = vpop.f32.mrf.mxu0
  %v514 = vadd.f32 %v465, %v513
  %515 = vmatmul.bf16.gmra.mxu0 %v213
  %v516 = vpop.f32.mrf.mxu0
  %v517 = vadd.f32 %v468, %v516
  %v518 = vpop.f32.mrf.mxu0
  %v519 = vadd.f32 %v470, %v518
  %520 = vmatmul.bf16.gmra.mxu0 %v217
  %v521 = vpop.f32.mrf.mxu0
  %v522 = vadd.f32 %v473, %v521
  %v523 = vpop.f32.mrf.mxu0
  %v524 = vadd.f32 %v475, %v523
  %525 = vmatmul.bf16.gmra.mxu0 %v221
  %v526 = vpop.f32.mrf.mxu0
  %v527 = vadd.f32 %v478, %v526
  %v528 = vpop.f32.mrf.mxu0
  %v529 = vadd.f32 %v480, %v528
  %530 = vmatmul.bf16.gmra.mxu0 %v225
  %v531 = vpop.f32.mrf.mxu0
  %v532 = vadd.f32 %v483, %v531
  %v533 = vpop.f32.mrf.mxu0
  %v534 = vadd.f32 %v485, %v533
  %535 = vmatmul.bf16.gmra.mxu0 %v229
  %v536 = vpop.f32.mrf.mxu0
  %v537 = vadd.f32 %v488, %v536
  %v538 = vpop.f32.mrf.mxu0
  %v539 = vadd.f32 %v490, %v538
  %540 = vdwg.mxu0
  %541 = vmatpush.bf16.msra.mxu0 %v387
  %542 = vmatpush.bf16.msra.mxu0 %v386
  %543 = vmatpush.bf16.msra.mxu0 %v385
  %544 = vmatpush.bf16.msra.mxu0 %v384
  %545 = vmatpush.bf16.msra.mxu0 %v383
  %546 = vmatpush.bf16.msra.mxu0 %v382
  %547 = vmatpush.bf16.msra.mxu0 %v381
  %548 = vmatpush.bf16.msra.mxu0 %v380
  %549 = vmatmul.bf16.gmra.mxu0 %v202
  %v550 = vpop.f32.mrf.mxu0
  %v551 = vadd.f32 %v502, %v550
  %v552 = vpop.f32.mrf.mxu0
  %v553 = vadd.f32 %v504, %v552
  %554 = vmatmul.bf16.gmra.mxu0 %v206
  %v555 = vpop.f32.mrf.mxu0
  %v556 = vadd.f32 %v507, %v555
  %v557 = vpop.f32.mrf.mxu0
  %v558 = vadd.f32 %v509, %v557
  %559 = vmatmul.bf16.gmra.mxu0 %v210
  %v560 = vpop.f32.mrf.mxu0
  %v561 = vadd.f32 %v512, %v560
  %v562 = vpop.f32.mrf.mxu0
  %v563 = vadd.f32 %v514, %v562
  %564 = vmatmul.bf16.gmra.mxu0 %v214
  %v565 = vpop.f32.mrf.mxu0
  %v566 = vadd.f32 %v517, %v565
  %v567 = vpop.f32.mrf.mxu0
  %v568 = vadd.f32 %v519, %v567
  %569 = vmatmul.bf16.gmra.mxu0 %v218
  %v570 = vpop.f32.mrf.mxu0
  %v571 = vadd.f32 %v522, %v570
  %v572 = vpop.f32.mrf.mxu0
  %v573 = vadd.f32 %v524, %v572
  %574 = vmatmul.bf16.gmra.mxu0 %v222
  %v575 = vpop.f32.mrf.mxu0
  %v576 = vadd.f32 %v527, %v575
  %v577 = vpop.f32.mrf.mxu0
  %v578 = vadd.f32 %v529, %v577
  %579 = vmatmul.bf16.gmra.mxu0 %v226
  %v580 = vpop.f32.mrf.mxu0
  %v581 = vadd.f32 %v532, %v580
  %v582 = vpop.f32.mrf.mxu0
  %v583 = vadd.f32 %v534, %v582
  %584 = vmatmul.bf16.gmra.mxu0 %v230
  %v585 = vpop.f32.mrf.mxu0
  %v586 = vadd.f32 %v537, %v585
  %v587 = vpop.f32.mrf.mxu0
  %v588 = vadd.f32 %v539, %v587
  %589 = vdwg.mxu0
  %590 = vmatpush.bf16.msra.mxu0 0
  %591 = vmatpush.bf16.msra.mxu0 0
  %592 = vmatpush.bf16.msra.mxu0 0
  %593 = vmatpush.bf16.msra.mxu0 0
  %594 = vmatpush.bf16.msra.mxu0 0
  %595 = vmatpush.bf16.msra.mxu0 %v390
  %596 = vmatpush.bf16.msra.mxu0 %v389
  %597 = vmatpush.bf16.msra.mxu0 %v388
  %598 = vmatmul.bf16.gmra.mxu0 %v420
  %v599 = vpop.f32.mrf.mxu0
  %v600 = vadd.f32 %v551, %v599
  %v601 = vpop.f32.mrf.mxu0
  %v602 = vadd.f32 %v553, %v601
  %603 = vmatmul.bf16.gmra.mxu0 %v423
  %v604 = vpop.f32.mrf.mxu0
  %v605 = vadd.f32 %v556, %v604
  %v606 = vpop.f32.mrf.mxu0
  %v607 = vadd.f32 %v558, %v606
  %608 = vmatmul.bf16.gmra.mxu0 %v426
  %v609 = vpop.f32.mrf.mxu0
  %v610 = vadd.f32 %v561, %v609
  %v611 = vpop.f32.mrf.mxu0
  %v612 = vadd.f32 %v563, %v611
  %613 = vmatmul.bf16.gmra.mxu0 %v429
  %v614 = vpop.f32.mrf.mxu0
  %v615 = vadd.f32 %v566, %v614
  %v616 = vpop.f32.mrf.mxu0
  %v617 = vadd.f32 %v568, %v616
  %618 = vmatmul.bf16.gmra.mxu0 %v432
  %v619 = vpop.f32.mrf.mxu0
  %v620 = vadd.f32 %v571, %v619
  %v621 = vpop.f32.mrf.mxu0
  %v622 = vadd.f32 %v573, %v621
  %623 = vmatmul.bf16.gmra.mxu0 %v435
  %v624 = vpop.f32.mrf.mxu0
  %v625 = vadd.f32 %v576, %v624
  %v626 = vpop.f32.mrf.mxu0
  %v627 = vadd.f32 %v578, %v626
  %628 = vmatmul.bf16.gmra.mxu0 %v438
  %v629 = vpop.f32.mrf.mxu0
  %v630 = vadd.f32 %v581, %v629
  %v631 = vpop.f32.mrf.mxu0
  %v632 = vadd.f32 %v583, %v631
  %633 = vmatmul.bf16.gmra.mxu0 %v441
  %v634 = vpop.f32.mrf.mxu0
  %v635 = vadd.f32 %v586, %v634
  %v636 = vpop.f32.mrf.mxu0
  %v637 = vadd.f32 %v588, %v636
  %638 = vdwg.mxu0
  %v639 = vadd.f32 %v600, %v602
  %v640 = vadd.f32 %v639, %v605
  %v641 = vadd.f32 %v640, %v607
  %v642 = vadd.f32 %v641, %v610
  %v643 = vadd.f32 %v642, %v612
  %v644 = vadd.f32 %v643, %v615
  %v645 = vadd.f32 %v644, %v617
  %v646 = vadd.f32 %v645, %v620
  %v647 = vadd.f32 %v646, %v622
  %v648 = vadd.f32 %v647, %v625
  %v649 = vadd.f32 %v648, %v627
  %v650 = vadd.f32 %v649, %v630
  %v651 = vadd.f32 %v650, %v632
  %v652 = vadd.f32 %v651, %v635
  %v653 = vadd.f32 %v652, %v637
  %v654 = vrot.slane %v653, 4
  %v655 = vadd.f32 %v653, %v654
  %v656 = vrot.slane %v655, 2
  %v657 = vadd.f32 %v655, %v656
  %v658 = vrot.slane %v657, 1
  %v659 = vadd.f32 %v657, %v658
  %v660 = vrcp.pop 128.0
  %v661 = vmul.f32 128.0, %v660
  %v662 = vsub.f32 1.0, %v661
  %v663 = vmul.f32 %v660, %v662
  %v664 = vadd.f32 %v660, %v663
  %vm665 = vweird.f32 %v660
  %v666 = vsel %vm665, %v660, %v664
  %v667 = vmul.f32 %v659, %v666
  %v668 = vsub.f32 %v600, %v667
  %v669 = vsub.f32 %v602, %v667
  %v670 = vsub.f32 %v605, %v667
  %v671 = vsub.f32 %v607, %v667
  %v672 = vsub.f32 %v610, %v667
  %v673 = vsub.f32 %v612, %v667
  %v674 = vsub.f32 %v615, %v667
  %v675 = vsub.f32 %v617, %v667
  %v676 = vsub.f32 %v620, %v667
  %v677 = vsub.f32 %v622, %v667
  %v678 = vsub.f32 %v625, %v667
  %v679 = vsub.f32 %v627, %v667
  %v680 = vsub.f32 %v630, %v667
  %v681 = vsub.f32 %v632, %v667
  %v682 = vsub.f32 %v635, %v667
  %v683 = vsub.f32 %v637, %v667
  %v684 = vmul.f32 %v668, %v668
  %v685 = vmul.f32 %v669, %v669
  %v686 = vmul.f32 %v670, %v670
  %v687 = vmul.f32 %v671, %v671
  %v688 = vmul.f32 %v672, %v672
  %v689 = vmul.f32 %v673, %v673
  %v690 = vmul.f32 %v674, %v674
  %v691 = vmul.f32 %v675, %v675
  %v692 = vmul.f32 %v676, %v676
  %v693 = vmul.f32 %v677, %v677
  %v694 = vmul.f32 %v678, %v678
  %v695 = vmul.f32 %v679, %v679
  %v696 = vmul.f32 %v680, %v680
  %v697 = vmul.f32 %v681, %v681
  %v698 = vmul.f32 %v682, %v682
  %v699 = vmul.f32 %v683, %v683
  %v700 = vadd.f32 %v684, %v685
  %v701 = vadd.f32 %v700, %v686
  %v702 = vadd.f32 %v701, %v687
  %v703 = vadd.f32 %v702, %v688
  %v704 = vadd.f32 %v703, %v689
  %v705 = vadd.f32 %v704, %v690
  %v706 = vadd.f32 %v705, %v691
  %v707 = vadd.f32 %v706, %v692
  %v708 = vadd.f32 %v707, %v693
  %v709 = vadd.f32 %v708, %v694
  %v710 = vadd.f32 %v709, %v695
  %v711 = vadd.f32 %v710, %v696
  %v712 = vadd.f32 %v711, %v697
  %v713 = vadd.f32 %v712, %v698
  %v714 = vadd.f32 %v713, %v699
  %v715 = vrot.slane %v714, 4
  %v716 = vadd.f32 %v714, %v715
  %v717 = vrot.slane %v716, 2
  %v718 = vadd.f32 %v716, %v717
  %v719 = vrot.slane %v718, 1
  %v720 = vadd.f32 %v718, %v719
  %v721 = vmul.f32 %v720, %v666
  %v722 = vld [vmem:[%s2] sm:$0x1]
  %v723 = vadd.f32 %v721, 1e-05
  %v724 = vrsqrt.pop %v723
  %v725 = vmul.f32 %v724, %v723
  %v726 = vmul.f32 %v725, %v724
  %v727 = vmul.f32 0.5, %v726
  %v728 = vsub.f32 1.5, %v727
  %v729 = vmul.f32 %v724, %v728
  %vm730 = vweird.f32 %v723
  %vm731 = vweird.f32 %v724
  %vm732 = vmor %vm730, %vm731
  %v733 = vsel %vm732, %v724, %v729
  %v734 = vmul.f32 %v722, %v733
  %v736 = vperm.slane %v734, 0
  %v738 = vmul.f32 %v668, %v736
  %v739 = vmul.f32 %v669, %v736
  %v740 = vmul.f32 %v670, %v736
  %v741 = vmul.f32 %v671, %v736
  %v742 = vmul.f32 %v672, %v736
  %v743 = vmul.f32 %v673, %v736
  %v744 = vmul.f32 %v674, %v736
  %v745 = vmul.f32 %v675, %v736
  %v746 = vmul.f32 %v676, %v736
  %v747 = vmul.f32 %v677, %v736
  %v748 = vmul.f32 %v678, %v736
  %v749 = vmul.f32 %v679, %v736
  %v750 = vmul.f32 %v680, %v736
  %v751 = vmul.f32 %v681, %v736
  %v752 = vmul.f32 %v682, %v736
  %v753 = vmul.f32 %v683, %v736
  %v754 = vld [vmem:[%s3] sm:$0x1]
  %v756 = vperm.slane %v754, 0
  %v758 = vadd.f32 %v738, %v756
  %v759 = vadd.f32 %v739, %v756
  %v760 = vadd.f32 %v740, %v756
  %v761 = vadd.f32 %v741, %v756
  %v762 = vadd.f32 %v742, %v756
  %v763 = vadd.f32 %v743, %v756
  %v764 = vadd.f32 %v744, %v756
  %v765 = vadd.f32 %v745, %v756
  %v766 = vadd.f32 %v746, %v756
  %v767 = vadd.f32 %v747, %v756
  %v768 = vadd.f32 %v748, %v756
  %v769 = vadd.f32 %v749, %v756
  %v770 = vadd.f32 %v750, %v756
  %v771 = vadd.f32 %v751, %v756
  %v772 = vadd.f32 %v752, %v756
  %v773 = vadd.f32 %v753, %v756
  %vm774 = vcmp.gt.f32.partialorder %v758, 0.0
  %vm775 = vcmp.gt.f32.partialorder %v759, 0.0
  %vm776 = vcmp.gt.f32.partialorder %v760, 0.0
  %vm777 = vcmp.gt.f32.partialorder %v761, 0.0
  %vm778 = vcmp.gt.f32.partialorder %v762, 0.0
  %vm779 = vcmp.gt.f32.partialorder %v763, 0.0
  %vm780 = vcmp.gt.f32.partialorder %v764, 0.0
  %vm781 = vcmp.gt.f32.partialorder %v765, 0.0
  %vm782 = vcmp.gt.f32.partialorder %v766, 0.0
  %vm783 = vcmp.gt.f32.partialorder %v767, 0.0
  %vm784 = vcmp.gt.f32.partialorder %v768, 0.0
  %vm785 = vcmp.gt.f32.partialorder %v769, 0.0
  %vm786 = vcmp.gt.f32.partialorder %v770, 0.0
  %vm787 = vcmp.gt.f32.partialorder %v771, 0.0
  %vm788 = vcmp.gt.f32.partialorder %v772, 0.0
  %vm789 = vcmp.gt.f32.partialorder %v773, 0.0
  %v790 = vmul.f32 %v758, 0.1
  %v791 = vmul.f32 %v759, 0.1
  %v792 = vmul.f32 %v760, 0.1
  %v793 = vmul.f32 %v761, 0.1
  %v794 = vmul.f32 %v762, 0.1
  %v795 = vmul.f32 %v763, 0.1
  %v796 = vmul.f32 %v764, 0.1
  %v797 = vmul.f32 %v765, 0.1
  %v798 = vmul.f32 %v766, 0.1
  %v799 = vmul.f32 %v767, 0.1
  %v800 = vmul.f32 %v768, 0.1
  %v801 = vmul.f32 %v769, 0.1
  %v802 = vmul.f32 %v770, 0.1
  %v803 = vmul.f32 %v771, 0.1
  %v804 = vmul.f32 %v772, 0.1
  %v805 = vmul.f32 %v773, 0.1
  %v806 = vsel %vm774, %v758, %v790
  %v807 = vsel %vm775, %v759, %v791
  %v808 = vsel %vm776, %v760, %v792
  %v809 = vsel %vm777, %v761, %v793
  %v810 = vsel %vm778, %v762, %v794
  %v811 = vsel %vm779, %v763, %v795
  %v812 = vsel %vm780, %v764, %v796
  %v813 = vsel %vm781, %v765, %v797
  %v814 = vsel %vm782, %v766, %v798
  %v815 = vsel %vm783, %v767, %v799
  %v816 = vsel %vm784, %v768, %v800
  %v817 = vsel %vm785, %v769, %v801
  %v818 = vsel %vm786, %v770, %v802
  %v819 = vsel %vm787, %v771, %v803
  %v820 = vsel %vm788, %v772, %v804
  %v821 = vsel %vm789, %v773, %v805
  %822 = vst [vmem:[%s4] sm:$0xff] %v806
  %823 = vst [vmem:[%s4 + $0x8] sm:$0xff] %v807
  %824 = vst [vmem:[%s4 + $0x10] sm:$0xff] %v808
  %825 = vst [vmem:[%s4 + $0x18] sm:$0xff] %v809
  %826 = vst [vmem:[%s4 + $0x20] sm:$0xff] %v810
  %827 = vst [vmem:[%s4 + $0x28] sm:$0xff] %v811
  %828 = vst [vmem:[%s4 + $0x30] sm:$0xff] %v812
  %829 = vst [vmem:[%s4 + $0x38] sm:$0xff] %v813
  %830 = vst [vmem:[%s4 + $0x40] sm:$0xff] %v814
  %831 = vst [vmem:[%s4 + $0x48] sm:$0xff] %v815
  %832 = vst [vmem:[%s4 + $0x50] sm:$0xff] %v816
  %833 = vst [vmem:[%s4 + $0x58] sm:$0xff] %v817
  %834 = vst [vmem:[%s4 + $0x60] sm:$0xff] %v818
  %835 = vst [vmem:[%s4 + $0x68] sm:$0xff] %v819
  %836 = vst [vmem:[%s4 + $0x70] sm:$0xff] %v820
  %837 = vst [vmem:[%s4 + $0x78] sm:$0xff] %v821
  // Predicated region
  $region18: #{_lambda_.18} parent=0 // pred_check
    _
  $region19: #{_lambda_.18} parent=0 // pred_check_branch
    %839 = sbr.rel (0) target = $region21
  $region20: #{_lambda_.18} parent=0 // pred_region
    _
  $region21: #{_lambda_.18} parent=0 // pred_fallthru
    _
  // Predicated region
  $region22: #{_lambda_.18} parent=0 // pred_check
    _
  $region23: #{_lambda_.18} parent=0 // pred_check_branch
    %841 = sbr.rel (0) target = $region25
  $region24: #{_lambda_.18} parent=0 // pred_region
    _
  $region25: #{_lambda_.18} parent=0 // pred_fallthru
    _

// kernel: _lambda_.19
$region0: #{_lambda_.19}
  #allocation0 [shape = 'u32[]', space=smem, size = 0x4, offset = 0x4, fixed_abs, tag = 'smem constant byte address 0x4 - core index']
  #allocation1 [shape = 'u32[72,128]{1,0:T(1,128)}', space=vmem, size = 0x9000, scoped, tag = 'internal scratch']
  %s0 = inlined_call_operand.vmem [shape: bf16[128,128], index: 0, kind: input, shape index: {}]
  %s1 = inlined_call_operand.vmem [shape: bf16[128,128], index: 1, kind: input, shape index: {}]
  %s2 = inlined_call_operand.vmem [shape: f32[1,128], index: 2, kind: input, shape index: {}]
  %s3 = inlined_call_operand.vmem [shape: f32[128,128], index: 3, kind: output, shape index: {}]
  %s4 = sld [smem:[#allocation0]]
  $region45: #{_lambda_.19} parent=0
    _
  %s6 = ssub.s32 1, %s4
  %s7 = scalar_select 0, %s6, %s4
  loop: start=0, step=1, limit=4
  $region2: #{_lambda_.19} parent=0 // loop_pre_header
    _
  $region3: #{_lambda_.19} parent=0 // loop_header
    %s9 = sphi 0, %s13
    %p10 = scmp.ge.s32.totalorder %s9, 4
    %s19 = sphi 0, %s21
    %s22 = sphi 0, %s19
    %s23 = sphi 0, %s22
    %s39 = sphi 0, %s23
    %s43 = sphi 0, %s43
    %s45 = sphi 0, %s43
    %s46 = sphi 0, %s45
    %s60 = sphi 0, %s46
    %s64 = sphi 0, %s64
    %s66 = sphi 0, %s64
    %s67 = sphi 0, %s66
    %s81 = sphi 0, %s67
    %s87 = sphi 0, %s89
    %s90 = sphi 0, %s87
    %s91 = sphi 0, %s90
    %s107 = sphi 0, %s91
  $region4: #{_lambda_.19} parent=0 // loop_header_branch
    %12 = sbr.rel (%p10) target = $region8
  $region5: #{_lambda_.19} parent=0 // loop_body
    %s14 = ssub.s32 %s9, 1
    %s15 = ssub.s32 %s9, 2
    %s16 = sadd.s32 %s9, 1
    %s17 = ssub.s32 %s9, %s16
    %p18 = scmp.eq.s32.totalorder %s17, 0
    %s20 = sadd.s32 %s19, 1
    %s21 = scalar_select %p18, %s19, %s20
    %p24 = pneg %p18
    %p25 = scmp.eq.s32.totalorder %s9, 1
    %p26 = por %p24, %p25
    %p27 = scmp.ne.s32.totalorder %s19, %s22
    %p28 = scmp.eq.s32.totalorder %s9, 0
    %p29 = por %p27, %p28
    %p30 = scmp.ne.s32.totalorder %s19, %s22
    %p31 = scmp.eq.s32.totalorder %s14, 1
    %p32 = por %p30, %p31
    %p33 = scmp.ne.s32.totalorder %s22, %s23
    %p34 = scmp.eq.s32.totalorder %s14, 0
    %p35 = por %p33, %p34
    %p36 = scmp.ne.s32.totalorder %s22, %s23
    %p37 = scmp.eq.s32.totalorder %s15, 1
    %p38 = por %p36, %p37
    %p40 = scmp.ne.s32.totalorder %s23, %s39
    %p41 = scmp.eq.s32.totalorder %s15, 0
    %p42 = por %p40, %p41
    %s44 = sadd.s32 %s43, 1
    %p47 = scmp.eq.s32.totalorder %s9, 1
    %p48 = scmp.ne.s32.totalorder %s43, %s45
    %p49 = scmp.eq.s32.totalorder %s9, 0
    %p50 = por %p48, %p49
    %p51 = scmp.ne.s32.totalorder %s43, %s45
    %p52 = scmp.eq.s32.totalorder %s14, 1
    %p53 = por %p51, %p52
    %p54 = scmp.ne.s32.totalorder %s45, %s46
    %p55 = scmp.eq.s32.totalorder %s14, 0
    %p56 = por %p54, %p55
    %p57 = scmp.ne.s32.totalorder %s45, %s46
    %p58 = scmp.eq.s32.totalorder %s15, 1
    %p59 = por %p57, %p58
    %p61 = scmp.ne.s32.totalorder %s46, %s60
    %p62 = scmp.eq.s32.totalorder %s15, 0
    %p63 = por %p61, %p62
    %s65 = sadd.s32 %s64, 1
    %p68 = scmp.eq.s32.totalorder %s9, 1
    %p69 = scmp.ne.s32.totalorder %s64, %s66
    %p70 = scmp.eq.s32.totalorder %s9, 0
    %p71 = por %p69, %p70
    %p72 = scmp.ne.s32.totalorder %s64, %s66
    %p73 = scmp.eq.s32.totalorder %s14, 1
    %p74 = por %p72, %p73
    %p75 = scmp.ne.s32.totalorder %s66, %s67
    %p76 = scmp.eq.s32.totalorder %s14, 0
    %p77 = por %p75, %p76
    %p78 = scmp.ne.s32.totalorder %s66, %s67
    %p79 = scmp.eq.s32.totalorder %s15, 1
    %p80 = por %p78, %p79
    %p82 = scmp.ne.s32.totalorder %s67, %s81
    %p83 = scmp.eq.s32.totalorder %s15, 0
    %p84 = por %p82, %p83
    %s85 = ssub.s32 %s9, %s16
    %p86 = scmp.eq.s32.totalorder %s85, 0
    %s88 = sadd.s32 %s87, 1
    %s89 = scalar_select %p86, %s87, %s88
    %p92 = pneg %p86
    %p93 = scmp.eq.s32.totalorder %s9, 1
    %p94 = por %p92, %p93
    %p95 = scmp.ne.s32.totalorder %s87, %s90
    %p96 = scmp.eq.s32.totalorder %s9, 0
    %p97 = por %p95, %p96
    %p98 = scmp.ne.s32.totalorder %s87, %s90
    %p99 = scmp.eq.s32.totalorder %s14, 1
    %p100 = por %p98, %p99
    %p101 = scmp.ne.s32.totalorder %s90, %s91
    %p102 = scmp.eq.s32.totalorder %s14, 0
    %p103 = por %p101, %p102
    %p104 = scmp.ne.s32.totalorder %s90, %s91
    %p105 = scmp.eq.s32.totalorder %s15, 1
    %p106 = por %p104, %p105
    %p108 = scmp.ne.s32.totalorder %s91, %s107
    %p109 = scmp.eq.s32.totalorder %s15, 0
    %p110 = por %p108, %p109
    %p111 = scmp.le.s32.totalorder 1, %s9
    %p112 = scmp.lt.s32.totalorder %s9, 3
    %p113 = pnand %p111, %p112
    %p114 = pneg %p113
    // Predicated region
    $region9: #{_lambda_.19} parent=5 // pred_check
      _
    $region10: #{_lambda_.19} parent=5 // pred_check_branch
      %116 = sbr.rel (%p113) target = $region12
    $region11: #{_lambda_.19} parent=5 // pred_region
      %s117 = ssub.s32 %s9, 1
      // Predicated region
      $region13: #{_lambda_.19} parent=11 // pred_check
        %p118 = pneg %p56
      $region14: #{_lambda_.19} parent=11 // pred_check_branch
        %120 = sbr.rel (%p118) target = $region16
      $region15: #{_lambda_.19} parent=11 // pred_region
        _
      $region16: #{_lambda_.19} parent=11 // pred_fallthru
        _
      // Predicated region
      $region17: #{_lambda_.19} parent=11 // pred_check
        %p121 = pneg %p77
      $region18: #{_lambda_.19} parent=11 // pred_check_branch
        %123 = sbr.rel (%p121) target = $region20
      $region19: #{_lambda_.19} parent=11 // pred_region
        _
      $region20: #{_lambda_.19} parent=11 // pred_fallthru
        _
    $region12: #{_lambda_.19} parent=5 // pred_fallthru
      _
    %p124 = scmp.lt.s32.totalorder %s9, 2
    // Predicated region
    $region21: #{_lambda_.19} parent=5 // pred_check
      %p125 = pneg %p124
    $region22: #{_lambda_.19} parent=5 // pred_check_branch
      %127 = sbr.rel (%p125) target = $region24
    $region23: #{_lambda_.19} parent=5 // pred_region
      // Predicated region
      $region25: #{_lambda_.19} parent=23 // pred_check
        %p128 = pneg %p29
      $region26: #{_lambda_.19} parent=23 // pred_check_branch
        %130 = sbr.rel (%p128) target = $region28
      $region27: #{_lambda_.19} parent=23 // pred_region
        %s131 = smul.u32 8, %s9
        %p132 = scmp.lt.s32.totalorder %s131, 15
        %s133 = scalar_select %p132, %s131, 15
        %s134 = smul.addr %s133, 4
        %s135 = scalar_lea.vmem %s0, %s134
        %s136 = smul.u32 8, %s9
      $region28: #{_lambda_.19} parent=23 // pred_fallthru
        _
    $region24: #{_lambda_.19} parent=5 // pred_fallthru
      _
    %p137 = scmp.le.s32.totalorder 1, %s9
    %p138 = scmp.lt.s32.totalorder %s9, 3
    %p139 = pnand %p137, %p138
    %p140 = pneg %p139
    // Predicated region
    $region29: #{_lambda_.19} parent=5 // pred_check
      _
    $region30: #{_lambda_.19} parent=5 // pred_check_branch
      %142 = sbr.rel (%p139) target = $region32
    $region31: #{_lambda_.19} parent=5 // pred_region
      %s143 = ssub.s32 %s9, 1
      %s144 = smul.u32 8, %s14
      %p145 = scmp.lt.s32.totalorder %s144, 15
      %s146 = scalar_select %p145, %s144, 15
      %s147 = smul.addr %s146, 4
      %s148 = scalar_lea.vmem %s0, %s147
      %p149 = pneg %p35
      %p150 = pneg %p32
      %p151 = pneg %p56
      %p152 = pneg %p53
      %p153 = pneg %p77
      %p154 = pneg %p74
      %p155 = pneg %p103
      %p156 = pneg %p100
      %s157 = smul.u32 8, %s14
      %p158 = scmp.lt.s32.totalorder %s157, 15
      %s159 = scalar_select %p158, %s157, 15
      %s160 = smul.addr %s159, 8
      %s161 = scalar_lea.vmem %s3, %s160
      %s162 = smul.u32 8, %s14
      %p163 = scmp.lt.s32.totalorder %s162, 15
      %s164 = scalar_select %p163, %s162, 15
      %s165 = smul.addr %s164, 4
      %s166 = scalar_lea.vmem %s0, %s165
      %s167 = smul.u32 8, %s14
      %s168 = smul.u32 8, %s14
      %p169 = scmp.lt.s32.totalorder %s168, 15
      %s170 = scalar_select %p169, %s168, 15
      %s171 = smul.addr %s170, 8
      %s172 = scalar_lea.vmem %s3, %s171
      %s173 = smul.u32 8, %s14
      %v174 = vld [vmem:[%s166] sm:$0xf]
      %v175 = vld [vmem:[%s166 + $0x4] sm:$0xf]
      %v176 = vld [vmem:[%s166 + $0x8] sm:$0xf]
      %v177 = vld [vmem:[%s166 + $0xc] sm:$0xf]
      %v178 = vld [vmem:[%s166 + $0x10] sm:$0xf]
      %v179 = vld [vmem:[%s166 + $0x14] sm:$0xf]
      %v180 = vld [vmem:[%s166 + $0x18] sm:$0xf]
      %v181 = vld [vmem:[%s166 + $0x1c] sm:$0xf]
      %v182 = vld [vmem:[%s1] sm:$0xf]
      %v183 = vld [vmem:[%s1 + $0x4] sm:$0xf]
      %v184 = vld [vmem:[%s1 + $0x8] sm:$0xf]
      %v185 = vld [vmem:[%s1 + $0xc] sm:$0xf]
      %v186 = vld [vmem:[%s1 + $0x10] sm:$0xf]
      %v187 = vld [vmem:[%s1 + $0x14] sm:$0xf]
      %v188 = vld [vmem:[%s1 + $0x18] sm:$0xf]
      %v189 = vld [vmem:[%s1 + $0x1c] sm:$0xf]
      %v190 = vld [vmem:[%s1 + $0x20] sm:$0xf]
      %v191 = vld [vmem:[%s1 + $0x24] sm:$0xf]
      %v192 = vld [vmem:[%s1 + $0x28] sm:$0xf]
      %v193 = vld [vmem:[%s1 + $0x2c] sm:$0xf]
      %v194 = vld [vmem:[%s1 + $0x30] sm:$0xf]
      %v195 = vld [vmem:[%s1 + $0x34] sm:$0xf]
      %v196 = vld [vmem:[%s1 + $0x38] sm:$0xf]
      %v197 = vld [vmem:[%s1 + $0x3c] sm:$0xf]
      %v198 = vld [vmem:[%s2] sm:$0x1]
      %v200 = vperm.slane %v198, 0
      %v210 = vunpack.c.l.b16 %v174
      %v211 = vunpack.c.l.b16 %v175
      %v212 = vunpack.c.l.b16 %v176
      %v213 = vunpack.c.l.b16 %v177
      %v214 = vunpack.c.l.b16 %v178
      %v215 = vunpack.c.l.b16 %v179
      %v216 = vunpack.c.l.b16 %v180
      %v217 = vunpack.c.l.b16 %v181
      %v218 = vpack.c.b16 %v211, %v210
      %v219 = vpack.c.b16 %v213, %v212
      %v220 = vpack.c.b16 %v215, %v214
      %v221 = vpack.c.b16 %v217, %v216
      %v242 = vunpack.c.l.b16 %v182
      %v243 = vunpack.c.l.b16 %v183
      %v244 = vunpack.c.l.b16 %v184
      %v245 = vunpack.c.l.b16 %v185
      %v246 = vunpack.c.l.b16 %v186
      %v247 = vunpack.c.l.b16 %v187
      %v248 = vunpack.c.l.b16 %v188
      %v249 = vunpack.c.l.b16 %v189
      %v250 = vunpack.c.l.b16 %v190
      %v251 = vunpack.c.l.b16 %v191
      %v252 = vunpack.c.l.b16 %v192
      %v253 = vunpack.c.l.b16 %v193
      %v254 = vunpack.c.l.b16 %v194
      %v255 = vunpack.c.l.b16 %v195
      %v256 = vunpack.c.l.b16 %v196
      %v257 = vunpack.c.l.b16 %v197
      %v258 = vpack.c.b16 %v243, %v242
      %v259 = vpack.c.b16 %v245, %v244
      %v260 = vpack.c.b16 %v247, %v246
      %v261 = vpack.c.b16 %v249, %v248
      %v262 = vpack.c.b16 %v251, %v250
      %v263 = vpack.c.b16 %v253, %v252
      %v264 = vpack.c.b16 %v255, %v254
      %v265 = vpack.c.b16 %v257, %v256
      %274 = vmatpush.bf16.msra.mxu0 %v265
      %275 = vmatpush.bf16.msra.mxu0 %v264
      %276 = vmatpush.bf16.msra.mxu0 %v263
      %277 = vmatpush.bf16.msra.mxu0 %v262
      %278 = vmatpush.bf16.msra.mxu0 %v261
      %279 = vmatpush.bf16.msra.mxu0 %v260
      %280 = vmatpush.bf16.msra.mxu0 %v259
      %281 = vmatpush.bf16.msra.mxu0 %v258
      %282 = vmatmul.bf16.gmra.mxu0 %v218
      %v283 = vpop.f32.mrf.mxu0
      %v284 = vadd.f32 %v200, %v283
      %v285 = vpop.f32.mrf.mxu0
      %v286 = vadd.f32 %v200, %v285
      %287 = vmatmul.bf16.gmra.mxu0 %v219
      %v288 = vpop.f32.mrf.mxu0
      %v289 = vadd.f32 %v200, %v288
      %v290 = vpop.f32.mrf.mxu0
      %v291 = vadd.f32 %v200, %v290
      %292 = vmatmul.bf16.gmra.mxu0 %v220
      %v293 = vpop.f32.mrf.mxu0
      %v294 = vadd.f32 %v200, %v293
      %v295 = vpop.f32.mrf.mxu0
      %v296 = vadd.f32 %v200, %v295
      %297 = vmatmul.bf16.gmra.mxu0 %v221
      %v298 = vpop.f32.mrf.mxu0
      %v299 = vadd.f32 %v200, %v298
      %v300 = vpop.f32.mrf.mxu0
      %v301 = vadd.f32 %v200, %v300
      %302 = vdwg.mxu0
      %303 = vst [vmem:[%s172] sm:$0xff] %v284
      %304 = vst [vmem:[%s172 + $0x8] sm:$0xff] %v286
      %305 = vst [vmem:[%s172 + $0x10] sm:$0xff] %v289
      %306 = vst [vmem:[%s172 + $0x18] sm:$0xff] %v291
      %307 = vst [vmem:[%s172 + $0x20] sm:$0xff] %v294
      %308 = vst [vmem:[%s172 + $0x28] sm:$0xff] %v296
      %309 = vst [vmem:[%s172 + $0x30] sm:$0xff] %v299
      %310 = vst [vmem:[%s172 + $0x38] sm:$0xff] %v301
      %s311 = smul.u32 8, %s14
      %p312 = scmp.lt.s32.totalorder %s311, 15
      %s313 = scalar_select %p312, %s311, 15
      %s314 = smul.addr %s313, 8
      %s315 = scalar_lea.vmem %s3, %s314
      // Predicated region
      $region33: #{_lambda_.19} parent=31 // pred_check
        %p316 = pneg %p100
      $region34: #{_lambda_.19} parent=31 // pred_check_branch
        %318 = sbr.rel (%p316) target = $region36
      $region35: #{_lambda_.19} parent=31 // pred_region
        %s319 = smul.u32 8, %s14
      $region36: #{_lambda_.19} parent=31 // pred_fallthru
        _
    $region32: #{_lambda_.19} parent=5 // pred_fallthru
      _
    %p320 = scmp.le.s32.totalorder 2, %s9
    // Predicated region
    $region37: #{_lambda_.19} parent=5 // pred_check
      %p321 = pneg %p320
    $region38: #{_lambda_.19} parent=5 // pred_check_branch
      %323 = sbr.rel (%p321) target = $region40
    $region39: #{_lambda_.19} parent=5 // pred_region
      %s324 = ssub.s32 %s9, 2
      // Predicated region
      $region41: #{_lambda_.19} parent=39 // pred_check
        %p325 = pneg %p106
      $region42: #{_lambda_.19} parent=39 // pred_check_branch
        %327 = sbr.rel (%p325) target = $region44
      $region43: #{_lambda_.19} parent=39 // pred_region
        %s328 = smul.u32 8, %s15
        %p329 = scmp.lt.s32.totalorder %s328, 15
        %s330 = scalar_select %p329, %s328, 15
        %s331 = smul.addr %s330, 8
        %s332 = scalar_lea.vmem %s3, %s331
      $region44: #{_lambda_.19} parent=39 // pred_fallthru
        _
    $region40: #{_lambda_.19} parent=5 // pred_fallthru
      _
  $region6: #{_lambda_.19} parent=0 // loop_footer
    %s13 = sadd.s32 1, %s9
  $region7: #{_lambda_.19} parent=0 // loop_footer_branch
    %8 = sbr.rel target = $region3
  $region8: #{_lambda_.19} parent=0 // loop_exit
    _

</llo_original>
